<compile_context>
chip_gen: v5e
topology: v5e:2x2
jax: 0.10.0
libtpu: 0.0.40
codegen_flags: <defaults>
</compile_context>

<pallas_src>
import functools

import jax
import jax.numpy as jnp
from jax import lax
from jax.experimental import pallas as pl
from jax.experimental.pallas import tpu as pltpu


# ---------------------------------------------------------------------------
# Kernel
# ---------------------------------------------------------------------------
def cross_attention_kernel(x_ref, y_ref, wq_ref, wk_ref, wv_ref, wp_ref, bp_ref,
                           out_ref, k_sc, v_sc,
                           *, num_heads, q_tile, key_chunk, n_valid, c1, dim,
                           bf16_exp):
    """One (batch, q-tile) grid step of channel-major cross attention.

    x_ref:  (1, C1, Np)  channel-major x sequence (C1 = 2*dim)
    y_ref:  (1, dim, Np) channel-major y sequence
    wq_ref: (dim, C1)    bf16, softmax scale folded in
    wk_ref: (dim, C1)    bf16
    wv_ref: (dim, dim)   bf16
    wp_ref: (dim, dim)   bf16
    bp_ref: (dim, 1)     f32
    out_ref:(1, C1+dim, tq) -- rows [0,C1) = x passthrough, [C1,C1+dim) = attn
    k_sc / v_sc: (num_heads, head_dim, Np) bf16 VMEM scratch
    """
    qi = pl.program_id(1)
    n_pad = k_sc.shape[-1]
    hd = dim // num_heads
    exp_dtype = jnp.bfloat16 if bf16_exp else jnp.float32

    # -- per-batch K/V projection: computed once (qi == 0), head-split once,
    #    cached in 3-D VMEM scratch so later q-tiles never relayout it.
    @pl.when(qi == 0)
    def _():
        xs = x_ref[0].astype(jnp.bfloat16)                       # (C1, Np)
        ys = y_ref[0].astype(jnp.bfloat16)                       # (dim, Np)
        k2 = jnp.dot(wk_ref[...], xs, preferred_element_type=jnp.float32)
        v2 = jnp.dot(wv_ref[...], ys, preferred_element_type=jnp.float32)
        k_sc[...] = k2.reshape(num_heads, hd, n_pad).astype(jnp.bfloat16)
        v_sc[...] = v2.reshape(num_heads, hd, n_pad).astype(jnp.bfloat16)

    # -- per-q-tile Q projection straight from the resident x block (no q scratch).
    start = pl.multiple_of(qi * q_tile, q_tile)
    x_t = x_ref[0, :, pl.ds(start, q_tile)]                      # (C1, tq) f32
    q2 = jnp.dot(wq_ref[...], x_t.astype(jnp.bfloat16),
                 preferred_element_type=jnp.float32)             # (dim, tq), scaled
    q3 = q2.reshape(num_heads, hd, q_tile).astype(jnp.bfloat16)  # (h, hd, tq)

    def scores(k_blk):
        # s[h, q, k] = sum_d q3[h, d, q] * k_blk[h, d, k]
        return lax.dot_general(q3, k_blk, (((1,), (1,)), ((0,), (0,))),
                               preferred_element_type=jnp.float32)

    def pv(p_blk, v_blk):
        # o[h, d, q] = sum_k v_blk[h, d, k] * p_blk[h, q, k]
        return lax.dot_general(v_blk, p_blk, (((2,), (2,)), ((0,), (0,))),
                               preferred_element_type=jnp.float32)

    # Additive key mask for padded token columns (static branch: only traced
    # when N was padded up to a lane multiple).
    if n_valid < n_pad:
        key_pos = lax.broadcasted_iota(jnp.int32, (1, 1, n_pad), 2)
        key_bias = jnp.where(key_pos < n_valid, 0.0, -1e30).astype(jnp.float32)
    else:
        key_bias = None

    n_kc = n_pad // key_chunk
    if n_kc == 1:
        # Full-N scores fit the budget: single-pass softmax.
        s = scores(k_sc[...])                                    # (h, tq, Np) f32
        if key_bias is not None:
            s = s + key_bias
        m = jnp.max(s, axis=-1, keepdims=True)                   # f32 row max
        p = jnp.exp((s - m).astype(exp_dtype))                   # bf16 EUP on v6e/v7x
        l = jnp.sum(p, axis=-1, dtype=jnp.float32)               # (h, tq)
        o = pv(p.astype(jnp.bfloat16), v_sc[...])                # (h, hd, tq) f32
    else:
        # Online softmax over key chunks: live score memory bounded by (h, tq, kc).
        m = jnp.full((num_heads, q_tile, 1), -1e30, jnp.float32)
        l = jnp.zeros((num_heads, q_tile), jnp.float32)
        o = jnp.zeros((num_heads, hd, q_tile), jnp.float32)
        for c in range(n_kc):                                    # static, small
            lo, hi = c * key_chunk, (c + 1) * key_chunk
            s = scores(k_sc[:, :, lo:hi])                        # (h, tq, kc) f32
            if key_bias is not None:
                s = s + key_bias[:, :, lo:hi]
            m_new = jnp.maximum(m, jnp.max(s, axis=-1, keepdims=True))
            alpha = jnp.exp(m - m_new)[:, :, 0]                  # (h, tq) f32
            p = jnp.exp((s - m_new).astype(exp_dtype))
            l = alpha * l + jnp.sum(p, axis=-1, dtype=jnp.float32)
            o = alpha[:, None, :] * o + pv(p.astype(jnp.bfloat16),
                                           v_sc[:, :, lo:hi])
            m = m_new

    # Deferred softmax normalization (EUP approx reciprocal, O(h*hd*tq) muls).
    o = o * pl.reciprocal(l, approx=True)[:, None, :]
    o = o.reshape(dim, q_tile)

    proj = jnp.dot(wp_ref[...], o.astype(jnp.bfloat16),
                   preferred_element_type=jnp.float32) + bp_ref[...]   # (dim, tq)

    # Fused channel-concat, lane-dense output (sequence on lanes).
    out_ref[0, 0:c1, :] = x_t.astype(out_ref.dtype)
    out_ref[0, c1:c1 + dim, :] = proj.astype(out_ref.dtype)


# ---------------------------------------------------------------------------
# Tiling / generation heuristics
# ---------------------------------------------------------------------------
def _device_traits():
    """(is_v7x, bf16_exp_ok) derived from the local TPU generation."""
    try:
        kind = jax.devices()[0].device_kind.lower()
    except Exception:
        kind = ""
    is_v7x = "v7" in kind
    old_gen = any(g in kind for g in ("v2", "v3", "v4", "v5"))   # no bf16 EUP/VPU
    return is_v7x, not old_gen


def _choose_tiling(n_tokens, num_heads, score_budget_bytes, bf16_exp):
    """Pick (padded N, q tile, key chunk); all lane-dense multiples of 128."""
    lane = 128
    n_pad = -(-n_tokens // lane) * lane
    m = n_pad // lane
    per_elem = 6 if bf16_exp else 10   # live bytes per score element (s + p [+ cast])

    def fits(tq, kc):
        return num_heads * tq * kc * per_elem <= score_budget_bytes

    # Largest q tile (divisor of n_pad) whose full-N score block fits the budget.
    for d in range(m, 0, -1):
        if m % d == 0 and fits(d * lane, n_pad):
            return n_pad, d * lane, n_pad
    # Full-N scores do not fit even at tq=128: tile the key axis too.
    for d in range(m, 0, -1):
        if m % d == 0 and fits(lane, d * lane):
            return n_pad, lane, d * lane
    return n_pad, lane, lane


def _vmem_limit_bytes(c1, dim, n_pad, tq, kc, num_heads, bf16_exp, is_v7x):
    per_elem = 6 if bf16_exp else 10
    est = (
        2 * (c1 + dim) * n_pad * 4                       # double-buffered x/y blocks
        + 2 * (c1 + dim) * tq * 4                        # double-buffered output block
        + 2 * (2 * dim * c1 + 2 * dim * dim + dim) * 2   # weights (<= 2 buffers, bf16)
        + 2 * dim * n_pad * 2                            # K/V scratch (bf16)
        + num_heads * tq * kc * per_elem                 # live softmax temporaries
        + 2 * dim * max(tq, n_pad) * 4                   # projection temporaries
    )
    cap = (48 << 20) if is_v7x else (100 << 20)
    return int(min(max(2 * est + (8 << 20), 32 << 20), cap))


# ---------------------------------------------------------------------------
# Wrapper
# ---------------------------------------------------------------------------
def cross_attention(x, y, params, num_heads, *, q_tile=None, key_chunk=None):
    """x: (B, 2*dim, H, W), y: (B, dim, H, W) -> (B, 3*dim, H, W)."""
    B, C1, H, W = x.shape
    _, dim, H2, W2 = y.shape
    N = H * W
    assert H2 * W2 == N, "attention requires matching token counts"
    assert C1 == 2 * dim
    assert dim % num_heads == 0
    hd = dim // num_heads
    scale = hd ** (-0.5)

    is_v7x, bf16_exp = _device_traits()
    score_budget = (10 << 20) if is_v7x else (24 << 20)
    n_pad, tq, kc = _choose_tiling(N, num_heads, score_budget, bf16_exp)
    if q_tile is not None:
        tq = q_tile
    if key_chunk is not None:
        kc = key_chunk
    assert tq % 128 == 0 and kc % 128 == 0
    assert n_pad % tq == 0 and n_pad % kc == 0

    # Channel-major sequences: pure reshape; pad ragged N up to a lane multiple.
    xs = x.reshape(B, C1, N)
    ys = y.reshape(B, dim, N)
    if n_pad != N:
        xs = jnp.pad(xs, ((0, 0), (0, 0), (0, n_pad - N)))
        ys = jnp.pad(ys, ((0, 0), (0, 0), (0, n_pad - N)))

    # bf16 MXU operands; softmax scale folded into Wq (no in-kernel scale pass).
    wq = (params["wq"] * scale).astype(jnp.bfloat16)
    wk = params["wk"].astype(jnp.bfloat16)
    wv = params["wv"].astype(jnp.bfloat16)
    wp = params["wp"].astype(jnp.bfloat16)
    bp = params["bp"].reshape(dim, 1).astype(jnp.float32)

    # Single-buffer weights only at large dims (VMEM win that matters on v7x);
    # their constant index maps already skip re-DMA either way.
    if dim >= 256:
        def wspec(shape):
            return pl.BlockSpec(shape, lambda b, qi: (0, 0),
                                pipeline_mode=pl.Buffered(1))
    else:
        def wspec(shape):
            return pl.BlockSpec(shape, lambda b, qi: (0, 0))

    kernel = functools.partial(
        cross_attention_kernel, num_heads=num_heads, q_tile=tq, key_chunk=kc,
        n_valid=N, c1=C1, dim=dim, bf16_exp=bf16_exp)

    out = pl.pallas_call(
        kernel,
        out_shape=jax.ShapeDtypeStruct((B, C1 + dim, n_pad), x.dtype),
        grid_spec=pltpu.PrefetchScalarGridSpec(
            num_scalar_prefetch=0,
            grid=(B, n_pad // tq),
            in_specs=[
                pl.BlockSpec((1, C1, n_pad), lambda b, qi: (b, 0, 0)),   # x (ch-major)
                pl.BlockSpec((1, dim, n_pad), lambda b, qi: (b, 0, 0)),  # y (ch-major)
                wspec((dim, C1)),     # Wq (scaled)
                wspec((dim, C1)),     # Wk
                wspec((dim, dim)),    # Wv
                wspec((dim, dim)),    # Wproj
                wspec((dim, 1)),      # bproj
            ],
            out_specs=pl.BlockSpec((1, C1 + dim, tq), lambda b, qi: (b, 0, qi)),
            scratch_shapes=[
                pltpu.VMEM((num_heads, hd, n_pad), jnp.bfloat16),  # K, head-split
                pltpu.VMEM((num_heads, hd, n_pad), jnp.bfloat16),  # V, head-split
            ],
        ),
        compiler_params=pltpu.CompilerParams(
            dimension_semantics=("parallel", "arbitrary"),
            vmem_limit_bytes=_vmem_limit_bytes(C1, dim, n_pad, tq, kc, num_heads,
                                               bf16_exp, is_v7x),
        ),
    )(xs, ys, wq, wk, wv, wp, bp)

    if n_pad != N:
        out = out[:, :, :N]
    return out.reshape(B, C1 + dim, H, W)


# ---------------------------------------------------------------------------
# Pure-JAX f32 reference (mirrors the PyTorch forward) and init
# ---------------------------------------------------------------------------
def reference(x, y, params, num_heads):
    B, C1, H, W = x.shape
    dim = y.shape[1]
    N = H * W
    hd = dim // num_heads
    scale = hd ** (-0.5)
    xs = x.reshape(B, C1, N).transpose(0, 2, 1)
    ys = y.reshape(B, dim, -1).transpose(0, 2, 1)
    q = (xs @ params["wq"].T).reshape(B, N, num_heads, hd).transpose(0, 2, 1, 3)
    k = (xs @ params["wk"].T).reshape(B, N, num_heads, hd).transpose(0, 2, 1, 3)
    v = (ys @ params["wv"].T).reshape(B, -1, num_heads, hd).transpose(0, 2, 1, 3)
    attn = jax.nn.softmax((q @ jnp.swapaxes(k, -2, -1)) * scale, axis=-1)
    o = (attn @ v).transpose(0, 2, 1, 3).reshape(B, N, dim)
    o = o @ params["wp"].T + params["bp"]
    x_att = o.transpose(0, 2, 1).reshape(B, dim, H, W)
    return jnp.concatenate([x, x_att], axis=1)


def init_params(key, dim):
    """trunc_normal(std=0.02) weights in torch (out, in) layout; zero proj bias;
    qkv_bias=False."""
    ks = jax.random.split(key, 4)

    def tn(k, shape):
        return jax.random.truncated_normal(k, -2.0, 2.0, shape, jnp.float32) * 0.02

    return {
        "wq": tn(ks[0], (dim, 2 * dim)),
        "wk": tn(ks[1], (dim, 2 * dim)),
        "wv": tn(ks[2], (dim, dim)),
        "wp": tn(ks[3], (dim, dim)),
        "bp": jnp.zeros((dim,), jnp.float32),
    }


if __name__ == "__main__":
    key = jax.random.PRNGKey(0)
    kx, ky, kp, kx2, ky2 = jax.random.split(key, 5)

    # Main config: N = 256 tokens -> single q-tile per batch element; head_dim = 8.
    B, dim, num_heads, H, W = 2, 64, 8, 16, 16
    x = jax.random.normal(kx, (B, 2 * dim, H, W), jnp.float32)   # (2, 128, 16, 16)
    y = jax.random.normal(ky, (B, dim, H, W), jnp.float32)       # (2, 64, 16, 16)
    params = init_params(kp, dim)

    out = cross_attention(x, y, params, num_heads)
    jax.block_until_ready(out)
    assert out.shape == (B, 3 * dim, H, W), out.shape
    ref = reference(x, y, params, num_heads)
    # bf16 MXU operands + (bf16) exp + approx reciprocal -> loosened tolerance.
    err = float(jnp.max(jnp.abs(out - ref)))
    assert err < 1e-2, err

    # Secondary config: ragged N (144 -> padded to 256) exercising the key-mask,
    # multi-q-tile and online (key-chunked) softmax paths.
    H2 = W2 = 12
    x2 = jax.random.normal(kx2, (B, 2 * dim, H2, W2), jnp.float32)
    y2 = jax.random.normal(ky2, (B, dim, H2, W2), jnp.float32)
    out2 = cross_attention(x2, y2, params, num_heads, q_tile=128, key_chunk=128)
    jax.block_until_ready(out2)
    ref2 = reference(x2, y2, params, num_heads)
    err2 = float(jnp.max(jnp.abs(out2 - ref2)))
    assert out2.shape == (B, 3 * dim, H2, W2), out2.shape
    assert err2 < 1e-2, err2

    print("KERNEL_OK")
</pallas_src>

<mosaic_0001>
module attributes {stable_mosaic.version = 11 : i64} {
  func.func @cross_attention_kernel(%arg0: i32, %arg1: i32, %arg2: memref<1x128x256xf32, #tpu.memory_space<vmem>>, %arg3: memref<1x64x256xf32, #tpu.memory_space<vmem>>, %arg4: memref<64x128xbf16, #tpu.memory_space<vmem>>, %arg5: memref<64x128xbf16, #tpu.memory_space<vmem>>, %arg6: memref<64x64xbf16, #tpu.memory_space<vmem>>, %arg7: memref<64x64xbf16, #tpu.memory_space<vmem>>, %arg8: memref<64x1xf32, #tpu.memory_space<vmem>>, %arg9: memref<1x192x256xf32, #tpu.memory_space<vmem>>, %arg10: memref<8x8x256xbf16, #tpu.memory_space<vmem>>, %arg11: memref<8x8x256xbf16, #tpu.memory_space<vmem>>) attributes {dimension_semantics = [#tpu.dimension_semantics<parallel>, #tpu.dimension_semantics<arbitrary>], iteration_bounds = array<i64: 2, 1>, scalar_prefetch = 0 : i64, scratch_operands = 2 : i64, tpu.core_type = #tpu.core_type<tc>, window_params = [{transform_indices = @transform_0, window_bounds = array<i64: 1, 128, 256>}, {transform_indices = @transform_1, window_bounds = array<i64: 1, 64, 256>}, {pipeline_mode = #tpu.pipeline_mode<synchronous>, transform_indices = @transform_2, window_bounds = array<i64: 64, 128>}, {pipeline_mode = #tpu.pipeline_mode<synchronous>, transform_indices = @transform_3, window_bounds = array<i64: 64, 128>}, {pipeline_mode = #tpu.pipeline_mode<synchronous>, transform_indices = @transform_4, window_bounds = array<i64: 64, 64>}, {pipeline_mode = #tpu.pipeline_mode<synchronous>, transform_indices = @transform_5, window_bounds = array<i64: 64, 64>}, {pipeline_mode = #tpu.pipeline_mode<synchronous>, transform_indices = @transform_6, window_bounds = array<i64: 64, 1>}, {transform_indices = @transform_7, window_bounds = array<i64: 1, 192, 256>}]} {
    %c0_i32 = arith.constant 0 : i32
    %0 = arith.cmpi eq, %arg1, %c0_i32 : i32
    %1 = arith.extui %0 : i1 to i32
    %c0_i32_0 = arith.constant 0 : i32
    %2 = arith.cmpi ne, %1, %c0_i32_0 : i32
    scf.if %2 {
      %c0_24 = arith.constant 0 : index
      %c0_25 = arith.constant 0 : index
      %c0_26 = arith.constant 0 : index
      %42 = vector.load %arg2[%c0_24, %c0_25, %c0_26] : memref<1x128x256xf32, #tpu.memory_space<vmem>>, vector<1x128x256xf32>
      %43 = vector.shape_cast %42 : vector<1x128x256xf32> to vector<128x256xf32>
      %44 = arith.truncf %43 : vector<128x256xf32> to vector<128x256xbf16>
      %c0_27 = arith.constant 0 : index
      %c0_28 = arith.constant 0 : index
      %c0_29 = arith.constant 0 : index
      %45 = vector.load %arg3[%c0_27, %c0_28, %c0_29] : memref<1x64x256xf32, #tpu.memory_space<vmem>>, vector<1x64x256xf32>
      %46 = vector.shape_cast %45 : vector<1x64x256xf32> to vector<64x256xf32>
      %47 = arith.truncf %46 : vector<64x256xf32> to vector<64x256xbf16>
      %c0_30 = arith.constant 0 : index
      %c0_31 = arith.constant 0 : index
      %48 = vector.load %arg5[%c0_30, %c0_31] : memref<64x128xbf16, #tpu.memory_space<vmem>>, vector<64x128xbf16>
      %cst_32 = arith.constant dense<0.000000e+00> : vector<64x256xf32>
      %49 = tpu.matmul %48, %44, %cst_32 {dimension_numbers = #tpu.dot_dimension_numbers<[1], [0], [0], [1], [0, 0, 1, 1], [], []>} : vector<64x128xbf16>, vector<128x256xbf16>, vector<64x256xf32> -> vector<64x256xf32>
      %c0_33 = arith.constant 0 : index
      %c0_34 = arith.constant 0 : index
      %50 = vector.load %arg6[%c0_33, %c0_34] : memref<64x64xbf16, #tpu.memory_space<vmem>>, vector<64x64xbf16>
      %cst_35 = arith.constant dense<0.000000e+00> : vector<64x256xf32>
      %51 = tpu.matmul %50, %47, %cst_35 {dimension_numbers = #tpu.dot_dimension_numbers<[1], [0], [0], [1], [0, 0, 1, 1], [], []>} : vector<64x64xbf16>, vector<64x256xbf16>, vector<64x256xf32> -> vector<64x256xf32>
      %52 = vector.shape_cast %49 : vector<64x256xf32> to vector<8x8x256xf32>
      %53 = arith.truncf %52 : vector<8x8x256xf32> to vector<8x8x256xbf16>
      %c0_36 = arith.constant 0 : index
      %c0_37 = arith.constant 0 : index
      %c0_38 = arith.constant 0 : index
      %54 = vector.load %arg10[%c0_36, %c0_37, %c0_38] : memref<8x8x256xbf16, #tpu.memory_space<vmem>>, vector<8x8x256xbf16>
      tpu.vector_store %arg10[%c0_36, %c0_37, %c0_38], %53 {strides = array<i32>} : memref<8x8x256xbf16, #tpu.memory_space<vmem>>, vector<8x8x256xbf16>,
      %55 = vector.shape_cast %51 : vector<64x256xf32> to vector<8x8x256xf32>
      %56 = arith.truncf %55 : vector<8x8x256xf32> to vector<8x8x256xbf16>
      %c0_39 = arith.constant 0 : index
      %c0_40 = arith.constant 0 : index
      %c0_41 = arith.constant 0 : index
      %57 = vector.load %arg11[%c0_39, %c0_40, %c0_41] : memref<8x8x256xbf16, #tpu.memory_space<vmem>>, vector<8x8x256xbf16>
      tpu.vector_store %arg11[%c0_39, %c0_40, %c0_41], %56 {strides = array<i32>} : memref<8x8x256xbf16, #tpu.memory_space<vmem>>, vector<8x8x256xbf16>,
    } else {
    }
    %c256_i32 = arith.constant 256 : i32
    %3 = arith.muli %arg1, %c256_i32 : i32
    %4 = tpu.assume_multiple %3, 256 : i32
    %c0 = arith.constant 0 : index
    %c0_1 = arith.constant 0 : index
    %5 = arith.index_cast %4 : i32 to index
    %6 = vector.load %arg2[%c0, %c0_1, %5] : memref<1x128x256xf32, #tpu.memory_space<vmem>>, vector<1x128x256xf32>
    %7 = vector.shape_cast %6 : vector<1x128x256xf32> to vector<128x256xf32>
    %c0_2 = arith.constant 0 : index
    %c0_3 = arith.constant 0 : index
    %8 = vector.load %arg4[%c0_2, %c0_3] : memref<64x128xbf16, #tpu.memory_space<vmem>>, vector<64x128xbf16>
    %9 = arith.truncf %7 : vector<128x256xf32> to vector<128x256xbf16>
    %cst = arith.constant dense<0.000000e+00> : vector<64x256xf32>
    %10 = tpu.matmul %8, %9, %cst {dimension_numbers = #tpu.dot_dimension_numbers<[1], [0], [0], [1], [0, 0, 1, 1], [], []>} : vector<64x128xbf16>, vector<128x256xbf16>, vector<64x256xf32> -> vector<64x256xf32>
    %11 = vector.shape_cast %10 : vector<64x256xf32> to vector<8x8x256xf32>
    %12 = arith.truncf %11 : vector<8x8x256xf32> to vector<8x8x256xbf16>
    %c0_4 = arith.constant 0 : index
    %c0_5 = arith.constant 0 : index
    %c0_6 = arith.constant 0 : index
    %13 = vector.load %arg10[%c0_4, %c0_5, %c0_6] : memref<8x8x256xbf16, #tpu.memory_space<vmem>>, vector<8x8x256xbf16>
    %cst_7 = arith.constant dense<0.000000e+00> : vector<8x256x256xf32>
    %14 = tpu.matmul %12, %13, %cst_7 {dimension_numbers = #tpu.dot_dimension_numbers<[1], [1], [2], [2], [0, 0, 0, 2, 1, 2], [0], [0]>} : vector<8x8x256xbf16>, vector<8x8x256xbf16>, vector<8x256x256xf32> -> vector<8x256x256xf32>
    %cst_8 = arith.constant dense<0xFF800000> : vector<8x256xf32>
    %15 = vector.multi_reduction <maximumf>, %14, %cst_8 [2] : vector<8x256x256xf32> to vector<8x256xf32>
    %16 = vector.shape_cast %15 : vector<8x256xf32> to vector<8x256x1xf32>
    %17 = vector.broadcast %16 : vector<8x256x1xf32> to vector<8x256x256xf32>
    %18 = arith.subf %14, %17 : vector<8x256x256xf32>
    %19 = arith.truncf %18 : vector<8x256x256xf32> to vector<8x256x256xbf16>
    %20 = math.exp %19 : vector<8x256x256xbf16>
    %21 = arith.extf %20 : vector<8x256x256xbf16> to vector<8x256x256xf32>
    %cst_9 = arith.constant dense<0.000000e+00> : vector<8x256xf32>
    %22 = vector.multi_reduction <add>, %21, %cst_9 [2] : vector<8x256x256xf32> to vector<8x256xf32>
    %c0_10 = arith.constant 0 : index
    %c0_11 = arith.constant 0 : index
    %c0_12 = arith.constant 0 : index
    %23 = vector.load %arg11[%c0_10, %c0_11, %c0_12] : memref<8x8x256xbf16, #tpu.memory_space<vmem>>, vector<8x8x256xbf16>
    %cst_13 = arith.constant dense<0.000000e+00> : vector<8x8x256xf32>
    %24 = tpu.matmul %23, %20, %cst_13 {dimension_numbers = #tpu.dot_dimension_numbers<[2], [2], [1], [1], [0, 0, 0, 1, 1, 1], [0], [0]>} : vector<8x8x256xbf16>, vector<8x256x256xbf16>, vector<8x8x256xf32> -> vector<8x8x256xf32>
    %25 = tpu.reciprocal %22 {approx = true} : vector<8x256xf32> -> vector<8x256xf32>
    %26 = vector.shape_cast %25 : vector<8x256xf32> to vector<8x1x256xf32>
    %27 = vector.broadcast %26 : vector<8x1x256xf32> to vector<8x8x256xf32>
    %28 = arith.mulf %24, %27 : vector<8x8x256xf32>
    %29 = vector.shape_cast %28 : vector<8x8x256xf32> to vector<64x256xf32>
    %c0_14 = arith.constant 0 : index
    %c0_15 = arith.constant 0 : index
    %30 = vector.load %arg7[%c0_14, %c0_15] : memref<64x64xbf16, #tpu.memory_space<vmem>>, vector<64x64xbf16>
    %31 = arith.truncf %29 : vector<64x256xf32> to vector<64x256xbf16>
    %cst_16 = arith.constant dense<0.000000e+00> : vector<64x256xf32>
    %32 = tpu.matmul %30, %31, %cst_16 {dimension_numbers = #tpu.dot_dimension_numbers<[1], [0], [0], [1], [0, 0, 1, 1], [], []>} : vector<64x64xbf16>, vector<64x256xbf16>, vector<64x256xf32> -> vector<64x256xf32>
    %c0_17 = arith.constant 0 : index
    %c0_18 = arith.constant 0 : index
    %33 = vector.load %arg8[%c0_17, %c0_18] : memref<64x1xf32, #tpu.memory_space<vmem>>, vector<64x1xf32>
    %34 = vector.broadcast %33 : vector<64x1xf32> to vector<64x256xf32>
    %35 = arith.addf %32, %34 : vector<64x256xf32>
    %c0_19 = arith.constant 0 : index
    %c0_20 = arith.constant 0 : index
    %c0_21 = arith.constant 0 : index
    %36 = vector.load %arg9[%c0_19, %c0_20, %c0_21] : memref<1x192x256xf32, #tpu.memory_space<vmem>>, vector<1x128x256xf32>
    %37 = vector.shape_cast %36 : vector<1x128x256xf32> to vector<128x256xf32>
    %38 = vector.shape_cast %7 : vector<128x256xf32> to vector<1x128x256xf32>
    tpu.vector_store %arg9[%c0_19, %c0_20, %c0_21], %38 {strides = array<i32>} : memref<1x192x256xf32, #tpu.memory_space<vmem>>, vector<1x128x256xf32>,
    %c0_22 = arith.constant 0 : index
    %c128 = arith.constant 128 : index
    %c0_23 = arith.constant 0 : index
    %39 = vector.load %arg9[%c0_22, %c128, %c0_23] : memref<1x192x256xf32, #tpu.memory_space<vmem>>, vector<1x64x256xf32>
    %40 = vector.shape_cast %39 : vector<1x64x256xf32> to vector<64x256xf32>
    %41 = vector.shape_cast %35 : vector<64x256xf32> to vector<1x64x256xf32>
    tpu.vector_store %arg9[%c0_22, %c128, %c0_23], %41 {strides = array<i32>} : memref<1x192x256xf32, #tpu.memory_space<vmem>>, vector<1x64x256xf32>,
    return
  }
  func.func @transform_0(%arg0: i32, %arg1: i32) -> (i32, i32, i32) {
    %c0_i32 = arith.constant 0 : i32
    %c0_i32_0 = arith.constant 0 : i32
    %c0_i32_1 = arith.constant 0 : i32
    return %arg0, %c0_i32, %c0_i32_0 : i32, i32, i32
  }
  func.func @transform_1(%arg0: i32, %arg1: i32) -> (i32, i32, i32) {
    %c0_i32 = arith.constant 0 : i32
    %c0_i32_0 = arith.constant 0 : i32
    %c0_i32_1 = arith.constant 0 : i32
    return %arg0, %c0_i32, %c0_i32_0 : i32, i32, i32
  }
  func.func @transform_2(%arg0: i32, %arg1: i32) -> (i32, i32) {
    %c0_i32 = arith.constant 0 : i32
    %c0_i32_0 = arith.constant 0 : i32
    %c0_i32_1 = arith.constant 0 : i32
    return %c0_i32, %c0_i32_0 : i32, i32
  }
  func.func @transform_3(%arg0: i32, %arg1: i32) -> (i32, i32) {
    %c0_i32 = arith.constant 0 : i32
    %c0_i32_0 = arith.constant 0 : i32
    %c0_i32_1 = arith.constant 0 : i32
    return %c0_i32, %c0_i32_0 : i32, i32
  }
  func.func @transform_4(%arg0: i32, %arg1: i32) -> (i32, i32) {
    %c0_i32 = arith.constant 0 : i32
    %c0_i32_0 = arith.constant 0 : i32
    %c0_i32_1 = arith.constant 0 : i32
    return %c0_i32, %c0_i32_0 : i32, i32
  }
  func.func @transform_5(%arg0: i32, %arg1: i32) -> (i32, i32) {
    %c0_i32 = arith.constant 0 : i32
    %c0_i32_0 = arith.constant 0 : i32
    %c0_i32_1 = arith.constant 0 : i32
    return %c0_i32, %c0_i32_0 : i32, i32
  }
  func.func @transform_6(%arg0: i32, %arg1: i32) -> (i32, i32) {
    %c0_i32 = arith.constant 0 : i32
    %c0_i32_0 = arith.constant 0 : i32
    %c0_i32_1 = arith.constant 0 : i32
    return %c0_i32, %c0_i32_0 : i32, i32
  }
  func.func @transform_7(%arg0: i32, %arg1: i32) -> (i32, i32, i32) {
    %c0_i32 = arith.constant 0 : i32
    %c0_i32_0 = arith.constant 0 : i32
    return %arg0, %c0_i32, %arg1 : i32, i32, i32
  }
}

</mosaic_0001>

<llo_original>
// kernel: tpu_custom_call.1
$region0: #{tpu_custom_call.1}
  #allocation0 [shape = 'u32[]', space=smem, size = 0x4, offset = 0x4, fixed_abs, tag = 'smem constant byte address 0x4 - core index']
  #allocation1 [shape = 'u32[72,128]{1,0:T(1,128)}', space=vmem, size = 0x9000, scoped, tag = 'internal scratch']
  #allocation2 [shape = 'bf16[8,8,256]{2,1,0:T(8,128)(2,1)}', space=vmem, size = 0x8000, scoped, tag = 'scratch operand']
  #allocation3 [shape = 'bf16[8,8,256]{2,1,0:T(8,128)(2,1)}', space=vmem, size = 0x8000, scoped, tag = 'scratch operand']
  %s0 = inlined_call_operand.hbm [shape: f32[2,128,256], index: 0, kind: input, shape index: {}]
  %s1 = inlined_call_operand.hbm [shape: f32[2,64,256], index: 1, kind: input, shape index: {}]
  %s2 = inlined_call_operand.vmem [shape: bf16[64,128], index: 2, kind: input, shape index: {}]
  %s3 = inlined_call_operand.vmem [shape: bf16[64,128], index: 3, kind: input, shape index: {}]
  %s4 = inlined_call_operand.hbm [shape: bf16[64,64], index: 4, kind: input, shape index: {}]
  %s5 = inlined_call_operand.hbm [shape: bf16[64,64], index: 5, kind: input, shape index: {}]
  %s6 = inlined_call_operand.vmem [shape: f32[64,1], index: 6, kind: input, shape index: {}]
  %s7 = inlined_call_operand.hbm [shape: f32[2,192,256], index: 7, kind: output, shape index: {}]
  %s8 = sld [smem:[#allocation0]]
  $region81: #{tpu_custom_call.1} parent=0
    _
  %s10 = ssub.s32 1, %s8
  %s11 = scalar_select 0, %s10, %s8
  $region1: #{tpu_custom_call.1} parent=0
    #allocation4 [shape = 'u8[262144]{0}', space=vmem, size = 0x40000, scoped, tag = 'input window, operand 0']
    #allocation5 [shape = 's32[2]{0}', space=sflag, size = 0x8, scoped, tag = 'scoped memory for tpu_custom_call.1']
    #allocation6 [shape = 's32[2]{0}', space=sflag, size = 0x8, scoped, tag = 'scoped memory for tpu_custom_call.1']
    #allocation7 [shape = 'u8[131072]{0}', space=vmem, size = 0x20000, scoped, tag = 'input window, operand 1']
    #allocation8 [shape = 's32[2]{0}', space=sflag, size = 0x8, scoped, tag = 'scoped memory for tpu_custom_call.1']
    #allocation9 [shape = 'u8[16384]{0}', space=vmem, size = 0x4000, scoped, tag = 'input window, operand 4, single buffered']
    #allocation10 [shape = 'u8[16384]{0}', space=vmem, size = 0x4000, scoped, tag = 'input window, operand 5, single buffered']
    #allocation11 [shape = 's32[1]{0}', space=sflag, size = 0x4, scoped, tag = 'scoped memory for tpu_custom_call.1']
    #allocation12 [shape = 'u8[393216]{0}', space=vmem, size = 0x60000, scoped, tag = 'output window, operand 0']
    %12 = vsyncpa [#allocation5], 0
    %s13 = scalar_lea.sflag [#allocation5], 1
    %14 = vsyncpa %s13, 0
    %15 = vsyncpa [#allocation8], 0
    %s16 = scalar_lea.sflag [#allocation8], 1
    %17 = vsyncpa %s16, 0
    %18 = vsyncpa [#allocation11], 0
    %19 = vsyncpa [#allocation6], 0
    %s20 = scalar_lea.sflag [#allocation6], 1
    %21 = vsyncpa %s20, 0
    loop: start=0, step=1, limit=4
    $region2: #{tpu_custom_call.1} parent=1 // loop_pre_header
      _
    $region3: #{tpu_custom_call.1} parent=1 // loop_header
      %s23 = sphi 0, %s27
      %p24 = scmp.ge.s32.totalorder %s23, 4
      %s30 = sphi 0, %s42
      %s31 = sphi 0, %s38
      %s32 = sphi 0, %s30
      %s33 = sphi 0, %s31
      %s34 = sphi 0, %s32
      %s35 = sphi 0, %s33
      %s45 = sphi 0, %s47
      %s48 = sphi 0, %s45
      %s49 = sphi 0, %s48
      %s65 = sphi 0, %s49
      %s71 = sphi 0, %s73
      %s74 = sphi 0, %s71
      %s75 = sphi 0, %s74
      %s91 = sphi 0, %s75
      %s95 = sphi 0, %s95
      %s97 = sphi 0, %s95
      %s98 = sphi 0, %s97
      %s112 = sphi 0, %s98
      %s116 = sphi 0, %s116
      %s118 = sphi 0, %s116
      %s119 = sphi 0, %s118
      %s133 = sphi 0, %s119
      %s137 = sphi 0, %s137
      %s139 = sphi 0, %s137
      %s140 = sphi 0, %s139
      %s154 = sphi 0, %s140
      %s158 = sphi 0, %s158
      %s160 = sphi 0, %s158
      %s161 = sphi 0, %s160
      %s175 = sphi 0, %s161
      %s179 = sphi 0, %s179
      %s181 = sphi 0, %s179
      %s182 = sphi 0, %s181
      %s196 = sphi 0, %s182
      %s204 = sphi 0, %s206
      %s207 = sphi 0, %s204
      %s208 = sphi 0, %s207
      %s224 = sphi 0, %s208
    $region4: #{tpu_custom_call.1} parent=1 // loop_header_branch
      %26 = sbr.rel (%p24) target = $region8
    $region5: #{tpu_custom_call.1} parent=1 // loop_body
      %s28 = ssub.s32 %s23, 1
      %s29 = ssub.s32 %s23, 2
      %s36 = sadd.s32 1, %s31
      %p37 = scmp.ge.s32.totalorder %s36, 1
      %s38 = scalar_select %p37, 0, %s36
      %s39 = sadd.s32 1, %s30
      %s40 = scalar_select %p37, %s39, %s30
      %p41 = scmp.ge.s32.totalorder %s40, 2
      %s42 = scalar_select %p41, 0, %s40
      %s43 = ssub.s32 %s30, %s42
      %p44 = scmp.eq.s32.totalorder %s43, 0
      %s46 = sadd.s32 %s45, 1
      %s47 = scalar_select %p44, %s45, %s46
      %p50 = pneg %p44
      %p51 = scmp.eq.s32.totalorder %s23, 1
      %p52 = por %p50, %p51
      %p53 = scmp.ne.s32.totalorder %s45, %s48
      %p54 = scmp.eq.s32.totalorder %s23, 0
      %p55 = por %p53, %p54
      %p56 = scmp.ne.s32.totalorder %s45, %s48
      %p57 = scmp.eq.s32.totalorder %s28, 1
      %p58 = por %p56, %p57
      %p59 = scmp.ne.s32.totalorder %s48, %s49
      %p60 = scmp.eq.s32.totalorder %s28, 0
      %p61 = por %p59, %p60
      %p62 = scmp.ne.s32.totalorder %s48, %s49
      %p63 = scmp.eq.s32.totalorder %s29, 1
      %p64 = por %p62, %p63
      %p66 = scmp.ne.s32.totalorder %s49, %s65
      %p67 = scmp.eq.s32.totalorder %s29, 0
      %p68 = por %p66, %p67
      %s69 = ssub.s32 %s30, %s42
      %p70 = scmp.eq.s32.totalorder %s69, 0
      %s72 = sadd.s32 %s71, 1
      %s73 = scalar_select %p70, %s71, %s72
      %p76 = pneg %p70
      %p77 = scmp.eq.s32.totalorder %s23, 1
      %p78 = por %p76, %p77
      %p79 = scmp.ne.s32.totalorder %s71, %s74
      %p80 = scmp.eq.s32.totalorder %s23, 0
      %p81 = por %p79, %p80
      %p82 = scmp.ne.s32.totalorder %s71, %s74
      %p83 = scmp.eq.s32.totalorder %s28, 1
      %p84 = por %p82, %p83
      %p85 = scmp.ne.s32.totalorder %s74, %s75
      %p86 = scmp.eq.s32.totalorder %s28, 0
      %p87 = por %p85, %p86
      %p88 = scmp.ne.s32.totalorder %s74, %s75
      %p89 = scmp.eq.s32.totalorder %s29, 1
      %p90 = por %p88, %p89
      %p92 = scmp.ne.s32.totalorder %s75, %s91
      %p93 = scmp.eq.s32.totalorder %s29, 0
      %p94 = por %p92, %p93
      %s96 = sadd.s32 %s95, 1
      %p99 = scmp.eq.s32.totalorder %s23, 1
      %p100 = scmp.ne.s32.totalorder %s95, %s97
      %p101 = scmp.eq.s32.totalorder %s23, 0
      %p102 = por %p100, %p101
      %p103 = scmp.ne.s32.totalorder %s95, %s97
      %p104 = scmp.eq.s32.totalorder %s28, 1
      %p105 = por %p103, %p104
      %p106 = scmp.ne.s32.totalorder %s97, %s98
      %p107 = scmp.eq.s32.totalorder %s28, 0
      %p108 = por %p106, %p107
      %p109 = scmp.ne.s32.totalorder %s97, %s98
      %p110 = scmp.eq.s32.totalorder %s29, 1
      %p111 = por %p109, %p110
      %p113 = scmp.ne.s32.totalorder %s98, %s112
      %p114 = scmp.eq.s32.totalorder %s29, 0
      %p115 = por %p113, %p114
      %s117 = sadd.s32 %s116, 1
      %p120 = scmp.eq.s32.totalorder %s23, 1
      %p121 = scmp.ne.s32.totalorder %s116, %s118
      %p122 = scmp.eq.s32.totalorder %s23, 0
      %p123 = por %p121, %p122
      %p124 = scmp.ne.s32.totalorder %s116, %s118
      %p125 = scmp.eq.s32.totalorder %s28, 1
      %p126 = por %p124, %p125
      %p127 = scmp.ne.s32.totalorder %s118, %s119
      %p128 = scmp.eq.s32.totalorder %s28, 0
      %p129 = por %p127, %p128
      %p130 = scmp.ne.s32.totalorder %s118, %s119
      %p131 = scmp.eq.s32.totalorder %s29, 1
      %p132 = por %p130, %p131
      %p134 = scmp.ne.s32.totalorder %s119, %s133
      %p135 = scmp.eq.s32.totalorder %s29, 0
      %p136 = por %p134, %p135
      %s138 = sadd.s32 %s137, 1
      %p141 = scmp.eq.s32.totalorder %s23, 1
      %p142 = scmp.ne.s32.totalorder %s137, %s139
      %p143 = scmp.eq.s32.totalorder %s23, 0
      %p144 = por %p142, %p143
      %p145 = scmp.ne.s32.totalorder %s137, %s139
      %p146 = scmp.eq.s32.totalorder %s28, 1
      %p147 = por %p145, %p146
      %p148 = scmp.ne.s32.totalorder %s139, %s140
      %p149 = scmp.eq.s32.totalorder %s28, 0
      %p150 = por %p148, %p149
      %p151 = scmp.ne.s32.totalorder %s139, %s140
      %p152 = scmp.eq.s32.totalorder %s29, 1
      %p153 = por %p151, %p152
      %p155 = scmp.ne.s32.totalorder %s140, %s154
      %p156 = scmp.eq.s32.totalorder %s29, 0
      %p157 = por %p155, %p156
      %s159 = sadd.s32 %s158, 1
      %p162 = scmp.eq.s32.totalorder %s23, 1
      %p163 = scmp.ne.s32.totalorder %s158, %s160
      %p164 = scmp.eq.s32.totalorder %s23, 0
      %p165 = por %p163, %p164
      %p166 = scmp.ne.s32.totalorder %s158, %s160
      %p167 = scmp.eq.s32.totalorder %s28, 1
      %p168 = por %p166, %p167
      %p169 = scmp.ne.s32.totalorder %s160, %s161
      %p170 = scmp.eq.s32.totalorder %s28, 0
      %p171 = por %p169, %p170
      %p172 = scmp.ne.s32.totalorder %s160, %s161
      %p173 = scmp.eq.s32.totalorder %s29, 1
      %p174 = por %p172, %p173
      %p176 = scmp.ne.s32.totalorder %s161, %s175
      %p177 = scmp.eq.s32.totalorder %s29, 0
      %p178 = por %p176, %p177
      %s180 = sadd.s32 %s179, 1
      %p183 = scmp.eq.s32.totalorder %s23, 1
      %p184 = scmp.ne.s32.totalorder %s179, %s181
      %p185 = scmp.eq.s32.totalorder %s23, 0
      %p186 = por %p184, %p185
      %p187 = scmp.ne.s32.totalorder %s179, %s181
      %p188 = scmp.eq.s32.totalorder %s28, 1
      %p189 = por %p187, %p188
      %p190 = scmp.ne.s32.totalorder %s181, %s182
      %p191 = scmp.eq.s32.totalorder %s28, 0
      %p192 = por %p190, %p191
      %p193 = scmp.ne.s32.totalorder %s181, %s182
      %p194 = scmp.eq.s32.totalorder %s29, 1
      %p195 = por %p193, %p194
      %p197 = scmp.ne.s32.totalorder %s182, %s196
      %p198 = scmp.eq.s32.totalorder %s29, 0
      %p199 = por %p197, %p198
      %s200 = ssub.s32 %s30, %s42
      %s201 = ssub.s32 %s31, %s38
      %s202 = sor.u32 %s200, %s201
      %p203 = scmp.eq.s32.totalorder %s202, 0
      %s205 = sadd.s32 %s204, 1
      %s206 = scalar_select %p203, %s204, %s205
      %p209 = pneg %p203
      %p210 = scmp.eq.s32.totalorder %s23, 1
      %p211 = por %p209, %p210
      %p212 = scmp.ne.s32.totalorder %s204, %s207
      %p213 = scmp.eq.s32.totalorder %s23, 0
      %p214 = por %p212, %p213
      %p215 = scmp.ne.s32.totalorder %s204, %s207
      %p216 = scmp.eq.s32.totalorder %s28, 1
      %p217 = por %p215, %p216
      %p218 = scmp.ne.s32.totalorder %s207, %s208
      %p219 = scmp.eq.s32.totalorder %s28, 0
      %p220 = por %p218, %p219
      %p221 = scmp.ne.s32.totalorder %s207, %s208
      %p222 = scmp.eq.s32.totalorder %s29, 1
      %p223 = por %p221, %p222
      %p225 = scmp.ne.s32.totalorder %s208, %s224
      %p226 = scmp.eq.s32.totalorder %s29, 0
      %p227 = por %p225, %p226
      %p228 = scmp.le.s32.totalorder 1, %s23
      %p229 = scmp.lt.s32.totalorder %s23, 3
      %p230 = pnand %p228, %p229
      %p231 = pneg %p230
      // Predicated region
      $region9: #{tpu_custom_call.1} parent=5 // pred_check
        _
      $region10: #{tpu_custom_call.1} parent=5 // pred_check_branch
        %233 = sbr.rel (%p230) target = $region12
      $region11: #{tpu_custom_call.1} parent=5 // pred_region
        %s234 = ssub.s32 %s23, 1
        // Predicated region
        $region13: #{tpu_custom_call.1} parent=11 // pred_check
          %p235 = pneg %p108
        $region14: #{tpu_custom_call.1} parent=11 // pred_check_branch
          %237 = sbr.rel (%p235) target = $region16
        $region15: #{tpu_custom_call.1} parent=11 // pred_region
          _
        $region16: #{tpu_custom_call.1} parent=11 // pred_fallthru
          _
        // Predicated region
        $region17: #{tpu_custom_call.1} parent=11 // pred_check
          %p238 = pneg %p129
        $region18: #{tpu_custom_call.1} parent=11 // pred_check_branch
          %240 = sbr.rel (%p238) target = $region20
        $region19: #{tpu_custom_call.1} parent=11 // pred_region
          _
        $region20: #{tpu_custom_call.1} parent=11 // pred_fallthru
          _
        // Predicated region
        $region21: #{tpu_custom_call.1} parent=11 // pred_check
          %p241 = pneg %p150
        $region22: #{tpu_custom_call.1} parent=11 // pred_check_branch
          %243 = sbr.rel (%p241) target = $region24
        $region23: #{tpu_custom_call.1} parent=11 // pred_region
          %245 = vsyncadd [#allocation8], 0
          %s246 = sshll.u32 %s4, 4
          %s247 = int_to_ptr.hbm [resolvable:$true] %s246
          %s248 = sshll.u32 [#allocation9], 4
          %s249 = int_to_ptr.vmem [resolvable:$true] %s248
          %254 = dma.hbm_to_vmem [thread:$0]  %s247, 512, %s249, [#allocation8], 64, 64, 4
        $region24: #{tpu_custom_call.1} parent=11 // pred_fallthru
          _
        // Predicated region
        $region25: #{tpu_custom_call.1} parent=11 // pred_check
          %p255 = pneg %p171
        $region26: #{tpu_custom_call.1} parent=11 // pred_check_branch
          %257 = sbr.rel (%p255) target = $region28
        $region27: #{tpu_custom_call.1} parent=11 // pred_region
          %259 = vsyncadd [#allocation11], 0
          %s260 = sshll.u32 %s5, 4
          %s261 = int_to_ptr.hbm [resolvable:$true] %s260
          %s262 = sshll.u32 [#allocation10], 4
          %s263 = int_to_ptr.vmem [resolvable:$true] %s262
          %268 = dma.hbm_to_vmem [thread:$0]  %s261, 512, %s263, [#allocation11], 64, 64, 4
        $region28: #{tpu_custom_call.1} parent=11 // pred_fallthru
          _
        // Predicated region
        $region29: #{tpu_custom_call.1} parent=11 // pred_check
          %p269 = pneg %p192
        $region30: #{tpu_custom_call.1} parent=11 // pred_check_branch
          %271 = sbr.rel (%p269) target = $region32
        $region31: #{tpu_custom_call.1} parent=11 // pred_region
          _
        $region32: #{tpu_custom_call.1} parent=11 // pred_fallthru
          _
      $region12: #{tpu_custom_call.1} parent=5 // pred_fallthru
        _
      %p272 = scmp.lt.s32.totalorder %s23, 2
      // Predicated region
      $region33: #{tpu_custom_call.1} parent=5 // pred_check
        %p273 = pneg %p272
      $region34: #{tpu_custom_call.1} parent=5 // pred_check_branch
        %275 = sbr.rel (%p273) target = $region36
      $region35: #{tpu_custom_call.1} parent=5 // pred_region
        // Predicated region
        $region37: #{tpu_custom_call.1} parent=35 // pred_check
          %p276 = pneg %p55
        $region38: #{tpu_custom_call.1} parent=35 // pred_check_branch
          %278 = sbr.rel (%p276) target = $region40
        $region39: #{tpu_custom_call.1} parent=35 // pred_region
          %s279 = sand.u32 %s45, 1
          %s280 = scalar_lea.sflag [#allocation5], %s279
          %s281 = sand.u32 %s45, 1
          %s282 = smul.addr %s281, 256
          %s283 = scalar_lea.vmem [#allocation4], %s282
          %285 = vsyncadd %s280, 0
          %s286 = smul.addr %s30, 32
          %s287 = smul.addr %s286, 8
          %s288 = scalar_lea.hbm %s0, %s287
          %s289 = sshll.u32 %s288, 4
          %s290 = int_to_ptr.hbm [resolvable:$true] %s289
          %s291 = sshll.u32 %s283, 4
          %s292 = int_to_ptr.vmem [resolvable:$true] %s291
          %297 = dma.hbm_to_vmem [thread:$0]  %s290, 4096, %s292, %s280, 256, 256, 16
        $region40: #{tpu_custom_call.1} parent=35 // pred_fallthru
          _
        // Predicated region
        $region41: #{tpu_custom_call.1} parent=35 // pred_check
          %p298 = pneg %p81
        $region42: #{tpu_custom_call.1} parent=35 // pred_check_branch
          %300 = sbr.rel (%p298) target = $region44
        $region43: #{tpu_custom_call.1} parent=35 // pred_region
          %s301 = sand.u32 %s23, 1
          %s302 = scalar_lea.sflag [#allocation8], %s301
          %s303 = sand.u32 %s71, 1
          %s304 = smul.addr %s303, 128
          %s305 = scalar_lea.vmem [#allocation7], %s304
          %307 = vsyncadd %s302, 0
          %s308 = smul.addr %s30, 16
          %s309 = smul.addr %s308, 8
          %s310 = scalar_lea.hbm %s1, %s309
          %s311 = sshll.u32 %s310, 4
          %s312 = int_to_ptr.hbm [resolvable:$true] %s311
          %s313 = sshll.u32 %s305, 4
          %s314 = int_to_ptr.vmem [resolvable:$true] %s313
          %319 = dma.hbm_to_vmem [thread:$0]  %s312, 2048, %s314, %s302, 256, 256, 16
        $region44: #{tpu_custom_call.1} parent=35 // pred_fallthru
          _
      $region36: #{tpu_custom_call.1} parent=5 // pred_fallthru
        _
      %p320 = scmp.le.s32.totalorder 1, %s23
      %p321 = scmp.lt.s32.totalorder %s23, 3
      %p322 = pnand %p320, %p321
      %p323 = pneg %p322
      // Predicated region
      $region45: #{tpu_custom_call.1} parent=5 // pred_check
        _
      $region46: #{tpu_custom_call.1} parent=5 // pred_check_branch
        %325 = sbr.rel (%p322) target = $region48
      $region47: #{tpu_custom_call.1} parent=5 // pred_region
        %s326 = ssub.s32 %s23, 1
        %s327 = sand.u32 %s48, 1
        %s328 = scalar_lea.sflag [#allocation5], %s327
        %s329 = sand.u32 %s48, 1
        %s330 = smul.addr %s329, 256
        %s331 = scalar_lea.vmem [#allocation4], %s330
        // Predicated region
        $region49: #{tpu_custom_call.1} parent=47 // pred_check
          %p332 = pneg %p61
        $region50: #{tpu_custom_call.1} parent=47 // pred_check_branch
          %334 = sbr.rel (%p332) target = $region52
        $region51: #{tpu_custom_call.1} parent=47 // pred_region
          %336 = dma.done %s328, 4096
        $region52: #{tpu_custom_call.1} parent=47 // pred_fallthru
          _
        %s337 = sand.u32 %s28, 1
        %s338 = scalar_lea.sflag [#allocation8], %s337
        %s339 = sand.u32 %s74, 1
        %s340 = smul.addr %s339, 128
        %s341 = scalar_lea.vmem [#allocation7], %s340
        // Predicated region
        $region53: #{tpu_custom_call.1} parent=47 // pred_check
          %p342 = pneg %p87
        $region54: #{tpu_custom_call.1} parent=47 // pred_check_branch
          %344 = sbr.rel (%p342) target = $region56
        $region55: #{tpu_custom_call.1} parent=47 // pred_region
          %346 = dma.done %s338, 2048
        $region56: #{tpu_custom_call.1} parent=47 // pred_fallthru
          _
        // Predicated region
        $region57: #{tpu_custom_call.1} parent=47 // pred_check
          %p347 = pneg %p150
        $region58: #{tpu_custom_call.1} parent=47 // pred_check_branch
          %349 = sbr.rel (%p347) target = $region60
        $region59: #{tpu_custom_call.1} parent=47 // pred_region
          %351 = dma.done [#allocation8], 512
        $region60: #{tpu_custom_call.1} parent=47 // pred_fallthru
          _
        // Predicated region
        $region61: #{tpu_custom_call.1} parent=47 // pred_check
          %p352 = pneg %p171
        $region62: #{tpu_custom_call.1} parent=47 // pred_check_branch
          %354 = sbr.rel (%p352) target = $region64
        $region63: #{tpu_custom_call.1} parent=47 // pred_region
          %356 = dma.done [#allocation11], 512
        $region64: #{tpu_custom_call.1} parent=47 // pred_fallthru
          _
        %s357 = sand.u32 %s48, 1
        %s358 = scalar_lea.sflag [#allocation5], %s357
        %s359 = sand.u32 %s48, 1
        %s360 = smul.addr %s359, 256
        %s361 = scalar_lea.vmem [#allocation4], %s360
        %p362 = pneg %p61
        %p363 = pneg %p58
        %s364 = sand.u32 %s28, 1
        %s365 = scalar_lea.sflag [#allocation8], %s364
        %s366 = sand.u32 %s74, 1
        %s367 = smul.addr %s366, 128
        %s368 = scalar_lea.vmem [#allocation7], %s367
        %p369 = pneg %p87
        %p370 = pneg %p84
        %p371 = pneg %p108
        %p372 = pneg %p105
        %p373 = pneg %p129
        %p374 = pneg %p126
        %p375 = pneg %p150
        %p376 = pneg %p147
        %p377 = pneg %p171
        %p378 = pneg %p168
        %p379 = pneg %p192
        %p380 = pneg %p189
        %p381 = pneg %p220
        %p382 = pneg %p217
        %s383 = sand.u32 %s207, 1
        %s384 = scalar_lea.sflag [#allocation6], %s383
        %s385 = sand.u32 %s207, 1
        %s386 = smul.addr %s385, 384
        %s387 = scalar_lea.vmem [#allocation12], %s386
        %s388 = smul.u32 2, %s33
        %p390 = scmp.eq.s32.totalorder %s33, 0
        // Predicated region
        $region65: #{tpu_custom_call.1} parent=47 // pred_check
          %p391 = pneg %p390
        $region66: #{tpu_custom_call.1} parent=47 // pred_check_branch
          %393 = sbr.rel (%p391) target = $region68
        $region67: #{tpu_custom_call.1} parent=47 // pred_region
          %v394 = vld [vmem:[%s331] sm:$0xff]
          %v395 = vld [vmem:[%s331 + $0x8] sm:$0xff]
          %v396 = vld [vmem:[%s331 + $0x10] sm:$0xff]
          %v397 = vld [vmem:[%s331 + $0x18] sm:$0xff]
          %v398 = vld [vmem:[%s331 + $0x20] sm:$0xff]
          %v399 = vld [vmem:[%s331 + $0x28] sm:$0xff]
          %v400 = vld [vmem:[%s331 + $0x30] sm:$0xff]
          %v401 = vld [vmem:[%s331 + $0x38] sm:$0xff]
          %v402 = vld [vmem:[%s331 + $0x40] sm:$0xff]
          %v403 = vld [vmem:[%s331 + $0x48] sm:$0xff]
          %v404 = vld [vmem:[%s331 + $0x50] sm:$0xff]
          %v405 = vld [vmem:[%s331 + $0x58] sm:$0xff]
          %v406 = vld [vmem:[%s331 + $0x60] sm:$0xff]
          %v407 = vld [vmem:[%s331 + $0x68] sm:$0xff]
          %v408 = vld [vmem:[%s331 + $0x70] sm:$0xff]
          %v409 = vld [vmem:[%s331 + $0x78] sm:$0xff]
          %v410 = vld [vmem:[%s331 + $0x80] sm:$0xff]
          %v411 = vld [vmem:[%s331 + $0x88] sm:$0xff]
          %v412 = vld [vmem:[%s331 + $0x90] sm:$0xff]
          %v413 = vld [vmem:[%s331 + $0x98] sm:$0xff]
          %v414 = vld [vmem:[%s331 + $0xa0] sm:$0xff]
          %v415 = vld [vmem:[%s331 + $0xa8] sm:$0xff]
          %v416 = vld [vmem:[%s331 + $0xb0] sm:$0xff]
          %v417 = vld [vmem:[%s331 + $0xb8] sm:$0xff]
          %v418 = vld [vmem:[%s331 + $0xc0] sm:$0xff]
          %v419 = vld [vmem:[%s331 + $0xc8] sm:$0xff]
          %v420 = vld [vmem:[%s331 + $0xd0] sm:$0xff]
          %v421 = vld [vmem:[%s331 + $0xd8] sm:$0xff]
          %v422 = vld [vmem:[%s331 + $0xe0] sm:$0xff]
          %v423 = vld [vmem:[%s331 + $0xe8] sm:$0xff]
          %v424 = vld [vmem:[%s331 + $0xf0] sm:$0xff]
          %v425 = vld [vmem:[%s331 + $0xf8] sm:$0xff]
          %v426 = vpack.c.bf16 %v396, %v394
          %v427 = vpack.c.bf16 %v397, %v395
          %v428 = vpack.c.bf16 %v400, %v398
          %v429 = vpack.c.bf16 %v401, %v399
          %v430 = vpack.c.bf16 %v404, %v402
          %v431 = vpack.c.bf16 %v405, %v403
          %v432 = vpack.c.bf16 %v408, %v406
          %v433 = vpack.c.bf16 %v409, %v407
          %v434 = vpack.c.bf16 %v412, %v410
          %v435 = vpack.c.bf16 %v413, %v411
          %v436 = vpack.c.bf16 %v416, %v414
          %v437 = vpack.c.bf16 %v417, %v415
          %v438 = vpack.c.bf16 %v420, %v418
          %v439 = vpack.c.bf16 %v421, %v419
          %v440 = vpack.c.bf16 %v424, %v422
          %v441 = vpack.c.bf16 %v425, %v423
          %v442 = vld [vmem:[%s341] sm:$0xff]
          %v443 = vld [vmem:[%s341 + $0x8] sm:$0xff]
          %v444 = vld [vmem:[%s341 + $0x10] sm:$0xff]
          %v445 = vld [vmem:[%s341 + $0x18] sm:$0xff]
          %v446 = vld [vmem:[%s341 + $0x20] sm:$0xff]
          %v447 = vld [vmem:[%s341 + $0x28] sm:$0xff]
          %v448 = vld [vmem:[%s341 + $0x30] sm:$0xff]
          %v449 = vld [vmem:[%s341 + $0x38] sm:$0xff]
          %v450 = vld [vmem:[%s341 + $0x40] sm:$0xff]
          %v451 = vld [vmem:[%s341 + $0x48] sm:$0xff]
          %v452 = vld [vmem:[%s341 + $0x50] sm:$0xff]
          %v453 = vld [vmem:[%s341 + $0x58] sm:$0xff]
          %v454 = vld [vmem:[%s341 + $0x60] sm:$0xff]
          %v455 = vld [vmem:[%s341 + $0x68] sm:$0xff]
          %v456 = vld [vmem:[%s341 + $0x70] sm:$0xff]
          %v457 = vld [vmem:[%s341 + $0x78] sm:$0xff]
          %v458 = vpack.c.bf16 %v444, %v442
          %v459 = vpack.c.bf16 %v445, %v443
          %v460 = vpack.c.bf16 %v448, %v446
          %v461 = vpack.c.bf16 %v449, %v447
          %v462 = vpack.c.bf16 %v452, %v450
          %v463 = vpack.c.bf16 %v453, %v451
          %v464 = vpack.c.bf16 %v456, %v454
          %v465 = vpack.c.bf16 %v457, %v455
          %v466 = vld [vmem:[%s3] sm:$0xf]
          %v467 = vld [vmem:[%s3 + $0x4] sm:$0xf]
          %v468 = vld [vmem:[%s3 + $0x8] sm:$0xf]
          %v469 = vld [vmem:[%s3 + $0xc] sm:$0xf]
          %v470 = vld [vmem:[%s3 + $0x10] sm:$0xf]
          %v471 = vld [vmem:[%s3 + $0x14] sm:$0xf]
          %v472 = vld [vmem:[%s3 + $0x18] sm:$0xf]
          %v473 = vld [vmem:[%s3 + $0x1c] sm:$0xf]
          %v482 = vunpack.c.l.b16 %v466
          %v483 = vunpack.c.l.b16 %v467
          %v484 = vunpack.c.l.b16 %v468
          %v485 = vunpack.c.l.b16 %v469
          %v486 = vunpack.c.l.b16 %v470
          %v487 = vunpack.c.l.b16 %v471
          %v488 = vunpack.c.l.b16 %v472
          %v489 = vunpack.c.l.b16 %v473
          %v490 = vpack.c.b16 %v483, %v482
          %v491 = vpack.c.b16 %v485, %v484
          %v492 = vpack.c.b16 %v487, %v486
          %v493 = vpack.c.b16 %v489, %v488
          %498 = vmatpush.bf16.msra.mxu0 %v440
          %499 = vmatpush.bf16.msra.mxu0 %v438
          %500 = vmatpush.bf16.msra.mxu0 %v436
          %501 = vmatpush.bf16.msra.mxu0 %v434
          %502 = vmatpush.bf16.msra.mxu0 %v432
          %503 = vmatpush.bf16.msra.mxu0 %v430
          %504 = vmatpush.bf16.msra.mxu0 %v428
          %505 = vmatpush.bf16.msra.mxu0 %v426
          %506 = vmatmul.bf16.gmra.mxu0 %v490
          %v507 = vpop.f32.mrf.mxu0
          %v508 = vadd.f32 0.0, %v507
          %v509 = vpop.f32.mrf.mxu0
          %v510 = vadd.f32 0.0, %v509
          %511 = vmatmul.bf16.gmra.mxu0 %v491
          %v512 = vpop.f32.mrf.mxu0
          %v513 = vadd.f32 0.0, %v512
          %v514 = vpop.f32.mrf.mxu0
          %v515 = vadd.f32 0.0, %v514
          %516 = vmatmul.bf16.gmra.mxu0 %v492
          %v517 = vpop.f32.mrf.mxu0
          %v518 = vadd.f32 0.0, %v517
          %v519 = vpop.f32.mrf.mxu0
          %v520 = vadd.f32 0.0, %v519
          %521 = vmatmul.bf16.gmra.mxu0 %v493
          %v522 = vpop.f32.mrf.mxu0
          %v523 = vadd.f32 0.0, %v522
          %v524 = vpop.f32.mrf.mxu0
          %v525 = vadd.f32 0.0, %v524
          %526 = vdwg.mxu0
          %527 = vmatpush.bf16.msra.mxu0 %v441
          %528 = vmatpush.bf16.msra.mxu0 %v439
          %529 = vmatpush.bf16.msra.mxu0 %v437
          %530 = vmatpush.bf16.msra.mxu0 %v435
          %531 = vmatpush.bf16.msra.mxu0 %v433
          %532 = vmatpush.bf16.msra.mxu0 %v431
          %533 = vmatpush.bf16.msra.mxu0 %v429
          %534 = vmatpush.bf16.msra.mxu0 %v427
          %535 = vmatmul.bf16.gmra.mxu0 %v490
          %v536 = vpop.f32.mrf.mxu0
          %v537 = vadd.f32 0.0, %v536
          %v538 = vpop.f32.mrf.mxu0
          %v539 = vadd.f32 0.0, %v538
          %540 = vmatmul.bf16.gmra.mxu0 %v491
          %v541 = vpop.f32.mrf.mxu0
          %v542 = vadd.f32 0.0, %v541
          %v543 = vpop.f32.mrf.mxu0
          %v544 = vadd.f32 0.0, %v543
          %545 = vmatmul.bf16.gmra.mxu0 %v492
          %v546 = vpop.f32.mrf.mxu0
          %v547 = vadd.f32 0.0, %v546
          %v548 = vpop.f32.mrf.mxu0
          %v549 = vadd.f32 0.0, %v548
          %550 = vmatmul.bf16.gmra.mxu0 %v493
          %v551 = vpop.f32.mrf.mxu0
          %v552 = vadd.f32 0.0, %v551
          %v553 = vpop.f32.mrf.mxu0
          %v554 = vadd.f32 0.0, %v553
          %555 = vdwg.mxu0
          %v556 = vld [vmem:[#allocation9] sm:$0xf]
          %v557 = vld [vmem:[#allocation9 + $0x4] sm:$0xf]
          %v558 = vld [vmem:[#allocation9 + $0x8] sm:$0xf]
          %v559 = vld [vmem:[#allocation9 + $0xc] sm:$0xf]
          %v560 = vld [vmem:[#allocation9 + $0x10] sm:$0xf]
          %v561 = vld [vmem:[#allocation9 + $0x14] sm:$0xf]
          %v562 = vld [vmem:[#allocation9 + $0x18] sm:$0xf]
          %v563 = vld [vmem:[#allocation9 + $0x1c] sm:$0xf]
          %v572 = vunpack.c.l.b16 %v556
          %v573 = vunpack.c.l.b16 %v557
          %v574 = vunpack.c.l.b16 %v558
          %v575 = vunpack.c.l.b16 %v559
          %v576 = vunpack.c.l.b16 %v560
          %v577 = vunpack.c.l.b16 %v561
          %v578 = vunpack.c.l.b16 %v562
          %v579 = vunpack.c.l.b16 %v563
          %v580 = vpack.c.b16 %v573, %v572
          %v581 = vpack.c.b16 %v575, %v574
          %v582 = vpack.c.b16 %v577, %v576
          %v583 = vpack.c.b16 %v579, %v578
          %vm584 = vcmask 523264
          %v586 = vsel %vm584, %v580, 0
          %v589 = vsel %vm584, %v581, 0
          %v592 = vsel %vm584, %v582, 0
          %v595 = vsel %vm584, %v583, 0
          %597 = vmatpush.bf16.msra.mxu0 0
          %598 = vmatpush.bf16.msra.mxu0 0
          %599 = vmatpush.bf16.msra.mxu0 0
          %600 = vmatpush.bf16.msra.mxu0 0
          %601 = vmatpush.bf16.msra.mxu0 %v464
          %602 = vmatpush.bf16.msra.mxu0 %v462
          %603 = vmatpush.bf16.msra.mxu0 %v460
          %604 = vmatpush.bf16.msra.mxu0 %v458
          %605 = vmatmul.bf16.gmra.mxu0 %v586
          %v606 = vpop.f32.mrf.mxu0
          %v607 = vadd.f32 0.0, %v606
          %v608 = vpop.f32.mrf.mxu0
          %v609 = vadd.f32 0.0, %v608
          %610 = vmatmul.bf16.gmra.mxu0 %v589
          %v611 = vpop.f32.mrf.mxu0
          %v612 = vadd.f32 0.0, %v611
          %v613 = vpop.f32.mrf.mxu0
          %v614 = vadd.f32 0.0, %v613
          %615 = vmatmul.bf16.gmra.mxu0 %v592
          %v616 = vpop.f32.mrf.mxu0
          %v617 = vadd.f32 0.0, %v616
          %v618 = vpop.f32.mrf.mxu0
          %v619 = vadd.f32 0.0, %v618
          %620 = vmatmul.bf16.gmra.mxu0 %v595
          %v621 = vpop.f32.mrf.mxu0
          %v622 = vadd.f32 0.0, %v621
          %v623 = vpop.f32.mrf.mxu0
          %v624 = vadd.f32 0.0, %v623
          %625 = vdwg.mxu0
          %626 = vmatpush.bf16.msra.mxu0 0
          %627 = vmatpush.bf16.msra.mxu0 0
          %628 = vmatpush.bf16.msra.mxu0 0
          %629 = vmatpush.bf16.msra.mxu0 0
          %630 = vmatpush.bf16.msra.mxu0 %v465
          %631 = vmatpush.bf16.msra.mxu0 %v463
          %632 = vmatpush.bf16.msra.mxu0 %v461
          %633 = vmatpush.bf16.msra.mxu0 %v459
          %634 = vmatmul.bf16.gmra.mxu0 %v586
          %v635 = vpop.f32.mrf.mxu0
          %v636 = vadd.f32 0.0, %v635
          %v637 = vpop.f32.mrf.mxu0
          %v638 = vadd.f32 0.0, %v637
          %639 = vmatmul.bf16.gmra.mxu0 %v589
          %v640 = vpop.f32.mrf.mxu0
          %v641 = vadd.f32 0.0, %v640
          %v642 = vpop.f32.mrf.mxu0
          %v643 = vadd.f32 0.0, %v642
          %644 = vmatmul.bf16.gmra.mxu0 %v592
          %v645 = vpop.f32.mrf.mxu0
          %v646 = vadd.f32 0.0, %v645
          %v647 = vpop.f32.mrf.mxu0
          %v648 = vadd.f32 0.0, %v647
          %649 = vmatmul.bf16.gmra.mxu0 %v595
          %v650 = vpop.f32.mrf.mxu0
          %v651 = vadd.f32 0.0, %v650
          %v652 = vpop.f32.mrf.mxu0
          %v653 = vadd.f32 0.0, %v652
          %654 = vdwg.mxu0
          %v655 = vpack.c.bf16 %v537, %v508
          %v656 = vpack.c.bf16 %v539, %v510
          %v657 = vpack.c.bf16 %v542, %v513
          %v658 = vpack.c.bf16 %v544, %v515
          %v659 = vpack.c.bf16 %v547, %v518
          %v660 = vpack.c.bf16 %v549, %v520
          %v661 = vpack.c.bf16 %v552, %v523
          %v662 = vpack.c.bf16 %v554, %v525
          %663 = vst [vmem:[#allocation2] sm:$0xff] %v655
          %664 = vst [vmem:[#allocation2 + $0x8] sm:$0xff] %v656
          %665 = vst [vmem:[#allocation2 + $0x10] sm:$0xff] %v657
          %666 = vst [vmem:[#allocation2 + $0x18] sm:$0xff] %v658
          %667 = vst [vmem:[#allocation2 + $0x20] sm:$0xff] %v659
          %668 = vst [vmem:[#allocation2 + $0x28] sm:$0xff] %v660
          %669 = vst [vmem:[#allocation2 + $0x30] sm:$0xff] %v661
          %670 = vst [vmem:[#allocation2 + $0x38] sm:$0xff] %v662
          %v671 = vpack.c.bf16 %v636, %v607
          %v672 = vpack.c.bf16 %v638, %v609
          %v673 = vpack.c.bf16 %v641, %v612
          %v674 = vpack.c.bf16 %v643, %v614
          %v675 = vpack.c.bf16 %v646, %v617
          %v676 = vpack.c.bf16 %v648, %v619
          %v677 = vpack.c.bf16 %v651, %v622
          %v678 = vpack.c.bf16 %v653, %v624
          %679 = vst [vmem:[#allocation3] sm:$0xff] %v671
          %680 = vst [vmem:[#allocation3 + $0x8] sm:$0xff] %v672
          %681 = vst [vmem:[#allocation3 + $0x10] sm:$0xff] %v673
          %682 = vst [vmem:[#allocation3 + $0x18] sm:$0xff] %v674
          %683 = vst [vmem:[#allocation3 + $0x20] sm:$0xff] %v675
          %684 = vst [vmem:[#allocation3 + $0x28] sm:$0xff] %v676
          %685 = vst [vmem:[#allocation3 + $0x30] sm:$0xff] %v677
          %686 = vst [vmem:[#allocation3 + $0x38] sm:$0xff] %v678
        $region68: #{tpu_custom_call.1} parent=47 // pred_fallthru
          _
        %s687 = smul.u32 %s33, 256
        %s688 = sshra.s32 %s687, 7
        %s689 = sand.u32 %s687, 127
        %s690 = smul.addr %s688, 8
        %s691 = scalar_lea.vmem %s331, %s690 [#allocation4]
        %v692 = vld [vmem:[%s691] sm:$0xff]
        %v693 = vld [vmem:[%s691 + $0x8] sm:$0xff]
        %v694 = vld [vmem:[%s691 + $0x10] sm:$0xff]
        %v695 = vld [vmem:[%s691 + $0x18] sm:$0xff]
        %v696 = vld [vmem:[%s691 + $0x20] sm:$0xff]
        %v697 = vld [vmem:[%s691 + $0x28] sm:$0xff]
        %v698 = vld [vmem:[%s691 + $0x30] sm:$0xff]
        %v699 = vld [vmem:[%s691 + $0x38] sm:$0xff]
        %v700 = vld [vmem:[%s691 + $0x40] sm:$0xff]
        %v701 = vld [vmem:[%s691 + $0x48] sm:$0xff]
        %v702 = vld [vmem:[%s691 + $0x50] sm:$0xff]
        %v703 = vld [vmem:[%s691 + $0x58] sm:$0xff]
        %v704 = vld [vmem:[%s691 + $0x60] sm:$0xff]
        %v705 = vld [vmem:[%s691 + $0x68] sm:$0xff]
        %v706 = vld [vmem:[%s691 + $0x70] sm:$0xff]
        %v707 = vld [vmem:[%s691 + $0x78] sm:$0xff]
        %v708 = vld [vmem:[%s691 + $0x80] sm:$0xff]
        %v709 = vld [vmem:[%s691 + $0x88] sm:$0xff]
        %v710 = vld [vmem:[%s691 + $0x90] sm:$0xff]
        %v711 = vld [vmem:[%s691 + $0x98] sm:$0xff]
        %v712 = vld [vmem:[%s691 + $0xa0] sm:$0xff]
        %v713 = vld [vmem:[%s691 + $0xa8] sm:$0xff]
        %v714 = vld [vmem:[%s691 + $0xb0] sm:$0xff]
        %v715 = vld [vmem:[%s691 + $0xb8] sm:$0xff]
        %v716 = vld [vmem:[%s691 + $0xc0] sm:$0xff]
        %v717 = vld [vmem:[%s691 + $0xc8] sm:$0xff]
        %v718 = vld [vmem:[%s691 + $0xd0] sm:$0xff]
        %v719 = vld [vmem:[%s691 + $0xd8] sm:$0xff]
        %v720 = vld [vmem:[%s691 + $0xe0] sm:$0xff]
        %v721 = vld [vmem:[%s691 + $0xe8] sm:$0xff]
        %v722 = vld [vmem:[%s691 + $0xf0] sm:$0xff]
        %v723 = vld [vmem:[%s691 + $0xf8] sm:$0xff]
        %v724 = vld [vmem:[%s2] sm:$0xf]
        %v725 = vld [vmem:[%s2 + $0x4] sm:$0xf]
        %v726 = vld [vmem:[%s2 + $0x8] sm:$0xf]
        %v727 = vld [vmem:[%s2 + $0xc] sm:$0xf]
        %v728 = vld [vmem:[%s2 + $0x10] sm:$0xf]
        %v729 = vld [vmem:[%s2 + $0x14] sm:$0xf]
        %v730 = vld [vmem:[%s2 + $0x18] sm:$0xf]
        %v731 = vld [vmem:[%s2 + $0x1c] sm:$0xf]
        %v732 = vpack.c.bf16 %v694, %v692
        %v733 = vpack.c.bf16 %v695, %v693
        %v734 = vpack.c.bf16 %v698, %v696
        %v735 = vpack.c.bf16 %v699, %v697
        %v736 = vpack.c.bf16 %v702, %v700
        %v737 = vpack.c.bf16 %v703, %v701
        %v738 = vpack.c.bf16 %v706, %v704
        %v739 = vpack.c.bf16 %v707, %v705
        %v740 = vpack.c.bf16 %v710, %v708
        %v741 = vpack.c.bf16 %v711, %v709
        %v742 = vpack.c.bf16 %v714, %v712
        %v743 = vpack.c.bf16 %v715, %v713
        %v744 = vpack.c.bf16 %v718, %v716
        %v745 = vpack.c.bf16 %v719, %v717
        %v746 = vpack.c.bf16 %v722, %v720
        %v747 = vpack.c.bf16 %v723, %v721
        %v756 = vunpack.c.l.b16 %v724
        %v757 = vunpack.c.l.b16 %v725
        %v758 = vunpack.c.l.b16 %v726
        %v759 = vunpack.c.l.b16 %v727
        %v760 = vunpack.c.l.b16 %v728
        %v761 = vunpack.c.l.b16 %v729
        %v762 = vunpack.c.l.b16 %v730
        %v763 = vunpack.c.l.b16 %v731
        %v764 = vpack.c.b16 %v757, %v756
        %v765 = vpack.c.b16 %v759, %v758
        %v766 = vpack.c.b16 %v761, %v760
        %v767 = vpack.c.b16 %v763, %v762
        %772 = vmatpush.bf16.msra.mxu0 %v746
        %773 = vmatpush.bf16.msra.mxu0 %v744
        %774 = vmatpush.bf16.msra.mxu0 %v742
        %775 = vmatpush.bf16.msra.mxu0 %v740
        %776 = vmatpush.bf16.msra.mxu0 %v738
        %777 = vmatpush.bf16.msra.mxu0 %v736
        %778 = vmatpush.bf16.msra.mxu0 %v734
        %779 = vmatpush.bf16.msra.mxu0 %v732
        %780 = vmatmul.bf16.gmra.mxu0 %v764
        %v781 = vpop.f32.mrf.mxu0
        %v782 = vadd.f32 0.0, %v781
        %v783 = vpop.f32.mrf.mxu0
        %v784 = vadd.f32 0.0, %v783
        %785 = vmatmul.bf16.gmra.mxu0 %v765
        %v786 = vpop.f32.mrf.mxu0
        %v787 = vadd.f32 0.0, %v786
        %v788 = vpop.f32.mrf.mxu0
        %v789 = vadd.f32 0.0, %v788
        %790 = vmatmul.bf16.gmra.mxu0 %v766
        %v791 = vpop.f32.mrf.mxu0
        %v792 = vadd.f32 0.0, %v791
        %v793 = vpop.f32.mrf.mxu0
        %v794 = vadd.f32 0.0, %v793
        %795 = vmatmul.bf16.gmra.mxu0 %v767
        %v796 = vpop.f32.mrf.mxu0
        %v797 = vadd.f32 0.0, %v796
        %v798 = vpop.f32.mrf.mxu0
        %v799 = vadd.f32 0.0, %v798
        %800 = vdwg.mxu0
        %801 = vmatpush.bf16.msra.mxu0 %v747
        %802 = vmatpush.bf16.msra.mxu0 %v745
        %803 = vmatpush.bf16.msra.mxu0 %v743
        %804 = vmatpush.bf16.msra.mxu0 %v741
        %805 = vmatpush.bf16.msra.mxu0 %v739
        %806 = vmatpush.bf16.msra.mxu0 %v737
        %807 = vmatpush.bf16.msra.mxu0 %v735
        %808 = vmatpush.bf16.msra.mxu0 %v733
        %809 = vmatmul.bf16.gmra.mxu0 %v764
        %v810 = vpop.f32.mrf.mxu0
        %v811 = vadd.f32 0.0, %v810
        %v812 = vpop.f32.mrf.mxu0
        %v813 = vadd.f32 0.0, %v812
        %814 = vmatmul.bf16.gmra.mxu0 %v765
        %v815 = vpop.f32.mrf.mxu0
        %v816 = vadd.f32 0.0, %v815
        %v817 = vpop.f32.mrf.mxu0
        %v818 = vadd.f32 0.0, %v817
        %819 = vmatmul.bf16.gmra.mxu0 %v766
        %v820 = vpop.f32.mrf.mxu0
        %v821 = vadd.f32 0.0, %v820
        %v822 = vpop.f32.mrf.mxu0
        %v823 = vadd.f32 0.0, %v822
        %824 = vmatmul.bf16.gmra.mxu0 %v767
        %v825 = vpop.f32.mrf.mxu0
        %v826 = vadd.f32 0.0, %v825
        %v827 = vpop.f32.mrf.mxu0
        %v828 = vadd.f32 0.0, %v827
        %829 = vdwg.mxu0
        %v830 = vpack.c.bf16 %v811, %v782
        %v831 = vpack.c.bf16 %v813, %v784
        %v832 = vpack.c.bf16 %v816, %v787
        %v833 = vpack.c.bf16 %v818, %v789
        %v834 = vpack.c.bf16 %v821, %v792
        %v835 = vpack.c.bf16 %v823, %v794
        %v836 = vpack.c.bf16 %v826, %v797
        %v837 = vpack.c.bf16 %v828, %v799
        %v838 = vld [vmem:[#allocation2] sm:$0xff]
        %v839 = vld [vmem:[#allocation2 + $0x8] sm:$0xff]
        %v840 = vld [vmem:[#allocation2 + $0x10] sm:$0xff]
        %v841 = vld [vmem:[#allocation2 + $0x18] sm:$0xff]
        %v842 = vld [vmem:[#allocation2 + $0x20] sm:$0xff]
        %v843 = vld [vmem:[#allocation2 + $0x28] sm:$0xff]
        %v844 = vld [vmem:[#allocation2 + $0x30] sm:$0xff]
        %v845 = vld [vmem:[#allocation2 + $0x38] sm:$0xff]
        %v847 = vunpack.c.l.b16 %v830
        %v848 = vunpack.c.h.b16 %v830
        %v849 = vpack.c.b16 %v847, %v847
        %v850 = vpack.c.b16 %v848, %v848
        %853 = vxpose.binary.xlu0.c.b16.start [1/16] %v850, %v849, 128
        %854 = vxpose.binary.xlu0.c.b16.cont [2/16] 0, 0, 128
        %855 = vxpose.binary.xlu0.c.b16.cont [3/16] 0, 0, 128
        %856 = vxpose.binary.xlu0.c.b16.cont [4/16] 0, 0, 128
        %857 = vxpose.binary.xlu0.c.b16.cont [5/16] 0, 0, 128
        %858 = vxpose.binary.xlu0.c.b16.cont [6/16] 0, 0, 128
        %859 = vxpose.binary.xlu0.c.b16.cont [7/16] 0, 0, 128
        %860 = vxpose.binary.xlu0.c.b16.end [8/16] 0, 0, 128
        %v861 = vpop.trf.xlu0
        %v862 = vpop.trf.xlu0
        %v863 = vpop.trf.xlu0
        %v864 = vpop.trf.xlu0
        %v865 = vpop.trf.xlu0
        %v866 = vpop.trf.xlu0
        %v867 = vpop.trf.xlu0
        %v868 = vpop.trf.xlu0
        %v869 = vpop.trf.xlu0
        %v870 = vpop.trf.xlu0
        %v871 = vpop.trf.xlu0
        %v872 = vpop.trf.xlu0
        %v873 = vpop.trf.xlu0
        %v874 = vpop.trf.xlu0
        %v875 = vpop.trf.xlu0
        %v876 = vpop.trf.xlu0
        %v878 = vunpack.c.l.b16 %v838
        %v879 = vunpack.c.h.b16 %v838
        %v880 = vpack.c.b16 %v878, %v878
        %v881 = vpack.c.b16 %v879, %v879
        %vm882 = vcmask 64512
        %v884 = vsel %vm882, %v861, 0
        %v887 = vsel %vm882, %v863, 0
        %v890 = vsel %vm882, %v865, 0
        %v893 = vsel %vm882, %v867, 0
        %v896 = vsel %vm882, %v869, 0
        %v899 = vsel %vm882, %v871, 0
        %v902 = vsel %vm882, %v873, 0
        %v905 = vsel %vm882, %v875, 0
        %v908 = vsel %vm882, %v862, 0
        %v911 = vsel %vm882, %v864, 0
        %v914 = vsel %vm882, %v866, 0
        %v917 = vsel %vm882, %v868, 0
        %v920 = vsel %vm882, %v870, 0
        %v923 = vsel %vm882, %v872, 0
        %v926 = vsel %vm882, %v874, 0
        %v929 = vsel %vm882, %v876, 0
        %vm931 = vcmask 1043456
        %v933 = vsel %vm931, %v880, 0
        %v936 = vsel %vm931, %v881, 0
        %938 = vmatpush.bf16.msra.mxu0 0
        %939 = vmatpush.bf16.msra.mxu0 0
        %940 = vmatpush.bf16.msra.mxu0 0
        %941 = vmatpush.bf16.msra.mxu0 0
        %942 = vmatpush.bf16.msra.mxu0 0
        %943 = vmatpush.bf16.msra.mxu0 0
        %944 = vmatpush.bf16.msra.mxu0 0
        %945 = vmatpush.bf16.msra.mxu0 %v933
        %946 = vmatmul.bf16.gmra.mxu0 %v884
        %v947 = vpop.f32.mrf.mxu0
        %v948 = vadd.f32 0.0, %v947
        %v949 = vpop.f32.mrf.mxu0
        %v950 = vadd.f32 0.0, %v949
        %951 = vmatmul.bf16.gmra.mxu0 %v887
        %v952 = vpop.f32.mrf.mxu0
        %v953 = vadd.f32 0.0, %v952
        %v954 = vpop.f32.mrf.mxu0
        %v955 = vadd.f32 0.0, %v954
        %956 = vmatmul.bf16.gmra.mxu0 %v890
        %v957 = vpop.f32.mrf.mxu0
        %v958 = vadd.f32 0.0, %v957
        %v959 = vpop.f32.mrf.mxu0
        %v960 = vadd.f32 0.0, %v959
        %961 = vmatmul.bf16.gmra.mxu0 %v893
        %v962 = vpop.f32.mrf.mxu0
        %v963 = vadd.f32 0.0, %v962
        %v964 = vpop.f32.mrf.mxu0
        %v965 = vadd.f32 0.0, %v964
        %966 = vmatmul.bf16.gmra.mxu0 %v896
        %v967 = vpop.f32.mrf.mxu0
        %v968 = vadd.f32 0.0, %v967
        %v969 = vpop.f32.mrf.mxu0
        %v970 = vadd.f32 0.0, %v969
        %971 = vmatmul.bf16.gmra.mxu0 %v899
        %v972 = vpop.f32.mrf.mxu0
        %v973 = vadd.f32 0.0, %v972
        %v974 = vpop.f32.mrf.mxu0
        %v975 = vadd.f32 0.0, %v974
        %976 = vmatmul.bf16.gmra.mxu0 %v902
        %v977 = vpop.f32.mrf.mxu0
        %v978 = vadd.f32 0.0, %v977
        %v979 = vpop.f32.mrf.mxu0
        %v980 = vadd.f32 0.0, %v979
        %981 = vmatmul.bf16.gmra.mxu0 %v905
        %v982 = vpop.f32.mrf.mxu0
        %v983 = vadd.f32 0.0, %v982
        %v984 = vpop.f32.mrf.mxu0
        %v985 = vadd.f32 0.0, %v984
        %986 = vmatmul.bf16.gmra.mxu0 %v908
        %v987 = vpop.f32.mrf.mxu0
        %v988 = vadd.f32 0.0, %v987
        %v989 = vpop.f32.mrf.mxu0
        %v990 = vadd.f32 0.0, %v989
        %991 = vmatmul.bf16.gmra.mxu0 %v911
        %v992 = vpop.f32.mrf.mxu0
        %v993 = vadd.f32 0.0, %v992
        %v994 = vpop.f32.mrf.mxu0
        %v995 = vadd.f32 0.0, %v994
        %996 = vmatmul.bf16.gmra.mxu0 %v914
        %v997 = vpop.f32.mrf.mxu0
        %v998 = vadd.f32 0.0, %v997
        %v999 = vpop.f32.mrf.mxu0
        %v1000 = vadd.f32 0.0, %v999
        %1001 = vmatmul.bf16.gmra.mxu0 %v917
        %v1002 = vpop.f32.mrf.mxu0
        %v1003 = vadd.f32 0.0, %v1002
        %v1004 = vpop.f32.mrf.mxu0
        %v1005 = vadd.f32 0.0, %v1004
        %1006 = vmatmul.bf16.gmra.mxu0 %v920
        %v1007 = vpop.f32.mrf.mxu0
        %v1008 = vadd.f32 0.0, %v1007
        %v1009 = vpop.f32.mrf.mxu0
        %v1010 = vadd.f32 0.0, %v1009
        %1011 = vmatmul.bf16.gmra.mxu0 %v923
        %v1012 = vpop.f32.mrf.mxu0
        %v1013 = vadd.f32 0.0, %v1012
        %v1014 = vpop.f32.mrf.mxu0
        %v1015 = vadd.f32 0.0, %v1014
        %1016 = vmatmul.bf16.gmra.mxu0 %v926
        %v1017 = vpop.f32.mrf.mxu0
        %v1018 = vadd.f32 0.0, %v1017
        %v1019 = vpop.f32.mrf.mxu0
        %v1020 = vadd.f32 0.0, %v1019
        %1021 = vmatmul.bf16.gmra.mxu0 %v929
        %v1022 = vpop.f32.mrf.mxu0
        %v1023 = vadd.f32 0.0, %v1022
        %v1024 = vpop.f32.mrf.mxu0
        %v1025 = vadd.f32 0.0, %v1024
        %1026 = vdwg.mxu0
        %1027 = vmatpush.bf16.msra.mxu0 0
        %1028 = vmatpush.bf16.msra.mxu0 0
        %1029 = vmatpush.bf16.msra.mxu0 0
        %1030 = vmatpush.bf16.msra.mxu0 0
        %1031 = vmatpush.bf16.msra.mxu0 0
        %1032 = vmatpush.bf16.msra.mxu0 0
        %1033 = vmatpush.bf16.msra.mxu0 0
        %1034 = vmatpush.bf16.msra.mxu0 %v936
        %1035 = vmatmul.bf16.gmra.mxu0 %v884
        %v1036 = vpop.f32.mrf.mxu0
        %v1037 = vadd.f32 0.0, %v1036
        %v1038 = vpop.f32.mrf.mxu0
        %v1039 = vadd.f32 0.0, %v1038
        %1040 = vmatmul.bf16.gmra.mxu0 %v887
        %v1041 = vpop.f32.mrf.mxu0
        %v1042 = vadd.f32 0.0, %v1041
        %v1043 = vpop.f32.mrf.mxu0
        %v1044 = vadd.f32 0.0, %v1043
        %1045 = vmatmul.bf16.gmra.mxu0 %v890
        %v1046 = vpop.f32.mrf.mxu0
        %v1047 = vadd.f32 0.0, %v1046
        %v1048 = vpop.f32.mrf.mxu0
        %v1049 = vadd.f32 0.0, %v1048
        %1050 = vmatmul.bf16.gmra.mxu0 %v893
        %v1051 = vpop.f32.mrf.mxu0
        %v1052 = vadd.f32 0.0, %v1051
        %v1053 = vpop.f32.mrf.mxu0
        %v1054 = vadd.f32 0.0, %v1053
        %1055 = vmatmul.bf16.gmra.mxu0 %v896
        %v1056 = vpop.f32.mrf.mxu0
        %v1057 = vadd.f32 0.0, %v1056
        %v1058 = vpop.f32.mrf.mxu0
        %v1059 = vadd.f32 0.0, %v1058
        %1060 = vmatmul.bf16.gmra.mxu0 %v899
        %v1061 = vpop.f32.mrf.mxu0
        %v1062 = vadd.f32 0.0, %v1061
        %v1063 = vpop.f32.mrf.mxu0
        %v1064 = vadd.f32 0.0, %v1063
        %1065 = vmatmul.bf16.gmra.mxu0 %v902
        %v1066 = vpop.f32.mrf.mxu0
        %v1067 = vadd.f32 0.0, %v1066
        %v1068 = vpop.f32.mrf.mxu0
        %v1069 = vadd.f32 0.0, %v1068
        %1070 = vmatmul.bf16.gmra.mxu0 %v905
        %v1071 = vpop.f32.mrf.mxu0
        %v1072 = vadd.f32 0.0, %v1071
        %v1073 = vpop.f32.mrf.mxu0
        %v1074 = vadd.f32 0.0, %v1073
        %1075 = vmatmul.bf16.gmra.mxu0 %v908
        %v1076 = vpop.f32.mrf.mxu0
        %v1077 = vadd.f32 0.0, %v1076
        %v1078 = vpop.f32.mrf.mxu0
        %v1079 = vadd.f32 0.0, %v1078
        %1080 = vmatmul.bf16.gmra.mxu0 %v911
        %v1081 = vpop.f32.mrf.mxu0
        %v1082 = vadd.f32 0.0, %v1081
        %v1083 = vpop.f32.mrf.mxu0
        %v1084 = vadd.f32 0.0, %v1083
        %1085 = vmatmul.bf16.gmra.mxu0 %v914
        %v1086 = vpop.f32.mrf.mxu0
        %v1087 = vadd.f32 0.0, %v1086
        %v1088 = vpop.f32.mrf.mxu0
        %v1089 = vadd.f32 0.0, %v1088
        %1090 = vmatmul.bf16.gmra.mxu0 %v917
        %v1091 = vpop.f32.mrf.mxu0
        %v1092 = vadd.f32 0.0, %v1091
        %v1093 = vpop.f32.mrf.mxu0
        %v1094 = vadd.f32 0.0, %v1093
        %1095 = vmatmul.bf16.gmra.mxu0 %v920
        %v1096 = vpop.f32.mrf.mxu0
        %v1097 = vadd.f32 0.0, %v1096
        %v1098 = vpop.f32.mrf.mxu0
        %v1099 = vadd.f32 0.0, %v1098
        %1100 = vmatmul.bf16.gmra.mxu0 %v923
        %v1101 = vpop.f32.mrf.mxu0
        %v1102 = vadd.f32 0.0, %v1101
        %v1103 = vpop.f32.mrf.mxu0
        %v1104 = vadd.f32 0.0, %v1103
        %1105 = vmatmul.bf16.gmra.mxu0 %v926
        %v1106 = vpop.f32.mrf.mxu0
        %v1107 = vadd.f32 0.0, %v1106
        %v1108 = vpop.f32.mrf.mxu0
        %v1109 = vadd.f32 0.0, %v1108
        %1110 = vmatmul.bf16.gmra.mxu0 %v929
        %v1111 = vpop.f32.mrf.mxu0
        %v1112 = vadd.f32 0.0, %v1111
        %v1113 = vpop.f32.mrf.mxu0
        %v1114 = vadd.f32 0.0, %v1113
        %1115 = vdwg.mxu0
        %v1117 = vunpack.c.l.b16 %v831
        %v1118 = vunpack.c.h.b16 %v831
        %v1119 = vpack.c.b16 %v1117, %v1117
        %v1120 = vpack.c.b16 %v1118, %v1118
        %1123 = vxpose.binary.xlu0.c.b16.start [1/16] %v1120, %v1119, 128
        %1124 = vxpose.binary.xlu0.c.b16.cont [2/16] 0, 0, 128
        %1125 = vxpose.binary.xlu0.c.b16.cont [3/16] 0, 0, 128
        %1126 = vxpose.binary.xlu0.c.b16.cont [4/16] 0, 0, 128
        %1127 = vxpose.binary.xlu0.c.b16.cont [5/16] 0, 0, 128
        %1128 = vxpose.binary.xlu0.c.b16.cont [6/16] 0, 0, 128
        %1129 = vxpose.binary.xlu0.c.b16.cont [7/16] 0, 0, 128
        %1130 = vxpose.binary.xlu0.c.b16.end [8/16] 0, 0, 128
        %v1131 = vpop.trf.xlu0
        %v1132 = vpop.trf.xlu0
        %v1133 = vpop.trf.xlu0
        %v1134 = vpop.trf.xlu0
        %v1135 = vpop.trf.xlu0
        %v1136 = vpop.trf.xlu0
        %v1137 = vpop.trf.xlu0
        %v1138 = vpop.trf.xlu0
        %v1139 = vpop.trf.xlu0
        %v1140 = vpop.trf.xlu0
        %v1141 = vpop.trf.xlu0
        %v1142 = vpop.trf.xlu0
        %v1143 = vpop.trf.xlu0
        %v1144 = vpop.trf.xlu0
        %v1145 = vpop.trf.xlu0
        %v1146 = vpop.trf.xlu0
        %v1148 = vunpack.c.l.b16 %v839
        %v1149 = vunpack.c.h.b16 %v839
        %v1150 = vpack.c.b16 %v1148, %v1148
        %v1151 = vpack.c.b16 %v1149, %v1149
        %v1153 = vsel %vm882, %v1131, 0
        %v1156 = vsel %vm882, %v1133, 0
        %v1159 = vsel %vm882, %v1135, 0
        %v1162 = vsel %vm882, %v1137, 0
        %v1165 = vsel %vm882, %v1139, 0
        %v1168 = vsel %vm882, %v1141, 0
        %v1171 = vsel %vm882, %v1143, 0
        %v1174 = vsel %vm882, %v1145, 0
        %v1177 = vsel %vm882, %v1132, 0
        %v1180 = vsel %vm882, %v1134, 0
        %v1183 = vsel %vm882, %v1136, 0
        %v1186 = vsel %vm882, %v1138, 0
        %v1189 = vsel %vm882, %v1140, 0
        %v1192 = vsel %vm882, %v1142, 0
        %v1195 = vsel %vm882, %v1144, 0
        %v1198 = vsel %vm882, %v1146, 0
        %v1201 = vsel %vm931, %v1150, 0
        %v1204 = vsel %vm931, %v1151, 0
        %1206 = vmatpush.bf16.msra.mxu0 0
        %1207 = vmatpush.bf16.msra.mxu0 0
        %1208 = vmatpush.bf16.msra.mxu0 0
        %1209 = vmatpush.bf16.msra.mxu0 0
        %1210 = vmatpush.bf16.msra.mxu0 0
        %1211 = vmatpush.bf16.msra.mxu0 0
        %1212 = vmatpush.bf16.msra.mxu0 0
        %1213 = vmatpush.bf16.msra.mxu0 %v1201
        %1214 = vmatmul.bf16.gmra.mxu0 %v1153
        %v1215 = vpop.f32.mrf.mxu0
        %v1216 = vadd.f32 0.0, %v1215
        %v1217 = vpop.f32.mrf.mxu0
        %v1218 = vadd.f32 0.0, %v1217
        %1219 = vmatmul.bf16.gmra.mxu0 %v1156
        %v1220 = vpop.f32.mrf.mxu0
        %v1221 = vadd.f32 0.0, %v1220
        %v1222 = vpop.f32.mrf.mxu0
        %v1223 = vadd.f32 0.0, %v1222
        %1224 = vmatmul.bf16.gmra.mxu0 %v1159
        %v1225 = vpop.f32.mrf.mxu0
        %v1226 = vadd.f32 0.0, %v1225
        %v1227 = vpop.f32.mrf.mxu0
        %v1228 = vadd.f32 0.0, %v1227
        %1229 = vmatmul.bf16.gmra.mxu0 %v1162
        %v1230 = vpop.f32.mrf.mxu0
        %v1231 = vadd.f32 0.0, %v1230
        %v1232 = vpop.f32.mrf.mxu0
        %v1233 = vadd.f32 0.0, %v1232
        %1234 = vmatmul.bf16.gmra.mxu0 %v1165
        %v1235 = vpop.f32.mrf.mxu0
        %v1236 = vadd.f32 0.0, %v1235
        %v1237 = vpop.f32.mrf.mxu0
        %v1238 = vadd.f32 0.0, %v1237
        %1239 = vmatmul.bf16.gmra.mxu0 %v1168
        %v1240 = vpop.f32.mrf.mxu0
        %v1241 = vadd.f32 0.0, %v1240
        %v1242 = vpop.f32.mrf.mxu0
        %v1243 = vadd.f32 0.0, %v1242
        %1244 = vmatmul.bf16.gmra.mxu0 %v1171
        %v1245 = vpop.f32.mrf.mxu0
        %v1246 = vadd.f32 0.0, %v1245
        %v1247 = vpop.f32.mrf.mxu0
        %v1248 = vadd.f32 0.0, %v1247
        %1249 = vmatmul.bf16.gmra.mxu0 %v1174
        %v1250 = vpop.f32.mrf.mxu0
        %v1251 = vadd.f32 0.0, %v1250
        %v1252 = vpop.f32.mrf.mxu0
        %v1253 = vadd.f32 0.0, %v1252
        %1254 = vmatmul.bf16.gmra.mxu0 %v1177
        %v1255 = vpop.f32.mrf.mxu0
        %v1256 = vadd.f32 0.0, %v1255
        %v1257 = vpop.f32.mrf.mxu0
        %v1258 = vadd.f32 0.0, %v1257
        %1259 = vmatmul.bf16.gmra.mxu0 %v1180
        %v1260 = vpop.f32.mrf.mxu0
        %v1261 = vadd.f32 0.0, %v1260
        %v1262 = vpop.f32.mrf.mxu0
        %v1263 = vadd.f32 0.0, %v1262
        %1264 = vmatmul.bf16.gmra.mxu0 %v1183
        %v1265 = vpop.f32.mrf.mxu0
        %v1266 = vadd.f32 0.0, %v1265
        %v1267 = vpop.f32.mrf.mxu0
        %v1268 = vadd.f32 0.0, %v1267
        %1269 = vmatmul.bf16.gmra.mxu0 %v1186
        %v1270 = vpop.f32.mrf.mxu0
        %v1271 = vadd.f32 0.0, %v1270
        %v1272 = vpop.f32.mrf.mxu0
        %v1273 = vadd.f32 0.0, %v1272
        %1274 = vmatmul.bf16.gmra.mxu0 %v1189
        %v1275 = vpop.f32.mrf.mxu0
        %v1276 = vadd.f32 0.0, %v1275
        %v1277 = vpop.f32.mrf.mxu0
        %v1278 = vadd.f32 0.0, %v1277
        %1279 = vmatmul.bf16.gmra.mxu0 %v1192
        %v1280 = vpop.f32.mrf.mxu0
        %v1281 = vadd.f32 0.0, %v1280
        %v1282 = vpop.f32.mrf.mxu0
        %v1283 = vadd.f32 0.0, %v1282
        %1284 = vmatmul.bf16.gmra.mxu0 %v1195
        %v1285 = vpop.f32.mrf.mxu0
        %v1286 = vadd.f32 0.0, %v1285
        %v1287 = vpop.f32.mrf.mxu0
        %v1288 = vadd.f32 0.0, %v1287
        %1289 = vmatmul.bf16.gmra.mxu0 %v1198
        %v1290 = vpop.f32.mrf.mxu0
        %v1291 = vadd.f32 0.0, %v1290
        %v1292 = vpop.f32.mrf.mxu0
        %v1293 = vadd.f32 0.0, %v1292
        %1294 = vdwg.mxu0
        %1295 = vmatpush.bf16.msra.mxu0 0
        %1296 = vmatpush.bf16.msra.mxu0 0
        %1297 = vmatpush.bf16.msra.mxu0 0
        %1298 = vmatpush.bf16.msra.mxu0 0
        %1299 = vmatpush.bf16.msra.mxu0 0
        %1300 = vmatpush.bf16.msra.mxu0 0
        %1301 = vmatpush.bf16.msra.mxu0 0
        %1302 = vmatpush.bf16.msra.mxu0 %v1204
        %1303 = vmatmul.bf16.gmra.mxu0 %v1153
        %v1304 = vpop.f32.mrf.mxu0
        %v1305 = vadd.f32 0.0, %v1304
        %v1306 = vpop.f32.mrf.mxu0
        %v1307 = vadd.f32 0.0, %v1306
        %1308 = vmatmul.bf16.gmra.mxu0 %v1156
        %v1309 = vpop.f32.mrf.mxu0
        %v1310 = vadd.f32 0.0, %v1309
        %v1311 = vpop.f32.mrf.mxu0
        %v1312 = vadd.f32 0.0, %v1311
        %1313 = vmatmul.bf16.gmra.mxu0 %v1159
        %v1314 = vpop.f32.mrf.mxu0
        %v1315 = vadd.f32 0.0, %v1314
        %v1316 = vpop.f32.mrf.mxu0
        %v1317 = vadd.f32 0.0, %v1316
        %1318 = vmatmul.bf16.gmra.mxu0 %v1162
        %v1319 = vpop.f32.mrf.mxu0
        %v1320 = vadd.f32 0.0, %v1319
        %v1321 = vpop.f32.mrf.mxu0
        %v1322 = vadd.f32 0.0, %v1321
        %1323 = vmatmul.bf16.gmra.mxu0 %v1165
        %v1324 = vpop.f32.mrf.mxu0
        %v1325 = vadd.f32 0.0, %v1324
        %v1326 = vpop.f32.mrf.mxu0
        %v1327 = vadd.f32 0.0, %v1326
        %1328 = vmatmul.bf16.gmra.mxu0 %v1168
        %v1329 = vpop.f32.mrf.mxu0
        %v1330 = vadd.f32 0.0, %v1329
        %v1331 = vpop.f32.mrf.mxu0
        %v1332 = vadd.f32 0.0, %v1331
        %1333 = vmatmul.bf16.gmra.mxu0 %v1171
        %v1334 = vpop.f32.mrf.mxu0
        %v1335 = vadd.f32 0.0, %v1334
        %v1336 = vpop.f32.mrf.mxu0
        %v1337 = vadd.f32 0.0, %v1336
        %1338 = vmatmul.bf16.gmra.mxu0 %v1174
        %v1339 = vpop.f32.mrf.mxu0
        %v1340 = vadd.f32 0.0, %v1339
        %v1341 = vpop.f32.mrf.mxu0
        %v1342 = vadd.f32 0.0, %v1341
        %1343 = vmatmul.bf16.gmra.mxu0 %v1177
        %v1344 = vpop.f32.mrf.mxu0
        %v1345 = vadd.f32 0.0, %v1344
        %v1346 = vpop.f32.mrf.mxu0
        %v1347 = vadd.f32 0.0, %v1346
        %1348 = vmatmul.bf16.gmra.mxu0 %v1180
        %v1349 = vpop.f32.mrf.mxu0
        %v1350 = vadd.f32 0.0, %v1349
        %v1351 = vpop.f32.mrf.mxu0
        %v1352 = vadd.f32 0.0, %v1351
        %1353 = vmatmul.bf16.gmra.mxu0 %v1183
        %v1354 = vpop.f32.mrf.mxu0
        %v1355 = vadd.f32 0.0, %v1354
        %v1356 = vpop.f32.mrf.mxu0
        %v1357 = vadd.f32 0.0, %v1356
        %1358 = vmatmul.bf16.gmra.mxu0 %v1186
        %v1359 = vpop.f32.mrf.mxu0
        %v1360 = vadd.f32 0.0, %v1359
        %v1361 = vpop.f32.mrf.mxu0
        %v1362 = vadd.f32 0.0, %v1361
        %1363 = vmatmul.bf16.gmra.mxu0 %v1189
        %v1364 = vpop.f32.mrf.mxu0
        %v1365 = vadd.f32 0.0, %v1364
        %v1366 = vpop.f32.mrf.mxu0
        %v1367 = vadd.f32 0.0, %v1366
        %1368 = vmatmul.bf16.gmra.mxu0 %v1192
        %v1369 = vpop.f32.mrf.mxu0
        %v1370 = vadd.f32 0.0, %v1369
        %v1371 = vpop.f32.mrf.mxu0
        %v1372 = vadd.f32 0.0, %v1371
        %1373 = vmatmul.bf16.gmra.mxu0 %v1195
        %v1374 = vpop.f32.mrf.mxu0
        %v1375 = vadd.f32 0.0, %v1374
        %v1376 = vpop.f32.mrf.mxu0
        %v1377 = vadd.f32 0.0, %v1376
        %1378 = vmatmul.bf16.gmra.mxu0 %v1198
        %v1379 = vpop.f32.mrf.mxu0
        %v1380 = vadd.f32 0.0, %v1379
        %v1381 = vpop.f32.mrf.mxu0
        %v1382 = vadd.f32 0.0, %v1381
        %1383 = vdwg.mxu0
        %v1385 = vunpack.c.l.b16 %v832
        %v1386 = vunpack.c.h.b16 %v832
        %v1387 = vpack.c.b16 %v1385, %v1385
        %v1388 = vpack.c.b16 %v1386, %v1386
        %1391 = vxpose.binary.xlu0.c.b16.start [1/16] %v1388, %v1387, 128
        %1392 = vxpose.binary.xlu0.c.b16.cont [2/16] 0, 0, 128
        %1393 = vxpose.binary.xlu0.c.b16.cont [3/16] 0, 0, 128
        %1394 = vxpose.binary.xlu0.c.b16.cont [4/16] 0, 0, 128
        %1395 = vxpose.binary.xlu0.c.b16.cont [5/16] 0, 0, 128
        %1396 = vxpose.binary.xlu0.c.b16.cont [6/16] 0, 0, 128
        %1397 = vxpose.binary.xlu0.c.b16.cont [7/16] 0, 0, 128
        %1398 = vxpose.binary.xlu0.c.b16.end [8/16] 0, 0, 128
        %v1399 = vpop.trf.xlu0
        %v1400 = vpop.trf.xlu0
        %v1401 = vpop.trf.xlu0
        %v1402 = vpop.trf.xlu0
        %v1403 = vpop.trf.xlu0
        %v1404 = vpop.trf.xlu0
        %v1405 = vpop.trf.xlu0
        %v1406 = vpop.trf.xlu0
        %v1407 = vpop.trf.xlu0
        %v1408 = vpop.trf.xlu0
        %v1409 = vpop.trf.xlu0
        %v1410 = vpop.trf.xlu0
        %v1411 = vpop.trf.xlu0
        %v1412 = vpop.trf.xlu0
        %v1413 = vpop.trf.xlu0
        %v1414 = vpop.trf.xlu0
        %v1416 = vunpack.c.l.b16 %v840
        %v1417 = vunpack.c.h.b16 %v840
        %v1418 = vpack.c.b16 %v1416, %v1416
        %v1419 = vpack.c.b16 %v1417, %v1417
        %v1421 = vsel %vm882, %v1399, 0
        %v1424 = vsel %vm882, %v1401, 0
        %v1427 = vsel %vm882, %v1403, 0
        %v1430 = vsel %vm882, %v1405, 0
        %v1433 = vsel %vm882, %v1407, 0
        %v1436 = vsel %vm882, %v1409, 0
        %v1439 = vsel %vm882, %v1411, 0
        %v1442 = vsel %vm882, %v1413, 0
        %v1445 = vsel %vm882, %v1400, 0
        %v1448 = vsel %vm882, %v1402, 0
        %v1451 = vsel %vm882, %v1404, 0
        %v1454 = vsel %vm882, %v1406, 0
        %v1457 = vsel %vm882, %v1408, 0
        %v1460 = vsel %vm882, %v1410, 0
        %v1463 = vsel %vm882, %v1412, 0
        %v1466 = vsel %vm882, %v1414, 0
        %v1469 = vsel %vm931, %v1418, 0
        %v1472 = vsel %vm931, %v1419, 0
        %1474 = vmatpush.bf16.msra.mxu0 0
        %1475 = vmatpush.bf16.msra.mxu0 0
        %1476 = vmatpush.bf16.msra.mxu0 0
        %1477 = vmatpush.bf16.msra.mxu0 0
        %1478 = vmatpush.bf16.msra.mxu0 0
        %1479 = vmatpush.bf16.msra.mxu0 0
        %1480 = vmatpush.bf16.msra.mxu0 0
        %1481 = vmatpush.bf16.msra.mxu0 %v1469
        %1482 = vmatmul.bf16.gmra.mxu0 %v1421
        %v1483 = vpop.f32.mrf.mxu0
        %v1484 = vadd.f32 0.0, %v1483
        %v1485 = vpop.f32.mrf.mxu0
        %v1486 = vadd.f32 0.0, %v1485
        %1487 = vmatmul.bf16.gmra.mxu0 %v1424
        %v1488 = vpop.f32.mrf.mxu0
        %v1489 = vadd.f32 0.0, %v1488
        %v1490 = vpop.f32.mrf.mxu0
        %v1491 = vadd.f32 0.0, %v1490
        %1492 = vmatmul.bf16.gmra.mxu0 %v1427
        %v1493 = vpop.f32.mrf.mxu0
        %v1494 = vadd.f32 0.0, %v1493
        %v1495 = vpop.f32.mrf.mxu0
        %v1496 = vadd.f32 0.0, %v1495
        %1497 = vmatmul.bf16.gmra.mxu0 %v1430
        %v1498 = vpop.f32.mrf.mxu0
        %v1499 = vadd.f32 0.0, %v1498
        %v1500 = vpop.f32.mrf.mxu0
        %v1501 = vadd.f32 0.0, %v1500
        %1502 = vmatmul.bf16.gmra.mxu0 %v1433
        %v1503 = vpop.f32.mrf.mxu0
        %v1504 = vadd.f32 0.0, %v1503
        %v1505 = vpop.f32.mrf.mxu0
        %v1506 = vadd.f32 0.0, %v1505
        %1507 = vmatmul.bf16.gmra.mxu0 %v1436
        %v1508 = vpop.f32.mrf.mxu0
        %v1509 = vadd.f32 0.0, %v1508
        %v1510 = vpop.f32.mrf.mxu0
        %v1511 = vadd.f32 0.0, %v1510
        %1512 = vmatmul.bf16.gmra.mxu0 %v1439
        %v1513 = vpop.f32.mrf.mxu0
        %v1514 = vadd.f32 0.0, %v1513
        %v1515 = vpop.f32.mrf.mxu0
        %v1516 = vadd.f32 0.0, %v1515
        %1517 = vmatmul.bf16.gmra.mxu0 %v1442
        %v1518 = vpop.f32.mrf.mxu0
        %v1519 = vadd.f32 0.0, %v1518
        %v1520 = vpop.f32.mrf.mxu0
        %v1521 = vadd.f32 0.0, %v1520
        %1522 = vmatmul.bf16.gmra.mxu0 %v1445
        %v1523 = vpop.f32.mrf.mxu0
        %v1524 = vadd.f32 0.0, %v1523
        %v1525 = vpop.f32.mrf.mxu0
        %v1526 = vadd.f32 0.0, %v1525
        %1527 = vmatmul.bf16.gmra.mxu0 %v1448
        %v1528 = vpop.f32.mrf.mxu0
        %v1529 = vadd.f32 0.0, %v1528
        %v1530 = vpop.f32.mrf.mxu0
        %v1531 = vadd.f32 0.0, %v1530
        %1532 = vmatmul.bf16.gmra.mxu0 %v1451
        %v1533 = vpop.f32.mrf.mxu0
        %v1534 = vadd.f32 0.0, %v1533
        %v1535 = vpop.f32.mrf.mxu0
        %v1536 = vadd.f32 0.0, %v1535
        %1537 = vmatmul.bf16.gmra.mxu0 %v1454
        %v1538 = vpop.f32.mrf.mxu0
        %v1539 = vadd.f32 0.0, %v1538
        %v1540 = vpop.f32.mrf.mxu0
        %v1541 = vadd.f32 0.0, %v1540
        %1542 = vmatmul.bf16.gmra.mxu0 %v1457
        %v1543 = vpop.f32.mrf.mxu0
        %v1544 = vadd.f32 0.0, %v1543
        %v1545 = vpop.f32.mrf.mxu0
        %v1546 = vadd.f32 0.0, %v1545
        %1547 = vmatmul.bf16.gmra.mxu0 %v1460
        %v1548 = vpop.f32.mrf.mxu0
        %v1549 = vadd.f32 0.0, %v1548
        %v1550 = vpop.f32.mrf.mxu0
        %v1551 = vadd.f32 0.0, %v1550
        %1552 = vmatmul.bf16.gmra.mxu0 %v1463
        %v1553 = vpop.f32.mrf.mxu0
        %v1554 = vadd.f32 0.0, %v1553
        %v1555 = vpop.f32.mrf.mxu0
        %v1556 = vadd.f32 0.0, %v1555
        %1557 = vmatmul.bf16.gmra.mxu0 %v1466
        %v1558 = vpop.f32.mrf.mxu0
        %v1559 = vadd.f32 0.0, %v1558
        %v1560 = vpop.f32.mrf.mxu0
        %v1561 = vadd.f32 0.0, %v1560
        %1562 = vdwg.mxu0
        %1563 = vmatpush.bf16.msra.mxu0 0
        %1564 = vmatpush.bf16.msra.mxu0 0
        %1565 = vmatpush.bf16.msra.mxu0 0
        %1566 = vmatpush.bf16.msra.mxu0 0
        %1567 = vmatpush.bf16.msra.mxu0 0
        %1568 = vmatpush.bf16.msra.mxu0 0
        %1569 = vmatpush.bf16.msra.mxu0 0
        %1570 = vmatpush.bf16.msra.mxu0 %v1472
        %1571 = vmatmul.bf16.gmra.mxu0 %v1421
        %v1572 = vpop.f32.mrf.mxu0
        %v1573 = vadd.f32 0.0, %v1572
        %v1574 = vpop.f32.mrf.mxu0
        %v1575 = vadd.f32 0.0, %v1574
        %1576 = vmatmul.bf16.gmra.mxu0 %v1424
        %v1577 = vpop.f32.mrf.mxu0
        %v1578 = vadd.f32 0.0, %v1577
        %v1579 = vpop.f32.mrf.mxu0
        %v1580 = vadd.f32 0.0, %v1579
        %1581 = vmatmul.bf16.gmra.mxu0 %v1427
        %v1582 = vpop.f32.mrf.mxu0
        %v1583 = vadd.f32 0.0, %v1582
        %v1584 = vpop.f32.mrf.mxu0
        %v1585 = vadd.f32 0.0, %v1584
        %1586 = vmatmul.bf16.gmra.mxu0 %v1430
        %v1587 = vpop.f32.mrf.mxu0
        %v1588 = vadd.f32 0.0, %v1587
        %v1589 = vpop.f32.mrf.mxu0
        %v1590 = vadd.f32 0.0, %v1589
        %1591 = vmatmul.bf16.gmra.mxu0 %v1433
        %v1592 = vpop.f32.mrf.mxu0
        %v1593 = vadd.f32 0.0, %v1592
        %v1594 = vpop.f32.mrf.mxu0
        %v1595 = vadd.f32 0.0, %v1594
        %1596 = vmatmul.bf16.gmra.mxu0 %v1436
        %v1597 = vpop.f32.mrf.mxu0
        %v1598 = vadd.f32 0.0, %v1597
        %v1599 = vpop.f32.mrf.mxu0
        %v1600 = vadd.f32 0.0, %v1599
        %1601 = vmatmul.bf16.gmra.mxu0 %v1439
        %v1602 = vpop.f32.mrf.mxu0
        %v1603 = vadd.f32 0.0, %v1602
        %v1604 = vpop.f32.mrf.mxu0
        %v1605 = vadd.f32 0.0, %v1604
        %1606 = vmatmul.bf16.gmra.mxu0 %v1442
        %v1607 = vpop.f32.mrf.mxu0
        %v1608 = vadd.f32 0.0, %v1607
        %v1609 = vpop.f32.mrf.mxu0
        %v1610 = vadd.f32 0.0, %v1609
        %1611 = vmatmul.bf16.gmra.mxu0 %v1445
        %v1612 = vpop.f32.mrf.mxu0
        %v1613 = vadd.f32 0.0, %v1612
        %v1614 = vpop.f32.mrf.mxu0
        %v1615 = vadd.f32 0.0, %v1614
        %1616 = vmatmul.bf16.gmra.mxu0 %v1448
        %v1617 = vpop.f32.mrf.mxu0
        %v1618 = vadd.f32 0.0, %v1617
        %v1619 = vpop.f32.mrf.mxu0
        %v1620 = vadd.f32 0.0, %v1619
        %1621 = vmatmul.bf16.gmra.mxu0 %v1451
        %v1622 = vpop.f32.mrf.mxu0
        %v1623 = vadd.f32 0.0, %v1622
        %v1624 = vpop.f32.mrf.mxu0
        %v1625 = vadd.f32 0.0, %v1624
        %1626 = vmatmul.bf16.gmra.mxu0 %v1454
        %v1627 = vpop.f32.mrf.mxu0
        %v1628 = vadd.f32 0.0, %v1627
        %v1629 = vpop.f32.mrf.mxu0
        %v1630 = vadd.f32 0.0, %v1629
        %1631 = vmatmul.bf16.gmra.mxu0 %v1457
        %v1632 = vpop.f32.mrf.mxu0
        %v1633 = vadd.f32 0.0, %v1632
        %v1634 = vpop.f32.mrf.mxu0
        %v1635 = vadd.f32 0.0, %v1634
        %1636 = vmatmul.bf16.gmra.mxu0 %v1460
        %v1637 = vpop.f32.mrf.mxu0
        %v1638 = vadd.f32 0.0, %v1637
        %v1639 = vpop.f32.mrf.mxu0
        %v1640 = vadd.f32 0.0, %v1639
        %1641 = vmatmul.bf16.gmra.mxu0 %v1463
        %v1642 = vpop.f32.mrf.mxu0
        %v1643 = vadd.f32 0.0, %v1642
        %v1644 = vpop.f32.mrf.mxu0
        %v1645 = vadd.f32 0.0, %v1644
        %1646 = vmatmul.bf16.gmra.mxu0 %v1466
        %v1647 = vpop.f32.mrf.mxu0
        %v1648 = vadd.f32 0.0, %v1647
        %v1649 = vpop.f32.mrf.mxu0
        %v1650 = vadd.f32 0.0, %v1649
        %1651 = vdwg.mxu0
        %v1653 = vunpack.c.l.b16 %v833
        %v1654 = vunpack.c.h.b16 %v833
        %v1655 = vpack.c.b16 %v1653, %v1653
        %v1656 = vpack.c.b16 %v1654, %v1654
        %1659 = vxpose.binary.xlu0.c.b16.start [1/16] %v1656, %v1655, 128
        %1660 = vxpose.binary.xlu0.c.b16.cont [2/16] 0, 0, 128
        %1661 = vxpose.binary.xlu0.c.b16.cont [3/16] 0, 0, 128
        %1662 = vxpose.binary.xlu0.c.b16.cont [4/16] 0, 0, 128
        %1663 = vxpose.binary.xlu0.c.b16.cont [5/16] 0, 0, 128
        %1664 = vxpose.binary.xlu0.c.b16.cont [6/16] 0, 0, 128
        %1665 = vxpose.binary.xlu0.c.b16.cont [7/16] 0, 0, 128
        %1666 = vxpose.binary.xlu0.c.b16.end [8/16] 0, 0, 128
        %v1667 = vpop.trf.xlu0
        %v1668 = vpop.trf.xlu0
        %v1669 = vpop.trf.xlu0
        %v1670 = vpop.trf.xlu0
        %v1671 = vpop.trf.xlu0
        %v1672 = vpop.trf.xlu0
        %v1673 = vpop.trf.xlu0
        %v1674 = vpop.trf.xlu0
        %v1675 = vpop.trf.xlu0
        %v1676 = vpop.trf.xlu0
        %v1677 = vpop.trf.xlu0
        %v1678 = vpop.trf.xlu0
        %v1679 = vpop.trf.xlu0
        %v1680 = vpop.trf.xlu0
        %v1681 = vpop.trf.xlu0
        %v1682 = vpop.trf.xlu0
        %v1684 = vunpack.c.l.b16 %v841
        %v1685 = vunpack.c.h.b16 %v841
        %v1686 = vpack.c.b16 %v1684, %v1684
        %v1687 = vpack.c.b16 %v1685, %v1685
        %v1689 = vsel %vm882, %v1667, 0
        %v1692 = vsel %vm882, %v1669, 0
        %v1695 = vsel %vm882, %v1671, 0
        %v1698 = vsel %vm882, %v1673, 0
        %v1701 = vsel %vm882, %v1675, 0
        %v1704 = vsel %vm882, %v1677, 0
        %v1707 = vsel %vm882, %v1679, 0
        %v1710 = vsel %vm882, %v1681, 0
        %v1713 = vsel %vm882, %v1668, 0
        %v1716 = vsel %vm882, %v1670, 0
        %v1719 = vsel %vm882, %v1672, 0
        %v1722 = vsel %vm882, %v1674, 0
        %v1725 = vsel %vm882, %v1676, 0
        %v1728 = vsel %vm882, %v1678, 0
        %v1731 = vsel %vm882, %v1680, 0
        %v1734 = vsel %vm882, %v1682, 0
        %v1737 = vsel %vm931, %v1686, 0
        %v1740 = vsel %vm931, %v1687, 0
        %1742 = vmatpush.bf16.msra.mxu0 0
        %1743 = vmatpush.bf16.msra.mxu0 0
        %1744 = vmatpush.bf16.msra.mxu0 0
        %1745 = vmatpush.bf16.msra.mxu0 0
        %1746 = vmatpush.bf16.msra.mxu0 0
        %1747 = vmatpush.bf16.msra.mxu0 0
        %1748 = vmatpush.bf16.msra.mxu0 0
        %1749 = vmatpush.bf16.msra.mxu0 %v1737
        %1750 = vmatmul.bf16.gmra.mxu0 %v1689
        %v1751 = vpop.f32.mrf.mxu0
        %v1752 = vadd.f32 0.0, %v1751
        %v1753 = vpop.f32.mrf.mxu0
        %v1754 = vadd.f32 0.0, %v1753
        %1755 = vmatmul.bf16.gmra.mxu0 %v1692
        %v1756 = vpop.f32.mrf.mxu0
        %v1757 = vadd.f32 0.0, %v1756
        %v1758 = vpop.f32.mrf.mxu0
        %v1759 = vadd.f32 0.0, %v1758
        %1760 = vmatmul.bf16.gmra.mxu0 %v1695
        %v1761 = vpop.f32.mrf.mxu0
        %v1762 = vadd.f32 0.0, %v1761
        %v1763 = vpop.f32.mrf.mxu0
        %v1764 = vadd.f32 0.0, %v1763
        %1765 = vmatmul.bf16.gmra.mxu0 %v1698
        %v1766 = vpop.f32.mrf.mxu0
        %v1767 = vadd.f32 0.0, %v1766
        %v1768 = vpop.f32.mrf.mxu0
        %v1769 = vadd.f32 0.0, %v1768
        %1770 = vmatmul.bf16.gmra.mxu0 %v1701
        %v1771 = vpop.f32.mrf.mxu0
        %v1772 = vadd.f32 0.0, %v1771
        %v1773 = vpop.f32.mrf.mxu0
        %v1774 = vadd.f32 0.0, %v1773
        %1775 = vmatmul.bf16.gmra.mxu0 %v1704
        %v1776 = vpop.f32.mrf.mxu0
        %v1777 = vadd.f32 0.0, %v1776
        %v1778 = vpop.f32.mrf.mxu0
        %v1779 = vadd.f32 0.0, %v1778
        %1780 = vmatmul.bf16.gmra.mxu0 %v1707
        %v1781 = vpop.f32.mrf.mxu0
        %v1782 = vadd.f32 0.0, %v1781
        %v1783 = vpop.f32.mrf.mxu0
        %v1784 = vadd.f32 0.0, %v1783
        %1785 = vmatmul.bf16.gmra.mxu0 %v1710
        %v1786 = vpop.f32.mrf.mxu0
        %v1787 = vadd.f32 0.0, %v1786
        %v1788 = vpop.f32.mrf.mxu0
        %v1789 = vadd.f32 0.0, %v1788
        %1790 = vmatmul.bf16.gmra.mxu0 %v1713
        %v1791 = vpop.f32.mrf.mxu0
        %v1792 = vadd.f32 0.0, %v1791
        %v1793 = vpop.f32.mrf.mxu0
        %v1794 = vadd.f32 0.0, %v1793
        %1795 = vmatmul.bf16.gmra.mxu0 %v1716
        %v1796 = vpop.f32.mrf.mxu0
        %v1797 = vadd.f32 0.0, %v1796
        %v1798 = vpop.f32.mrf.mxu0
        %v1799 = vadd.f32 0.0, %v1798
        %1800 = vmatmul.bf16.gmra.mxu0 %v1719
        %v1801 = vpop.f32.mrf.mxu0
        %v1802 = vadd.f32 0.0, %v1801
        %v1803 = vpop.f32.mrf.mxu0
        %v1804 = vadd.f32 0.0, %v1803
        %1805 = vmatmul.bf16.gmra.mxu0 %v1722
        %v1806 = vpop.f32.mrf.mxu0
        %v1807 = vadd.f32 0.0, %v1806
        %v1808 = vpop.f32.mrf.mxu0
        %v1809 = vadd.f32 0.0, %v1808
        %1810 = vmatmul.bf16.gmra.mxu0 %v1725
        %v1811 = vpop.f32.mrf.mxu0
        %v1812 = vadd.f32 0.0, %v1811
        %v1813 = vpop.f32.mrf.mxu0
        %v1814 = vadd.f32 0.0, %v1813
        %1815 = vmatmul.bf16.gmra.mxu0 %v1728
        %v1816 = vpop.f32.mrf.mxu0
        %v1817 = vadd.f32 0.0, %v1816
        %v1818 = vpop.f32.mrf.mxu0
        %v1819 = vadd.f32 0.0, %v1818
        %1820 = vmatmul.bf16.gmra.mxu0 %v1731
        %v1821 = vpop.f32.mrf.mxu0
        %v1822 = vadd.f32 0.0, %v1821
        %v1823 = vpop.f32.mrf.mxu0
        %v1824 = vadd.f32 0.0, %v1823
        %1825 = vmatmul.bf16.gmra.mxu0 %v1734
        %v1826 = vpop.f32.mrf.mxu0
        %v1827 = vadd.f32 0.0, %v1826
        %v1828 = vpop.f32.mrf.mxu0
        %v1829 = vadd.f32 0.0, %v1828
        %1830 = vdwg.mxu0
        %1831 = vmatpush.bf16.msra.mxu0 0
        %1832 = vmatpush.bf16.msra.mxu0 0
        %1833 = vmatpush.bf16.msra.mxu0 0
        %1834 = vmatpush.bf16.msra.mxu0 0
        %1835 = vmatpush.bf16.msra.mxu0 0
        %1836 = vmatpush.bf16.msra.mxu0 0
        %1837 = vmatpush.bf16.msra.mxu0 0
        %1838 = vmatpush.bf16.msra.mxu0 %v1740
        %1839 = vmatmul.bf16.gmra.mxu0 %v1689
        %v1840 = vpop.f32.mrf.mxu0
        %v1841 = vadd.f32 0.0, %v1840
        %v1842 = vpop.f32.mrf.mxu0
        %v1843 = vadd.f32 0.0, %v1842
        %1844 = vmatmul.bf16.gmra.mxu0 %v1692
        %v1845 = vpop.f32.mrf.mxu0
        %v1846 = vadd.f32 0.0, %v1845
        %v1847 = vpop.f32.mrf.mxu0
        %v1848 = vadd.f32 0.0, %v1847
        %1849 = vmatmul.bf16.gmra.mxu0 %v1695
        %v1850 = vpop.f32.mrf.mxu0
        %v1851 = vadd.f32 0.0, %v1850
        %v1852 = vpop.f32.mrf.mxu0
        %v1853 = vadd.f32 0.0, %v1852
        %1854 = vmatmul.bf16.gmra.mxu0 %v1698
        %v1855 = vpop.f32.mrf.mxu0
        %v1856 = vadd.f32 0.0, %v1855
        %v1857 = vpop.f32.mrf.mxu0
        %v1858 = vadd.f32 0.0, %v1857
        %1859 = vmatmul.bf16.gmra.mxu0 %v1701
        %v1860 = vpop.f32.mrf.mxu0
        %v1861 = vadd.f32 0.0, %v1860
        %v1862 = vpop.f32.mrf.mxu0
        %v1863 = vadd.f32 0.0, %v1862
        %1864 = vmatmul.bf16.gmra.mxu0 %v1704
        %v1865 = vpop.f32.mrf.mxu0
        %v1866 = vadd.f32 0.0, %v1865
        %v1867 = vpop.f32.mrf.mxu0
        %v1868 = vadd.f32 0.0, %v1867
        %1869 = vmatmul.bf16.gmra.mxu0 %v1707
        %v1870 = vpop.f32.mrf.mxu0
        %v1871 = vadd.f32 0.0, %v1870
        %v1872 = vpop.f32.mrf.mxu0
        %v1873 = vadd.f32 0.0, %v1872
        %1874 = vmatmul.bf16.gmra.mxu0 %v1710
        %v1875 = vpop.f32.mrf.mxu0
        %v1876 = vadd.f32 0.0, %v1875
        %v1877 = vpop.f32.mrf.mxu0
        %v1878 = vadd.f32 0.0, %v1877
        %1879 = vmatmul.bf16.gmra.mxu0 %v1713
        %v1880 = vpop.f32.mrf.mxu0
        %v1881 = vadd.f32 0.0, %v1880
        %v1882 = vpop.f32.mrf.mxu0
        %v1883 = vadd.f32 0.0, %v1882
        %1884 = vmatmul.bf16.gmra.mxu0 %v1716
        %v1885 = vpop.f32.mrf.mxu0
        %v1886 = vadd.f32 0.0, %v1885
        %v1887 = vpop.f32.mrf.mxu0
        %v1888 = vadd.f32 0.0, %v1887
        %1889 = vmatmul.bf16.gmra.mxu0 %v1719
        %v1890 = vpop.f32.mrf.mxu0
        %v1891 = vadd.f32 0.0, %v1890
        %v1892 = vpop.f32.mrf.mxu0
        %v1893 = vadd.f32 0.0, %v1892
        %1894 = vmatmul.bf16.gmra.mxu0 %v1722
        %v1895 = vpop.f32.mrf.mxu0
        %v1896 = vadd.f32 0.0, %v1895
        %v1897 = vpop.f32.mrf.mxu0
        %v1898 = vadd.f32 0.0, %v1897
        %1899 = vmatmul.bf16.gmra.mxu0 %v1725
        %v1900 = vpop.f32.mrf.mxu0
        %v1901 = vadd.f32 0.0, %v1900
        %v1902 = vpop.f32.mrf.mxu0
        %v1903 = vadd.f32 0.0, %v1902
        %1904 = vmatmul.bf16.gmra.mxu0 %v1728
        %v1905 = vpop.f32.mrf.mxu0
        %v1906 = vadd.f32 0.0, %v1905
        %v1907 = vpop.f32.mrf.mxu0
        %v1908 = vadd.f32 0.0, %v1907
        %1909 = vmatmul.bf16.gmra.mxu0 %v1731
        %v1910 = vpop.f32.mrf.mxu0
        %v1911 = vadd.f32 0.0, %v1910
        %v1912 = vpop.f32.mrf.mxu0
        %v1913 = vadd.f32 0.0, %v1912
        %1914 = vmatmul.bf16.gmra.mxu0 %v1734
        %v1915 = vpop.f32.mrf.mxu0
        %v1916 = vadd.f32 0.0, %v1915
        %v1917 = vpop.f32.mrf.mxu0
        %v1918 = vadd.f32 0.0, %v1917
        %1919 = vdwg.mxu0
        %v1921 = vunpack.c.l.b16 %v834
        %v1922 = vunpack.c.h.b16 %v834
        %v1923 = vpack.c.b16 %v1921, %v1921
        %v1924 = vpack.c.b16 %v1922, %v1922
        %1927 = vxpose.binary.xlu0.c.b16.start [1/16] %v1924, %v1923, 128
        %1928 = vxpose.binary.xlu0.c.b16.cont [2/16] 0, 0, 128
        %1929 = vxpose.binary.xlu0.c.b16.cont [3/16] 0, 0, 128
        %1930 = vxpose.binary.xlu0.c.b16.cont [4/16] 0, 0, 128
        %1931 = vxpose.binary.xlu0.c.b16.cont [5/16] 0, 0, 128
        %1932 = vxpose.binary.xlu0.c.b16.cont [6/16] 0, 0, 128
        %1933 = vxpose.binary.xlu0.c.b16.cont [7/16] 0, 0, 128
        %1934 = vxpose.binary.xlu0.c.b16.end [8/16] 0, 0, 128
        %v1935 = vpop.trf.xlu0
        %v1936 = vpop.trf.xlu0
        %v1937 = vpop.trf.xlu0
        %v1938 = vpop.trf.xlu0
        %v1939 = vpop.trf.xlu0
        %v1940 = vpop.trf.xlu0
        %v1941 = vpop.trf.xlu0
        %v1942 = vpop.trf.xlu0
        %v1943 = vpop.trf.xlu0
        %v1944 = vpop.trf.xlu0
        %v1945 = vpop.trf.xlu0
        %v1946 = vpop.trf.xlu0
        %v1947 = vpop.trf.xlu0
        %v1948 = vpop.trf.xlu0
        %v1949 = vpop.trf.xlu0
        %v1950 = vpop.trf.xlu0
        %v1952 = vunpack.c.l.b16 %v842
        %v1953 = vunpack.c.h.b16 %v842
        %v1954 = vpack.c.b16 %v1952, %v1952
        %v1955 = vpack.c.b16 %v1953, %v1953
        %v1957 = vsel %vm882, %v1935, 0
        %v1960 = vsel %vm882, %v1937, 0
        %v1963 = vsel %vm882, %v1939, 0
        %v1966 = vsel %vm882, %v1941, 0
        %v1969 = vsel %vm882, %v1943, 0
        %v1972 = vsel %vm882, %v1945, 0
        %v1975 = vsel %vm882, %v1947, 0
        %v1978 = vsel %vm882, %v1949, 0
        %v1981 = vsel %vm882, %v1936, 0
        %v1984 = vsel %vm882, %v1938, 0
        %v1987 = vsel %vm882, %v1940, 0
        %v1990 = vsel %vm882, %v1942, 0
        %v1993 = vsel %vm882, %v1944, 0
        %v1996 = vsel %vm882, %v1946, 0
        %v1999 = vsel %vm882, %v1948, 0
        %v2002 = vsel %vm882, %v1950, 0
        %v2005 = vsel %vm931, %v1954, 0
        %v2008 = vsel %vm931, %v1955, 0
        %2010 = vmatpush.bf16.msra.mxu0 0
        %2011 = vmatpush.bf16.msra.mxu0 0
        %2012 = vmatpush.bf16.msra.mxu0 0
        %2013 = vmatpush.bf16.msra.mxu0 0
        %2014 = vmatpush.bf16.msra.mxu0 0
        %2015 = vmatpush.bf16.msra.mxu0 0
        %2016 = vmatpush.bf16.msra.mxu0 0
        %2017 = vmatpush.bf16.msra.mxu0 %v2005
        %2018 = vmatmul.bf16.gmra.mxu0 %v1957
        %v2019 = vpop.f32.mrf.mxu0
        %v2020 = vadd.f32 0.0, %v2019
        %v2021 = vpop.f32.mrf.mxu0
        %v2022 = vadd.f32 0.0, %v2021
        %2023 = vmatmul.bf16.gmra.mxu0 %v1960
        %v2024 = vpop.f32.mrf.mxu0
        %v2025 = vadd.f32 0.0, %v2024
        %v2026 = vpop.f32.mrf.mxu0
        %v2027 = vadd.f32 0.0, %v2026
        %2028 = vmatmul.bf16.gmra.mxu0 %v1963
        %v2029 = vpop.f32.mrf.mxu0
        %v2030 = vadd.f32 0.0, %v2029
        %v2031 = vpop.f32.mrf.mxu0
        %v2032 = vadd.f32 0.0, %v2031
        %2033 = vmatmul.bf16.gmra.mxu0 %v1966
        %v2034 = vpop.f32.mrf.mxu0
        %v2035 = vadd.f32 0.0, %v2034
        %v2036 = vpop.f32.mrf.mxu0
        %v2037 = vadd.f32 0.0, %v2036
        %2038 = vmatmul.bf16.gmra.mxu0 %v1969
        %v2039 = vpop.f32.mrf.mxu0
        %v2040 = vadd.f32 0.0, %v2039
        %v2041 = vpop.f32.mrf.mxu0
        %v2042 = vadd.f32 0.0, %v2041
        %2043 = vmatmul.bf16.gmra.mxu0 %v1972
        %v2044 = vpop.f32.mrf.mxu0
        %v2045 = vadd.f32 0.0, %v2044
        %v2046 = vpop.f32.mrf.mxu0
        %v2047 = vadd.f32 0.0, %v2046
        %2048 = vmatmul.bf16.gmra.mxu0 %v1975
        %v2049 = vpop.f32.mrf.mxu0
        %v2050 = vadd.f32 0.0, %v2049
        %v2051 = vpop.f32.mrf.mxu0
        %v2052 = vadd.f32 0.0, %v2051
        %2053 = vmatmul.bf16.gmra.mxu0 %v1978
        %v2054 = vpop.f32.mrf.mxu0
        %v2055 = vadd.f32 0.0, %v2054
        %v2056 = vpop.f32.mrf.mxu0
        %v2057 = vadd.f32 0.0, %v2056
        %2058 = vmatmul.bf16.gmra.mxu0 %v1981
        %v2059 = vpop.f32.mrf.mxu0
        %v2060 = vadd.f32 0.0, %v2059
        %v2061 = vpop.f32.mrf.mxu0
        %v2062 = vadd.f32 0.0, %v2061
        %2063 = vmatmul.bf16.gmra.mxu0 %v1984
        %v2064 = vpop.f32.mrf.mxu0
        %v2065 = vadd.f32 0.0, %v2064
        %v2066 = vpop.f32.mrf.mxu0
        %v2067 = vadd.f32 0.0, %v2066
        %2068 = vmatmul.bf16.gmra.mxu0 %v1987
        %v2069 = vpop.f32.mrf.mxu0
        %v2070 = vadd.f32 0.0, %v2069
        %v2071 = vpop.f32.mrf.mxu0
        %v2072 = vadd.f32 0.0, %v2071
        %2073 = vmatmul.bf16.gmra.mxu0 %v1990
        %v2074 = vpop.f32.mrf.mxu0
        %v2075 = vadd.f32 0.0, %v2074
        %v2076 = vpop.f32.mrf.mxu0
        %v2077 = vadd.f32 0.0, %v2076
        %2078 = vmatmul.bf16.gmra.mxu0 %v1993
        %v2079 = vpop.f32.mrf.mxu0
        %v2080 = vadd.f32 0.0, %v2079
        %v2081 = vpop.f32.mrf.mxu0
        %v2082 = vadd.f32 0.0, %v2081
        %2083 = vmatmul.bf16.gmra.mxu0 %v1996
        %v2084 = vpop.f32.mrf.mxu0
        %v2085 = vadd.f32 0.0, %v2084
        %v2086 = vpop.f32.mrf.mxu0
        %v2087 = vadd.f32 0.0, %v2086
        %2088 = vmatmul.bf16.gmra.mxu0 %v1999
        %v2089 = vpop.f32.mrf.mxu0
        %v2090 = vadd.f32 0.0, %v2089
        %v2091 = vpop.f32.mrf.mxu0
        %v2092 = vadd.f32 0.0, %v2091
        %2093 = vmatmul.bf16.gmra.mxu0 %v2002
        %v2094 = vpop.f32.mrf.mxu0
        %v2095 = vadd.f32 0.0, %v2094
        %v2096 = vpop.f32.mrf.mxu0
        %v2097 = vadd.f32 0.0, %v2096
        %2098 = vdwg.mxu0
        %2099 = vmatpush.bf16.msra.mxu0 0
        %2100 = vmatpush.bf16.msra.mxu0 0
        %2101 = vmatpush.bf16.msra.mxu0 0
        %2102 = vmatpush.bf16.msra.mxu0 0
        %2103 = vmatpush.bf16.msra.mxu0 0
        %2104 = vmatpush.bf16.msra.mxu0 0
        %2105 = vmatpush.bf16.msra.mxu0 0
        %2106 = vmatpush.bf16.msra.mxu0 %v2008
        %2107 = vmatmul.bf16.gmra.mxu0 %v1957
        %v2108 = vpop.f32.mrf.mxu0
        %v2109 = vadd.f32 0.0, %v2108
        %v2110 = vpop.f32.mrf.mxu0
        %v2111 = vadd.f32 0.0, %v2110
        %2112 = vmatmul.bf16.gmra.mxu0 %v1960
        %v2113 = vpop.f32.mrf.mxu0
        %v2114 = vadd.f32 0.0, %v2113
        %v2115 = vpop.f32.mrf.mxu0
        %v2116 = vadd.f32 0.0, %v2115
        %2117 = vmatmul.bf16.gmra.mxu0 %v1963
        %v2118 = vpop.f32.mrf.mxu0
        %v2119 = vadd.f32 0.0, %v2118
        %v2120 = vpop.f32.mrf.mxu0
        %v2121 = vadd.f32 0.0, %v2120
        %2122 = vmatmul.bf16.gmra.mxu0 %v1966
        %v2123 = vpop.f32.mrf.mxu0
        %v2124 = vadd.f32 0.0, %v2123
        %v2125 = vpop.f32.mrf.mxu0
        %v2126 = vadd.f32 0.0, %v2125
        %2127 = vmatmul.bf16.gmra.mxu0 %v1969
        %v2128 = vpop.f32.mrf.mxu0
        %v2129 = vadd.f32 0.0, %v2128
        %v2130 = vpop.f32.mrf.mxu0
        %v2131 = vadd.f32 0.0, %v2130
        %2132 = vmatmul.bf16.gmra.mxu0 %v1972
        %v2133 = vpop.f32.mrf.mxu0
        %v2134 = vadd.f32 0.0, %v2133
        %v2135 = vpop.f32.mrf.mxu0
        %v2136 = vadd.f32 0.0, %v2135
        %2137 = vmatmul.bf16.gmra.mxu0 %v1975
        %v2138 = vpop.f32.mrf.mxu0
        %v2139 = vadd.f32 0.0, %v2138
        %v2140 = vpop.f32.mrf.mxu0
        %v2141 = vadd.f32 0.0, %v2140
        %2142 = vmatmul.bf16.gmra.mxu0 %v1978
        %v2143 = vpop.f32.mrf.mxu0
        %v2144 = vadd.f32 0.0, %v2143
        %v2145 = vpop.f32.mrf.mxu0
        %v2146 = vadd.f32 0.0, %v2145
        %2147 = vmatmul.bf16.gmra.mxu0 %v1981
        %v2148 = vpop.f32.mrf.mxu0
        %v2149 = vadd.f32 0.0, %v2148
        %v2150 = vpop.f32.mrf.mxu0
        %v2151 = vadd.f32 0.0, %v2150
        %2152 = vmatmul.bf16.gmra.mxu0 %v1984
        %v2153 = vpop.f32.mrf.mxu0
        %v2154 = vadd.f32 0.0, %v2153
        %v2155 = vpop.f32.mrf.mxu0
        %v2156 = vadd.f32 0.0, %v2155
        %2157 = vmatmul.bf16.gmra.mxu0 %v1987
        %v2158 = vpop.f32.mrf.mxu0
        %v2159 = vadd.f32 0.0, %v2158
        %v2160 = vpop.f32.mrf.mxu0
        %v2161 = vadd.f32 0.0, %v2160
        %2162 = vmatmul.bf16.gmra.mxu0 %v1990
        %v2163 = vpop.f32.mrf.mxu0
        %v2164 = vadd.f32 0.0, %v2163
        %v2165 = vpop.f32.mrf.mxu0
        %v2166 = vadd.f32 0.0, %v2165
        %2167 = vmatmul.bf16.gmra.mxu0 %v1993
        %v2168 = vpop.f32.mrf.mxu0
        %v2169 = vadd.f32 0.0, %v2168
        %v2170 = vpop.f32.mrf.mxu0
        %v2171 = vadd.f32 0.0, %v2170
        %2172 = vmatmul.bf16.gmra.mxu0 %v1996
        %v2173 = vpop.f32.mrf.mxu0
        %v2174 = vadd.f32 0.0, %v2173
        %v2175 = vpop.f32.mrf.mxu0
        %v2176 = vadd.f32 0.0, %v2175
        %2177 = vmatmul.bf16.gmra.mxu0 %v1999
        %v2178 = vpop.f32.mrf.mxu0
        %v2179 = vadd.f32 0.0, %v2178
        %v2180 = vpop.f32.mrf.mxu0
        %v2181 = vadd.f32 0.0, %v2180
        %2182 = vmatmul.bf16.gmra.mxu0 %v2002
        %v2183 = vpop.f32.mrf.mxu0
        %v2184 = vadd.f32 0.0, %v2183
        %v2185 = vpop.f32.mrf.mxu0
        %v2186 = vadd.f32 0.0, %v2185
        %2187 = vdwg.mxu0
        %v2189 = vunpack.c.l.b16 %v835
        %v2190 = vunpack.c.h.b16 %v835
        %v2191 = vpack.c.b16 %v2189, %v2189
        %v2192 = vpack.c.b16 %v2190, %v2190
        %2195 = vxpose.binary.xlu0.c.b16.start [1/16] %v2192, %v2191, 128
        %2196 = vxpose.binary.xlu0.c.b16.cont [2/16] 0, 0, 128
        %2197 = vxpose.binary.xlu0.c.b16.cont [3/16] 0, 0, 128
        %2198 = vxpose.binary.xlu0.c.b16.cont [4/16] 0, 0, 128
        %2199 = vxpose.binary.xlu0.c.b16.cont [5/16] 0, 0, 128
        %2200 = vxpose.binary.xlu0.c.b16.cont [6/16] 0, 0, 128
        %2201 = vxpose.binary.xlu0.c.b16.cont [7/16] 0, 0, 128
        %2202 = vxpose.binary.xlu0.c.b16.end [8/16] 0, 0, 128
        %v2203 = vpop.trf.xlu0
        %v2204 = vpop.trf.xlu0
        %v2205 = vpop.trf.xlu0
        %v2206 = vpop.trf.xlu0
        %v2207 = vpop.trf.xlu0
        %v2208 = vpop.trf.xlu0
        %v2209 = vpop.trf.xlu0
        %v2210 = vpop.trf.xlu0
        %v2211 = vpop.trf.xlu0
        %v2212 = vpop.trf.xlu0
        %v2213 = vpop.trf.xlu0
        %v2214 = vpop.trf.xlu0
        %v2215 = vpop.trf.xlu0
        %v2216 = vpop.trf.xlu0
        %v2217 = vpop.trf.xlu0
        %v2218 = vpop.trf.xlu0
        %v2220 = vunpack.c.l.b16 %v843
        %v2221 = vunpack.c.h.b16 %v843
        %v2222 = vpack.c.b16 %v2220, %v2220
        %v2223 = vpack.c.b16 %v2221, %v2221
        %v2225 = vsel %vm882, %v2203, 0
        %v2228 = vsel %vm882, %v2205, 0
        %v2231 = vsel %vm882, %v2207, 0
        %v2234 = vsel %vm882, %v2209, 0
        %v2237 = vsel %vm882, %v2211, 0
        %v2240 = vsel %vm882, %v2213, 0
        %v2243 = vsel %vm882, %v2215, 0
        %v2246 = vsel %vm882, %v2217, 0
        %v2249 = vsel %vm882, %v2204, 0
        %v2252 = vsel %vm882, %v2206, 0
        %v2255 = vsel %vm882, %v2208, 0
        %v2258 = vsel %vm882, %v2210, 0
        %v2261 = vsel %vm882, %v2212, 0
        %v2264 = vsel %vm882, %v2214, 0
        %v2267 = vsel %vm882, %v2216, 0
        %v2270 = vsel %vm882, %v2218, 0
        %v2273 = vsel %vm931, %v2222, 0
        %v2276 = vsel %vm931, %v2223, 0
        %2278 = vmatpush.bf16.msra.mxu0 0
        %2279 = vmatpush.bf16.msra.mxu0 0
        %2280 = vmatpush.bf16.msra.mxu0 0
        %2281 = vmatpush.bf16.msra.mxu0 0
        %2282 = vmatpush.bf16.msra.mxu0 0
        %2283 = vmatpush.bf16.msra.mxu0 0
        %2284 = vmatpush.bf16.msra.mxu0 0
        %2285 = vmatpush.bf16.msra.mxu0 %v2273
        %2286 = vmatmul.bf16.gmra.mxu0 %v2225
        %v2287 = vpop.f32.mrf.mxu0
        %v2288 = vadd.f32 0.0, %v2287
        %v2289 = vpop.f32.mrf.mxu0
        %v2290 = vadd.f32 0.0, %v2289
        %2291 = vmatmul.bf16.gmra.mxu0 %v2228
        %v2292 = vpop.f32.mrf.mxu0
        %v2293 = vadd.f32 0.0, %v2292
        %v2294 = vpop.f32.mrf.mxu0
        %v2295 = vadd.f32 0.0, %v2294
        %2296 = vmatmul.bf16.gmra.mxu0 %v2231
        %v2297 = vpop.f32.mrf.mxu0
        %v2298 = vadd.f32 0.0, %v2297
        %v2299 = vpop.f32.mrf.mxu0
        %v2300 = vadd.f32 0.0, %v2299
        %2301 = vmatmul.bf16.gmra.mxu0 %v2234
        %v2302 = vpop.f32.mrf.mxu0
        %v2303 = vadd.f32 0.0, %v2302
        %v2304 = vpop.f32.mrf.mxu0
        %v2305 = vadd.f32 0.0, %v2304
        %2306 = vmatmul.bf16.gmra.mxu0 %v2237
        %v2307 = vpop.f32.mrf.mxu0
        %v2308 = vadd.f32 0.0, %v2307
        %v2309 = vpop.f32.mrf.mxu0
        %v2310 = vadd.f32 0.0, %v2309
        %2311 = vmatmul.bf16.gmra.mxu0 %v2240
        %v2312 = vpop.f32.mrf.mxu0
        %v2313 = vadd.f32 0.0, %v2312
        %v2314 = vpop.f32.mrf.mxu0
        %v2315 = vadd.f32 0.0, %v2314
        %2316 = vmatmul.bf16.gmra.mxu0 %v2243
        %v2317 = vpop.f32.mrf.mxu0
        %v2318 = vadd.f32 0.0, %v2317
        %v2319 = vpop.f32.mrf.mxu0
        %v2320 = vadd.f32 0.0, %v2319
        %2321 = vmatmul.bf16.gmra.mxu0 %v2246
        %v2322 = vpop.f32.mrf.mxu0
        %v2323 = vadd.f32 0.0, %v2322
        %v2324 = vpop.f32.mrf.mxu0
        %v2325 = vadd.f32 0.0, %v2324
        %2326 = vmatmul.bf16.gmra.mxu0 %v2249
        %v2327 = vpop.f32.mrf.mxu0
        %v2328 = vadd.f32 0.0, %v2327
        %v2329 = vpop.f32.mrf.mxu0
        %v2330 = vadd.f32 0.0, %v2329
        %2331 = vmatmul.bf16.gmra.mxu0 %v2252
        %v2332 = vpop.f32.mrf.mxu0
        %v2333 = vadd.f32 0.0, %v2332
        %v2334 = vpop.f32.mrf.mxu0
        %v2335 = vadd.f32 0.0, %v2334
        %2336 = vmatmul.bf16.gmra.mxu0 %v2255
        %v2337 = vpop.f32.mrf.mxu0
        %v2338 = vadd.f32 0.0, %v2337
        %v2339 = vpop.f32.mrf.mxu0
        %v2340 = vadd.f32 0.0, %v2339
        %2341 = vmatmul.bf16.gmra.mxu0 %v2258
        %v2342 = vpop.f32.mrf.mxu0
        %v2343 = vadd.f32 0.0, %v2342
        %v2344 = vpop.f32.mrf.mxu0
        %v2345 = vadd.f32 0.0, %v2344
        %2346 = vmatmul.bf16.gmra.mxu0 %v2261
        %v2347 = vpop.f32.mrf.mxu0
        %v2348 = vadd.f32 0.0, %v2347
        %v2349 = vpop.f32.mrf.mxu0
        %v2350 = vadd.f32 0.0, %v2349
        %2351 = vmatmul.bf16.gmra.mxu0 %v2264
        %v2352 = vpop.f32.mrf.mxu0
        %v2353 = vadd.f32 0.0, %v2352
        %v2354 = vpop.f32.mrf.mxu0
        %v2355 = vadd.f32 0.0, %v2354
        %2356 = vmatmul.bf16.gmra.mxu0 %v2267
        %v2357 = vpop.f32.mrf.mxu0
        %v2358 = vadd.f32 0.0, %v2357
        %v2359 = vpop.f32.mrf.mxu0
        %v2360 = vadd.f32 0.0, %v2359
        %2361 = vmatmul.bf16.gmra.mxu0 %v2270
        %v2362 = vpop.f32.mrf.mxu0
        %v2363 = vadd.f32 0.0, %v2362
        %v2364 = vpop.f32.mrf.mxu0
        %v2365 = vadd.f32 0.0, %v2364
        %2366 = vdwg.mxu0
        %2367 = vmatpush.bf16.msra.mxu0 0
        %2368 = vmatpush.bf16.msra.mxu0 0
        %2369 = vmatpush.bf16.msra.mxu0 0
        %2370 = vmatpush.bf16.msra.mxu0 0
        %2371 = vmatpush.bf16.msra.mxu0 0
        %2372 = vmatpush.bf16.msra.mxu0 0
        %2373 = vmatpush.bf16.msra.mxu0 0
        %2374 = vmatpush.bf16.msra.mxu0 %v2276
        %2375 = vmatmul.bf16.gmra.mxu0 %v2225
        %v2376 = vpop.f32.mrf.mxu0
        %v2377 = vadd.f32 0.0, %v2376
        %v2378 = vpop.f32.mrf.mxu0
        %v2379 = vadd.f32 0.0, %v2378
        %2380 = vmatmul.bf16.gmra.mxu0 %v2228
        %v2381 = vpop.f32.mrf.mxu0
        %v2382 = vadd.f32 0.0, %v2381
        %v2383 = vpop.f32.mrf.mxu0
        %v2384 = vadd.f32 0.0, %v2383
        %2385 = vmatmul.bf16.gmra.mxu0 %v2231
        %v2386 = vpop.f32.mrf.mxu0
        %v2387 = vadd.f32 0.0, %v2386
        %v2388 = vpop.f32.mrf.mxu0
        %v2389 = vadd.f32 0.0, %v2388
        %2390 = vmatmul.bf16.gmra.mxu0 %v2234
        %v2391 = vpop.f32.mrf.mxu0
        %v2392 = vadd.f32 0.0, %v2391
        %v2393 = vpop.f32.mrf.mxu0
        %v2394 = vadd.f32 0.0, %v2393
        %2395 = vmatmul.bf16.gmra.mxu0 %v2237
        %v2396 = vpop.f32.mrf.mxu0
        %v2397 = vadd.f32 0.0, %v2396
        %v2398 = vpop.f32.mrf.mxu0
        %v2399 = vadd.f32 0.0, %v2398
        %2400 = vmatmul.bf16.gmra.mxu0 %v2240
        %v2401 = vpop.f32.mrf.mxu0
        %v2402 = vadd.f32 0.0, %v2401
        %v2403 = vpop.f32.mrf.mxu0
        %v2404 = vadd.f32 0.0, %v2403
        %2405 = vmatmul.bf16.gmra.mxu0 %v2243
        %v2406 = vpop.f32.mrf.mxu0
        %v2407 = vadd.f32 0.0, %v2406
        %v2408 = vpop.f32.mrf.mxu0
        %v2409 = vadd.f32 0.0, %v2408
        %2410 = vmatmul.bf16.gmra.mxu0 %v2246
        %v2411 = vpop.f32.mrf.mxu0
        %v2412 = vadd.f32 0.0, %v2411
        %v2413 = vpop.f32.mrf.mxu0
        %v2414 = vadd.f32 0.0, %v2413
        %2415 = vmatmul.bf16.gmra.mxu0 %v2249
        %v2416 = vpop.f32.mrf.mxu0
        %v2417 = vadd.f32 0.0, %v2416
        %v2418 = vpop.f32.mrf.mxu0
        %v2419 = vadd.f32 0.0, %v2418
        %2420 = vmatmul.bf16.gmra.mxu0 %v2252
        %v2421 = vpop.f32.mrf.mxu0
        %v2422 = vadd.f32 0.0, %v2421
        %v2423 = vpop.f32.mrf.mxu0
        %v2424 = vadd.f32 0.0, %v2423
        %2425 = vmatmul.bf16.gmra.mxu0 %v2255
        %v2426 = vpop.f32.mrf.mxu0
        %v2427 = vadd.f32 0.0, %v2426
        %v2428 = vpop.f32.mrf.mxu0
        %v2429 = vadd.f32 0.0, %v2428
        %2430 = vmatmul.bf16.gmra.mxu0 %v2258
        %v2431 = vpop.f32.mrf.mxu0
        %v2432 = vadd.f32 0.0, %v2431
        %v2433 = vpop.f32.mrf.mxu0
        %v2434 = vadd.f32 0.0, %v2433
        %2435 = vmatmul.bf16.gmra.mxu0 %v2261
        %v2436 = vpop.f32.mrf.mxu0
        %v2437 = vadd.f32 0.0, %v2436
        %v2438 = vpop.f32.mrf.mxu0
        %v2439 = vadd.f32 0.0, %v2438
        %2440 = vmatmul.bf16.gmra.mxu0 %v2264
        %v2441 = vpop.f32.mrf.mxu0
        %v2442 = vadd.f32 0.0, %v2441
        %v2443 = vpop.f32.mrf.mxu0
        %v2444 = vadd.f32 0.0, %v2443
        %2445 = vmatmul.bf16.gmra.mxu0 %v2267
        %v2446 = vpop.f32.mrf.mxu0
        %v2447 = vadd.f32 0.0, %v2446
        %v2448 = vpop.f32.mrf.mxu0
        %v2449 = vadd.f32 0.0, %v2448
        %2450 = vmatmul.bf16.gmra.mxu0 %v2270
        %v2451 = vpop.f32.mrf.mxu0
        %v2452 = vadd.f32 0.0, %v2451
        %v2453 = vpop.f32.mrf.mxu0
        %v2454 = vadd.f32 0.0, %v2453
        %2455 = vdwg.mxu0
        %v2457 = vunpack.c.l.b16 %v836
        %v2458 = vunpack.c.h.b16 %v836
        %v2459 = vpack.c.b16 %v2457, %v2457
        %v2460 = vpack.c.b16 %v2458, %v2458
        %2463 = vxpose.binary.xlu0.c.b16.start [1/16] %v2460, %v2459, 128
        %2464 = vxpose.binary.xlu0.c.b16.cont [2/16] 0, 0, 128
        %2465 = vxpose.binary.xlu0.c.b16.cont [3/16] 0, 0, 128
        %2466 = vxpose.binary.xlu0.c.b16.cont [4/16] 0, 0, 128
        %2467 = vxpose.binary.xlu0.c.b16.cont [5/16] 0, 0, 128
        %2468 = vxpose.binary.xlu0.c.b16.cont [6/16] 0, 0, 128
        %2469 = vxpose.binary.xlu0.c.b16.cont [7/16] 0, 0, 128
        %2470 = vxpose.binary.xlu0.c.b16.end [8/16] 0, 0, 128
        %v2471 = vpop.trf.xlu0
        %v2472 = vpop.trf.xlu0
        %v2473 = vpop.trf.xlu0
        %v2474 = vpop.trf.xlu0
        %v2475 = vpop.trf.xlu0
        %v2476 = vpop.trf.xlu0
        %v2477 = vpop.trf.xlu0
        %v2478 = vpop.trf.xlu0
        %v2479 = vpop.trf.xlu0
        %v2480 = vpop.trf.xlu0
        %v2481 = vpop.trf.xlu0
        %v2482 = vpop.trf.xlu0
        %v2483 = vpop.trf.xlu0
        %v2484 = vpop.trf.xlu0
        %v2485 = vpop.trf.xlu0
        %v2486 = vpop.trf.xlu0
        %v2488 = vunpack.c.l.b16 %v844
        %v2489 = vunpack.c.h.b16 %v844
        %v2490 = vpack.c.b16 %v2488, %v2488
        %v2491 = vpack.c.b16 %v2489, %v2489
        %v2493 = vsel %vm882, %v2471, 0
        %v2496 = vsel %vm882, %v2473, 0
        %v2499 = vsel %vm882, %v2475, 0
        %v2502 = vsel %vm882, %v2477, 0
        %v2505 = vsel %vm882, %v2479, 0
        %v2508 = vsel %vm882, %v2481, 0
        %v2511 = vsel %vm882, %v2483, 0
        %v2514 = vsel %vm882, %v2485, 0
        %v2517 = vsel %vm882, %v2472, 0
        %v2520 = vsel %vm882, %v2474, 0
        %v2523 = vsel %vm882, %v2476, 0
        %v2526 = vsel %vm882, %v2478, 0
        %v2529 = vsel %vm882, %v2480, 0
        %v2532 = vsel %vm882, %v2482, 0
        %v2535 = vsel %vm882, %v2484, 0
        %v2538 = vsel %vm882, %v2486, 0
        %v2541 = vsel %vm931, %v2490, 0
        %v2544 = vsel %vm931, %v2491, 0
        %2546 = vmatpush.bf16.msra.mxu0 0
        %2547 = vmatpush.bf16.msra.mxu0 0
        %2548 = vmatpush.bf16.msra.mxu0 0
        %2549 = vmatpush.bf16.msra.mxu0 0
        %2550 = vmatpush.bf16.msra.mxu0 0
        %2551 = vmatpush.bf16.msra.mxu0 0
        %2552 = vmatpush.bf16.msra.mxu0 0
        %2553 = vmatpush.bf16.msra.mxu0 %v2541
        %2554 = vmatmul.bf16.gmra.mxu0 %v2493
        %v2555 = vpop.f32.mrf.mxu0
        %v2556 = vadd.f32 0.0, %v2555
        %v2557 = vpop.f32.mrf.mxu0
        %v2558 = vadd.f32 0.0, %v2557
        %2559 = vmatmul.bf16.gmra.mxu0 %v2496
        %v2560 = vpop.f32.mrf.mxu0
        %v2561 = vadd.f32 0.0, %v2560
        %v2562 = vpop.f32.mrf.mxu0
        %v2563 = vadd.f32 0.0, %v2562
        %2564 = vmatmul.bf16.gmra.mxu0 %v2499
        %v2565 = vpop.f32.mrf.mxu0
        %v2566 = vadd.f32 0.0, %v2565
        %v2567 = vpop.f32.mrf.mxu0
        %v2568 = vadd.f32 0.0, %v2567
        %2569 = vmatmul.bf16.gmra.mxu0 %v2502
        %v2570 = vpop.f32.mrf.mxu0
        %v2571 = vadd.f32 0.0, %v2570
        %v2572 = vpop.f32.mrf.mxu0
        %v2573 = vadd.f32 0.0, %v2572
        %2574 = vmatmul.bf16.gmra.mxu0 %v2505
        %v2575 = vpop.f32.mrf.mxu0
        %v2576 = vadd.f32 0.0, %v2575
        %v2577 = vpop.f32.mrf.mxu0
        %v2578 = vadd.f32 0.0, %v2577
        %2579 = vmatmul.bf16.gmra.mxu0 %v2508
        %v2580 = vpop.f32.mrf.mxu0
        %v2581 = vadd.f32 0.0, %v2580
        %v2582 = vpop.f32.mrf.mxu0
        %v2583 = vadd.f32 0.0, %v2582
        %2584 = vmatmul.bf16.gmra.mxu0 %v2511
        %v2585 = vpop.f32.mrf.mxu0
        %v2586 = vadd.f32 0.0, %v2585
        %v2587 = vpop.f32.mrf.mxu0
        %v2588 = vadd.f32 0.0, %v2587
        %2589 = vmatmul.bf16.gmra.mxu0 %v2514
        %v2590 = vpop.f32.mrf.mxu0
        %v2591 = vadd.f32 0.0, %v2590
        %v2592 = vpop.f32.mrf.mxu0
        %v2593 = vadd.f32 0.0, %v2592
        %2594 = vmatmul.bf16.gmra.mxu0 %v2517
        %v2595 = vpop.f32.mrf.mxu0
        %v2596 = vadd.f32 0.0, %v2595
        %v2597 = vpop.f32.mrf.mxu0
        %v2598 = vadd.f32 0.0, %v2597
        %2599 = vmatmul.bf16.gmra.mxu0 %v2520
        %v2600 = vpop.f32.mrf.mxu0
        %v2601 = vadd.f32 0.0, %v2600
        %v2602 = vpop.f32.mrf.mxu0
        %v2603 = vadd.f32 0.0, %v2602
        %2604 = vmatmul.bf16.gmra.mxu0 %v2523
        %v2605 = vpop.f32.mrf.mxu0
        %v2606 = vadd.f32 0.0, %v2605
        %v2607 = vpop.f32.mrf.mxu0
        %v2608 = vadd.f32 0.0, %v2607
        %2609 = vmatmul.bf16.gmra.mxu0 %v2526
        %v2610 = vpop.f32.mrf.mxu0
        %v2611 = vadd.f32 0.0, %v2610
        %v2612 = vpop.f32.mrf.mxu0
        %v2613 = vadd.f32 0.0, %v2612
        %2614 = vmatmul.bf16.gmra.mxu0 %v2529
        %v2615 = vpop.f32.mrf.mxu0
        %v2616 = vadd.f32 0.0, %v2615
        %v2617 = vpop.f32.mrf.mxu0
        %v2618 = vadd.f32 0.0, %v2617
        %2619 = vmatmul.bf16.gmra.mxu0 %v2532
        %v2620 = vpop.f32.mrf.mxu0
        %v2621 = vadd.f32 0.0, %v2620
        %v2622 = vpop.f32.mrf.mxu0
        %v2623 = vadd.f32 0.0, %v2622
        %2624 = vmatmul.bf16.gmra.mxu0 %v2535
        %v2625 = vpop.f32.mrf.mxu0
        %v2626 = vadd.f32 0.0, %v2625
        %v2627 = vpop.f32.mrf.mxu0
        %v2628 = vadd.f32 0.0, %v2627
        %2629 = vmatmul.bf16.gmra.mxu0 %v2538
        %v2630 = vpop.f32.mrf.mxu0
        %v2631 = vadd.f32 0.0, %v2630
        %v2632 = vpop.f32.mrf.mxu0
        %v2633 = vadd.f32 0.0, %v2632
        %2634 = vdwg.mxu0
        %2635 = vmatpush.bf16.msra.mxu0 0
        %2636 = vmatpush.bf16.msra.mxu0 0
        %2637 = vmatpush.bf16.msra.mxu0 0
        %2638 = vmatpush.bf16.msra.mxu0 0
        %2639 = vmatpush.bf16.msra.mxu0 0
        %2640 = vmatpush.bf16.msra.mxu0 0
        %2641 = vmatpush.bf16.msra.mxu0 0
        %2642 = vmatpush.bf16.msra.mxu0 %v2544
        %2643 = vmatmul.bf16.gmra.mxu0 %v2493
        %v2644 = vpop.f32.mrf.mxu0
        %v2645 = vadd.f32 0.0, %v2644
        %v2646 = vpop.f32.mrf.mxu0
        %v2647 = vadd.f32 0.0, %v2646
        %2648 = vmatmul.bf16.gmra.mxu0 %v2496
        %v2649 = vpop.f32.mrf.mxu0
        %v2650 = vadd.f32 0.0, %v2649
        %v2651 = vpop.f32.mrf.mxu0
        %v2652 = vadd.f32 0.0, %v2651
        %2653 = vmatmul.bf16.gmra.mxu0 %v2499
        %v2654 = vpop.f32.mrf.mxu0
        %v2655 = vadd.f32 0.0, %v2654
        %v2656 = vpop.f32.mrf.mxu0
        %v2657 = vadd.f32 0.0, %v2656
        %2658 = vmatmul.bf16.gmra.mxu0 %v2502
        %v2659 = vpop.f32.mrf.mxu0
        %v2660 = vadd.f32 0.0, %v2659
        %v2661 = vpop.f32.mrf.mxu0
        %v2662 = vadd.f32 0.0, %v2661
        %2663 = vmatmul.bf16.gmra.mxu0 %v2505
        %v2664 = vpop.f32.mrf.mxu0
        %v2665 = vadd.f32 0.0, %v2664
        %v2666 = vpop.f32.mrf.mxu0
        %v2667 = vadd.f32 0.0, %v2666
        %2668 = vmatmul.bf16.gmra.mxu0 %v2508
        %v2669 = vpop.f32.mrf.mxu0
        %v2670 = vadd.f32 0.0, %v2669
        %v2671 = vpop.f32.mrf.mxu0
        %v2672 = vadd.f32 0.0, %v2671
        %2673 = vmatmul.bf16.gmra.mxu0 %v2511
        %v2674 = vpop.f32.mrf.mxu0
        %v2675 = vadd.f32 0.0, %v2674
        %v2676 = vpop.f32.mrf.mxu0
        %v2677 = vadd.f32 0.0, %v2676
        %2678 = vmatmul.bf16.gmra.mxu0 %v2514
        %v2679 = vpop.f32.mrf.mxu0
        %v2680 = vadd.f32 0.0, %v2679
        %v2681 = vpop.f32.mrf.mxu0
        %v2682 = vadd.f32 0.0, %v2681
        %2683 = vmatmul.bf16.gmra.mxu0 %v2517
        %v2684 = vpop.f32.mrf.mxu0
        %v2685 = vadd.f32 0.0, %v2684
        %v2686 = vpop.f32.mrf.mxu0
        %v2687 = vadd.f32 0.0, %v2686
        %2688 = vmatmul.bf16.gmra.mxu0 %v2520
        %v2689 = vpop.f32.mrf.mxu0
        %v2690 = vadd.f32 0.0, %v2689
        %v2691 = vpop.f32.mrf.mxu0
        %v2692 = vadd.f32 0.0, %v2691
        %2693 = vmatmul.bf16.gmra.mxu0 %v2523
        %v2694 = vpop.f32.mrf.mxu0
        %v2695 = vadd.f32 0.0, %v2694
        %v2696 = vpop.f32.mrf.mxu0
        %v2697 = vadd.f32 0.0, %v2696
        %2698 = vmatmul.bf16.gmra.mxu0 %v2526
        %v2699 = vpop.f32.mrf.mxu0
        %v2700 = vadd.f32 0.0, %v2699
        %v2701 = vpop.f32.mrf.mxu0
        %v2702 = vadd.f32 0.0, %v2701
        %2703 = vmatmul.bf16.gmra.mxu0 %v2529
        %v2704 = vpop.f32.mrf.mxu0
        %v2705 = vadd.f32 0.0, %v2704
        %v2706 = vpop.f32.mrf.mxu0
        %v2707 = vadd.f32 0.0, %v2706
        %2708 = vmatmul.bf16.gmra.mxu0 %v2532
        %v2709 = vpop.f32.mrf.mxu0
        %v2710 = vadd.f32 0.0, %v2709
        %v2711 = vpop.f32.mrf.mxu0
        %v2712 = vadd.f32 0.0, %v2711
        %2713 = vmatmul.bf16.gmra.mxu0 %v2535
        %v2714 = vpop.f32.mrf.mxu0
        %v2715 = vadd.f32 0.0, %v2714
        %v2716 = vpop.f32.mrf.mxu0
        %v2717 = vadd.f32 0.0, %v2716
        %2718 = vmatmul.bf16.gmra.mxu0 %v2538
        %v2719 = vpop.f32.mrf.mxu0
        %v2720 = vadd.f32 0.0, %v2719
        %v2721 = vpop.f32.mrf.mxu0
        %v2722 = vadd.f32 0.0, %v2721
        %2723 = vdwg.mxu0
        %v2725 = vunpack.c.l.b16 %v837
        %v2726 = vunpack.c.h.b16 %v837
        %v2727 = vpack.c.b16 %v2725, %v2725
        %v2728 = vpack.c.b16 %v2726, %v2726
        %2731 = vxpose.binary.xlu0.c.b16.start [1/16] %v2728, %v2727, 128
        %2732 = vxpose.binary.xlu0.c.b16.cont [2/16] 0, 0, 128
        %2733 = vxpose.binary.xlu0.c.b16.cont [3/16] 0, 0, 128
        %2734 = vxpose.binary.xlu0.c.b16.cont [4/16] 0, 0, 128
        %2735 = vxpose.binary.xlu0.c.b16.cont [5/16] 0, 0, 128
        %2736 = vxpose.binary.xlu0.c.b16.cont [6/16] 0, 0, 128
        %2737 = vxpose.binary.xlu0.c.b16.cont [7/16] 0, 0, 128
        %2738 = vxpose.binary.xlu0.c.b16.end [8/16] 0, 0, 128
        %v2739 = vpop.trf.xlu0
        %v2740 = vpop.trf.xlu0
        %v2741 = vpop.trf.xlu0
        %v2742 = vpop.trf.xlu0
        %v2743 = vpop.trf.xlu0
        %v2744 = vpop.trf.xlu0
        %v2745 = vpop.trf.xlu0
        %v2746 = vpop.trf.xlu0
        %v2747 = vpop.trf.xlu0
        %v2748 = vpop.trf.xlu0
        %v2749 = vpop.trf.xlu0
        %v2750 = vpop.trf.xlu0
        %v2751 = vpop.trf.xlu0
        %v2752 = vpop.trf.xlu0
        %v2753 = vpop.trf.xlu0
        %v2754 = vpop.trf.xlu0
        %v2756 = vunpack.c.l.b16 %v845
        %v2757 = vunpack.c.h.b16 %v845
        %v2758 = vpack.c.b16 %v2756, %v2756
        %v2759 = vpack.c.b16 %v2757, %v2757
        %v2761 = vsel %vm882, %v2739, 0
        %v2764 = vsel %vm882, %v2741, 0
        %v2767 = vsel %vm882, %v2743, 0
        %v2770 = vsel %vm882, %v2745, 0
        %v2773 = vsel %vm882, %v2747, 0
        %v2776 = vsel %vm882, %v2749, 0
        %v2779 = vsel %vm882, %v2751, 0
        %v2782 = vsel %vm882, %v2753, 0
        %v2785 = vsel %vm882, %v2740, 0
        %v2788 = vsel %vm882, %v2742, 0
        %v2791 = vsel %vm882, %v2744, 0
        %v2794 = vsel %vm882, %v2746, 0
        %v2797 = vsel %vm882, %v2748, 0
        %v2800 = vsel %vm882, %v2750, 0
        %v2803 = vsel %vm882, %v2752, 0
        %v2806 = vsel %vm882, %v2754, 0
        %v2809 = vsel %vm931, %v2758, 0
        %v2812 = vsel %vm931, %v2759, 0
        %2814 = vmatpush.bf16.msra.mxu0 0
        %2815 = vmatpush.bf16.msra.mxu0 0
        %2816 = vmatpush.bf16.msra.mxu0 0
        %2817 = vmatpush.bf16.msra.mxu0 0
        %2818 = vmatpush.bf16.msra.mxu0 0
        %2819 = vmatpush.bf16.msra.mxu0 0
        %2820 = vmatpush.bf16.msra.mxu0 0
        %2821 = vmatpush.bf16.msra.mxu0 %v2809
        %2822 = vmatmul.bf16.gmra.mxu0 %v2761
        %v2823 = vpop.f32.mrf.mxu0
        %v2824 = vadd.f32 0.0, %v2823
        %v2825 = vpop.f32.mrf.mxu0
        %v2826 = vadd.f32 0.0, %v2825
        %2827 = vmatmul.bf16.gmra.mxu0 %v2764
        %v2828 = vpop.f32.mrf.mxu0
        %v2829 = vadd.f32 0.0, %v2828
        %v2830 = vpop.f32.mrf.mxu0
        %v2831 = vadd.f32 0.0, %v2830
        %2832 = vmatmul.bf16.gmra.mxu0 %v2767
        %v2833 = vpop.f32.mrf.mxu0
        %v2834 = vadd.f32 0.0, %v2833
        %v2835 = vpop.f32.mrf.mxu0
        %v2836 = vadd.f32 0.0, %v2835
        %2837 = vmatmul.bf16.gmra.mxu0 %v2770
        %v2838 = vpop.f32.mrf.mxu0
        %v2839 = vadd.f32 0.0, %v2838
        %v2840 = vpop.f32.mrf.mxu0
        %v2841 = vadd.f32 0.0, %v2840
        %2842 = vmatmul.bf16.gmra.mxu0 %v2773
        %v2843 = vpop.f32.mrf.mxu0
        %v2844 = vadd.f32 0.0, %v2843
        %v2845 = vpop.f32.mrf.mxu0
        %v2846 = vadd.f32 0.0, %v2845
        %2847 = vmatmul.bf16.gmra.mxu0 %v2776
        %v2848 = vpop.f32.mrf.mxu0
        %v2849 = vadd.f32 0.0, %v2848
        %v2850 = vpop.f32.mrf.mxu0
        %v2851 = vadd.f32 0.0, %v2850
        %2852 = vmatmul.bf16.gmra.mxu0 %v2779
        %v2853 = vpop.f32.mrf.mxu0
        %v2854 = vadd.f32 0.0, %v2853
        %v2855 = vpop.f32.mrf.mxu0
        %v2856 = vadd.f32 0.0, %v2855
        %2857 = vmatmul.bf16.gmra.mxu0 %v2782
        %v2858 = vpop.f32.mrf.mxu0
        %v2859 = vadd.f32 0.0, %v2858
        %v2860 = vpop.f32.mrf.mxu0
        %v2861 = vadd.f32 0.0, %v2860
        %2862 = vmatmul.bf16.gmra.mxu0 %v2785
        %v2863 = vpop.f32.mrf.mxu0
        %v2864 = vadd.f32 0.0, %v2863
        %v2865 = vpop.f32.mrf.mxu0
        %v2866 = vadd.f32 0.0, %v2865
        %2867 = vmatmul.bf16.gmra.mxu0 %v2788
        %v2868 = vpop.f32.mrf.mxu0
        %v2869 = vadd.f32 0.0, %v2868
        %v2870 = vpop.f32.mrf.mxu0
        %v2871 = vadd.f32 0.0, %v2870
        %2872 = vmatmul.bf16.gmra.mxu0 %v2791
        %v2873 = vpop.f32.mrf.mxu0
        %v2874 = vadd.f32 0.0, %v2873
        %v2875 = vpop.f32.mrf.mxu0
        %v2876 = vadd.f32 0.0, %v2875
        %2877 = vmatmul.bf16.gmra.mxu0 %v2794
        %v2878 = vpop.f32.mrf.mxu0
        %v2879 = vadd.f32 0.0, %v2878
        %v2880 = vpop.f32.mrf.mxu0
        %v2881 = vadd.f32 0.0, %v2880
        %2882 = vmatmul.bf16.gmra.mxu0 %v2797
        %v2883 = vpop.f32.mrf.mxu0
        %v2884 = vadd.f32 0.0, %v2883
        %v2885 = vpop.f32.mrf.mxu0
        %v2886 = vadd.f32 0.0, %v2885
        %2887 = vmatmul.bf16.gmra.mxu0 %v2800
        %v2888 = vpop.f32.mrf.mxu0
        %v2889 = vadd.f32 0.0, %v2888
        %v2890 = vpop.f32.mrf.mxu0
        %v2891 = vadd.f32 0.0, %v2890
        %2892 = vmatmul.bf16.gmra.mxu0 %v2803
        %v2893 = vpop.f32.mrf.mxu0
        %v2894 = vadd.f32 0.0, %v2893
        %v2895 = vpop.f32.mrf.mxu0
        %v2896 = vadd.f32 0.0, %v2895
        %2897 = vmatmul.bf16.gmra.mxu0 %v2806
        %v2898 = vpop.f32.mrf.mxu0
        %v2899 = vadd.f32 0.0, %v2898
        %v2900 = vpop.f32.mrf.mxu0
        %v2901 = vadd.f32 0.0, %v2900
        %2902 = vdwg.mxu0
        %2903 = vmatpush.bf16.msra.mxu0 0
        %2904 = vmatpush.bf16.msra.mxu0 0
        %2905 = vmatpush.bf16.msra.mxu0 0
        %2906 = vmatpush.bf16.msra.mxu0 0
        %2907 = vmatpush.bf16.msra.mxu0 0
        %2908 = vmatpush.bf16.msra.mxu0 0
        %2909 = vmatpush.bf16.msra.mxu0 0
        %2910 = vmatpush.bf16.msra.mxu0 %v2812
        %2911 = vmatmul.bf16.gmra.mxu0 %v2761
        %v2912 = vpop.f32.mrf.mxu0
        %v2913 = vadd.f32 0.0, %v2912
        %v2914 = vpop.f32.mrf.mxu0
        %v2915 = vadd.f32 0.0, %v2914
        %2916 = vmatmul.bf16.gmra.mxu0 %v2764
        %v2917 = vpop.f32.mrf.mxu0
        %v2918 = vadd.f32 0.0, %v2917
        %v2919 = vpop.f32.mrf.mxu0
        %v2920 = vadd.f32 0.0, %v2919
        %2921 = vmatmul.bf16.gmra.mxu0 %v2767
        %v2922 = vpop.f32.mrf.mxu0
        %v2923 = vadd.f32 0.0, %v2922
        %v2924 = vpop.f32.mrf.mxu0
        %v2925 = vadd.f32 0.0, %v2924
        %2926 = vmatmul.bf16.gmra.mxu0 %v2770
        %v2927 = vpop.f32.mrf.mxu0
        %v2928 = vadd.f32 0.0, %v2927
        %v2929 = vpop.f32.mrf.mxu0
        %v2930 = vadd.f32 0.0, %v2929
        %2931 = vmatmul.bf16.gmra.mxu0 %v2773
        %v2932 = vpop.f32.mrf.mxu0
        %v2933 = vadd.f32 0.0, %v2932
        %v2934 = vpop.f32.mrf.mxu0
        %v2935 = vadd.f32 0.0, %v2934
        %2936 = vmatmul.bf16.gmra.mxu0 %v2776
        %v2937 = vpop.f32.mrf.mxu0
        %v2938 = vadd.f32 0.0, %v2937
        %v2939 = vpop.f32.mrf.mxu0
        %v2940 = vadd.f32 0.0, %v2939
        %2941 = vmatmul.bf16.gmra.mxu0 %v2779
        %v2942 = vpop.f32.mrf.mxu0
        %v2943 = vadd.f32 0.0, %v2942
        %v2944 = vpop.f32.mrf.mxu0
        %v2945 = vadd.f32 0.0, %v2944
        %2946 = vmatmul.bf16.gmra.mxu0 %v2782
        %v2947 = vpop.f32.mrf.mxu0
        %v2948 = vadd.f32 0.0, %v2947
        %v2949 = vpop.f32.mrf.mxu0
        %v2950 = vadd.f32 0.0, %v2949
        %2951 = vmatmul.bf16.gmra.mxu0 %v2785
        %v2952 = vpop.f32.mrf.mxu0
        %v2953 = vadd.f32 0.0, %v2952
        %v2954 = vpop.f32.mrf.mxu0
        %v2955 = vadd.f32 0.0, %v2954
        %2956 = vmatmul.bf16.gmra.mxu0 %v2788
        %v2957 = vpop.f32.mrf.mxu0
        %v2958 = vadd.f32 0.0, %v2957
        %v2959 = vpop.f32.mrf.mxu0
        %v2960 = vadd.f32 0.0, %v2959
        %2961 = vmatmul.bf16.gmra.mxu0 %v2791
        %v2962 = vpop.f32.mrf.mxu0
        %v2963 = vadd.f32 0.0, %v2962
        %v2964 = vpop.f32.mrf.mxu0
        %v2965 = vadd.f32 0.0, %v2964
        %2966 = vmatmul.bf16.gmra.mxu0 %v2794
        %v2967 = vpop.f32.mrf.mxu0
        %v2968 = vadd.f32 0.0, %v2967
        %v2969 = vpop.f32.mrf.mxu0
        %v2970 = vadd.f32 0.0, %v2969
        %2971 = vmatmul.bf16.gmra.mxu0 %v2797
        %v2972 = vpop.f32.mrf.mxu0
        %v2973 = vadd.f32 0.0, %v2972
        %v2974 = vpop.f32.mrf.mxu0
        %v2975 = vadd.f32 0.0, %v2974
        %2976 = vmatmul.bf16.gmra.mxu0 %v2800
        %v2977 = vpop.f32.mrf.mxu0
        %v2978 = vadd.f32 0.0, %v2977
        %v2979 = vpop.f32.mrf.mxu0
        %v2980 = vadd.f32 0.0, %v2979
        %2981 = vmatmul.bf16.gmra.mxu0 %v2803
        %v2982 = vpop.f32.mrf.mxu0
        %v2983 = vadd.f32 0.0, %v2982
        %v2984 = vpop.f32.mrf.mxu0
        %v2985 = vadd.f32 0.0, %v2984
        %2986 = vmatmul.bf16.gmra.mxu0 %v2806
        %v2987 = vpop.f32.mrf.mxu0
        %v2988 = vadd.f32 0.0, %v2987
        %v2989 = vpop.f32.mrf.mxu0
        %v2990 = vadd.f32 0.0, %v2989
        %2991 = vdwg.mxu0
        %v2992 = vmax.f32 %v948, %v1037
        %2993 = vmax.xlane.f32.xlu0 %v2992
        %v2994 = vpop.xlane.xlu0 %2993
        %v2995 = vmax.f32 %v950, %v1039
        %2996 = vmax.xlane.f32.xlu0 %v2995
        %v2997 = vpop.xlane.xlu0 %2996
        %v2998 = vmax.f32 %v953, %v1042
        %2999 = vmax.xlane.f32.xlu0 %v2998
        %v3000 = vpop.xlane.xlu0 %2999
        %v3001 = vmax.f32 %v955, %v1044
        %3002 = vmax.xlane.f32.xlu0 %v3001
        %v3003 = vpop.xlane.xlu0 %3002
        %v3004 = vmax.f32 %v958, %v1047
        %3005 = vmax.xlane.f32.xlu0 %v3004
        %v3006 = vpop.xlane.xlu0 %3005
        %v3007 = vmax.f32 %v960, %v1049
        %3008 = vmax.xlane.f32.xlu0 %v3007
        %v3009 = vpop.xlane.xlu0 %3008
        %v3010 = vmax.f32 %v963, %v1052
        %3011 = vmax.xlane.f32.xlu0 %v3010
        %v3012 = vpop.xlane.xlu0 %3011
        %v3013 = vmax.f32 %v965, %v1054
        %3014 = vmax.xlane.f32.xlu0 %v3013
        %v3015 = vpop.xlane.xlu0 %3014
        %v3016 = vmax.f32 %v968, %v1057
        %3017 = vmax.xlane.f32.xlu0 %v3016
        %v3018 = vpop.xlane.xlu0 %3017
        %v3019 = vmax.f32 %v970, %v1059
        %3020 = vmax.xlane.f32.xlu0 %v3019
        %v3021 = vpop.xlane.xlu0 %3020
        %v3022 = vmax.f32 %v973, %v1062
        %3023 = vmax.xlane.f32.xlu0 %v3022
        %v3024 = vpop.xlane.xlu0 %3023
        %v3025 = vmax.f32 %v975, %v1064
        %3026 = vmax.xlane.f32.xlu0 %v3025
        %v3027 = vpop.xlane.xlu0 %3026
        %v3028 = vmax.f32 %v978, %v1067
        %3029 = vmax.xlane.f32.xlu0 %v3028
        %v3030 = vpop.xlane.xlu0 %3029
        %v3031 = vmax.f32 %v980, %v1069
        %3032 = vmax.xlane.f32.xlu0 %v3031
        %v3033 = vpop.xlane.xlu0 %3032
        %v3034 = vmax.f32 %v983, %v1072
        %3035 = vmax.xlane.f32.xlu0 %v3034
        %v3036 = vpop.xlane.xlu0 %3035
        %v3037 = vmax.f32 %v985, %v1074
        %3038 = vmax.xlane.f32.xlu0 %v3037
        %v3039 = vpop.xlane.xlu0 %3038
        %v3040 = vmax.f32 %v988, %v1077
        %3041 = vmax.xlane.f32.xlu0 %v3040
        %v3042 = vpop.xlane.xlu0 %3041
        %v3043 = vmax.f32 %v990, %v1079
        %3044 = vmax.xlane.f32.xlu0 %v3043
        %v3045 = vpop.xlane.xlu0 %3044
        %v3046 = vmax.f32 %v993, %v1082
        %3047 = vmax.xlane.f32.xlu0 %v3046
        %v3048 = vpop.xlane.xlu0 %3047
        %v3049 = vmax.f32 %v995, %v1084
        %3050 = vmax.xlane.f32.xlu0 %v3049
        %v3051 = vpop.xlane.xlu0 %3050
        %v3052 = vmax.f32 %v998, %v1087
        %3053 = vmax.xlane.f32.xlu0 %v3052
        %v3054 = vpop.xlane.xlu0 %3053
        %v3055 = vmax.f32 %v1000, %v1089
        %3056 = vmax.xlane.f32.xlu0 %v3055
        %v3057 = vpop.xlane.xlu0 %3056
        %v3058 = vmax.f32 %v1003, %v1092
        %3059 = vmax.xlane.f32.xlu0 %v3058
        %v3060 = vpop.xlane.xlu0 %3059
        %v3061 = vmax.f32 %v1005, %v1094
        %3062 = vmax.xlane.f32.xlu0 %v3061
        %v3063 = vpop.xlane.xlu0 %3062
        %v3064 = vmax.f32 %v1008, %v1097
        %3065 = vmax.xlane.f32.xlu0 %v3064
        %v3066 = vpop.xlane.xlu0 %3065
        %v3067 = vmax.f32 %v1010, %v1099
        %3068 = vmax.xlane.f32.xlu0 %v3067
        %v3069 = vpop.xlane.xlu0 %3068
        %v3070 = vmax.f32 %v1013, %v1102
        %3071 = vmax.xlane.f32.xlu0 %v3070
        %v3072 = vpop.xlane.xlu0 %3071
        %v3073 = vmax.f32 %v1015, %v1104
        %3074 = vmax.xlane.f32.xlu0 %v3073
        %v3075 = vpop.xlane.xlu0 %3074
        %v3076 = vmax.f32 %v1018, %v1107
        %3077 = vmax.xlane.f32.xlu0 %v3076
        %v3078 = vpop.xlane.xlu0 %3077
        %v3079 = vmax.f32 %v1020, %v1109
        %3080 = vmax.xlane.f32.xlu0 %v3079
        %v3081 = vpop.xlane.xlu0 %3080
        %v3082 = vmax.f32 %v1023, %v1112
        %3083 = vmax.xlane.f32.xlu0 %v3082
        %v3084 = vpop.xlane.xlu0 %3083
        %v3085 = vmax.f32 %v1025, %v1114
        %3086 = vmax.xlane.f32.xlu0 %v3085
        %v3087 = vpop.xlane.xlu0 %3086
        %v3088 = vmax.f32 %v1216, %v1305
        %3089 = vmax.xlane.f32.xlu0 %v3088
        %v3090 = vpop.xlane.xlu0 %3089
        %v3091 = vmax.f32 %v1218, %v1307
        %3092 = vmax.xlane.f32.xlu0 %v3091
        %v3093 = vpop.xlane.xlu0 %3092
        %v3094 = vmax.f32 %v1221, %v1310
        %3095 = vmax.xlane.f32.xlu0 %v3094
        %v3096 = vpop.xlane.xlu0 %3095
        %v3097 = vmax.f32 %v1223, %v1312
        %3098 = vmax.xlane.f32.xlu0 %v3097
        %v3099 = vpop.xlane.xlu0 %3098
        %v3100 = vmax.f32 %v1226, %v1315
        %3101 = vmax.xlane.f32.xlu0 %v3100
        %v3102 = vpop.xlane.xlu0 %3101
        %v3103 = vmax.f32 %v1228, %v1317
        %3104 = vmax.xlane.f32.xlu0 %v3103
        %v3105 = vpop.xlane.xlu0 %3104
        %v3106 = vmax.f32 %v1231, %v1320
        %3107 = vmax.xlane.f32.xlu0 %v3106
        %v3108 = vpop.xlane.xlu0 %3107
        %v3109 = vmax.f32 %v1233, %v1322
        %3110 = vmax.xlane.f32.xlu0 %v3109
        %v3111 = vpop.xlane.xlu0 %3110
        %v3112 = vmax.f32 %v1236, %v1325
        %3113 = vmax.xlane.f32.xlu0 %v3112
        %v3114 = vpop.xlane.xlu0 %3113
        %v3115 = vmax.f32 %v1238, %v1327
        %3116 = vmax.xlane.f32.xlu0 %v3115
        %v3117 = vpop.xlane.xlu0 %3116
        %v3118 = vmax.f32 %v1241, %v1330
        %3119 = vmax.xlane.f32.xlu0 %v3118
        %v3120 = vpop.xlane.xlu0 %3119
        %v3121 = vmax.f32 %v1243, %v1332
        %3122 = vmax.xlane.f32.xlu0 %v3121
        %v3123 = vpop.xlane.xlu0 %3122
        %v3124 = vmax.f32 %v1246, %v1335
        %3125 = vmax.xlane.f32.xlu0 %v3124
        %v3126 = vpop.xlane.xlu0 %3125
        %v3127 = vmax.f32 %v1248, %v1337
        %3128 = vmax.xlane.f32.xlu0 %v3127
        %v3129 = vpop.xlane.xlu0 %3128
        %v3130 = vmax.f32 %v1251, %v1340
        %3131 = vmax.xlane.f32.xlu0 %v3130
        %v3132 = vpop.xlane.xlu0 %3131
        %v3133 = vmax.f32 %v1253, %v1342
        %3134 = vmax.xlane.f32.xlu0 %v3133
        %v3135 = vpop.xlane.xlu0 %3134
        %v3136 = vmax.f32 %v1256, %v1345
        %3137 = vmax.xlane.f32.xlu0 %v3136
        %v3138 = vpop.xlane.xlu0 %3137
        %v3139 = vmax.f32 %v1258, %v1347
        %3140 = vmax.xlane.f32.xlu0 %v3139
        %v3141 = vpop.xlane.xlu0 %3140
        %v3142 = vmax.f32 %v1261, %v1350
        %3143 = vmax.xlane.f32.xlu0 %v3142
        %v3144 = vpop.xlane.xlu0 %3143
        %v3145 = vmax.f32 %v1263, %v1352
        %3146 = vmax.xlane.f32.xlu0 %v3145
        %v3147 = vpop.xlane.xlu0 %3146
        %v3148 = vmax.f32 %v1266, %v1355
        %3149 = vmax.xlane.f32.xlu0 %v3148
        %v3150 = vpop.xlane.xlu0 %3149
        %v3151 = vmax.f32 %v1268, %v1357
        %3152 = vmax.xlane.f32.xlu0 %v3151
        %v3153 = vpop.xlane.xlu0 %3152
        %v3154 = vmax.f32 %v1271, %v1360
        %3155 = vmax.xlane.f32.xlu0 %v3154
        %v3156 = vpop.xlane.xlu0 %3155
        %v3157 = vmax.f32 %v1273, %v1362
        %3158 = vmax.xlane.f32.xlu0 %v3157
        %v3159 = vpop.xlane.xlu0 %3158
        %v3160 = vmax.f32 %v1276, %v1365
        %3161 = vmax.xlane.f32.xlu0 %v3160
        %v3162 = vpop.xlane.xlu0 %3161
        %v3163 = vmax.f32 %v1278, %v1367
        %3164 = vmax.xlane.f32.xlu0 %v3163
        %v3165 = vpop.xlane.xlu0 %3164
        %v3166 = vmax.f32 %v1281, %v1370
        %3167 = vmax.xlane.f32.xlu0 %v3166
        %v3168 = vpop.xlane.xlu0 %3167
        %v3169 = vmax.f32 %v1283, %v1372
        %3170 = vmax.xlane.f32.xlu0 %v3169
        %v3171 = vpop.xlane.xlu0 %3170
        %v3172 = vmax.f32 %v1286, %v1375
        %3173 = vmax.xlane.f32.xlu0 %v3172
        %v3174 = vpop.xlane.xlu0 %3173
        %v3175 = vmax.f32 %v1288, %v1377
        %3176 = vmax.xlane.f32.xlu0 %v3175
        %v3177 = vpop.xlane.xlu0 %3176
        %v3178 = vmax.f32 %v1291, %v1380
        %3179 = vmax.xlane.f32.xlu0 %v3178
        %v3180 = vpop.xlane.xlu0 %3179
        %v3181 = vmax.f32 %v1293, %v1382
        %3182 = vmax.xlane.f32.xlu0 %v3181
        %v3183 = vpop.xlane.xlu0 %3182
        %v3184 = vmax.f32 %v1484, %v1573
        %3185 = vmax.xlane.f32.xlu0 %v3184
        %v3186 = vpop.xlane.xlu0 %3185
        %v3187 = vmax.f32 %v1486, %v1575
        %3188 = vmax.xlane.f32.xlu0 %v3187
        %v3189 = vpop.xlane.xlu0 %3188
        %v3190 = vmax.f32 %v1489, %v1578
        %3191 = vmax.xlane.f32.xlu0 %v3190
        %v3192 = vpop.xlane.xlu0 %3191
        %v3193 = vmax.f32 %v1491, %v1580
        %3194 = vmax.xlane.f32.xlu0 %v3193
        %v3195 = vpop.xlane.xlu0 %3194
        %v3196 = vmax.f32 %v1494, %v1583
        %3197 = vmax.xlane.f32.xlu0 %v3196
        %v3198 = vpop.xlane.xlu0 %3197
        %v3199 = vmax.f32 %v1496, %v1585
        %3200 = vmax.xlane.f32.xlu0 %v3199
        %v3201 = vpop.xlane.xlu0 %3200
        %v3202 = vmax.f32 %v1499, %v1588
        %3203 = vmax.xlane.f32.xlu0 %v3202
        %v3204 = vpop.xlane.xlu0 %3203
        %v3205 = vmax.f32 %v1501, %v1590
        %3206 = vmax.xlane.f32.xlu0 %v3205
        %v3207 = vpop.xlane.xlu0 %3206
        %v3208 = vmax.f32 %v1504, %v1593
        %3209 = vmax.xlane.f32.xlu0 %v3208
        %v3210 = vpop.xlane.xlu0 %3209
        %v3211 = vmax.f32 %v1506, %v1595
        %3212 = vmax.xlane.f32.xlu0 %v3211
        %v3213 = vpop.xlane.xlu0 %3212
        %v3214 = vmax.f32 %v1509, %v1598
        %3215 = vmax.xlane.f32.xlu0 %v3214
        %v3216 = vpop.xlane.xlu0 %3215
        %v3217 = vmax.f32 %v1511, %v1600
        %3218 = vmax.xlane.f32.xlu0 %v3217
        %v3219 = vpop.xlane.xlu0 %3218
        %v3220 = vmax.f32 %v1514, %v1603
        %3221 = vmax.xlane.f32.xlu0 %v3220
        %v3222 = vpop.xlane.xlu0 %3221
        %v3223 = vmax.f32 %v1516, %v1605
        %3224 = vmax.xlane.f32.xlu0 %v3223
        %v3225 = vpop.xlane.xlu0 %3224
        %v3226 = vmax.f32 %v1519, %v1608
        %3227 = vmax.xlane.f32.xlu0 %v3226
        %v3228 = vpop.xlane.xlu0 %3227
        %v3229 = vmax.f32 %v1521, %v1610
        %3230 = vmax.xlane.f32.xlu0 %v3229
        %v3231 = vpop.xlane.xlu0 %3230
        %v3232 = vmax.f32 %v1524, %v1613
        %3233 = vmax.xlane.f32.xlu0 %v3232
        %v3234 = vpop.xlane.xlu0 %3233
        %v3235 = vmax.f32 %v1526, %v1615
        %3236 = vmax.xlane.f32.xlu0 %v3235
        %v3237 = vpop.xlane.xlu0 %3236
        %v3238 = vmax.f32 %v1529, %v1618
        %3239 = vmax.xlane.f32.xlu0 %v3238
        %v3240 = vpop.xlane.xlu0 %3239
        %v3241 = vmax.f32 %v1531, %v1620
        %3242 = vmax.xlane.f32.xlu0 %v3241
        %v3243 = vpop.xlane.xlu0 %3242
        %v3244 = vmax.f32 %v1534, %v1623
        %3245 = vmax.xlane.f32.xlu0 %v3244
        %v3246 = vpop.xlane.xlu0 %3245
        %v3247 = vmax.f32 %v1536, %v1625
        %3248 = vmax.xlane.f32.xlu0 %v3247
        %v3249 = vpop.xlane.xlu0 %3248
        %v3250 = vmax.f32 %v1539, %v1628
        %3251 = vmax.xlane.f32.xlu0 %v3250
        %v3252 = vpop.xlane.xlu0 %3251
        %v3253 = vmax.f32 %v1541, %v1630
        %3254 = vmax.xlane.f32.xlu0 %v3253
        %v3255 = vpop.xlane.xlu0 %3254
        %v3256 = vmax.f32 %v1544, %v1633
        %3257 = vmax.xlane.f32.xlu0 %v3256
        %v3258 = vpop.xlane.xlu0 %3257
        %v3259 = vmax.f32 %v1546, %v1635
        %3260 = vmax.xlane.f32.xlu0 %v3259
        %v3261 = vpop.xlane.xlu0 %3260
        %v3262 = vmax.f32 %v1549, %v1638
        %3263 = vmax.xlane.f32.xlu0 %v3262
        %v3264 = vpop.xlane.xlu0 %3263
        %v3265 = vmax.f32 %v1551, %v1640
        %3266 = vmax.xlane.f32.xlu0 %v3265
        %v3267 = vpop.xlane.xlu0 %3266
        %v3268 = vmax.f32 %v1554, %v1643
        %3269 = vmax.xlane.f32.xlu0 %v3268
        %v3270 = vpop.xlane.xlu0 %3269
        %v3271 = vmax.f32 %v1556, %v1645
        %3272 = vmax.xlane.f32.xlu0 %v3271
        %v3273 = vpop.xlane.xlu0 %3272
        %v3274 = vmax.f32 %v1559, %v1648
        %3275 = vmax.xlane.f32.xlu0 %v3274
        %v3276 = vpop.xlane.xlu0 %3275
        %v3277 = vmax.f32 %v1561, %v1650
        %3278 = vmax.xlane.f32.xlu0 %v3277
        %v3279 = vpop.xlane.xlu0 %3278
        %v3280 = vmax.f32 %v1752, %v1841
        %3281 = vmax.xlane.f32.xlu0 %v3280
        %v3282 = vpop.xlane.xlu0 %3281
        %v3283 = vmax.f32 %v1754, %v1843
        %3284 = vmax.xlane.f32.xlu0 %v3283
        %v3285 = vpop.xlane.xlu0 %3284
        %v3286 = vmax.f32 %v1757, %v1846
        %3287 = vmax.xlane.f32.xlu0 %v3286
        %v3288 = vpop.xlane.xlu0 %3287
        %v3289 = vmax.f32 %v1759, %v1848
        %3290 = vmax.xlane.f32.xlu0 %v3289
        %v3291 = vpop.xlane.xlu0 %3290
        %v3292 = vmax.f32 %v1762, %v1851
        %3293 = vmax.xlane.f32.xlu0 %v3292
        %v3294 = vpop.xlane.xlu0 %3293
        %v3295 = vmax.f32 %v1764, %v1853
        %3296 = vmax.xlane.f32.xlu0 %v3295
        %v3297 = vpop.xlane.xlu0 %3296
        %v3298 = vmax.f32 %v1767, %v1856
        %3299 = vmax.xlane.f32.xlu0 %v3298
        %v3300 = vpop.xlane.xlu0 %3299
        %v3301 = vmax.f32 %v1769, %v1858
        %3302 = vmax.xlane.f32.xlu0 %v3301
        %v3303 = vpop.xlane.xlu0 %3302
        %v3304 = vmax.f32 %v1772, %v1861
        %3305 = vmax.xlane.f32.xlu0 %v3304
        %v3306 = vpop.xlane.xlu0 %3305
        %v3307 = vmax.f32 %v1774, %v1863
        %3308 = vmax.xlane.f32.xlu0 %v3307
        %v3309 = vpop.xlane.xlu0 %3308
        %v3310 = vmax.f32 %v1777, %v1866
        %3311 = vmax.xlane.f32.xlu0 %v3310
        %v3312 = vpop.xlane.xlu0 %3311
        %v3313 = vmax.f32 %v1779, %v1868
        %3314 = vmax.xlane.f32.xlu0 %v3313
        %v3315 = vpop.xlane.xlu0 %3314
        %v3316 = vmax.f32 %v1782, %v1871
        %3317 = vmax.xlane.f32.xlu0 %v3316
        %v3318 = vpop.xlane.xlu0 %3317
        %v3319 = vmax.f32 %v1784, %v1873
        %3320 = vmax.xlane.f32.xlu0 %v3319
        %v3321 = vpop.xlane.xlu0 %3320
        %v3322 = vmax.f32 %v1787, %v1876
        %3323 = vmax.xlane.f32.xlu0 %v3322
        %v3324 = vpop.xlane.xlu0 %3323
        %v3325 = vmax.f32 %v1789, %v1878
        %3326 = vmax.xlane.f32.xlu0 %v3325
        %v3327 = vpop.xlane.xlu0 %3326
        %v3328 = vmax.f32 %v1792, %v1881
        %3329 = vmax.xlane.f32.xlu0 %v3328
        %v3330 = vpop.xlane.xlu0 %3329
        %v3331 = vmax.f32 %v1794, %v1883
        %3332 = vmax.xlane.f32.xlu0 %v3331
        %v3333 = vpop.xlane.xlu0 %3332
        %v3334 = vmax.f32 %v1797, %v1886
        %3335 = vmax.xlane.f32.xlu0 %v3334
        %v3336 = vpop.xlane.xlu0 %3335
        %v3337 = vmax.f32 %v1799, %v1888
        %3338 = vmax.xlane.f32.xlu0 %v3337
        %v3339 = vpop.xlane.xlu0 %3338
        %v3340 = vmax.f32 %v1802, %v1891
        %3341 = vmax.xlane.f32.xlu0 %v3340
        %v3342 = vpop.xlane.xlu0 %3341
        %v3343 = vmax.f32 %v1804, %v1893
        %3344 = vmax.xlane.f32.xlu0 %v3343
        %v3345 = vpop.xlane.xlu0 %3344
        %v3346 = vmax.f32 %v1807, %v1896
        %3347 = vmax.xlane.f32.xlu0 %v3346
        %v3348 = vpop.xlane.xlu0 %3347
        %v3349 = vmax.f32 %v1809, %v1898
        %3350 = vmax.xlane.f32.xlu0 %v3349
        %v3351 = vpop.xlane.xlu0 %3350
        %v3352 = vmax.f32 %v1812, %v1901
        %3353 = vmax.xlane.f32.xlu0 %v3352
        %v3354 = vpop.xlane.xlu0 %3353
        %v3355 = vmax.f32 %v1814, %v1903
        %3356 = vmax.xlane.f32.xlu0 %v3355
        %v3357 = vpop.xlane.xlu0 %3356
        %v3358 = vmax.f32 %v1817, %v1906
        %3359 = vmax.xlane.f32.xlu0 %v3358
        %v3360 = vpop.xlane.xlu0 %3359
        %v3361 = vmax.f32 %v1819, %v1908
        %3362 = vmax.xlane.f32.xlu0 %v3361
        %v3363 = vpop.xlane.xlu0 %3362
        %v3364 = vmax.f32 %v1822, %v1911
        %3365 = vmax.xlane.f32.xlu0 %v3364
        %v3366 = vpop.xlane.xlu0 %3365
        %v3367 = vmax.f32 %v1824, %v1913
        %3368 = vmax.xlane.f32.xlu0 %v3367
        %v3369 = vpop.xlane.xlu0 %3368
        %v3370 = vmax.f32 %v1827, %v1916
        %3371 = vmax.xlane.f32.xlu0 %v3370
        %v3372 = vpop.xlane.xlu0 %3371
        %v3373 = vmax.f32 %v1829, %v1918
        %3374 = vmax.xlane.f32.xlu0 %v3373
        %v3375 = vpop.xlane.xlu0 %3374
        %v3376 = vmax.f32 %v2020, %v2109
        %3377 = vmax.xlane.f32.xlu0 %v3376
        %v3378 = vpop.xlane.xlu0 %3377
        %v3379 = vmax.f32 %v2022, %v2111
        %3380 = vmax.xlane.f32.xlu0 %v3379
        %v3381 = vpop.xlane.xlu0 %3380
        %v3382 = vmax.f32 %v2025, %v2114
        %3383 = vmax.xlane.f32.xlu0 %v3382
        %v3384 = vpop.xlane.xlu0 %3383
        %v3385 = vmax.f32 %v2027, %v2116
        %3386 = vmax.xlane.f32.xlu0 %v3385
        %v3387 = vpop.xlane.xlu0 %3386
        %v3388 = vmax.f32 %v2030, %v2119
        %3389 = vmax.xlane.f32.xlu0 %v3388
        %v3390 = vpop.xlane.xlu0 %3389
        %v3391 = vmax.f32 %v2032, %v2121
        %3392 = vmax.xlane.f32.xlu0 %v3391
        %v3393 = vpop.xlane.xlu0 %3392
        %v3394 = vmax.f32 %v2035, %v2124
        %3395 = vmax.xlane.f32.xlu0 %v3394
        %v3396 = vpop.xlane.xlu0 %3395
        %v3397 = vmax.f32 %v2037, %v2126
        %3398 = vmax.xlane.f32.xlu0 %v3397
        %v3399 = vpop.xlane.xlu0 %3398
        %v3400 = vmax.f32 %v2040, %v2129
        %3401 = vmax.xlane.f32.xlu0 %v3400
        %v3402 = vpop.xlane.xlu0 %3401
        %v3403 = vmax.f32 %v2042, %v2131
        %3404 = vmax.xlane.f32.xlu0 %v3403
        %v3405 = vpop.xlane.xlu0 %3404
        %v3406 = vmax.f32 %v2045, %v2134
        %3407 = vmax.xlane.f32.xlu0 %v3406
        %v3408 = vpop.xlane.xlu0 %3407
        %v3409 = vmax.f32 %v2047, %v2136
        %3410 = vmax.xlane.f32.xlu0 %v3409
        %v3411 = vpop.xlane.xlu0 %3410
        %v3412 = vmax.f32 %v2050, %v2139
        %3413 = vmax.xlane.f32.xlu0 %v3412
        %v3414 = vpop.xlane.xlu0 %3413
        %v3415 = vmax.f32 %v2052, %v2141
        %3416 = vmax.xlane.f32.xlu0 %v3415
        %v3417 = vpop.xlane.xlu0 %3416
        %v3418 = vmax.f32 %v2055, %v2144
        %3419 = vmax.xlane.f32.xlu0 %v3418
        %v3420 = vpop.xlane.xlu0 %3419
        %v3421 = vmax.f32 %v2057, %v2146
        %3422 = vmax.xlane.f32.xlu0 %v3421
        %v3423 = vpop.xlane.xlu0 %3422
        %v3424 = vmax.f32 %v2060, %v2149
        %3425 = vmax.xlane.f32.xlu0 %v3424
        %v3426 = vpop.xlane.xlu0 %3425
        %v3427 = vmax.f32 %v2062, %v2151
        %3428 = vmax.xlane.f32.xlu0 %v3427
        %v3429 = vpop.xlane.xlu0 %3428
        %v3430 = vmax.f32 %v2065, %v2154
        %3431 = vmax.xlane.f32.xlu0 %v3430
        %v3432 = vpop.xlane.xlu0 %3431
        %v3433 = vmax.f32 %v2067, %v2156
        %3434 = vmax.xlane.f32.xlu0 %v3433
        %v3435 = vpop.xlane.xlu0 %3434
        %v3436 = vmax.f32 %v2070, %v2159
        %3437 = vmax.xlane.f32.xlu0 %v3436
        %v3438 = vpop.xlane.xlu0 %3437
        %v3439 = vmax.f32 %v2072, %v2161
        %3440 = vmax.xlane.f32.xlu0 %v3439
        %v3441 = vpop.xlane.xlu0 %3440
        %v3442 = vmax.f32 %v2075, %v2164
        %3443 = vmax.xlane.f32.xlu0 %v3442
        %v3444 = vpop.xlane.xlu0 %3443
        %v3445 = vmax.f32 %v2077, %v2166
        %3446 = vmax.xlane.f32.xlu0 %v3445
        %v3447 = vpop.xlane.xlu0 %3446
        %v3448 = vmax.f32 %v2080, %v2169
        %3449 = vmax.xlane.f32.xlu0 %v3448
        %v3450 = vpop.xlane.xlu0 %3449
        %v3451 = vmax.f32 %v2082, %v2171
        %3452 = vmax.xlane.f32.xlu0 %v3451
        %v3453 = vpop.xlane.xlu0 %3452
        %v3454 = vmax.f32 %v2085, %v2174
        %3455 = vmax.xlane.f32.xlu0 %v3454
        %v3456 = vpop.xlane.xlu0 %3455
        %v3457 = vmax.f32 %v2087, %v2176
        %3458 = vmax.xlane.f32.xlu0 %v3457
        %v3459 = vpop.xlane.xlu0 %3458
        %v3460 = vmax.f32 %v2090, %v2179
        %3461 = vmax.xlane.f32.xlu0 %v3460
        %v3462 = vpop.xlane.xlu0 %3461
        %v3463 = vmax.f32 %v2092, %v2181
        %3464 = vmax.xlane.f32.xlu0 %v3463
        %v3465 = vpop.xlane.xlu0 %3464
        %v3466 = vmax.f32 %v2095, %v2184
        %3467 = vmax.xlane.f32.xlu0 %v3466
        %v3468 = vpop.xlane.xlu0 %3467
        %v3469 = vmax.f32 %v2097, %v2186
        %3470 = vmax.xlane.f32.xlu0 %v3469
        %v3471 = vpop.xlane.xlu0 %3470
        %v3472 = vmax.f32 %v2288, %v2377
        %3473 = vmax.xlane.f32.xlu0 %v3472
        %v3474 = vpop.xlane.xlu0 %3473
        %v3475 = vmax.f32 %v2290, %v2379
        %3476 = vmax.xlane.f32.xlu0 %v3475
        %v3477 = vpop.xlane.xlu0 %3476
        %v3478 = vmax.f32 %v2293, %v2382
        %3479 = vmax.xlane.f32.xlu0 %v3478
        %v3480 = vpop.xlane.xlu0 %3479
        %v3481 = vmax.f32 %v2295, %v2384
        %3482 = vmax.xlane.f32.xlu0 %v3481
        %v3483 = vpop.xlane.xlu0 %3482
        %v3484 = vmax.f32 %v2298, %v2387
        %3485 = vmax.xlane.f32.xlu0 %v3484
        %v3486 = vpop.xlane.xlu0 %3485
        %v3487 = vmax.f32 %v2300, %v2389
        %3488 = vmax.xlane.f32.xlu0 %v3487
        %v3489 = vpop.xlane.xlu0 %3488
        %v3490 = vmax.f32 %v2303, %v2392
        %3491 = vmax.xlane.f32.xlu0 %v3490
        %v3492 = vpop.xlane.xlu0 %3491
        %v3493 = vmax.f32 %v2305, %v2394
        %3494 = vmax.xlane.f32.xlu0 %v3493
        %v3495 = vpop.xlane.xlu0 %3494
        %v3496 = vmax.f32 %v2308, %v2397
        %3497 = vmax.xlane.f32.xlu0 %v3496
        %v3498 = vpop.xlane.xlu0 %3497
        %v3499 = vmax.f32 %v2310, %v2399
        %3500 = vmax.xlane.f32.xlu0 %v3499
        %v3501 = vpop.xlane.xlu0 %3500
        %v3502 = vmax.f32 %v2313, %v2402
        %3503 = vmax.xlane.f32.xlu0 %v3502
        %v3504 = vpop.xlane.xlu0 %3503
        %v3505 = vmax.f32 %v2315, %v2404
        %3506 = vmax.xlane.f32.xlu0 %v3505
        %v3507 = vpop.xlane.xlu0 %3506
        %v3508 = vmax.f32 %v2318, %v2407
        %3509 = vmax.xlane.f32.xlu0 %v3508
        %v3510 = vpop.xlane.xlu0 %3509
        %v3511 = vmax.f32 %v2320, %v2409
        %3512 = vmax.xlane.f32.xlu0 %v3511
        %v3513 = vpop.xlane.xlu0 %3512
        %v3514 = vmax.f32 %v2323, %v2412
        %3515 = vmax.xlane.f32.xlu0 %v3514
        %v3516 = vpop.xlane.xlu0 %3515
        %v3517 = vmax.f32 %v2325, %v2414
        %3518 = vmax.xlane.f32.xlu0 %v3517
        %v3519 = vpop.xlane.xlu0 %3518
        %v3520 = vmax.f32 %v2328, %v2417
        %3521 = vmax.xlane.f32.xlu0 %v3520
        %v3522 = vpop.xlane.xlu0 %3521
        %v3523 = vmax.f32 %v2330, %v2419
        %3524 = vmax.xlane.f32.xlu0 %v3523
        %v3525 = vpop.xlane.xlu0 %3524
        %v3526 = vmax.f32 %v2333, %v2422
        %3527 = vmax.xlane.f32.xlu0 %v3526
        %v3528 = vpop.xlane.xlu0 %3527
        %v3529 = vmax.f32 %v2335, %v2424
        %3530 = vmax.xlane.f32.xlu0 %v3529
        %v3531 = vpop.xlane.xlu0 %3530
        %v3532 = vmax.f32 %v2338, %v2427
        %3533 = vmax.xlane.f32.xlu0 %v3532
        %v3534 = vpop.xlane.xlu0 %3533
        %v3535 = vmax.f32 %v2340, %v2429
        %3536 = vmax.xlane.f32.xlu0 %v3535
        %v3537 = vpop.xlane.xlu0 %3536
        %v3538 = vmax.f32 %v2343, %v2432
        %3539 = vmax.xlane.f32.xlu0 %v3538
        %v3540 = vpop.xlane.xlu0 %3539
        %v3541 = vmax.f32 %v2345, %v2434
        %3542 = vmax.xlane.f32.xlu0 %v3541
        %v3543 = vpop.xlane.xlu0 %3542
        %v3544 = vmax.f32 %v2348, %v2437
        %3545 = vmax.xlane.f32.xlu0 %v3544
        %v3546 = vpop.xlane.xlu0 %3545
        %v3547 = vmax.f32 %v2350, %v2439
        %3548 = vmax.xlane.f32.xlu0 %v3547
        %v3549 = vpop.xlane.xlu0 %3548
        %v3550 = vmax.f32 %v2353, %v2442
        %3551 = vmax.xlane.f32.xlu0 %v3550
        %v3552 = vpop.xlane.xlu0 %3551
        %v3553 = vmax.f32 %v2355, %v2444
        %3554 = vmax.xlane.f32.xlu0 %v3553
        %v3555 = vpop.xlane.xlu0 %3554
        %v3556 = vmax.f32 %v2358, %v2447
        %3557 = vmax.xlane.f32.xlu0 %v3556
        %v3558 = vpop.xlane.xlu0 %3557
        %v3559 = vmax.f32 %v2360, %v2449
        %3560 = vmax.xlane.f32.xlu0 %v3559
        %v3561 = vpop.xlane.xlu0 %3560
        %v3562 = vmax.f32 %v2363, %v2452
        %3563 = vmax.xlane.f32.xlu0 %v3562
        %v3564 = vpop.xlane.xlu0 %3563
        %v3565 = vmax.f32 %v2365, %v2454
        %3566 = vmax.xlane.f32.xlu0 %v3565
        %v3567 = vpop.xlane.xlu0 %3566
        %v3568 = vmax.f32 %v2556, %v2645
        %3569 = vmax.xlane.f32.xlu0 %v3568
        %v3570 = vpop.xlane.xlu0 %3569
        %v3571 = vmax.f32 %v2558, %v2647
        %3572 = vmax.xlane.f32.xlu0 %v3571
        %v3573 = vpop.xlane.xlu0 %3572
        %v3574 = vmax.f32 %v2561, %v2650
        %3575 = vmax.xlane.f32.xlu0 %v3574
        %v3576 = vpop.xlane.xlu0 %3575
        %v3577 = vmax.f32 %v2563, %v2652
        %3578 = vmax.xlane.f32.xlu0 %v3577
        %v3579 = vpop.xlane.xlu0 %3578
        %v3580 = vmax.f32 %v2566, %v2655
        %3581 = vmax.xlane.f32.xlu0 %v3580
        %v3582 = vpop.xlane.xlu0 %3581
        %v3583 = vmax.f32 %v2568, %v2657
        %3584 = vmax.xlane.f32.xlu0 %v3583
        %v3585 = vpop.xlane.xlu0 %3584
        %v3586 = vmax.f32 %v2571, %v2660
        %3587 = vmax.xlane.f32.xlu0 %v3586
        %v3588 = vpop.xlane.xlu0 %3587
        %v3589 = vmax.f32 %v2573, %v2662
        %3590 = vmax.xlane.f32.xlu0 %v3589
        %v3591 = vpop.xlane.xlu0 %3590
        %v3592 = vmax.f32 %v2576, %v2665
        %3593 = vmax.xlane.f32.xlu0 %v3592
        %v3594 = vpop.xlane.xlu0 %3593
        %v3595 = vmax.f32 %v2578, %v2667
        %3596 = vmax.xlane.f32.xlu0 %v3595
        %v3597 = vpop.xlane.xlu0 %3596
        %v3598 = vmax.f32 %v2581, %v2670
        %3599 = vmax.xlane.f32.xlu0 %v3598
        %v3600 = vpop.xlane.xlu0 %3599
        %v3601 = vmax.f32 %v2583, %v2672
        %3602 = vmax.xlane.f32.xlu0 %v3601
        %v3603 = vpop.xlane.xlu0 %3602
        %v3604 = vmax.f32 %v2586, %v2675
        %3605 = vmax.xlane.f32.xlu0 %v3604
        %v3606 = vpop.xlane.xlu0 %3605
        %v3607 = vmax.f32 %v2588, %v2677
        %3608 = vmax.xlane.f32.xlu0 %v3607
        %v3609 = vpop.xlane.xlu0 %3608
        %v3610 = vmax.f32 %v2591, %v2680
        %3611 = vmax.xlane.f32.xlu0 %v3610
        %v3612 = vpop.xlane.xlu0 %3611
        %v3613 = vmax.f32 %v2593, %v2682
        %3614 = vmax.xlane.f32.xlu0 %v3613
        %v3615 = vpop.xlane.xlu0 %3614
        %v3616 = vmax.f32 %v2596, %v2685
        %3617 = vmax.xlane.f32.xlu0 %v3616
        %v3618 = vpop.xlane.xlu0 %3617
        %v3619 = vmax.f32 %v2598, %v2687
        %3620 = vmax.xlane.f32.xlu0 %v3619
        %v3621 = vpop.xlane.xlu0 %3620
        %v3622 = vmax.f32 %v2601, %v2690
        %3623 = vmax.xlane.f32.xlu0 %v3622
        %v3624 = vpop.xlane.xlu0 %3623
        %v3625 = vmax.f32 %v2603, %v2692
        %3626 = vmax.xlane.f32.xlu0 %v3625
        %v3627 = vpop.xlane.xlu0 %3626
        %v3628 = vmax.f32 %v2606, %v2695
        %3629 = vmax.xlane.f32.xlu0 %v3628
        %v3630 = vpop.xlane.xlu0 %3629
        %v3631 = vmax.f32 %v2608, %v2697
        %3632 = vmax.xlane.f32.xlu0 %v3631
        %v3633 = vpop.xlane.xlu0 %3632
        %v3634 = vmax.f32 %v2611, %v2700
        %3635 = vmax.xlane.f32.xlu0 %v3634
        %v3636 = vpop.xlane.xlu0 %3635
        %v3637 = vmax.f32 %v2613, %v2702
        %3638 = vmax.xlane.f32.xlu0 %v3637
        %v3639 = vpop.xlane.xlu0 %3638
        %v3640 = vmax.f32 %v2616, %v2705
        %3641 = vmax.xlane.f32.xlu0 %v3640
        %v3642 = vpop.xlane.xlu0 %3641
        %v3643 = vmax.f32 %v2618, %v2707
        %3644 = vmax.xlane.f32.xlu0 %v3643
        %v3645 = vpop.xlane.xlu0 %3644
        %v3646 = vmax.f32 %v2621, %v2710
        %3647 = vmax.xlane.f32.xlu0 %v3646
        %v3648 = vpop.xlane.xlu0 %3647
        %v3649 = vmax.f32 %v2623, %v2712
        %3650 = vmax.xlane.f32.xlu0 %v3649
        %v3651 = vpop.xlane.xlu0 %3650
        %v3652 = vmax.f32 %v2626, %v2715
        %3653 = vmax.xlane.f32.xlu0 %v3652
        %v3654 = vpop.xlane.xlu0 %3653
        %v3655 = vmax.f32 %v2628, %v2717
        %3656 = vmax.xlane.f32.xlu0 %v3655
        %v3657 = vpop.xlane.xlu0 %3656
        %v3658 = vmax.f32 %v2631, %v2720
        %3659 = vmax.xlane.f32.xlu0 %v3658
        %v3660 = vpop.xlane.xlu0 %3659
        %v3661 = vmax.f32 %v2633, %v2722
        %3662 = vmax.xlane.f32.xlu0 %v3661
        %v3663 = vpop.xlane.xlu0 %3662
        %v3664 = vmax.f32 %v2824, %v2913
        %3665 = vmax.xlane.f32.xlu0 %v3664
        %v3666 = vpop.xlane.xlu0 %3665
        %v3667 = vmax.f32 %v2826, %v2915
        %3668 = vmax.xlane.f32.xlu0 %v3667
        %v3669 = vpop.xlane.xlu0 %3668
        %v3670 = vmax.f32 %v2829, %v2918
        %3671 = vmax.xlane.f32.xlu0 %v3670
        %v3672 = vpop.xlane.xlu0 %3671
        %v3673 = vmax.f32 %v2831, %v2920
        %3674 = vmax.xlane.f32.xlu0 %v3673
        %v3675 = vpop.xlane.xlu0 %3674
        %v3676 = vmax.f32 %v2834, %v2923
        %3677 = vmax.xlane.f32.xlu0 %v3676
        %v3678 = vpop.xlane.xlu0 %3677
        %v3679 = vmax.f32 %v2836, %v2925
        %3680 = vmax.xlane.f32.xlu0 %v3679
        %v3681 = vpop.xlane.xlu0 %3680
        %v3682 = vmax.f32 %v2839, %v2928
        %3683 = vmax.xlane.f32.xlu0 %v3682
        %v3684 = vpop.xlane.xlu0 %3683
        %v3685 = vmax.f32 %v2841, %v2930
        %3686 = vmax.xlane.f32.xlu0 %v3685
        %v3687 = vpop.xlane.xlu0 %3686
        %v3688 = vmax.f32 %v2844, %v2933
        %3689 = vmax.xlane.f32.xlu0 %v3688
        %v3690 = vpop.xlane.xlu0 %3689
        %v3691 = vmax.f32 %v2846, %v2935
        %3692 = vmax.xlane.f32.xlu0 %v3691
        %v3693 = vpop.xlane.xlu0 %3692
        %v3694 = vmax.f32 %v2849, %v2938
        %3695 = vmax.xlane.f32.xlu0 %v3694
        %v3696 = vpop.xlane.xlu0 %3695
        %v3697 = vmax.f32 %v2851, %v2940
        %3698 = vmax.xlane.f32.xlu0 %v3697
        %v3699 = vpop.xlane.xlu0 %3698
        %v3700 = vmax.f32 %v2854, %v2943
        %3701 = vmax.xlane.f32.xlu0 %v3700
        %v3702 = vpop.xlane.xlu0 %3701
        %v3703 = vmax.f32 %v2856, %v2945
        %3704 = vmax.xlane.f32.xlu0 %v3703
        %v3705 = vpop.xlane.xlu0 %3704
        %v3706 = vmax.f32 %v2859, %v2948
        %3707 = vmax.xlane.f32.xlu0 %v3706
        %v3708 = vpop.xlane.xlu0 %3707
        %v3709 = vmax.f32 %v2861, %v2950
        %3710 = vmax.xlane.f32.xlu0 %v3709
        %v3711 = vpop.xlane.xlu0 %3710
        %v3712 = vmax.f32 %v2864, %v2953
        %3713 = vmax.xlane.f32.xlu0 %v3712
        %v3714 = vpop.xlane.xlu0 %3713
        %v3715 = vmax.f32 %v2866, %v2955
        %3716 = vmax.xlane.f32.xlu0 %v3715
        %v3717 = vpop.xlane.xlu0 %3716
        %v3718 = vmax.f32 %v2869, %v2958
        %3719 = vmax.xlane.f32.xlu0 %v3718
        %v3720 = vpop.xlane.xlu0 %3719
        %v3721 = vmax.f32 %v2871, %v2960
        %3722 = vmax.xlane.f32.xlu0 %v3721
        %v3723 = vpop.xlane.xlu0 %3722
        %v3724 = vmax.f32 %v2874, %v2963
        %3725 = vmax.xlane.f32.xlu0 %v3724
        %v3726 = vpop.xlane.xlu0 %3725
        %v3727 = vmax.f32 %v2876, %v2965
        %3728 = vmax.xlane.f32.xlu0 %v3727
        %v3729 = vpop.xlane.xlu0 %3728
        %v3730 = vmax.f32 %v2879, %v2968
        %3731 = vmax.xlane.f32.xlu0 %v3730
        %v3732 = vpop.xlane.xlu0 %3731
        %v3733 = vmax.f32 %v2881, %v2970
        %3734 = vmax.xlane.f32.xlu0 %v3733
        %v3735 = vpop.xlane.xlu0 %3734
        %v3736 = vmax.f32 %v2884, %v2973
        %3737 = vmax.xlane.f32.xlu0 %v3736
        %v3738 = vpop.xlane.xlu0 %3737
        %v3739 = vmax.f32 %v2886, %v2975
        %3740 = vmax.xlane.f32.xlu0 %v3739
        %v3741 = vpop.xlane.xlu0 %3740
        %v3742 = vmax.f32 %v2889, %v2978
        %3743 = vmax.xlane.f32.xlu0 %v3742
        %v3744 = vpop.xlane.xlu0 %3743
        %v3745 = vmax.f32 %v2891, %v2980
        %3746 = vmax.xlane.f32.xlu0 %v3745
        %v3747 = vpop.xlane.xlu0 %3746
        %v3748 = vmax.f32 %v2894, %v2983
        %3749 = vmax.xlane.f32.xlu0 %v3748
        %v3750 = vpop.xlane.xlu0 %3749
        %v3751 = vmax.f32 %v2896, %v2985
        %3752 = vmax.xlane.f32.xlu0 %v3751
        %v3753 = vpop.xlane.xlu0 %3752
        %v3754 = vmax.f32 %v2899, %v2988
        %3755 = vmax.xlane.f32.xlu0 %v3754
        %v3756 = vpop.xlane.xlu0 %3755
        %v3757 = vmax.f32 %v2901, %v2990
        %3758 = vmax.xlane.f32.xlu0 %v3757
        %v3759 = vpop.xlane.xlu0 %3758
        %v3760 = vsub.f32 %v948, %v2994
        %v3761 = vsub.f32 %v1037, %v2994
        %v3762 = vsub.f32 %v950, %v2997
        %v3763 = vsub.f32 %v1039, %v2997
        %v3764 = vsub.f32 %v953, %v3000
        %v3765 = vsub.f32 %v1042, %v3000
        %v3766 = vsub.f32 %v955, %v3003
        %v3767 = vsub.f32 %v1044, %v3003
        %v3768 = vsub.f32 %v958, %v3006
        %v3769 = vsub.f32 %v1047, %v3006
        %v3770 = vsub.f32 %v960, %v3009
        %v3771 = vsub.f32 %v1049, %v3009
        %v3772 = vsub.f32 %v963, %v3012
        %v3773 = vsub.f32 %v1052, %v3012
        %v3774 = vsub.f32 %v965, %v3015
        %v3775 = vsub.f32 %v1054, %v3015
        %v3776 = vsub.f32 %v968, %v3018
        %v3777 = vsub.f32 %v1057, %v3018
        %v3778 = vsub.f32 %v970, %v3021
        %v3779 = vsub.f32 %v1059, %v3021
        %v3780 = vsub.f32 %v973, %v3024
        %v3781 = vsub.f32 %v1062, %v3024
        %v3782 = vsub.f32 %v975, %v3027
        %v3783 = vsub.f32 %v1064, %v3027
        %v3784 = vsub.f32 %v978, %v3030
        %v3785 = vsub.f32 %v1067, %v3030
        %v3786 = vsub.f32 %v980, %v3033
        %v3787 = vsub.f32 %v1069, %v3033
        %v3788 = vsub.f32 %v983, %v3036
        %v3789 = vsub.f32 %v1072, %v3036
        %v3790 = vsub.f32 %v985, %v3039
        %v3791 = vsub.f32 %v1074, %v3039
        %v3792 = vsub.f32 %v988, %v3042
        %v3793 = vsub.f32 %v1077, %v3042
        %v3794 = vsub.f32 %v990, %v3045
        %v3795 = vsub.f32 %v1079, %v3045
        %v3796 = vsub.f32 %v993, %v3048
        %v3797 = vsub.f32 %v1082, %v3048
        %v3798 = vsub.f32 %v995, %v3051
        %v3799 = vsub.f32 %v1084, %v3051
        %v3800 = vsub.f32 %v998, %v3054
        %v3801 = vsub.f32 %v1087, %v3054
        %v3802 = vsub.f32 %v1000, %v3057
        %v3803 = vsub.f32 %v1089, %v3057
        %v3804 = vsub.f32 %v1003, %v3060
        %v3805 = vsub.f32 %v1092, %v3060
        %v3806 = vsub.f32 %v1005, %v3063
        %v3807 = vsub.f32 %v1094, %v3063
        %v3808 = vsub.f32 %v1008, %v3066
        %v3809 = vsub.f32 %v1097, %v3066
        %v3810 = vsub.f32 %v1010, %v3069
        %v3811 = vsub.f32 %v1099, %v3069
        %v3812 = vsub.f32 %v1013, %v3072
        %v3813 = vsub.f32 %v1102, %v3072
        %v3814 = vsub.f32 %v1015, %v3075
        %v3815 = vsub.f32 %v1104, %v3075
        %v3816 = vsub.f32 %v1018, %v3078
        %v3817 = vsub.f32 %v1107, %v3078
        %v3818 = vsub.f32 %v1020, %v3081
        %v3819 = vsub.f32 %v1109, %v3081
        %v3820 = vsub.f32 %v1023, %v3084
        %v3821 = vsub.f32 %v1112, %v3084
        %v3822 = vsub.f32 %v1025, %v3087
        %v3823 = vsub.f32 %v1114, %v3087
        %v3824 = vsub.f32 %v1216, %v3090
        %v3825 = vsub.f32 %v1305, %v3090
        %v3826 = vsub.f32 %v1218, %v3093
        %v3827 = vsub.f32 %v1307, %v3093
        %v3828 = vsub.f32 %v1221, %v3096
        %v3829 = vsub.f32 %v1310, %v3096
        %v3830 = vsub.f32 %v1223, %v3099
        %v3831 = vsub.f32 %v1312, %v3099
        %v3832 = vsub.f32 %v1226, %v3102
        %v3833 = vsub.f32 %v1315, %v3102
        %v3834 = vsub.f32 %v1228, %v3105
        %v3835 = vsub.f32 %v1317, %v3105
        %v3836 = vsub.f32 %v1231, %v3108
        %v3837 = vsub.f32 %v1320, %v3108
        %v3838 = vsub.f32 %v1233, %v3111
        %v3839 = vsub.f32 %v1322, %v3111
        %v3840 = vsub.f32 %v1236, %v3114
        %v3841 = vsub.f32 %v1325, %v3114
        %v3842 = vsub.f32 %v1238, %v3117
        %v3843 = vsub.f32 %v1327, %v3117
        %v3844 = vsub.f32 %v1241, %v3120
        %v3845 = vsub.f32 %v1330, %v3120
        %v3846 = vsub.f32 %v1243, %v3123
        %v3847 = vsub.f32 %v1332, %v3123
        %v3848 = vsub.f32 %v1246, %v3126
        %v3849 = vsub.f32 %v1335, %v3126
        %v3850 = vsub.f32 %v1248, %v3129
        %v3851 = vsub.f32 %v1337, %v3129
        %v3852 = vsub.f32 %v1251, %v3132
        %v3853 = vsub.f32 %v1340, %v3132
        %v3854 = vsub.f32 %v1253, %v3135
        %v3855 = vsub.f32 %v1342, %v3135
        %v3856 = vsub.f32 %v1256, %v3138
        %v3857 = vsub.f32 %v1345, %v3138
        %v3858 = vsub.f32 %v1258, %v3141
        %v3859 = vsub.f32 %v1347, %v3141
        %v3860 = vsub.f32 %v1261, %v3144
        %v3861 = vsub.f32 %v1350, %v3144
        %v3862 = vsub.f32 %v1263, %v3147
        %v3863 = vsub.f32 %v1352, %v3147
        %v3864 = vsub.f32 %v1266, %v3150
        %v3865 = vsub.f32 %v1355, %v3150
        %v3866 = vsub.f32 %v1268, %v3153
        %v3867 = vsub.f32 %v1357, %v3153
        %v3868 = vsub.f32 %v1271, %v3156
        %v3869 = vsub.f32 %v1360, %v3156
        %v3870 = vsub.f32 %v1273, %v3159
        %v3871 = vsub.f32 %v1362, %v3159
        %v3872 = vsub.f32 %v1276, %v3162
        %v3873 = vsub.f32 %v1365, %v3162
        %v3874 = vsub.f32 %v1278, %v3165
        %v3875 = vsub.f32 %v1367, %v3165
        %v3876 = vsub.f32 %v1281, %v3168
        %v3877 = vsub.f32 %v1370, %v3168
        %v3878 = vsub.f32 %v1283, %v3171
        %v3879 = vsub.f32 %v1372, %v3171
        %v3880 = vsub.f32 %v1286, %v3174
        %v3881 = vsub.f32 %v1375, %v3174
        %v3882 = vsub.f32 %v1288, %v3177
        %v3883 = vsub.f32 %v1377, %v3177
        %v3884 = vsub.f32 %v1291, %v3180
        %v3885 = vsub.f32 %v1380, %v3180
        %v3886 = vsub.f32 %v1293, %v3183
        %v3887 = vsub.f32 %v1382, %v3183
        %v3888 = vsub.f32 %v1484, %v3186
        %v3889 = vsub.f32 %v1573, %v3186
        %v3890 = vsub.f32 %v1486, %v3189
        %v3891 = vsub.f32 %v1575, %v3189
        %v3892 = vsub.f32 %v1489, %v3192
        %v3893 = vsub.f32 %v1578, %v3192
        %v3894 = vsub.f32 %v1491, %v3195
        %v3895 = vsub.f32 %v1580, %v3195
        %v3896 = vsub.f32 %v1494, %v3198
        %v3897 = vsub.f32 %v1583, %v3198
        %v3898 = vsub.f32 %v1496, %v3201
        %v3899 = vsub.f32 %v1585, %v3201
        %v3900 = vsub.f32 %v1499, %v3204
        %v3901 = vsub.f32 %v1588, %v3204
        %v3902 = vsub.f32 %v1501, %v3207
        %v3903 = vsub.f32 %v1590, %v3207
        %v3904 = vsub.f32 %v1504, %v3210
        %v3905 = vsub.f32 %v1593, %v3210
        %v3906 = vsub.f32 %v1506, %v3213
        %v3907 = vsub.f32 %v1595, %v3213
        %v3908 = vsub.f32 %v1509, %v3216
        %v3909 = vsub.f32 %v1598, %v3216
        %v3910 = vsub.f32 %v1511, %v3219
        %v3911 = vsub.f32 %v1600, %v3219
        %v3912 = vsub.f32 %v1514, %v3222
        %v3913 = vsub.f32 %v1603, %v3222
        %v3914 = vsub.f32 %v1516, %v3225
        %v3915 = vsub.f32 %v1605, %v3225
        %v3916 = vsub.f32 %v1519, %v3228
        %v3917 = vsub.f32 %v1608, %v3228
        %v3918 = vsub.f32 %v1521, %v3231
        %v3919 = vsub.f32 %v1610, %v3231
        %v3920 = vsub.f32 %v1524, %v3234
        %v3921 = vsub.f32 %v1613, %v3234
        %v3922 = vsub.f32 %v1526, %v3237
        %v3923 = vsub.f32 %v1615, %v3237
        %v3924 = vsub.f32 %v1529, %v3240
        %v3925 = vsub.f32 %v1618, %v3240
        %v3926 = vsub.f32 %v1531, %v3243
        %v3927 = vsub.f32 %v1620, %v3243
        %v3928 = vsub.f32 %v1534, %v3246
        %v3929 = vsub.f32 %v1623, %v3246
        %v3930 = vsub.f32 %v1536, %v3249
        %v3931 = vsub.f32 %v1625, %v3249
        %v3932 = vsub.f32 %v1539, %v3252
        %v3933 = vsub.f32 %v1628, %v3252
        %v3934 = vsub.f32 %v1541, %v3255
        %v3935 = vsub.f32 %v1630, %v3255
        %v3936 = vsub.f32 %v1544, %v3258
        %v3937 = vsub.f32 %v1633, %v3258
        %v3938 = vsub.f32 %v1546, %v3261
        %v3939 = vsub.f32 %v1635, %v3261
        %v3940 = vsub.f32 %v1549, %v3264
        %v3941 = vsub.f32 %v1638, %v3264
        %v3942 = vsub.f32 %v1551, %v3267
        %v3943 = vsub.f32 %v1640, %v3267
        %v3944 = vsub.f32 %v1554, %v3270
        %v3945 = vsub.f32 %v1643, %v3270
        %v3946 = vsub.f32 %v1556, %v3273
        %v3947 = vsub.f32 %v1645, %v3273
        %v3948 = vsub.f32 %v1559, %v3276
        %v3949 = vsub.f32 %v1648, %v3276
        %v3950 = vsub.f32 %v1561, %v3279
        %v3951 = vsub.f32 %v1650, %v3279
        %v3952 = vsub.f32 %v1752, %v3282
        %v3953 = vsub.f32 %v1841, %v3282
        %v3954 = vsub.f32 %v1754, %v3285
        %v3955 = vsub.f32 %v1843, %v3285
        %v3956 = vsub.f32 %v1757, %v3288
        %v3957 = vsub.f32 %v1846, %v3288
        %v3958 = vsub.f32 %v1759, %v3291
        %v3959 = vsub.f32 %v1848, %v3291
        %v3960 = vsub.f32 %v1762, %v3294
        %v3961 = vsub.f32 %v1851, %v3294
        %v3962 = vsub.f32 %v1764, %v3297
        %v3963 = vsub.f32 %v1853, %v3297
        %v3964 = vsub.f32 %v1767, %v3300
        %v3965 = vsub.f32 %v1856, %v3300
        %v3966 = vsub.f32 %v1769, %v3303
        %v3967 = vsub.f32 %v1858, %v3303
        %v3968 = vsub.f32 %v1772, %v3306
        %v3969 = vsub.f32 %v1861, %v3306
        %v3970 = vsub.f32 %v1774, %v3309
        %v3971 = vsub.f32 %v1863, %v3309
        %v3972 = vsub.f32 %v1777, %v3312
        %v3973 = vsub.f32 %v1866, %v3312
        %v3974 = vsub.f32 %v1779, %v3315
        %v3975 = vsub.f32 %v1868, %v3315
        %v3976 = vsub.f32 %v1782, %v3318
        %v3977 = vsub.f32 %v1871, %v3318
        %v3978 = vsub.f32 %v1784, %v3321
        %v3979 = vsub.f32 %v1873, %v3321
        %v3980 = vsub.f32 %v1787, %v3324
        %v3981 = vsub.f32 %v1876, %v3324
        %v3982 = vsub.f32 %v1789, %v3327
        %v3983 = vsub.f32 %v1878, %v3327
        %v3984 = vsub.f32 %v1792, %v3330
        %v3985 = vsub.f32 %v1881, %v3330
        %v3986 = vsub.f32 %v1794, %v3333
        %v3987 = vsub.f32 %v1883, %v3333
        %v3988 = vsub.f32 %v1797, %v3336
        %v3989 = vsub.f32 %v1886, %v3336
        %v3990 = vsub.f32 %v1799, %v3339
        %v3991 = vsub.f32 %v1888, %v3339
        %v3992 = vsub.f32 %v1802, %v3342
        %v3993 = vsub.f32 %v1891, %v3342
        %v3994 = vsub.f32 %v1804, %v3345
        %v3995 = vsub.f32 %v1893, %v3345
        %v3996 = vsub.f32 %v1807, %v3348
        %v3997 = vsub.f32 %v1896, %v3348
        %v3998 = vsub.f32 %v1809, %v3351
        %v3999 = vsub.f32 %v1898, %v3351
        %v4000 = vsub.f32 %v1812, %v3354
        %v4001 = vsub.f32 %v1901, %v3354
        %v4002 = vsub.f32 %v1814, %v3357
        %v4003 = vsub.f32 %v1903, %v3357
        %v4004 = vsub.f32 %v1817, %v3360
        %v4005 = vsub.f32 %v1906, %v3360
        %v4006 = vsub.f32 %v1819, %v3363
        %v4007 = vsub.f32 %v1908, %v3363
        %v4008 = vsub.f32 %v1822, %v3366
        %v4009 = vsub.f32 %v1911, %v3366
        %v4010 = vsub.f32 %v1824, %v3369
        %v4011 = vsub.f32 %v1913, %v3369
        %v4012 = vsub.f32 %v1827, %v3372
        %v4013 = vsub.f32 %v1916, %v3372
        %v4014 = vsub.f32 %v1829, %v3375
        %v4015 = vsub.f32 %v1918, %v3375
        %v4016 = vsub.f32 %v2020, %v3378
        %v4017 = vsub.f32 %v2109, %v3378
        %v4018 = vsub.f32 %v2022, %v3381
        %v4019 = vsub.f32 %v2111, %v3381
        %v4020 = vsub.f32 %v2025, %v3384
        %v4021 = vsub.f32 %v2114, %v3384
        %v4022 = vsub.f32 %v2027, %v3387
        %v4023 = vsub.f32 %v2116, %v3387
        %v4024 = vsub.f32 %v2030, %v3390
        %v4025 = vsub.f32 %v2119, %v3390
        %v4026 = vsub.f32 %v2032, %v3393
        %v4027 = vsub.f32 %v2121, %v3393
        %v4028 = vsub.f32 %v2035, %v3396
        %v4029 = vsub.f32 %v2124, %v3396
        %v4030 = vsub.f32 %v2037, %v3399
        %v4031 = vsub.f32 %v2126, %v3399
        %v4032 = vsub.f32 %v2040, %v3402
        %v4033 = vsub.f32 %v2129, %v3402
        %v4034 = vsub.f32 %v2042, %v3405
        %v4035 = vsub.f32 %v2131, %v3405
        %v4036 = vsub.f32 %v2045, %v3408
        %v4037 = vsub.f32 %v2134, %v3408
        %v4038 = vsub.f32 %v2047, %v3411
        %v4039 = vsub.f32 %v2136, %v3411
        %v4040 = vsub.f32 %v2050, %v3414
        %v4041 = vsub.f32 %v2139, %v3414
        %v4042 = vsub.f32 %v2052, %v3417
        %v4043 = vsub.f32 %v2141, %v3417
        %v4044 = vsub.f32 %v2055, %v3420
        %v4045 = vsub.f32 %v2144, %v3420
        %v4046 = vsub.f32 %v2057, %v3423
        %v4047 = vsub.f32 %v2146, %v3423
        %v4048 = vsub.f32 %v2060, %v3426
        %v4049 = vsub.f32 %v2149, %v3426
        %v4050 = vsub.f32 %v2062, %v3429
        %v4051 = vsub.f32 %v2151, %v3429
        %v4052 = vsub.f32 %v2065, %v3432
        %v4053 = vsub.f32 %v2154, %v3432
        %v4054 = vsub.f32 %v2067, %v3435
        %v4055 = vsub.f32 %v2156, %v3435
        %v4056 = vsub.f32 %v2070, %v3438
        %v4057 = vsub.f32 %v2159, %v3438
        %v4058 = vsub.f32 %v2072, %v3441
        %v4059 = vsub.f32 %v2161, %v3441
        %v4060 = vsub.f32 %v2075, %v3444
        %v4061 = vsub.f32 %v2164, %v3444
        %v4062 = vsub.f32 %v2077, %v3447
        %v4063 = vsub.f32 %v2166, %v3447
        %v4064 = vsub.f32 %v2080, %v3450
        %v4065 = vsub.f32 %v2169, %v3450
        %v4066 = vsub.f32 %v2082, %v3453
        %v4067 = vsub.f32 %v2171, %v3453
        %v4068 = vsub.f32 %v2085, %v3456
        %v4069 = vsub.f32 %v2174, %v3456
        %v4070 = vsub.f32 %v2087, %v3459
        %v4071 = vsub.f32 %v2176, %v3459
        %v4072 = vsub.f32 %v2090, %v3462
        %v4073 = vsub.f32 %v2179, %v3462
        %v4074 = vsub.f32 %v2092, %v3465
        %v4075 = vsub.f32 %v2181, %v3465
        %v4076 = vsub.f32 %v2095, %v3468
        %v4077 = vsub.f32 %v2184, %v3468
        %v4078 = vsub.f32 %v2097, %v3471
        %v4079 = vsub.f32 %v2186, %v3471
        %v4080 = vsub.f32 %v2288, %v3474
        %v4081 = vsub.f32 %v2377, %v3474
        %v4082 = vsub.f32 %v2290, %v3477
        %v4083 = vsub.f32 %v2379, %v3477
        %v4084 = vsub.f32 %v2293, %v3480
        %v4085 = vsub.f32 %v2382, %v3480
        %v4086 = vsub.f32 %v2295, %v3483
        %v4087 = vsub.f32 %v2384, %v3483
        %v4088 = vsub.f32 %v2298, %v3486
        %v4089 = vsub.f32 %v2387, %v3486
        %v4090 = vsub.f32 %v2300, %v3489
        %v4091 = vsub.f32 %v2389, %v3489
        %v4092 = vsub.f32 %v2303, %v3492
        %v4093 = vsub.f32 %v2392, %v3492
        %v4094 = vsub.f32 %v2305, %v3495
        %v4095 = vsub.f32 %v2394, %v3495
        %v4096 = vsub.f32 %v2308, %v3498
        %v4097 = vsub.f32 %v2397, %v3498
        %v4098 = vsub.f32 %v2310, %v3501
        %v4099 = vsub.f32 %v2399, %v3501
        %v4100 = vsub.f32 %v2313, %v3504
        %v4101 = vsub.f32 %v2402, %v3504
        %v4102 = vsub.f32 %v2315, %v3507
        %v4103 = vsub.f32 %v2404, %v3507
        %v4104 = vsub.f32 %v2318, %v3510
        %v4105 = vsub.f32 %v2407, %v3510
        %v4106 = vsub.f32 %v2320, %v3513
        %v4107 = vsub.f32 %v2409, %v3513
        %v4108 = vsub.f32 %v2323, %v3516
        %v4109 = vsub.f32 %v2412, %v3516
        %v4110 = vsub.f32 %v2325, %v3519
        %v4111 = vsub.f32 %v2414, %v3519
        %v4112 = vsub.f32 %v2328, %v3522
        %v4113 = vsub.f32 %v2417, %v3522
        %v4114 = vsub.f32 %v2330, %v3525
        %v4115 = vsub.f32 %v2419, %v3525
        %v4116 = vsub.f32 %v2333, %v3528
        %v4117 = vsub.f32 %v2422, %v3528
        %v4118 = vsub.f32 %v2335, %v3531
        %v4119 = vsub.f32 %v2424, %v3531
        %v4120 = vsub.f32 %v2338, %v3534
        %v4121 = vsub.f32 %v2427, %v3534
        %v4122 = vsub.f32 %v2340, %v3537
        %v4123 = vsub.f32 %v2429, %v3537
        %v4124 = vsub.f32 %v2343, %v3540
        %v4125 = vsub.f32 %v2432, %v3540
        %v4126 = vsub.f32 %v2345, %v3543
        %v4127 = vsub.f32 %v2434, %v3543
        %v4128 = vsub.f32 %v2348, %v3546
        %v4129 = vsub.f32 %v2437, %v3546
        %v4130 = vsub.f32 %v2350, %v3549
        %v4131 = vsub.f32 %v2439, %v3549
        %v4132 = vsub.f32 %v2353, %v3552
        %v4133 = vsub.f32 %v2442, %v3552
        %v4134 = vsub.f32 %v2355, %v3555
        %v4135 = vsub.f32 %v2444, %v3555
        %v4136 = vsub.f32 %v2358, %v3558
        %v4137 = vsub.f32 %v2447, %v3558
        %v4138 = vsub.f32 %v2360, %v3561
        %v4139 = vsub.f32 %v2449, %v3561
        %v4140 = vsub.f32 %v2363, %v3564
        %v4141 = vsub.f32 %v2452, %v3564
        %v4142 = vsub.f32 %v2365, %v3567
        %v4143 = vsub.f32 %v2454, %v3567
        %v4144 = vsub.f32 %v2556, %v3570
        %v4145 = vsub.f32 %v2645, %v3570
        %v4146 = vsub.f32 %v2558, %v3573
        %v4147 = vsub.f32 %v2647, %v3573
        %v4148 = vsub.f32 %v2561, %v3576
        %v4149 = vsub.f32 %v2650, %v3576
        %v4150 = vsub.f32 %v2563, %v3579
        %v4151 = vsub.f32 %v2652, %v3579
        %v4152 = vsub.f32 %v2566, %v3582
        %v4153 = vsub.f32 %v2655, %v3582
        %v4154 = vsub.f32 %v2568, %v3585
        %v4155 = vsub.f32 %v2657, %v3585
        %v4156 = vsub.f32 %v2571, %v3588
        %v4157 = vsub.f32 %v2660, %v3588
        %v4158 = vsub.f32 %v2573, %v3591
        %v4159 = vsub.f32 %v2662, %v3591
        %v4160 = vsub.f32 %v2576, %v3594
        %v4161 = vsub.f32 %v2665, %v3594
        %v4162 = vsub.f32 %v2578, %v3597
        %v4163 = vsub.f32 %v2667, %v3597
        %v4164 = vsub.f32 %v2581, %v3600
        %v4165 = vsub.f32 %v2670, %v3600
        %v4166 = vsub.f32 %v2583, %v3603
        %v4167 = vsub.f32 %v2672, %v3603
        %v4168 = vsub.f32 %v2586, %v3606
        %v4169 = vsub.f32 %v2675, %v3606
        %v4170 = vsub.f32 %v2588, %v3609
        %v4171 = vsub.f32 %v2677, %v3609
        %v4172 = vsub.f32 %v2591, %v3612
        %v4173 = vsub.f32 %v2680, %v3612
        %v4174 = vsub.f32 %v2593, %v3615
        %v4175 = vsub.f32 %v2682, %v3615
        %v4176 = vsub.f32 %v2596, %v3618
        %v4177 = vsub.f32 %v2685, %v3618
        %v4178 = vsub.f32 %v2598, %v3621
        %v4179 = vsub.f32 %v2687, %v3621
        %v4180 = vsub.f32 %v2601, %v3624
        %v4181 = vsub.f32 %v2690, %v3624
        %v4182 = vsub.f32 %v2603, %v3627
        %v4183 = vsub.f32 %v2692, %v3627
        %v4184 = vsub.f32 %v2606, %v3630
        %v4185 = vsub.f32 %v2695, %v3630
        %v4186 = vsub.f32 %v2608, %v3633
        %v4187 = vsub.f32 %v2697, %v3633
        %v4188 = vsub.f32 %v2611, %v3636
        %v4189 = vsub.f32 %v2700, %v3636
        %v4190 = vsub.f32 %v2613, %v3639
        %v4191 = vsub.f32 %v2702, %v3639
        %v4192 = vsub.f32 %v2616, %v3642
        %v4193 = vsub.f32 %v2705, %v3642
        %v4194 = vsub.f32 %v2618, %v3645
        %v4195 = vsub.f32 %v2707, %v3645
        %v4196 = vsub.f32 %v2621, %v3648
        %v4197 = vsub.f32 %v2710, %v3648
        %v4198 = vsub.f32 %v2623, %v3651
        %v4199 = vsub.f32 %v2712, %v3651
        %v4200 = vsub.f32 %v2626, %v3654
        %v4201 = vsub.f32 %v2715, %v3654
        %v4202 = vsub.f32 %v2628, %v3657
        %v4203 = vsub.f32 %v2717, %v3657
        %v4204 = vsub.f32 %v2631, %v3660
        %v4205 = vsub.f32 %v2720, %v3660
        %v4206 = vsub.f32 %v2633, %v3663
        %v4207 = vsub.f32 %v2722, %v3663
        %v4208 = vsub.f32 %v2824, %v3666
        %v4209 = vsub.f32 %v2913, %v3666
        %v4210 = vsub.f32 %v2826, %v3669
        %v4211 = vsub.f32 %v2915, %v3669
        %v4212 = vsub.f32 %v2829, %v3672
        %v4213 = vsub.f32 %v2918, %v3672
        %v4214 = vsub.f32 %v2831, %v3675
        %v4215 = vsub.f32 %v2920, %v3675
        %v4216 = vsub.f32 %v2834, %v3678
        %v4217 = vsub.f32 %v2923, %v3678
        %v4218 = vsub.f32 %v2836, %v3681
        %v4219 = vsub.f32 %v2925, %v3681
        %v4220 = vsub.f32 %v2839, %v3684
        %v4221 = vsub.f32 %v2928, %v3684
        %v4222 = vsub.f32 %v2841, %v3687
        %v4223 = vsub.f32 %v2930, %v3687
        %v4224 = vsub.f32 %v2844, %v3690
        %v4225 = vsub.f32 %v2933, %v3690
        %v4226 = vsub.f32 %v2846, %v3693
        %v4227 = vsub.f32 %v2935, %v3693
        %v4228 = vsub.f32 %v2849, %v3696
        %v4229 = vsub.f32 %v2938, %v3696
        %v4230 = vsub.f32 %v2851, %v3699
        %v4231 = vsub.f32 %v2940, %v3699
        %v4232 = vsub.f32 %v2854, %v3702
        %v4233 = vsub.f32 %v2943, %v3702
        %v4234 = vsub.f32 %v2856, %v3705
        %v4235 = vsub.f32 %v2945, %v3705
        %v4236 = vsub.f32 %v2859, %v3708
        %v4237 = vsub.f32 %v2948, %v3708
        %v4238 = vsub.f32 %v2861, %v3711
        %v4239 = vsub.f32 %v2950, %v3711
        %v4240 = vsub.f32 %v2864, %v3714
        %v4241 = vsub.f32 %v2953, %v3714
        %v4242 = vsub.f32 %v2866, %v3717
        %v4243 = vsub.f32 %v2955, %v3717
        %v4244 = vsub.f32 %v2869, %v3720
        %v4245 = vsub.f32 %v2958, %v3720
        %v4246 = vsub.f32 %v2871, %v3723
        %v4247 = vsub.f32 %v2960, %v3723
        %v4248 = vsub.f32 %v2874, %v3726
        %v4249 = vsub.f32 %v2963, %v3726
        %v4250 = vsub.f32 %v2876, %v3729
        %v4251 = vsub.f32 %v2965, %v3729
        %v4252 = vsub.f32 %v2879, %v3732
        %v4253 = vsub.f32 %v2968, %v3732
        %v4254 = vsub.f32 %v2881, %v3735
        %v4255 = vsub.f32 %v2970, %v3735
        %v4256 = vsub.f32 %v2884, %v3738
        %v4257 = vsub.f32 %v2973, %v3738
        %v4258 = vsub.f32 %v2886, %v3741
        %v4259 = vsub.f32 %v2975, %v3741
        %v4260 = vsub.f32 %v2889, %v3744
        %v4261 = vsub.f32 %v2978, %v3744
        %v4262 = vsub.f32 %v2891, %v3747
        %v4263 = vsub.f32 %v2980, %v3747
        %v4264 = vsub.f32 %v2894, %v3750
        %v4265 = vsub.f32 %v2983, %v3750
        %v4266 = vsub.f32 %v2896, %v3753
        %v4267 = vsub.f32 %v2985, %v3753
        %v4268 = vsub.f32 %v2899, %v3756
        %v4269 = vsub.f32 %v2988, %v3756
        %v4270 = vsub.f32 %v2901, %v3759
        %v4271 = vsub.f32 %v2990, %v3759
        %v4272 = vpack.c.bf16 %v3761, %v3760
        %v4273 = vpack.c.bf16 %v3763, %v3762
        %v4274 = vpack.c.bf16 %v3765, %v3764
        %v4275 = vpack.c.bf16 %v3767, %v3766
        %v4276 = vpack.c.bf16 %v3769, %v3768
        %v4277 = vpack.c.bf16 %v3771, %v3770
        %v4278 = vpack.c.bf16 %v3773, %v3772
        %v4279 = vpack.c.bf16 %v3775, %v3774
        %v4280 = vpack.c.bf16 %v3777, %v3776
        %v4281 = vpack.c.bf16 %v3779, %v3778
        %v4282 = vpack.c.bf16 %v3781, %v3780
        %v4283 = vpack.c.bf16 %v3783, %v3782
        %v4284 = vpack.c.bf16 %v3785, %v3784
        %v4285 = vpack.c.bf16 %v3787, %v3786
        %v4286 = vpack.c.bf16 %v3789, %v3788
        %v4287 = vpack.c.bf16 %v3791, %v3790
        %v4288 = vpack.c.bf16 %v3793, %v3792
        %v4289 = vpack.c.bf16 %v3795, %v3794
        %v4290 = vpack.c.bf16 %v3797, %v3796
        %v4291 = vpack.c.bf16 %v3799, %v3798
        %v4292 = vpack.c.bf16 %v3801, %v3800
        %v4293 = vpack.c.bf16 %v3803, %v3802
        %v4294 = vpack.c.bf16 %v3805, %v3804
        %v4295 = vpack.c.bf16 %v3807, %v3806
        %v4296 = vpack.c.bf16 %v3809, %v3808
        %v4297 = vpack.c.bf16 %v3811, %v3810
        %v4298 = vpack.c.bf16 %v3813, %v3812
        %v4299 = vpack.c.bf16 %v3815, %v3814
        %v4300 = vpack.c.bf16 %v3817, %v3816
        %v4301 = vpack.c.bf16 %v3819, %v3818
        %v4302 = vpack.c.bf16 %v3821, %v3820
        %v4303 = vpack.c.bf16 %v3823, %v3822
        %v4304 = vpack.c.bf16 %v3825, %v3824
        %v4305 = vpack.c.bf16 %v3827, %v3826
        %v4306 = vpack.c.bf16 %v3829, %v3828
        %v4307 = vpack.c.bf16 %v3831, %v3830
        %v4308 = vpack.c.bf16 %v3833, %v3832
        %v4309 = vpack.c.bf16 %v3835, %v3834
        %v4310 = vpack.c.bf16 %v3837, %v3836
        %v4311 = vpack.c.bf16 %v3839, %v3838
        %v4312 = vpack.c.bf16 %v3841, %v3840
        %v4313 = vpack.c.bf16 %v3843, %v3842
        %v4314 = vpack.c.bf16 %v3845, %v3844
        %v4315 = vpack.c.bf16 %v3847, %v3846
        %v4316 = vpack.c.bf16 %v3849, %v3848
        %v4317 = vpack.c.bf16 %v3851, %v3850
        %v4318 = vpack.c.bf16 %v3853, %v3852
        %v4319 = vpack.c.bf16 %v3855, %v3854
        %v4320 = vpack.c.bf16 %v3857, %v3856
        %v4321 = vpack.c.bf16 %v3859, %v3858
        %v4322 = vpack.c.bf16 %v3861, %v3860
        %v4323 = vpack.c.bf16 %v3863, %v3862
        %v4324 = vpack.c.bf16 %v3865, %v3864
        %v4325 = vpack.c.bf16 %v3867, %v3866
        %v4326 = vpack.c.bf16 %v3869, %v3868
        %v4327 = vpack.c.bf16 %v3871, %v3870
        %v4328 = vpack.c.bf16 %v3873, %v3872
        %v4329 = vpack.c.bf16 %v3875, %v3874
        %v4330 = vpack.c.bf16 %v3877, %v3876
        %v4331 = vpack.c.bf16 %v3879, %v3878
        %v4332 = vpack.c.bf16 %v3881, %v3880
        %v4333 = vpack.c.bf16 %v3883, %v3882
        %v4334 = vpack.c.bf16 %v3885, %v3884
        %v4335 = vpack.c.bf16 %v3887, %v3886
        %v4336 = vpack.c.bf16 %v3889, %v3888
        %v4337 = vpack.c.bf16 %v3891, %v3890
        %v4338 = vpack.c.bf16 %v3893, %v3892
        %v4339 = vpack.c.bf16 %v3895, %v3894
        %v4340 = vpack.c.bf16 %v3897, %v3896
        %v4341 = vpack.c.bf16 %v3899, %v3898
        %v4342 = vpack.c.bf16 %v3901, %v3900
        %v4343 = vpack.c.bf16 %v3903, %v3902
        %v4344 = vpack.c.bf16 %v3905, %v3904
        %v4345 = vpack.c.bf16 %v3907, %v3906
        %v4346 = vpack.c.bf16 %v3909, %v3908
        %v4347 = vpack.c.bf16 %v3911, %v3910
        %v4348 = vpack.c.bf16 %v3913, %v3912
        %v4349 = vpack.c.bf16 %v3915, %v3914
        %v4350 = vpack.c.bf16 %v3917, %v3916
        %v4351 = vpack.c.bf16 %v3919, %v3918
        %v4352 = vpack.c.bf16 %v3921, %v3920
        %v4353 = vpack.c.bf16 %v3923, %v3922
        %v4354 = vpack.c.bf16 %v3925, %v3924
        %v4355 = vpack.c.bf16 %v3927, %v3926
        %v4356 = vpack.c.bf16 %v3929, %v3928
        %v4357 = vpack.c.bf16 %v3931, %v3930
        %v4358 = vpack.c.bf16 %v3933, %v3932
        %v4359 = vpack.c.bf16 %v3935, %v3934
        %v4360 = vpack.c.bf16 %v3937, %v3936
        %v4361 = vpack.c.bf16 %v3939, %v3938
        %v4362 = vpack.c.bf16 %v3941, %v3940
        %v4363 = vpack.c.bf16 %v3943, %v3942
        %v4364 = vpack.c.bf16 %v3945, %v3944
        %v4365 = vpack.c.bf16 %v3947, %v3946
        %v4366 = vpack.c.bf16 %v3949, %v3948
        %v4367 = vpack.c.bf16 %v3951, %v3950
        %v4368 = vpack.c.bf16 %v3953, %v3952
        %v4369 = vpack.c.bf16 %v3955, %v3954
        %v4370 = vpack.c.bf16 %v3957, %v3956
        %v4371 = vpack.c.bf16 %v3959, %v3958
        %v4372 = vpack.c.bf16 %v3961, %v3960
        %v4373 = vpack.c.bf16 %v3963, %v3962
        %v4374 = vpack.c.bf16 %v3965, %v3964
        %v4375 = vpack.c.bf16 %v3967, %v3966
        %v4376 = vpack.c.bf16 %v3969, %v3968
        %v4377 = vpack.c.bf16 %v3971, %v3970
        %v4378 = vpack.c.bf16 %v3973, %v3972
        %v4379 = vpack.c.bf16 %v3975, %v3974
        %v4380 = vpack.c.bf16 %v3977, %v3976
        %v4381 = vpack.c.bf16 %v3979, %v3978
        %v4382 = vpack.c.bf16 %v3981, %v3980
        %v4383 = vpack.c.bf16 %v3983, %v3982
        %v4384 = vpack.c.bf16 %v3985, %v3984
        %v4385 = vpack.c.bf16 %v3987, %v3986
        %v4386 = vpack.c.bf16 %v3989, %v3988
        %v4387 = vpack.c.bf16 %v3991, %v3990
        %v4388 = vpack.c.bf16 %v3993, %v3992
        %v4389 = vpack.c.bf16 %v3995, %v3994
        %v4390 = vpack.c.bf16 %v3997, %v3996
        %v4391 = vpack.c.bf16 %v3999, %v3998
        %v4392 = vpack.c.bf16 %v4001, %v4000
        %v4393 = vpack.c.bf16 %v4003, %v4002
        %v4394 = vpack.c.bf16 %v4005, %v4004
        %v4395 = vpack.c.bf16 %v4007, %v4006
        %v4396 = vpack.c.bf16 %v4009, %v4008
        %v4397 = vpack.c.bf16 %v4011, %v4010
        %v4398 = vpack.c.bf16 %v4013, %v4012
        %v4399 = vpack.c.bf16 %v4015, %v4014
        %v4400 = vpack.c.bf16 %v4017, %v4016
        %v4401 = vpack.c.bf16 %v4019, %v4018
        %v4402 = vpack.c.bf16 %v4021, %v4020
        %v4403 = vpack.c.bf16 %v4023, %v4022
        %v4404 = vpack.c.bf16 %v4025, %v4024
        %v4405 = vpack.c.bf16 %v4027, %v4026
        %v4406 = vpack.c.bf16 %v4029, %v4028
        %v4407 = vpack.c.bf16 %v4031, %v4030
        %v4408 = vpack.c.bf16 %v4033, %v4032
        %v4409 = vpack.c.bf16 %v4035, %v4034
        %v4410 = vpack.c.bf16 %v4037, %v4036
        %v4411 = vpack.c.bf16 %v4039, %v4038
        %v4412 = vpack.c.bf16 %v4041, %v4040
        %v4413 = vpack.c.bf16 %v4043, %v4042
        %v4414 = vpack.c.bf16 %v4045, %v4044
        %v4415 = vpack.c.bf16 %v4047, %v4046
        %v4416 = vpack.c.bf16 %v4049, %v4048
        %v4417 = vpack.c.bf16 %v4051, %v4050
        %v4418 = vpack.c.bf16 %v4053, %v4052
        %v4419 = vpack.c.bf16 %v4055, %v4054
        %v4420 = vpack.c.bf16 %v4057, %v4056
        %v4421 = vpack.c.bf16 %v4059, %v4058
        %v4422 = vpack.c.bf16 %v4061, %v4060
        %v4423 = vpack.c.bf16 %v4063, %v4062
        %v4424 = vpack.c.bf16 %v4065, %v4064
        %v4425 = vpack.c.bf16 %v4067, %v4066
        %v4426 = vpack.c.bf16 %v4069, %v4068
        %v4427 = vpack.c.bf16 %v4071, %v4070
        %v4428 = vpack.c.bf16 %v4073, %v4072
        %v4429 = vpack.c.bf16 %v4075, %v4074
        %v4430 = vpack.c.bf16 %v4077, %v4076
        %v4431 = vpack.c.bf16 %v4079, %v4078
        %v4432 = vpack.c.bf16 %v4081, %v4080
        %v4433 = vpack.c.bf16 %v4083, %v4082
        %v4434 = vpack.c.bf16 %v4085, %v4084
        %v4435 = vpack.c.bf16 %v4087, %v4086
        %v4436 = vpack.c.bf16 %v4089, %v4088
        %v4437 = vpack.c.bf16 %v4091, %v4090
        %v4438 = vpack.c.bf16 %v4093, %v4092
        %v4439 = vpack.c.bf16 %v4095, %v4094
        %v4440 = vpack.c.bf16 %v4097, %v4096
        %v4441 = vpack.c.bf16 %v4099, %v4098
        %v4442 = vpack.c.bf16 %v4101, %v4100
        %v4443 = vpack.c.bf16 %v4103, %v4102
        %v4444 = vpack.c.bf16 %v4105, %v4104
        %v4445 = vpack.c.bf16 %v4107, %v4106
        %v4446 = vpack.c.bf16 %v4109, %v4108
        %v4447 = vpack.c.bf16 %v4111, %v4110
        %v4448 = vpack.c.bf16 %v4113, %v4112
        %v4449 = vpack.c.bf16 %v4115, %v4114
        %v4450 = vpack.c.bf16 %v4117, %v4116
        %v4451 = vpack.c.bf16 %v4119, %v4118
        %v4452 = vpack.c.bf16 %v4121, %v4120
        %v4453 = vpack.c.bf16 %v4123, %v4122
        %v4454 = vpack.c.bf16 %v4125, %v4124
        %v4455 = vpack.c.bf16 %v4127, %v4126
        %v4456 = vpack.c.bf16 %v4129, %v4128
        %v4457 = vpack.c.bf16 %v4131, %v4130
        %v4458 = vpack.c.bf16 %v4133, %v4132
        %v4459 = vpack.c.bf16 %v4135, %v4134
        %v4460 = vpack.c.bf16 %v4137, %v4136
        %v4461 = vpack.c.bf16 %v4139, %v4138
        %v4462 = vpack.c.bf16 %v4141, %v4140
        %v4463 = vpack.c.bf16 %v4143, %v4142
        %v4464 = vpack.c.bf16 %v4145, %v4144
        %v4465 = vpack.c.bf16 %v4147, %v4146
        %v4466 = vpack.c.bf16 %v4149, %v4148
        %v4467 = vpack.c.bf16 %v4151, %v4150
        %v4468 = vpack.c.bf16 %v4153, %v4152
        %v4469 = vpack.c.bf16 %v4155, %v4154
        %v4470 = vpack.c.bf16 %v4157, %v4156
        %v4471 = vpack.c.bf16 %v4159, %v4158
        %v4472 = vpack.c.bf16 %v4161, %v4160
        %v4473 = vpack.c.bf16 %v4163, %v4162
        %v4474 = vpack.c.bf16 %v4165, %v4164
        %v4475 = vpack.c.bf16 %v4167, %v4166
        %v4476 = vpack.c.bf16 %v4169, %v4168
        %v4477 = vpack.c.bf16 %v4171, %v4170
        %v4478 = vpack.c.bf16 %v4173, %v4172
        %v4479 = vpack.c.bf16 %v4175, %v4174
        %v4480 = vpack.c.bf16 %v4177, %v4176
        %v4481 = vpack.c.bf16 %v4179, %v4178
        %v4482 = vpack.c.bf16 %v4181, %v4180
        %v4483 = vpack.c.bf16 %v4183, %v4182
        %v4484 = vpack.c.bf16 %v4185, %v4184
        %v4485 = vpack.c.bf16 %v4187, %v4186
        %v4486 = vpack.c.bf16 %v4189, %v4188
        %v4487 = vpack.c.bf16 %v4191, %v4190
        %v4488 = vpack.c.bf16 %v4193, %v4192
        %v4489 = vpack.c.bf16 %v4195, %v4194
        %v4490 = vpack.c.bf16 %v4197, %v4196
        %v4491 = vpack.c.bf16 %v4199, %v4198
        %v4492 = vpack.c.bf16 %v4201, %v4200
        %v4493 = vpack.c.bf16 %v4203, %v4202
        %v4494 = vpack.c.bf16 %v4205, %v4204
        %v4495 = vpack.c.bf16 %v4207, %v4206
        %v4496 = vpack.c.bf16 %v4209, %v4208
        %v4497 = vpack.c.bf16 %v4211, %v4210
        %v4498 = vpack.c.bf16 %v4213, %v4212
        %v4499 = vpack.c.bf16 %v4215, %v4214
        %v4500 = vpack.c.bf16 %v4217, %v4216
        %v4501 = vpack.c.bf16 %v4219, %v4218
        %v4502 = vpack.c.bf16 %v4221, %v4220
        %v4503 = vpack.c.bf16 %v4223, %v4222
        %v4504 = vpack.c.bf16 %v4225, %v4224
        %v4505 = vpack.c.bf16 %v4227, %v4226
        %v4506 = vpack.c.bf16 %v4229, %v4228
        %v4507 = vpack.c.bf16 %v4231, %v4230
        %v4508 = vpack.c.bf16 %v4233, %v4232
        %v4509 = vpack.c.bf16 %v4235, %v4234
        %v4510 = vpack.c.bf16 %v4237, %v4236
        %v4511 = vpack.c.bf16 %v4239, %v4238
        %v4512 = vpack.c.bf16 %v4241, %v4240
        %v4513 = vpack.c.bf16 %v4243, %v4242
        %v4514 = vpack.c.bf16 %v4245, %v4244
        %v4515 = vpack.c.bf16 %v4247, %v4246
        %v4516 = vpack.c.bf16 %v4249, %v4248
        %v4517 = vpack.c.bf16 %v4251, %v4250
        %v4518 = vpack.c.bf16 %v4253, %v4252
        %v4519 = vpack.c.bf16 %v4255, %v4254
        %v4520 = vpack.c.bf16 %v4257, %v4256
        %v4521 = vpack.c.bf16 %v4259, %v4258
        %v4522 = vpack.c.bf16 %v4261, %v4260
        %v4523 = vpack.c.bf16 %v4263, %v4262
        %v4524 = vpack.c.bf16 %v4265, %v4264
        %v4525 = vpack.c.bf16 %v4267, %v4266
        %v4526 = vpack.c.bf16 %v4269, %v4268
        %v4527 = vpack.c.bf16 %v4271, %v4270
        %v4528 = vunpack.c.l.bf16 %v4272
        %v4529 = vunpack.c.h.bf16 %v4272
        %v4530 = vunpack.c.l.bf16 %v4273
        %v4531 = vunpack.c.h.bf16 %v4273
        %v4532 = vunpack.c.l.bf16 %v4274
        %v4533 = vunpack.c.h.bf16 %v4274
        %v4534 = vunpack.c.l.bf16 %v4275
        %v4535 = vunpack.c.h.bf16 %v4275
        %v4536 = vunpack.c.l.bf16 %v4276
        %v4537 = vunpack.c.h.bf16 %v4276
        %v4538 = vunpack.c.l.bf16 %v4277
        %v4539 = vunpack.c.h.bf16 %v4277
        %v4540 = vunpack.c.l.bf16 %v4278
        %v4541 = vunpack.c.h.bf16 %v4278
        %v4542 = vunpack.c.l.bf16 %v4279
        %v4543 = vunpack.c.h.bf16 %v4279
        %v4544 = vunpack.c.l.bf16 %v4280
        %v4545 = vunpack.c.h.bf16 %v4280
        %v4546 = vunpack.c.l.bf16 %v4281
        %v4547 = vunpack.c.h.bf16 %v4281
        %v4548 = vunpack.c.l.bf16 %v4282
        %v4549 = vunpack.c.h.bf16 %v4282
        %v4550 = vunpack.c.l.bf16 %v4283
        %v4551 = vunpack.c.h.bf16 %v4283
        %v4552 = vunpack.c.l.bf16 %v4284
        %v4553 = vunpack.c.h.bf16 %v4284
        %v4554 = vunpack.c.l.bf16 %v4285
        %v4555 = vunpack.c.h.bf16 %v4285
        %v4556 = vunpack.c.l.bf16 %v4286
        %v4557 = vunpack.c.h.bf16 %v4286
        %v4558 = vunpack.c.l.bf16 %v4287
        %v4559 = vunpack.c.h.bf16 %v4287
        %v4560 = vunpack.c.l.bf16 %v4288
        %v4561 = vunpack.c.h.bf16 %v4288
        %v4562 = vunpack.c.l.bf16 %v4289
        %v4563 = vunpack.c.h.bf16 %v4289
        %v4564 = vunpack.c.l.bf16 %v4290
        %v4565 = vunpack.c.h.bf16 %v4290
        %v4566 = vunpack.c.l.bf16 %v4291
        %v4567 = vunpack.c.h.bf16 %v4291
        %v4568 = vunpack.c.l.bf16 %v4292
        %v4569 = vunpack.c.h.bf16 %v4292
        %v4570 = vunpack.c.l.bf16 %v4293
        %v4571 = vunpack.c.h.bf16 %v4293
        %v4572 = vunpack.c.l.bf16 %v4294
        %v4573 = vunpack.c.h.bf16 %v4294
        %v4574 = vunpack.c.l.bf16 %v4295
        %v4575 = vunpack.c.h.bf16 %v4295
        %v4576 = vunpack.c.l.bf16 %v4296
        %v4577 = vunpack.c.h.bf16 %v4296
        %v4578 = vunpack.c.l.bf16 %v4297
        %v4579 = vunpack.c.h.bf16 %v4297
        %v4580 = vunpack.c.l.bf16 %v4298
        %v4581 = vunpack.c.h.bf16 %v4298
        %v4582 = vunpack.c.l.bf16 %v4299
        %v4583 = vunpack.c.h.bf16 %v4299
        %v4584 = vunpack.c.l.bf16 %v4300
        %v4585 = vunpack.c.h.bf16 %v4300
        %v4586 = vunpack.c.l.bf16 %v4301
        %v4587 = vunpack.c.h.bf16 %v4301
        %v4588 = vunpack.c.l.bf16 %v4302
        %v4589 = vunpack.c.h.bf16 %v4302
        %v4590 = vunpack.c.l.bf16 %v4303
        %v4591 = vunpack.c.h.bf16 %v4303
        %v4592 = vunpack.c.l.bf16 %v4304
        %v4593 = vunpack.c.h.bf16 %v4304
        %v4594 = vunpack.c.l.bf16 %v4305
        %v4595 = vunpack.c.h.bf16 %v4305
        %v4596 = vunpack.c.l.bf16 %v4306
        %v4597 = vunpack.c.h.bf16 %v4306
        %v4598 = vunpack.c.l.bf16 %v4307
        %v4599 = vunpack.c.h.bf16 %v4307
        %v4600 = vunpack.c.l.bf16 %v4308
        %v4601 = vunpack.c.h.bf16 %v4308
        %v4602 = vunpack.c.l.bf16 %v4309
        %v4603 = vunpack.c.h.bf16 %v4309
        %v4604 = vunpack.c.l.bf16 %v4310
        %v4605 = vunpack.c.h.bf16 %v4310
        %v4606 = vunpack.c.l.bf16 %v4311
        %v4607 = vunpack.c.h.bf16 %v4311
        %v4608 = vunpack.c.l.bf16 %v4312
        %v4609 = vunpack.c.h.bf16 %v4312
        %v4610 = vunpack.c.l.bf16 %v4313
        %v4611 = vunpack.c.h.bf16 %v4313
        %v4612 = vunpack.c.l.bf16 %v4314
        %v4613 = vunpack.c.h.bf16 %v4314
        %v4614 = vunpack.c.l.bf16 %v4315
        %v4615 = vunpack.c.h.bf16 %v4315
        %v4616 = vunpack.c.l.bf16 %v4316
        %v4617 = vunpack.c.h.bf16 %v4316
        %v4618 = vunpack.c.l.bf16 %v4317
        %v4619 = vunpack.c.h.bf16 %v4317
        %v4620 = vunpack.c.l.bf16 %v4318
        %v4621 = vunpack.c.h.bf16 %v4318
        %v4622 = vunpack.c.l.bf16 %v4319
        %v4623 = vunpack.c.h.bf16 %v4319
        %v4624 = vunpack.c.l.bf16 %v4320
        %v4625 = vunpack.c.h.bf16 %v4320
        %v4626 = vunpack.c.l.bf16 %v4321
        %v4627 = vunpack.c.h.bf16 %v4321
        %v4628 = vunpack.c.l.bf16 %v4322
        %v4629 = vunpack.c.h.bf16 %v4322
        %v4630 = vunpack.c.l.bf16 %v4323
        %v4631 = vunpack.c.h.bf16 %v4323
        %v4632 = vunpack.c.l.bf16 %v4324
        %v4633 = vunpack.c.h.bf16 %v4324
        %v4634 = vunpack.c.l.bf16 %v4325
        %v4635 = vunpack.c.h.bf16 %v4325
        %v4636 = vunpack.c.l.bf16 %v4326
        %v4637 = vunpack.c.h.bf16 %v4326
        %v4638 = vunpack.c.l.bf16 %v4327
        %v4639 = vunpack.c.h.bf16 %v4327
        %v4640 = vunpack.c.l.bf16 %v4328
        %v4641 = vunpack.c.h.bf16 %v4328
        %v4642 = vunpack.c.l.bf16 %v4329
        %v4643 = vunpack.c.h.bf16 %v4329
        %v4644 = vunpack.c.l.bf16 %v4330
        %v4645 = vunpack.c.h.bf16 %v4330
        %v4646 = vunpack.c.l.bf16 %v4331
        %v4647 = vunpack.c.h.bf16 %v4331
        %v4648 = vunpack.c.l.bf16 %v4332
        %v4649 = vunpack.c.h.bf16 %v4332
        %v4650 = vunpack.c.l.bf16 %v4333
        %v4651 = vunpack.c.h.bf16 %v4333
        %v4652 = vunpack.c.l.bf16 %v4334
        %v4653 = vunpack.c.h.bf16 %v4334
        %v4654 = vunpack.c.l.bf16 %v4335
        %v4655 = vunpack.c.h.bf16 %v4335
        %v4656 = vunpack.c.l.bf16 %v4336
        %v4657 = vunpack.c.h.bf16 %v4336
        %v4658 = vunpack.c.l.bf16 %v4337
        %v4659 = vunpack.c.h.bf16 %v4337
        %v4660 = vunpack.c.l.bf16 %v4338
        %v4661 = vunpack.c.h.bf16 %v4338
        %v4662 = vunpack.c.l.bf16 %v4339
        %v4663 = vunpack.c.h.bf16 %v4339
        %v4664 = vunpack.c.l.bf16 %v4340
        %v4665 = vunpack.c.h.bf16 %v4340
        %v4666 = vunpack.c.l.bf16 %v4341
        %v4667 = vunpack.c.h.bf16 %v4341
        %v4668 = vunpack.c.l.bf16 %v4342
        %v4669 = vunpack.c.h.bf16 %v4342
        %v4670 = vunpack.c.l.bf16 %v4343
        %v4671 = vunpack.c.h.bf16 %v4343
        %v4672 = vunpack.c.l.bf16 %v4344
        %v4673 = vunpack.c.h.bf16 %v4344
        %v4674 = vunpack.c.l.bf16 %v4345
        %v4675 = vunpack.c.h.bf16 %v4345
        %v4676 = vunpack.c.l.bf16 %v4346
        %v4677 = vunpack.c.h.bf16 %v4346
        %v4678 = vunpack.c.l.bf16 %v4347
        %v4679 = vunpack.c.h.bf16 %v4347
        %v4680 = vunpack.c.l.bf16 %v4348
        %v4681 = vunpack.c.h.bf16 %v4348
        %v4682 = vunpack.c.l.bf16 %v4349
        %v4683 = vunpack.c.h.bf16 %v4349
        %v4684 = vunpack.c.l.bf16 %v4350
        %v4685 = vunpack.c.h.bf16 %v4350
        %v4686 = vunpack.c.l.bf16 %v4351
        %v4687 = vunpack.c.h.bf16 %v4351
        %v4688 = vunpack.c.l.bf16 %v4352
        %v4689 = vunpack.c.h.bf16 %v4352
        %v4690 = vunpack.c.l.bf16 %v4353
        %v4691 = vunpack.c.h.bf16 %v4353
        %v4692 = vunpack.c.l.bf16 %v4354
        %v4693 = vunpack.c.h.bf16 %v4354
        %v4694 = vunpack.c.l.bf16 %v4355
        %v4695 = vunpack.c.h.bf16 %v4355
        %v4696 = vunpack.c.l.bf16 %v4356
        %v4697 = vunpack.c.h.bf16 %v4356
        %v4698 = vunpack.c.l.bf16 %v4357
        %v4699 = vunpack.c.h.bf16 %v4357
        %v4700 = vunpack.c.l.bf16 %v4358
        %v4701 = vunpack.c.h.bf16 %v4358
        %v4702 = vunpack.c.l.bf16 %v4359
        %v4703 = vunpack.c.h.bf16 %v4359
        %v4704 = vunpack.c.l.bf16 %v4360
        %v4705 = vunpack.c.h.bf16 %v4360
        %v4706 = vunpack.c.l.bf16 %v4361
        %v4707 = vunpack.c.h.bf16 %v4361
        %v4708 = vunpack.c.l.bf16 %v4362
        %v4709 = vunpack.c.h.bf16 %v4362
        %v4710 = vunpack.c.l.bf16 %v4363
        %v4711 = vunpack.c.h.bf16 %v4363
        %v4712 = vunpack.c.l.bf16 %v4364
        %v4713 = vunpack.c.h.bf16 %v4364
        %v4714 = vunpack.c.l.bf16 %v4365
        %v4715 = vunpack.c.h.bf16 %v4365
        %v4716 = vunpack.c.l.bf16 %v4366
        %v4717 = vunpack.c.h.bf16 %v4366
        %v4718 = vunpack.c.l.bf16 %v4367
        %v4719 = vunpack.c.h.bf16 %v4367
        %v4720 = vunpack.c.l.bf16 %v4368
        %v4721 = vunpack.c.h.bf16 %v4368
        %v4722 = vunpack.c.l.bf16 %v4369
        %v4723 = vunpack.c.h.bf16 %v4369
        %v4724 = vunpack.c.l.bf16 %v4370
        %v4725 = vunpack.c.h.bf16 %v4370
        %v4726 = vunpack.c.l.bf16 %v4371
        %v4727 = vunpack.c.h.bf16 %v4371
        %v4728 = vunpack.c.l.bf16 %v4372
        %v4729 = vunpack.c.h.bf16 %v4372
        %v4730 = vunpack.c.l.bf16 %v4373
        %v4731 = vunpack.c.h.bf16 %v4373
        %v4732 = vunpack.c.l.bf16 %v4374
        %v4733 = vunpack.c.h.bf16 %v4374
        %v4734 = vunpack.c.l.bf16 %v4375
        %v4735 = vunpack.c.h.bf16 %v4375
        %v4736 = vunpack.c.l.bf16 %v4376
        %v4737 = vunpack.c.h.bf16 %v4376
        %v4738 = vunpack.c.l.bf16 %v4377
        %v4739 = vunpack.c.h.bf16 %v4377
        %v4740 = vunpack.c.l.bf16 %v4378
        %v4741 = vunpack.c.h.bf16 %v4378
        %v4742 = vunpack.c.l.bf16 %v4379
        %v4743 = vunpack.c.h.bf16 %v4379
        %v4744 = vunpack.c.l.bf16 %v4380
        %v4745 = vunpack.c.h.bf16 %v4380
        %v4746 = vunpack.c.l.bf16 %v4381
        %v4747 = vunpack.c.h.bf16 %v4381
        %v4748 = vunpack.c.l.bf16 %v4382
        %v4749 = vunpack.c.h.bf16 %v4382
        %v4750 = vunpack.c.l.bf16 %v4383
        %v4751 = vunpack.c.h.bf16 %v4383
        %v4752 = vunpack.c.l.bf16 %v4384
        %v4753 = vunpack.c.h.bf16 %v4384
        %v4754 = vunpack.c.l.bf16 %v4385
        %v4755 = vunpack.c.h.bf16 %v4385
        %v4756 = vunpack.c.l.bf16 %v4386
        %v4757 = vunpack.c.h.bf16 %v4386
        %v4758 = vunpack.c.l.bf16 %v4387
        %v4759 = vunpack.c.h.bf16 %v4387
        %v4760 = vunpack.c.l.bf16 %v4388
        %v4761 = vunpack.c.h.bf16 %v4388
        %v4762 = vunpack.c.l.bf16 %v4389
        %v4763 = vunpack.c.h.bf16 %v4389
        %v4764 = vunpack.c.l.bf16 %v4390
        %v4765 = vunpack.c.h.bf16 %v4390
        %v4766 = vunpack.c.l.bf16 %v4391
        %v4767 = vunpack.c.h.bf16 %v4391
        %v4768 = vunpack.c.l.bf16 %v4392
        %v4769 = vunpack.c.h.bf16 %v4392
        %v4770 = vunpack.c.l.bf16 %v4393
        %v4771 = vunpack.c.h.bf16 %v4393
        %v4772 = vunpack.c.l.bf16 %v4394
        %v4773 = vunpack.c.h.bf16 %v4394
        %v4774 = vunpack.c.l.bf16 %v4395
        %v4775 = vunpack.c.h.bf16 %v4395
        %v4776 = vunpack.c.l.bf16 %v4396
        %v4777 = vunpack.c.h.bf16 %v4396
        %v4778 = vunpack.c.l.bf16 %v4397
        %v4779 = vunpack.c.h.bf16 %v4397
        %v4780 = vunpack.c.l.bf16 %v4398
        %v4781 = vunpack.c.h.bf16 %v4398
        %v4782 = vunpack.c.l.bf16 %v4399
        %v4783 = vunpack.c.h.bf16 %v4399
        %v4784 = vunpack.c.l.bf16 %v4400
        %v4785 = vunpack.c.h.bf16 %v4400
        %v4786 = vunpack.c.l.bf16 %v4401
        %v4787 = vunpack.c.h.bf16 %v4401
        %v4788 = vunpack.c.l.bf16 %v4402
        %v4789 = vunpack.c.h.bf16 %v4402
        %v4790 = vunpack.c.l.bf16 %v4403
        %v4791 = vunpack.c.h.bf16 %v4403
        %v4792 = vunpack.c.l.bf16 %v4404
        %v4793 = vunpack.c.h.bf16 %v4404
        %v4794 = vunpack.c.l.bf16 %v4405
        %v4795 = vunpack.c.h.bf16 %v4405
        %v4796 = vunpack.c.l.bf16 %v4406
        %v4797 = vunpack.c.h.bf16 %v4406
        %v4798 = vunpack.c.l.bf16 %v4407
        %v4799 = vunpack.c.h.bf16 %v4407
        %v4800 = vunpack.c.l.bf16 %v4408
        %v4801 = vunpack.c.h.bf16 %v4408
        %v4802 = vunpack.c.l.bf16 %v4409
        %v4803 = vunpack.c.h.bf16 %v4409
        %v4804 = vunpack.c.l.bf16 %v4410
        %v4805 = vunpack.c.h.bf16 %v4410
        %v4806 = vunpack.c.l.bf16 %v4411
        %v4807 = vunpack.c.h.bf16 %v4411
        %v4808 = vunpack.c.l.bf16 %v4412
        %v4809 = vunpack.c.h.bf16 %v4412
        %v4810 = vunpack.c.l.bf16 %v4413
        %v4811 = vunpack.c.h.bf16 %v4413
        %v4812 = vunpack.c.l.bf16 %v4414
        %v4813 = vunpack.c.h.bf16 %v4414
        %v4814 = vunpack.c.l.bf16 %v4415
        %v4815 = vunpack.c.h.bf16 %v4415
        %v4816 = vunpack.c.l.bf16 %v4416
        %v4817 = vunpack.c.h.bf16 %v4416
        %v4818 = vunpack.c.l.bf16 %v4417
        %v4819 = vunpack.c.h.bf16 %v4417
        %v4820 = vunpack.c.l.bf16 %v4418
        %v4821 = vunpack.c.h.bf16 %v4418
        %v4822 = vunpack.c.l.bf16 %v4419
        %v4823 = vunpack.c.h.bf16 %v4419
        %v4824 = vunpack.c.l.bf16 %v4420
        %v4825 = vunpack.c.h.bf16 %v4420
        %v4826 = vunpack.c.l.bf16 %v4421
        %v4827 = vunpack.c.h.bf16 %v4421
        %v4828 = vunpack.c.l.bf16 %v4422
        %v4829 = vunpack.c.h.bf16 %v4422
        %v4830 = vunpack.c.l.bf16 %v4423
        %v4831 = vunpack.c.h.bf16 %v4423
        %v4832 = vunpack.c.l.bf16 %v4424
        %v4833 = vunpack.c.h.bf16 %v4424
        %v4834 = vunpack.c.l.bf16 %v4425
        %v4835 = vunpack.c.h.bf16 %v4425
        %v4836 = vunpack.c.l.bf16 %v4426
        %v4837 = vunpack.c.h.bf16 %v4426
        %v4838 = vunpack.c.l.bf16 %v4427
        %v4839 = vunpack.c.h.bf16 %v4427
        %v4840 = vunpack.c.l.bf16 %v4428
        %v4841 = vunpack.c.h.bf16 %v4428
        %v4842 = vunpack.c.l.bf16 %v4429
        %v4843 = vunpack.c.h.bf16 %v4429
        %v4844 = vunpack.c.l.bf16 %v4430
        %v4845 = vunpack.c.h.bf16 %v4430
        %v4846 = vunpack.c.l.bf16 %v4431
        %v4847 = vunpack.c.h.bf16 %v4431
        %v4848 = vunpack.c.l.bf16 %v4432
        %v4849 = vunpack.c.h.bf16 %v4432
        %v4850 = vunpack.c.l.bf16 %v4433
        %v4851 = vunpack.c.h.bf16 %v4433
        %v4852 = vunpack.c.l.bf16 %v4434
        %v4853 = vunpack.c.h.bf16 %v4434
        %v4854 = vunpack.c.l.bf16 %v4435
        %v4855 = vunpack.c.h.bf16 %v4435
        %v4856 = vunpack.c.l.bf16 %v4436
        %v4857 = vunpack.c.h.bf16 %v4436
        %v4858 = vunpack.c.l.bf16 %v4437
        %v4859 = vunpack.c.h.bf16 %v4437
        %v4860 = vunpack.c.l.bf16 %v4438
        %v4861 = vunpack.c.h.bf16 %v4438
        %v4862 = vunpack.c.l.bf16 %v4439
        %v4863 = vunpack.c.h.bf16 %v4439
        %v4864 = vunpack.c.l.bf16 %v4440
        %v4865 = vunpack.c.h.bf16 %v4440
        %v4866 = vunpack.c.l.bf16 %v4441
        %v4867 = vunpack.c.h.bf16 %v4441
        %v4868 = vunpack.c.l.bf16 %v4442
        %v4869 = vunpack.c.h.bf16 %v4442
        %v4870 = vunpack.c.l.bf16 %v4443
        %v4871 = vunpack.c.h.bf16 %v4443
        %v4872 = vunpack.c.l.bf16 %v4444
        %v4873 = vunpack.c.h.bf16 %v4444
        %v4874 = vunpack.c.l.bf16 %v4445
        %v4875 = vunpack.c.h.bf16 %v4445
        %v4876 = vunpack.c.l.bf16 %v4446
        %v4877 = vunpack.c.h.bf16 %v4446
        %v4878 = vunpack.c.l.bf16 %v4447
        %v4879 = vunpack.c.h.bf16 %v4447
        %v4880 = vunpack.c.l.bf16 %v4448
        %v4881 = vunpack.c.h.bf16 %v4448
        %v4882 = vunpack.c.l.bf16 %v4449
        %v4883 = vunpack.c.h.bf16 %v4449
        %v4884 = vunpack.c.l.bf16 %v4450
        %v4885 = vunpack.c.h.bf16 %v4450
        %v4886 = vunpack.c.l.bf16 %v4451
        %v4887 = vunpack.c.h.bf16 %v4451
        %v4888 = vunpack.c.l.bf16 %v4452
        %v4889 = vunpack.c.h.bf16 %v4452
        %v4890 = vunpack.c.l.bf16 %v4453
        %v4891 = vunpack.c.h.bf16 %v4453
        %v4892 = vunpack.c.l.bf16 %v4454
        %v4893 = vunpack.c.h.bf16 %v4454
        %v4894 = vunpack.c.l.bf16 %v4455
        %v4895 = vunpack.c.h.bf16 %v4455
        %v4896 = vunpack.c.l.bf16 %v4456
        %v4897 = vunpack.c.h.bf16 %v4456
        %v4898 = vunpack.c.l.bf16 %v4457
        %v4899 = vunpack.c.h.bf16 %v4457
        %v4900 = vunpack.c.l.bf16 %v4458
        %v4901 = vunpack.c.h.bf16 %v4458
        %v4902 = vunpack.c.l.bf16 %v4459
        %v4903 = vunpack.c.h.bf16 %v4459
        %v4904 = vunpack.c.l.bf16 %v4460
        %v4905 = vunpack.c.h.bf16 %v4460
        %v4906 = vunpack.c.l.bf16 %v4461
        %v4907 = vunpack.c.h.bf16 %v4461
        %v4908 = vunpack.c.l.bf16 %v4462
        %v4909 = vunpack.c.h.bf16 %v4462
        %v4910 = vunpack.c.l.bf16 %v4463
        %v4911 = vunpack.c.h.bf16 %v4463
        %v4912 = vunpack.c.l.bf16 %v4464
        %v4913 = vunpack.c.h.bf16 %v4464
        %v4914 = vunpack.c.l.bf16 %v4465
        %v4915 = vunpack.c.h.bf16 %v4465
        %v4916 = vunpack.c.l.bf16 %v4466
        %v4917 = vunpack.c.h.bf16 %v4466
        %v4918 = vunpack.c.l.bf16 %v4467
        %v4919 = vunpack.c.h.bf16 %v4467
        %v4920 = vunpack.c.l.bf16 %v4468
        %v4921 = vunpack.c.h.bf16 %v4468
        %v4922 = vunpack.c.l.bf16 %v4469
        %v4923 = vunpack.c.h.bf16 %v4469
        %v4924 = vunpack.c.l.bf16 %v4470
        %v4925 = vunpack.c.h.bf16 %v4470
        %v4926 = vunpack.c.l.bf16 %v4471
        %v4927 = vunpack.c.h.bf16 %v4471
        %v4928 = vunpack.c.l.bf16 %v4472
        %v4929 = vunpack.c.h.bf16 %v4472
        %v4930 = vunpack.c.l.bf16 %v4473
        %v4931 = vunpack.c.h.bf16 %v4473
        %v4932 = vunpack.c.l.bf16 %v4474
        %v4933 = vunpack.c.h.bf16 %v4474
        %v4934 = vunpack.c.l.bf16 %v4475
        %v4935 = vunpack.c.h.bf16 %v4475
        %v4936 = vunpack.c.l.bf16 %v4476
        %v4937 = vunpack.c.h.bf16 %v4476
        %v4938 = vunpack.c.l.bf16 %v4477
        %v4939 = vunpack.c.h.bf16 %v4477
        %v4940 = vunpack.c.l.bf16 %v4478
        %v4941 = vunpack.c.h.bf16 %v4478
        %v4942 = vunpack.c.l.bf16 %v4479
        %v4943 = vunpack.c.h.bf16 %v4479
        %v4944 = vunpack.c.l.bf16 %v4480
        %v4945 = vunpack.c.h.bf16 %v4480
        %v4946 = vunpack.c.l.bf16 %v4481
        %v4947 = vunpack.c.h.bf16 %v4481
        %v4948 = vunpack.c.l.bf16 %v4482
        %v4949 = vunpack.c.h.bf16 %v4482
        %v4950 = vunpack.c.l.bf16 %v4483
        %v4951 = vunpack.c.h.bf16 %v4483
        %v4952 = vunpack.c.l.bf16 %v4484
        %v4953 = vunpack.c.h.bf16 %v4484
        %v4954 = vunpack.c.l.bf16 %v4485
        %v4955 = vunpack.c.h.bf16 %v4485
        %v4956 = vunpack.c.l.bf16 %v4486
        %v4957 = vunpack.c.h.bf16 %v4486
        %v4958 = vunpack.c.l.bf16 %v4487
        %v4959 = vunpack.c.h.bf16 %v4487
        %v4960 = vunpack.c.l.bf16 %v4488
        %v4961 = vunpack.c.h.bf16 %v4488
        %v4962 = vunpack.c.l.bf16 %v4489
        %v4963 = vunpack.c.h.bf16 %v4489
        %v4964 = vunpack.c.l.bf16 %v4490
        %v4965 = vunpack.c.h.bf16 %v4490
        %v4966 = vunpack.c.l.bf16 %v4491
        %v4967 = vunpack.c.h.bf16 %v4491
        %v4968 = vunpack.c.l.bf16 %v4492
        %v4969 = vunpack.c.h.bf16 %v4492
        %v4970 = vunpack.c.l.bf16 %v4493
        %v4971 = vunpack.c.h.bf16 %v4493
        %v4972 = vunpack.c.l.bf16 %v4494
        %v4973 = vunpack.c.h.bf16 %v4494
        %v4974 = vunpack.c.l.bf16 %v4495
        %v4975 = vunpack.c.h.bf16 %v4495
        %v4976 = vunpack.c.l.bf16 %v4496
        %v4977 = vunpack.c.h.bf16 %v4496
        %v4978 = vunpack.c.l.bf16 %v4497
        %v4979 = vunpack.c.h.bf16 %v4497
        %v4980 = vunpack.c.l.bf16 %v4498
        %v4981 = vunpack.c.h.bf16 %v4498
        %v4982 = vunpack.c.l.bf16 %v4499
        %v4983 = vunpack.c.h.bf16 %v4499
        %v4984 = vunpack.c.l.bf16 %v4500
        %v4985 = vunpack.c.h.bf16 %v4500
        %v4986 = vunpack.c.l.bf16 %v4501
        %v4987 = vunpack.c.h.bf16 %v4501
        %v4988 = vunpack.c.l.bf16 %v4502
        %v4989 = vunpack.c.h.bf16 %v4502
        %v4990 = vunpack.c.l.bf16 %v4503
        %v4991 = vunpack.c.h.bf16 %v4503
        %v4992 = vunpack.c.l.bf16 %v4504
        %v4993 = vunpack.c.h.bf16 %v4504
        %v4994 = vunpack.c.l.bf16 %v4505
        %v4995 = vunpack.c.h.bf16 %v4505
        %v4996 = vunpack.c.l.bf16 %v4506
        %v4997 = vunpack.c.h.bf16 %v4506
        %v4998 = vunpack.c.l.bf16 %v4507
        %v4999 = vunpack.c.h.bf16 %v4507
        %v5000 = vunpack.c.l.bf16 %v4508
        %v5001 = vunpack.c.h.bf16 %v4508
        %v5002 = vunpack.c.l.bf16 %v4509
        %v5003 = vunpack.c.h.bf16 %v4509
        %v5004 = vunpack.c.l.bf16 %v4510
        %v5005 = vunpack.c.h.bf16 %v4510
        %v5006 = vunpack.c.l.bf16 %v4511
        %v5007 = vunpack.c.h.bf16 %v4511
        %v5008 = vunpack.c.l.bf16 %v4512
        %v5009 = vunpack.c.h.bf16 %v4512
        %v5010 = vunpack.c.l.bf16 %v4513
        %v5011 = vunpack.c.h.bf16 %v4513
        %v5012 = vunpack.c.l.bf16 %v4514
        %v5013 = vunpack.c.h.bf16 %v4514
        %v5014 = vunpack.c.l.bf16 %v4515
        %v5015 = vunpack.c.h.bf16 %v4515
        %v5016 = vunpack.c.l.bf16 %v4516
        %v5017 = vunpack.c.h.bf16 %v4516
        %v5018 = vunpack.c.l.bf16 %v4517
        %v5019 = vunpack.c.h.bf16 %v4517
        %v5020 = vunpack.c.l.bf16 %v4518
        %v5021 = vunpack.c.h.bf16 %v4518
        %v5022 = vunpack.c.l.bf16 %v4519
        %v5023 = vunpack.c.h.bf16 %v4519
        %v5024 = vunpack.c.l.bf16 %v4520
        %v5025 = vunpack.c.h.bf16 %v4520
        %v5026 = vunpack.c.l.bf16 %v4521
        %v5027 = vunpack.c.h.bf16 %v4521
        %v5028 = vunpack.c.l.bf16 %v4522
        %v5029 = vunpack.c.h.bf16 %v4522
        %v5030 = vunpack.c.l.bf16 %v4523
        %v5031 = vunpack.c.h.bf16 %v4523
        %v5032 = vunpack.c.l.bf16 %v4524
        %v5033 = vunpack.c.h.bf16 %v4524
        %v5034 = vunpack.c.l.bf16 %v4525
        %v5035 = vunpack.c.h.bf16 %v4525
        %v5036 = vunpack.c.l.bf16 %v4526
        %v5037 = vunpack.c.h.bf16 %v4526
        %v5038 = vunpack.c.l.bf16 %v4527
        %v5039 = vunpack.c.h.bf16 %v4527
        %v5040 = vmul.f32 %v4528, 1.442695
        %v5041 = vpow.pop %v5040
        %v5042 = vmul.f32 %v4529, 1.442695
        %v5043 = vpow.pop %v5042
        %v5044 = vmul.f32 %v4530, 1.442695
        %v5045 = vpow.pop %v5044
        %v5046 = vmul.f32 %v4531, 1.442695
        %v5047 = vpow.pop %v5046
        %v5048 = vmul.f32 %v4532, 1.442695
        %v5049 = vpow.pop %v5048
        %v5050 = vmul.f32 %v4533, 1.442695
        %v5051 = vpow.pop %v5050
        %v5052 = vmul.f32 %v4534, 1.442695
        %v5053 = vpow.pop %v5052
        %v5054 = vmul.f32 %v4535, 1.442695
        %v5055 = vpow.pop %v5054
        %v5056 = vmul.f32 %v4536, 1.442695
        %v5057 = vpow.pop %v5056
        %v5058 = vmul.f32 %v4537, 1.442695
        %v5059 = vpow.pop %v5058
        %v5060 = vmul.f32 %v4538, 1.442695
        %v5061 = vpow.pop %v5060
        %v5062 = vmul.f32 %v4539, 1.442695
        %v5063 = vpow.pop %v5062
        %v5064 = vmul.f32 %v4540, 1.442695
        %v5065 = vpow.pop %v5064
        %v5066 = vmul.f32 %v4541, 1.442695
        %v5067 = vpow.pop %v5066
        %v5068 = vmul.f32 %v4542, 1.442695
        %v5069 = vpow.pop %v5068
        %v5070 = vmul.f32 %v4543, 1.442695
        %v5071 = vpow.pop %v5070
        %v5072 = vmul.f32 %v4544, 1.442695
        %v5073 = vpow.pop %v5072
        %v5074 = vmul.f32 %v4545, 1.442695
        %v5075 = vpow.pop %v5074
        %v5076 = vmul.f32 %v4546, 1.442695
        %v5077 = vpow.pop %v5076
        %v5078 = vmul.f32 %v4547, 1.442695
        %v5079 = vpow.pop %v5078
        %v5080 = vmul.f32 %v4548, 1.442695
        %v5081 = vpow.pop %v5080
        %v5082 = vmul.f32 %v4549, 1.442695
        %v5083 = vpow.pop %v5082
        %v5084 = vmul.f32 %v4550, 1.442695
        %v5085 = vpow.pop %v5084
        %v5086 = vmul.f32 %v4551, 1.442695
        %v5087 = vpow.pop %v5086
        %v5088 = vmul.f32 %v4552, 1.442695
        %v5089 = vpow.pop %v5088
        %v5090 = vmul.f32 %v4553, 1.442695
        %v5091 = vpow.pop %v5090
        %v5092 = vmul.f32 %v4554, 1.442695
        %v5093 = vpow.pop %v5092
        %v5094 = vmul.f32 %v4555, 1.442695
        %v5095 = vpow.pop %v5094
        %v5096 = vmul.f32 %v4556, 1.442695
        %v5097 = vpow.pop %v5096
        %v5098 = vmul.f32 %v4557, 1.442695
        %v5099 = vpow.pop %v5098
        %v5100 = vmul.f32 %v4558, 1.442695
        %v5101 = vpow.pop %v5100
        %v5102 = vmul.f32 %v4559, 1.442695
        %v5103 = vpow.pop %v5102
        %v5104 = vmul.f32 %v4560, 1.442695
        %v5105 = vpow.pop %v5104
        %v5106 = vmul.f32 %v4561, 1.442695
        %v5107 = vpow.pop %v5106
        %v5108 = vmul.f32 %v4562, 1.442695
        %v5109 = vpow.pop %v5108
        %v5110 = vmul.f32 %v4563, 1.442695
        %v5111 = vpow.pop %v5110
        %v5112 = vmul.f32 %v4564, 1.442695
        %v5113 = vpow.pop %v5112
        %v5114 = vmul.f32 %v4565, 1.442695
        %v5115 = vpow.pop %v5114
        %v5116 = vmul.f32 %v4566, 1.442695
        %v5117 = vpow.pop %v5116
        %v5118 = vmul.f32 %v4567, 1.442695
        %v5119 = vpow.pop %v5118
        %v5120 = vmul.f32 %v4568, 1.442695
        %v5121 = vpow.pop %v5120
        %v5122 = vmul.f32 %v4569, 1.442695
        %v5123 = vpow.pop %v5122
        %v5124 = vmul.f32 %v4570, 1.442695
        %v5125 = vpow.pop %v5124
        %v5126 = vmul.f32 %v4571, 1.442695
        %v5127 = vpow.pop %v5126
        %v5128 = vmul.f32 %v4572, 1.442695
        %v5129 = vpow.pop %v5128
        %v5130 = vmul.f32 %v4573, 1.442695
        %v5131 = vpow.pop %v5130
        %v5132 = vmul.f32 %v4574, 1.442695
        %v5133 = vpow.pop %v5132
        %v5134 = vmul.f32 %v4575, 1.442695
        %v5135 = vpow.pop %v5134
        %v5136 = vmul.f32 %v4576, 1.442695
        %v5137 = vpow.pop %v5136
        %v5138 = vmul.f32 %v4577, 1.442695
        %v5139 = vpow.pop %v5138
        %v5140 = vmul.f32 %v4578, 1.442695
        %v5141 = vpow.pop %v5140
        %v5142 = vmul.f32 %v4579, 1.442695
        %v5143 = vpow.pop %v5142
        %v5144 = vmul.f32 %v4580, 1.442695
        %v5145 = vpow.pop %v5144
        %v5146 = vmul.f32 %v4581, 1.442695
        %v5147 = vpow.pop %v5146
        %v5148 = vmul.f32 %v4582, 1.442695
        %v5149 = vpow.pop %v5148
        %v5150 = vmul.f32 %v4583, 1.442695
        %v5151 = vpow.pop %v5150
        %v5152 = vmul.f32 %v4584, 1.442695
        %v5153 = vpow.pop %v5152
        %v5154 = vmul.f32 %v4585, 1.442695
        %v5155 = vpow.pop %v5154
        %v5156 = vmul.f32 %v4586, 1.442695
        %v5157 = vpow.pop %v5156
        %v5158 = vmul.f32 %v4587, 1.442695
        %v5159 = vpow.pop %v5158
        %v5160 = vmul.f32 %v4588, 1.442695
        %v5161 = vpow.pop %v5160
        %v5162 = vmul.f32 %v4589, 1.442695
        %v5163 = vpow.pop %v5162
        %v5164 = vmul.f32 %v4590, 1.442695
        %v5165 = vpow.pop %v5164
        %v5166 = vmul.f32 %v4591, 1.442695
        %v5167 = vpow.pop %v5166
        %v5168 = vmul.f32 %v4592, 1.442695
        %v5169 = vpow.pop %v5168
        %v5170 = vmul.f32 %v4593, 1.442695
        %v5171 = vpow.pop %v5170
        %v5172 = vmul.f32 %v4594, 1.442695
        %v5173 = vpow.pop %v5172
        %v5174 = vmul.f32 %v4595, 1.442695
        %v5175 = vpow.pop %v5174
        %v5176 = vmul.f32 %v4596, 1.442695
        %v5177 = vpow.pop %v5176
        %v5178 = vmul.f32 %v4597, 1.442695
        %v5179 = vpow.pop %v5178
        %v5180 = vmul.f32 %v4598, 1.442695
        %v5181 = vpow.pop %v5180
        %v5182 = vmul.f32 %v4599, 1.442695
        %v5183 = vpow.pop %v5182
        %v5184 = vmul.f32 %v4600, 1.442695
        %v5185 = vpow.pop %v5184
        %v5186 = vmul.f32 %v4601, 1.442695
        %v5187 = vpow.pop %v5186
        %v5188 = vmul.f32 %v4602, 1.442695
        %v5189 = vpow.pop %v5188
        %v5190 = vmul.f32 %v4603, 1.442695
        %v5191 = vpow.pop %v5190
        %v5192 = vmul.f32 %v4604, 1.442695
        %v5193 = vpow.pop %v5192
        %v5194 = vmul.f32 %v4605, 1.442695
        %v5195 = vpow.pop %v5194
        %v5196 = vmul.f32 %v4606, 1.442695
        %v5197 = vpow.pop %v5196
        %v5198 = vmul.f32 %v4607, 1.442695
        %v5199 = vpow.pop %v5198
        %v5200 = vmul.f32 %v4608, 1.442695
        %v5201 = vpow.pop %v5200
        %v5202 = vmul.f32 %v4609, 1.442695
        %v5203 = vpow.pop %v5202
        %v5204 = vmul.f32 %v4610, 1.442695
        %v5205 = vpow.pop %v5204
        %v5206 = vmul.f32 %v4611, 1.442695
        %v5207 = vpow.pop %v5206
        %v5208 = vmul.f32 %v4612, 1.442695
        %v5209 = vpow.pop %v5208
        %v5210 = vmul.f32 %v4613, 1.442695
        %v5211 = vpow.pop %v5210
        %v5212 = vmul.f32 %v4614, 1.442695
        %v5213 = vpow.pop %v5212
        %v5214 = vmul.f32 %v4615, 1.442695
        %v5215 = vpow.pop %v5214
        %v5216 = vmul.f32 %v4616, 1.442695
        %v5217 = vpow.pop %v5216
        %v5218 = vmul.f32 %v4617, 1.442695
        %v5219 = vpow.pop %v5218
        %v5220 = vmul.f32 %v4618, 1.442695
        %v5221 = vpow.pop %v5220
        %v5222 = vmul.f32 %v4619, 1.442695
        %v5223 = vpow.pop %v5222
        %v5224 = vmul.f32 %v4620, 1.442695
        %v5225 = vpow.pop %v5224
        %v5226 = vmul.f32 %v4621, 1.442695
        %v5227 = vpow.pop %v5226
        %v5228 = vmul.f32 %v4622, 1.442695
        %v5229 = vpow.pop %v5228
        %v5230 = vmul.f32 %v4623, 1.442695
        %v5231 = vpow.pop %v5230
        %v5232 = vmul.f32 %v4624, 1.442695
        %v5233 = vpow.pop %v5232
        %v5234 = vmul.f32 %v4625, 1.442695
        %v5235 = vpow.pop %v5234
        %v5236 = vmul.f32 %v4626, 1.442695
        %v5237 = vpow.pop %v5236
        %v5238 = vmul.f32 %v4627, 1.442695
        %v5239 = vpow.pop %v5238
        %v5240 = vmul.f32 %v4628, 1.442695
        %v5241 = vpow.pop %v5240
        %v5242 = vmul.f32 %v4629, 1.442695
        %v5243 = vpow.pop %v5242
        %v5244 = vmul.f32 %v4630, 1.442695
        %v5245 = vpow.pop %v5244
        %v5246 = vmul.f32 %v4631, 1.442695
        %v5247 = vpow.pop %v5246
        %v5248 = vmul.f32 %v4632, 1.442695
        %v5249 = vpow.pop %v5248
        %v5250 = vmul.f32 %v4633, 1.442695
        %v5251 = vpow.pop %v5250
        %v5252 = vmul.f32 %v4634, 1.442695
        %v5253 = vpow.pop %v5252
        %v5254 = vmul.f32 %v4635, 1.442695
        %v5255 = vpow.pop %v5254
        %v5256 = vmul.f32 %v4636, 1.442695
        %v5257 = vpow.pop %v5256
        %v5258 = vmul.f32 %v4637, 1.442695
        %v5259 = vpow.pop %v5258
        %v5260 = vmul.f32 %v4638, 1.442695
        %v5261 = vpow.pop %v5260
        %v5262 = vmul.f32 %v4639, 1.442695
        %v5263 = vpow.pop %v5262
        %v5264 = vmul.f32 %v4640, 1.442695
        %v5265 = vpow.pop %v5264
        %v5266 = vmul.f32 %v4641, 1.442695
        %v5267 = vpow.pop %v5266
        %v5268 = vmul.f32 %v4642, 1.442695
        %v5269 = vpow.pop %v5268
        %v5270 = vmul.f32 %v4643, 1.442695
        %v5271 = vpow.pop %v5270
        %v5272 = vmul.f32 %v4644, 1.442695
        %v5273 = vpow.pop %v5272
        %v5274 = vmul.f32 %v4645, 1.442695
        %v5275 = vpow.pop %v5274
        %v5276 = vmul.f32 %v4646, 1.442695
        %v5277 = vpow.pop %v5276
        %v5278 = vmul.f32 %v4647, 1.442695
        %v5279 = vpow.pop %v5278
        %v5280 = vmul.f32 %v4648, 1.442695
        %v5281 = vpow.pop %v5280
        %v5282 = vmul.f32 %v4649, 1.442695
        %v5283 = vpow.pop %v5282
        %v5284 = vmul.f32 %v4650, 1.442695
        %v5285 = vpow.pop %v5284
        %v5286 = vmul.f32 %v4651, 1.442695
        %v5287 = vpow.pop %v5286
        %v5288 = vmul.f32 %v4652, 1.442695
        %v5289 = vpow.pop %v5288
        %v5290 = vmul.f32 %v4653, 1.442695
        %v5291 = vpow.pop %v5290
        %v5292 = vmul.f32 %v4654, 1.442695
        %v5293 = vpow.pop %v5292
        %v5294 = vmul.f32 %v4655, 1.442695
        %v5295 = vpow.pop %v5294
        %v5296 = vmul.f32 %v4656, 1.442695
        %v5297 = vpow.pop %v5296
        %v5298 = vmul.f32 %v4657, 1.442695
        %v5299 = vpow.pop %v5298
        %v5300 = vmul.f32 %v4658, 1.442695
        %v5301 = vpow.pop %v5300
        %v5302 = vmul.f32 %v4659, 1.442695
        %v5303 = vpow.pop %v5302
        %v5304 = vmul.f32 %v4660, 1.442695
        %v5305 = vpow.pop %v5304
        %v5306 = vmul.f32 %v4661, 1.442695
        %v5307 = vpow.pop %v5306
        %v5308 = vmul.f32 %v4662, 1.442695
        %v5309 = vpow.pop %v5308
        %v5310 = vmul.f32 %v4663, 1.442695
        %v5311 = vpow.pop %v5310
        %v5312 = vmul.f32 %v4664, 1.442695
        %v5313 = vpow.pop %v5312
        %v5314 = vmul.f32 %v4665, 1.442695
        %v5315 = vpow.pop %v5314
        %v5316 = vmul.f32 %v4666, 1.442695
        %v5317 = vpow.pop %v5316
        %v5318 = vmul.f32 %v4667, 1.442695
        %v5319 = vpow.pop %v5318
        %v5320 = vmul.f32 %v4668, 1.442695
        %v5321 = vpow.pop %v5320
        %v5322 = vmul.f32 %v4669, 1.442695
        %v5323 = vpow.pop %v5322
        %v5324 = vmul.f32 %v4670, 1.442695
        %v5325 = vpow.pop %v5324
        %v5326 = vmul.f32 %v4671, 1.442695
        %v5327 = vpow.pop %v5326
        %v5328 = vmul.f32 %v4672, 1.442695
        %v5329 = vpow.pop %v5328
        %v5330 = vmul.f32 %v4673, 1.442695
        %v5331 = vpow.pop %v5330
        %v5332 = vmul.f32 %v4674, 1.442695
        %v5333 = vpow.pop %v5332
        %v5334 = vmul.f32 %v4675, 1.442695
        %v5335 = vpow.pop %v5334
        %v5336 = vmul.f32 %v4676, 1.442695
        %v5337 = vpow.pop %v5336
        %v5338 = vmul.f32 %v4677, 1.442695
        %v5339 = vpow.pop %v5338
        %v5340 = vmul.f32 %v4678, 1.442695
        %v5341 = vpow.pop %v5340
        %v5342 = vmul.f32 %v4679, 1.442695
        %v5343 = vpow.pop %v5342
        %v5344 = vmul.f32 %v4680, 1.442695
        %v5345 = vpow.pop %v5344
        %v5346 = vmul.f32 %v4681, 1.442695
        %v5347 = vpow.pop %v5346
        %v5348 = vmul.f32 %v4682, 1.442695
        %v5349 = vpow.pop %v5348
        %v5350 = vmul.f32 %v4683, 1.442695
        %v5351 = vpow.pop %v5350
        %v5352 = vmul.f32 %v4684, 1.442695
        %v5353 = vpow.pop %v5352
        %v5354 = vmul.f32 %v4685, 1.442695
        %v5355 = vpow.pop %v5354
        %v5356 = vmul.f32 %v4686, 1.442695
        %v5357 = vpow.pop %v5356
        %v5358 = vmul.f32 %v4687, 1.442695
        %v5359 = vpow.pop %v5358
        %v5360 = vmul.f32 %v4688, 1.442695
        %v5361 = vpow.pop %v5360
        %v5362 = vmul.f32 %v4689, 1.442695
        %v5363 = vpow.pop %v5362
        %v5364 = vmul.f32 %v4690, 1.442695
        %v5365 = vpow.pop %v5364
        %v5366 = vmul.f32 %v4691, 1.442695
        %v5367 = vpow.pop %v5366
        %v5368 = vmul.f32 %v4692, 1.442695
        %v5369 = vpow.pop %v5368
        %v5370 = vmul.f32 %v4693, 1.442695
        %v5371 = vpow.pop %v5370
        %v5372 = vmul.f32 %v4694, 1.442695
        %v5373 = vpow.pop %v5372
        %v5374 = vmul.f32 %v4695, 1.442695
        %v5375 = vpow.pop %v5374
        %v5376 = vmul.f32 %v4696, 1.442695
        %v5377 = vpow.pop %v5376
        %v5378 = vmul.f32 %v4697, 1.442695
        %v5379 = vpow.pop %v5378
        %v5380 = vmul.f32 %v4698, 1.442695
        %v5381 = vpow.pop %v5380
        %v5382 = vmul.f32 %v4699, 1.442695
        %v5383 = vpow.pop %v5382
        %v5384 = vmul.f32 %v4700, 1.442695
        %v5385 = vpow.pop %v5384
        %v5386 = vmul.f32 %v4701, 1.442695
        %v5387 = vpow.pop %v5386
        %v5388 = vmul.f32 %v4702, 1.442695
        %v5389 = vpow.pop %v5388
        %v5390 = vmul.f32 %v4703, 1.442695
        %v5391 = vpow.pop %v5390
        %v5392 = vmul.f32 %v4704, 1.442695
        %v5393 = vpow.pop %v5392
        %v5394 = vmul.f32 %v4705, 1.442695
        %v5395 = vpow.pop %v5394
        %v5396 = vmul.f32 %v4706, 1.442695
        %v5397 = vpow.pop %v5396
        %v5398 = vmul.f32 %v4707, 1.442695
        %v5399 = vpow.pop %v5398
        %v5400 = vmul.f32 %v4708, 1.442695
        %v5401 = vpow.pop %v5400
        %v5402 = vmul.f32 %v4709, 1.442695
        %v5403 = vpow.pop %v5402
        %v5404 = vmul.f32 %v4710, 1.442695
        %v5405 = vpow.pop %v5404
        %v5406 = vmul.f32 %v4711, 1.442695
        %v5407 = vpow.pop %v5406
        %v5408 = vmul.f32 %v4712, 1.442695
        %v5409 = vpow.pop %v5408
        %v5410 = vmul.f32 %v4713, 1.442695
        %v5411 = vpow.pop %v5410
        %v5412 = vmul.f32 %v4714, 1.442695
        %v5413 = vpow.pop %v5412
        %v5414 = vmul.f32 %v4715, 1.442695
        %v5415 = vpow.pop %v5414
        %v5416 = vmul.f32 %v4716, 1.442695
        %v5417 = vpow.pop %v5416
        %v5418 = vmul.f32 %v4717, 1.442695
        %v5419 = vpow.pop %v5418
        %v5420 = vmul.f32 %v4718, 1.442695
        %v5421 = vpow.pop %v5420
        %v5422 = vmul.f32 %v4719, 1.442695
        %v5423 = vpow.pop %v5422
        %v5424 = vmul.f32 %v4720, 1.442695
        %v5425 = vpow.pop %v5424
        %v5426 = vmul.f32 %v4721, 1.442695
        %v5427 = vpow.pop %v5426
        %v5428 = vmul.f32 %v4722, 1.442695
        %v5429 = vpow.pop %v5428
        %v5430 = vmul.f32 %v4723, 1.442695
        %v5431 = vpow.pop %v5430
        %v5432 = vmul.f32 %v4724, 1.442695
        %v5433 = vpow.pop %v5432
        %v5434 = vmul.f32 %v4725, 1.442695
        %v5435 = vpow.pop %v5434
        %v5436 = vmul.f32 %v4726, 1.442695
        %v5437 = vpow.pop %v5436
        %v5438 = vmul.f32 %v4727, 1.442695
        %v5439 = vpow.pop %v5438
        %v5440 = vmul.f32 %v4728, 1.442695
        %v5441 = vpow.pop %v5440
        %v5442 = vmul.f32 %v4729, 1.442695
        %v5443 = vpow.pop %v5442
        %v5444 = vmul.f32 %v4730, 1.442695
        %v5445 = vpow.pop %v5444
        %v5446 = vmul.f32 %v4731, 1.442695
        %v5447 = vpow.pop %v5446
        %v5448 = vmul.f32 %v4732, 1.442695
        %v5449 = vpow.pop %v5448
        %v5450 = vmul.f32 %v4733, 1.442695
        %v5451 = vpow.pop %v5450
        %v5452 = vmul.f32 %v4734, 1.442695
        %v5453 = vpow.pop %v5452
        %v5454 = vmul.f32 %v4735, 1.442695
        %v5455 = vpow.pop %v5454
        %v5456 = vmul.f32 %v4736, 1.442695
        %v5457 = vpow.pop %v5456
        %v5458 = vmul.f32 %v4737, 1.442695
        %v5459 = vpow.pop %v5458
        %v5460 = vmul.f32 %v4738, 1.442695
        %v5461 = vpow.pop %v5460
        %v5462 = vmul.f32 %v4739, 1.442695
        %v5463 = vpow.pop %v5462
        %v5464 = vmul.f32 %v4740, 1.442695
        %v5465 = vpow.pop %v5464
        %v5466 = vmul.f32 %v4741, 1.442695
        %v5467 = vpow.pop %v5466
        %v5468 = vmul.f32 %v4742, 1.442695
        %v5469 = vpow.pop %v5468
        %v5470 = vmul.f32 %v4743, 1.442695
        %v5471 = vpow.pop %v5470
        %v5472 = vmul.f32 %v4744, 1.442695
        %v5473 = vpow.pop %v5472
        %v5474 = vmul.f32 %v4745, 1.442695
        %v5475 = vpow.pop %v5474
        %v5476 = vmul.f32 %v4746, 1.442695
        %v5477 = vpow.pop %v5476
        %v5478 = vmul.f32 %v4747, 1.442695
        %v5479 = vpow.pop %v5478
        %v5480 = vmul.f32 %v4748, 1.442695
        %v5481 = vpow.pop %v5480
        %v5482 = vmul.f32 %v4749, 1.442695
        %v5483 = vpow.pop %v5482
        %v5484 = vmul.f32 %v4750, 1.442695
        %v5485 = vpow.pop %v5484
        %v5486 = vmul.f32 %v4751, 1.442695
        %v5487 = vpow.pop %v5486
        %v5488 = vmul.f32 %v4752, 1.442695
        %v5489 = vpow.pop %v5488
        %v5490 = vmul.f32 %v4753, 1.442695
        %v5491 = vpow.pop %v5490
        %v5492 = vmul.f32 %v4754, 1.442695
        %v5493 = vpow.pop %v5492
        %v5494 = vmul.f32 %v4755, 1.442695
        %v5495 = vpow.pop %v5494
        %v5496 = vmul.f32 %v4756, 1.442695
        %v5497 = vpow.pop %v5496
        %v5498 = vmul.f32 %v4757, 1.442695
        %v5499 = vpow.pop %v5498
        %v5500 = vmul.f32 %v4758, 1.442695
        %v5501 = vpow.pop %v5500
        %v5502 = vmul.f32 %v4759, 1.442695
        %v5503 = vpow.pop %v5502
        %v5504 = vmul.f32 %v4760, 1.442695
        %v5505 = vpow.pop %v5504
        %v5506 = vmul.f32 %v4761, 1.442695
        %v5507 = vpow.pop %v5506
        %v5508 = vmul.f32 %v4762, 1.442695
        %v5509 = vpow.pop %v5508
        %v5510 = vmul.f32 %v4763, 1.442695
        %v5511 = vpow.pop %v5510
        %v5512 = vmul.f32 %v4764, 1.442695
        %v5513 = vpow.pop %v5512
        %v5514 = vmul.f32 %v4765, 1.442695
        %v5515 = vpow.pop %v5514
        %v5516 = vmul.f32 %v4766, 1.442695
        %v5517 = vpow.pop %v5516
        %v5518 = vmul.f32 %v4767, 1.442695
        %v5519 = vpow.pop %v5518
        %v5520 = vmul.f32 %v4768, 1.442695
        %v5521 = vpow.pop %v5520
        %v5522 = vmul.f32 %v4769, 1.442695
        %v5523 = vpow.pop %v5522
        %v5524 = vmul.f32 %v4770, 1.442695
        %v5525 = vpow.pop %v5524
        %v5526 = vmul.f32 %v4771, 1.442695
        %v5527 = vpow.pop %v5526
        %v5528 = vmul.f32 %v4772, 1.442695
        %v5529 = vpow.pop %v5528
        %v5530 = vmul.f32 %v4773, 1.442695
        %v5531 = vpow.pop %v5530
        %v5532 = vmul.f32 %v4774, 1.442695
        %v5533 = vpow.pop %v5532
        %v5534 = vmul.f32 %v4775, 1.442695
        %v5535 = vpow.pop %v5534
        %v5536 = vmul.f32 %v4776, 1.442695
        %v5537 = vpow.pop %v5536
        %v5538 = vmul.f32 %v4777, 1.442695
        %v5539 = vpow.pop %v5538
        %v5540 = vmul.f32 %v4778, 1.442695
        %v5541 = vpow.pop %v5540
        %v5542 = vmul.f32 %v4779, 1.442695
        %v5543 = vpow.pop %v5542
        %v5544 = vmul.f32 %v4780, 1.442695
        %v5545 = vpow.pop %v5544
        %v5546 = vmul.f32 %v4781, 1.442695
        %v5547 = vpow.pop %v5546
        %v5548 = vmul.f32 %v4782, 1.442695
        %v5549 = vpow.pop %v5548
        %v5550 = vmul.f32 %v4783, 1.442695
        %v5551 = vpow.pop %v5550
        %v5552 = vmul.f32 %v4784, 1.442695
        %v5553 = vpow.pop %v5552
        %v5554 = vmul.f32 %v4785, 1.442695
        %v5555 = vpow.pop %v5554
        %v5556 = vmul.f32 %v4786, 1.442695
        %v5557 = vpow.pop %v5556
        %v5558 = vmul.f32 %v4787, 1.442695
        %v5559 = vpow.pop %v5558
        %v5560 = vmul.f32 %v4788, 1.442695
        %v5561 = vpow.pop %v5560
        %v5562 = vmul.f32 %v4789, 1.442695
        %v5563 = vpow.pop %v5562
        %v5564 = vmul.f32 %v4790, 1.442695
        %v5565 = vpow.pop %v5564
        %v5566 = vmul.f32 %v4791, 1.442695
        %v5567 = vpow.pop %v5566
        %v5568 = vmul.f32 %v4792, 1.442695
        %v5569 = vpow.pop %v5568
        %v5570 = vmul.f32 %v4793, 1.442695
        %v5571 = vpow.pop %v5570
        %v5572 = vmul.f32 %v4794, 1.442695
        %v5573 = vpow.pop %v5572
        %v5574 = vmul.f32 %v4795, 1.442695
        %v5575 = vpow.pop %v5574
        %v5576 = vmul.f32 %v4796, 1.442695
        %v5577 = vpow.pop %v5576
        %v5578 = vmul.f32 %v4797, 1.442695
        %v5579 = vpow.pop %v5578
        %v5580 = vmul.f32 %v4798, 1.442695
        %v5581 = vpow.pop %v5580
        %v5582 = vmul.f32 %v4799, 1.442695
        %v5583 = vpow.pop %v5582
        %v5584 = vmul.f32 %v4800, 1.442695
        %v5585 = vpow.pop %v5584
        %v5586 = vmul.f32 %v4801, 1.442695
        %v5587 = vpow.pop %v5586
        %v5588 = vmul.f32 %v4802, 1.442695
        %v5589 = vpow.pop %v5588
        %v5590 = vmul.f32 %v4803, 1.442695
        %v5591 = vpow.pop %v5590
        %v5592 = vmul.f32 %v4804, 1.442695
        %v5593 = vpow.pop %v5592
        %v5594 = vmul.f32 %v4805, 1.442695
        %v5595 = vpow.pop %v5594
        %v5596 = vmul.f32 %v4806, 1.442695
        %v5597 = vpow.pop %v5596
        %v5598 = vmul.f32 %v4807, 1.442695
        %v5599 = vpow.pop %v5598
        %v5600 = vmul.f32 %v4808, 1.442695
        %v5601 = vpow.pop %v5600
        %v5602 = vmul.f32 %v4809, 1.442695
        %v5603 = vpow.pop %v5602
        %v5604 = vmul.f32 %v4810, 1.442695
        %v5605 = vpow.pop %v5604
        %v5606 = vmul.f32 %v4811, 1.442695
        %v5607 = vpow.pop %v5606
        %v5608 = vmul.f32 %v4812, 1.442695
        %v5609 = vpow.pop %v5608
        %v5610 = vmul.f32 %v4813, 1.442695
        %v5611 = vpow.pop %v5610
        %v5612 = vmul.f32 %v4814, 1.442695
        %v5613 = vpow.pop %v5612
        %v5614 = vmul.f32 %v4815, 1.442695
        %v5615 = vpow.pop %v5614
        %v5616 = vmul.f32 %v4816, 1.442695
        %v5617 = vpow.pop %v5616
        %v5618 = vmul.f32 %v4817, 1.442695
        %v5619 = vpow.pop %v5618
        %v5620 = vmul.f32 %v4818, 1.442695
        %v5621 = vpow.pop %v5620
        %v5622 = vmul.f32 %v4819, 1.442695
        %v5623 = vpow.pop %v5622
        %v5624 = vmul.f32 %v4820, 1.442695
        %v5625 = vpow.pop %v5624
        %v5626 = vmul.f32 %v4821, 1.442695
        %v5627 = vpow.pop %v5626
        %v5628 = vmul.f32 %v4822, 1.442695
        %v5629 = vpow.pop %v5628
        %v5630 = vmul.f32 %v4823, 1.442695
        %v5631 = vpow.pop %v5630
        %v5632 = vmul.f32 %v4824, 1.442695
        %v5633 = vpow.pop %v5632
        %v5634 = vmul.f32 %v4825, 1.442695
        %v5635 = vpow.pop %v5634
        %v5636 = vmul.f32 %v4826, 1.442695
        %v5637 = vpow.pop %v5636
        %v5638 = vmul.f32 %v4827, 1.442695
        %v5639 = vpow.pop %v5638
        %v5640 = vmul.f32 %v4828, 1.442695
        %v5641 = vpow.pop %v5640
        %v5642 = vmul.f32 %v4829, 1.442695
        %v5643 = vpow.pop %v5642
        %v5644 = vmul.f32 %v4830, 1.442695
        %v5645 = vpow.pop %v5644
        %v5646 = vmul.f32 %v4831, 1.442695
        %v5647 = vpow.pop %v5646
        %v5648 = vmul.f32 %v4832, 1.442695
        %v5649 = vpow.pop %v5648
        %v5650 = vmul.f32 %v4833, 1.442695
        %v5651 = vpow.pop %v5650
        %v5652 = vmul.f32 %v4834, 1.442695
        %v5653 = vpow.pop %v5652
        %v5654 = vmul.f32 %v4835, 1.442695
        %v5655 = vpow.pop %v5654
        %v5656 = vmul.f32 %v4836, 1.442695
        %v5657 = vpow.pop %v5656
        %v5658 = vmul.f32 %v4837, 1.442695
        %v5659 = vpow.pop %v5658
        %v5660 = vmul.f32 %v4838, 1.442695
        %v5661 = vpow.pop %v5660
        %v5662 = vmul.f32 %v4839, 1.442695
        %v5663 = vpow.pop %v5662
        %v5664 = vmul.f32 %v4840, 1.442695
        %v5665 = vpow.pop %v5664
        %v5666 = vmul.f32 %v4841, 1.442695
        %v5667 = vpow.pop %v5666
        %v5668 = vmul.f32 %v4842, 1.442695
        %v5669 = vpow.pop %v5668
        %v5670 = vmul.f32 %v4843, 1.442695
        %v5671 = vpow.pop %v5670
        %v5672 = vmul.f32 %v4844, 1.442695
        %v5673 = vpow.pop %v5672
        %v5674 = vmul.f32 %v4845, 1.442695
        %v5675 = vpow.pop %v5674
        %v5676 = vmul.f32 %v4846, 1.442695
        %v5677 = vpow.pop %v5676
        %v5678 = vmul.f32 %v4847, 1.442695
        %v5679 = vpow.pop %v5678
        %v5680 = vmul.f32 %v4848, 1.442695
        %v5681 = vpow.pop %v5680
        %v5682 = vmul.f32 %v4849, 1.442695
        %v5683 = vpow.pop %v5682
        %v5684 = vmul.f32 %v4850, 1.442695
        %v5685 = vpow.pop %v5684
        %v5686 = vmul.f32 %v4851, 1.442695
        %v5687 = vpow.pop %v5686
        %v5688 = vmul.f32 %v4852, 1.442695
        %v5689 = vpow.pop %v5688
        %v5690 = vmul.f32 %v4853, 1.442695
        %v5691 = vpow.pop %v5690
        %v5692 = vmul.f32 %v4854, 1.442695
        %v5693 = vpow.pop %v5692
        %v5694 = vmul.f32 %v4855, 1.442695
        %v5695 = vpow.pop %v5694
        %v5696 = vmul.f32 %v4856, 1.442695
        %v5697 = vpow.pop %v5696
        %v5698 = vmul.f32 %v4857, 1.442695
        %v5699 = vpow.pop %v5698
        %v5700 = vmul.f32 %v4858, 1.442695
        %v5701 = vpow.pop %v5700
        %v5702 = vmul.f32 %v4859, 1.442695
        %v5703 = vpow.pop %v5702
        %v5704 = vmul.f32 %v4860, 1.442695
        %v5705 = vpow.pop %v5704
        %v5706 = vmul.f32 %v4861, 1.442695
        %v5707 = vpow.pop %v5706
        %v5708 = vmul.f32 %v4862, 1.442695
        %v5709 = vpow.pop %v5708
        %v5710 = vmul.f32 %v4863, 1.442695
        %v5711 = vpow.pop %v5710
        %v5712 = vmul.f32 %v4864, 1.442695
        %v5713 = vpow.pop %v5712
        %v5714 = vmul.f32 %v4865, 1.442695
        %v5715 = vpow.pop %v5714
        %v5716 = vmul.f32 %v4866, 1.442695
        %v5717 = vpow.pop %v5716
        %v5718 = vmul.f32 %v4867, 1.442695
        %v5719 = vpow.pop %v5718
        %v5720 = vmul.f32 %v4868, 1.442695
        %v5721 = vpow.pop %v5720
        %v5722 = vmul.f32 %v4869, 1.442695
        %v5723 = vpow.pop %v5722
        %v5724 = vmul.f32 %v4870, 1.442695
        %v5725 = vpow.pop %v5724
        %v5726 = vmul.f32 %v4871, 1.442695
        %v5727 = vpow.pop %v5726
        %v5728 = vmul.f32 %v4872, 1.442695
        %v5729 = vpow.pop %v5728
        %v5730 = vmul.f32 %v4873, 1.442695
        %v5731 = vpow.pop %v5730
        %v5732 = vmul.f32 %v4874, 1.442695
        %v5733 = vpow.pop %v5732
        %v5734 = vmul.f32 %v4875, 1.442695
        %v5735 = vpow.pop %v5734
        %v5736 = vmul.f32 %v4876, 1.442695
        %v5737 = vpow.pop %v5736
        %v5738 = vmul.f32 %v4877, 1.442695
        %v5739 = vpow.pop %v5738
        %v5740 = vmul.f32 %v4878, 1.442695
        %v5741 = vpow.pop %v5740
        %v5742 = vmul.f32 %v4879, 1.442695
        %v5743 = vpow.pop %v5742
        %v5744 = vmul.f32 %v4880, 1.442695
        %v5745 = vpow.pop %v5744
        %v5746 = vmul.f32 %v4881, 1.442695
        %v5747 = vpow.pop %v5746
        %v5748 = vmul.f32 %v4882, 1.442695
        %v5749 = vpow.pop %v5748
        %v5750 = vmul.f32 %v4883, 1.442695
        %v5751 = vpow.pop %v5750
        %v5752 = vmul.f32 %v4884, 1.442695
        %v5753 = vpow.pop %v5752
        %v5754 = vmul.f32 %v4885, 1.442695
        %v5755 = vpow.pop %v5754
        %v5756 = vmul.f32 %v4886, 1.442695
        %v5757 = vpow.pop %v5756
        %v5758 = vmul.f32 %v4887, 1.442695
        %v5759 = vpow.pop %v5758
        %v5760 = vmul.f32 %v4888, 1.442695
        %v5761 = vpow.pop %v5760
        %v5762 = vmul.f32 %v4889, 1.442695
        %v5763 = vpow.pop %v5762
        %v5764 = vmul.f32 %v4890, 1.442695
        %v5765 = vpow.pop %v5764
        %v5766 = vmul.f32 %v4891, 1.442695
        %v5767 = vpow.pop %v5766
        %v5768 = vmul.f32 %v4892, 1.442695
        %v5769 = vpow.pop %v5768
        %v5770 = vmul.f32 %v4893, 1.442695
        %v5771 = vpow.pop %v5770
        %v5772 = vmul.f32 %v4894, 1.442695
        %v5773 = vpow.pop %v5772
        %v5774 = vmul.f32 %v4895, 1.442695
        %v5775 = vpow.pop %v5774
        %v5776 = vmul.f32 %v4896, 1.442695
        %v5777 = vpow.pop %v5776
        %v5778 = vmul.f32 %v4897, 1.442695
        %v5779 = vpow.pop %v5778
        %v5780 = vmul.f32 %v4898, 1.442695
        %v5781 = vpow.pop %v5780
        %v5782 = vmul.f32 %v4899, 1.442695
        %v5783 = vpow.pop %v5782
        %v5784 = vmul.f32 %v4900, 1.442695
        %v5785 = vpow.pop %v5784
        %v5786 = vmul.f32 %v4901, 1.442695
        %v5787 = vpow.pop %v5786
        %v5788 = vmul.f32 %v4902, 1.442695
        %v5789 = vpow.pop %v5788
        %v5790 = vmul.f32 %v4903, 1.442695
        %v5791 = vpow.pop %v5790
        %v5792 = vmul.f32 %v4904, 1.442695
        %v5793 = vpow.pop %v5792
        %v5794 = vmul.f32 %v4905, 1.442695
        %v5795 = vpow.pop %v5794
        %v5796 = vmul.f32 %v4906, 1.442695
        %v5797 = vpow.pop %v5796
        %v5798 = vmul.f32 %v4907, 1.442695
        %v5799 = vpow.pop %v5798
        %v5800 = vmul.f32 %v4908, 1.442695
        %v5801 = vpow.pop %v5800
        %v5802 = vmul.f32 %v4909, 1.442695
        %v5803 = vpow.pop %v5802
        %v5804 = vmul.f32 %v4910, 1.442695
        %v5805 = vpow.pop %v5804
        %v5806 = vmul.f32 %v4911, 1.442695
        %v5807 = vpow.pop %v5806
        %v5808 = vmul.f32 %v4912, 1.442695
        %v5809 = vpow.pop %v5808
        %v5810 = vmul.f32 %v4913, 1.442695
        %v5811 = vpow.pop %v5810
        %v5812 = vmul.f32 %v4914, 1.442695
        %v5813 = vpow.pop %v5812
        %v5814 = vmul.f32 %v4915, 1.442695
        %v5815 = vpow.pop %v5814
        %v5816 = vmul.f32 %v4916, 1.442695
        %v5817 = vpow.pop %v5816
        %v5818 = vmul.f32 %v4917, 1.442695
        %v5819 = vpow.pop %v5818
        %v5820 = vmul.f32 %v4918, 1.442695
        %v5821 = vpow.pop %v5820
        %v5822 = vmul.f32 %v4919, 1.442695
        %v5823 = vpow.pop %v5822
        %v5824 = vmul.f32 %v4920, 1.442695
        %v5825 = vpow.pop %v5824
        %v5826 = vmul.f32 %v4921, 1.442695
        %v5827 = vpow.pop %v5826
        %v5828 = vmul.f32 %v4922, 1.442695
        %v5829 = vpow.pop %v5828
        %v5830 = vmul.f32 %v4923, 1.442695
        %v5831 = vpow.pop %v5830
        %v5832 = vmul.f32 %v4924, 1.442695
        %v5833 = vpow.pop %v5832
        %v5834 = vmul.f32 %v4925, 1.442695
        %v5835 = vpow.pop %v5834
        %v5836 = vmul.f32 %v4926, 1.442695
        %v5837 = vpow.pop %v5836
        %v5838 = vmul.f32 %v4927, 1.442695
        %v5839 = vpow.pop %v5838
        %v5840 = vmul.f32 %v4928, 1.442695
        %v5841 = vpow.pop %v5840
        %v5842 = vmul.f32 %v4929, 1.442695
        %v5843 = vpow.pop %v5842
        %v5844 = vmul.f32 %v4930, 1.442695
        %v5845 = vpow.pop %v5844
        %v5846 = vmul.f32 %v4931, 1.442695
        %v5847 = vpow.pop %v5846
        %v5848 = vmul.f32 %v4932, 1.442695
        %v5849 = vpow.pop %v5848
        %v5850 = vmul.f32 %v4933, 1.442695
        %v5851 = vpow.pop %v5850
        %v5852 = vmul.f32 %v4934, 1.442695
        %v5853 = vpow.pop %v5852
        %v5854 = vmul.f32 %v4935, 1.442695
        %v5855 = vpow.pop %v5854
        %v5856 = vmul.f32 %v4936, 1.442695
        %v5857 = vpow.pop %v5856
        %v5858 = vmul.f32 %v4937, 1.442695
        %v5859 = vpow.pop %v5858
        %v5860 = vmul.f32 %v4938, 1.442695
        %v5861 = vpow.pop %v5860
        %v5862 = vmul.f32 %v4939, 1.442695
        %v5863 = vpow.pop %v5862
        %v5864 = vmul.f32 %v4940, 1.442695
        %v5865 = vpow.pop %v5864
        %v5866 = vmul.f32 %v4941, 1.442695
        %v5867 = vpow.pop %v5866
        %v5868 = vmul.f32 %v4942, 1.442695
        %v5869 = vpow.pop %v5868
        %v5870 = vmul.f32 %v4943, 1.442695
        %v5871 = vpow.pop %v5870
        %v5872 = vmul.f32 %v4944, 1.442695
        %v5873 = vpow.pop %v5872
        %v5874 = vmul.f32 %v4945, 1.442695
        %v5875 = vpow.pop %v5874
        %v5876 = vmul.f32 %v4946, 1.442695
        %v5877 = vpow.pop %v5876
        %v5878 = vmul.f32 %v4947, 1.442695
        %v5879 = vpow.pop %v5878
        %v5880 = vmul.f32 %v4948, 1.442695
        %v5881 = vpow.pop %v5880
        %v5882 = vmul.f32 %v4949, 1.442695
        %v5883 = vpow.pop %v5882
        %v5884 = vmul.f32 %v4950, 1.442695
        %v5885 = vpow.pop %v5884
        %v5886 = vmul.f32 %v4951, 1.442695
        %v5887 = vpow.pop %v5886
        %v5888 = vmul.f32 %v4952, 1.442695
        %v5889 = vpow.pop %v5888
        %v5890 = vmul.f32 %v4953, 1.442695
        %v5891 = vpow.pop %v5890
        %v5892 = vmul.f32 %v4954, 1.442695
        %v5893 = vpow.pop %v5892
        %v5894 = vmul.f32 %v4955, 1.442695
        %v5895 = vpow.pop %v5894
        %v5896 = vmul.f32 %v4956, 1.442695
        %v5897 = vpow.pop %v5896
        %v5898 = vmul.f32 %v4957, 1.442695
        %v5899 = vpow.pop %v5898
        %v5900 = vmul.f32 %v4958, 1.442695
        %v5901 = vpow.pop %v5900
        %v5902 = vmul.f32 %v4959, 1.442695
        %v5903 = vpow.pop %v5902
        %v5904 = vmul.f32 %v4960, 1.442695
        %v5905 = vpow.pop %v5904
        %v5906 = vmul.f32 %v4961, 1.442695
        %v5907 = vpow.pop %v5906
        %v5908 = vmul.f32 %v4962, 1.442695
        %v5909 = vpow.pop %v5908
        %v5910 = vmul.f32 %v4963, 1.442695
        %v5911 = vpow.pop %v5910
        %v5912 = vmul.f32 %v4964, 1.442695
        %v5913 = vpow.pop %v5912
        %v5914 = vmul.f32 %v4965, 1.442695
        %v5915 = vpow.pop %v5914
        %v5916 = vmul.f32 %v4966, 1.442695
        %v5917 = vpow.pop %v5916
        %v5918 = vmul.f32 %v4967, 1.442695
        %v5919 = vpow.pop %v5918
        %v5920 = vmul.f32 %v4968, 1.442695
        %v5921 = vpow.pop %v5920
        %v5922 = vmul.f32 %v4969, 1.442695
        %v5923 = vpow.pop %v5922
        %v5924 = vmul.f32 %v4970, 1.442695
        %v5925 = vpow.pop %v5924
        %v5926 = vmul.f32 %v4971, 1.442695
        %v5927 = vpow.pop %v5926
        %v5928 = vmul.f32 %v4972, 1.442695
        %v5929 = vpow.pop %v5928
        %v5930 = vmul.f32 %v4973, 1.442695
        %v5931 = vpow.pop %v5930
        %v5932 = vmul.f32 %v4974, 1.442695
        %v5933 = vpow.pop %v5932
        %v5934 = vmul.f32 %v4975, 1.442695
        %v5935 = vpow.pop %v5934
        %v5936 = vmul.f32 %v4976, 1.442695
        %v5937 = vpow.pop %v5936
        %v5938 = vmul.f32 %v4977, 1.442695
        %v5939 = vpow.pop %v5938
        %v5940 = vmul.f32 %v4978, 1.442695
        %v5941 = vpow.pop %v5940
        %v5942 = vmul.f32 %v4979, 1.442695
        %v5943 = vpow.pop %v5942
        %v5944 = vmul.f32 %v4980, 1.442695
        %v5945 = vpow.pop %v5944
        %v5946 = vmul.f32 %v4981, 1.442695
        %v5947 = vpow.pop %v5946
        %v5948 = vmul.f32 %v4982, 1.442695
        %v5949 = vpow.pop %v5948
        %v5950 = vmul.f32 %v4983, 1.442695
        %v5951 = vpow.pop %v5950
        %v5952 = vmul.f32 %v4984, 1.442695
        %v5953 = vpow.pop %v5952
        %v5954 = vmul.f32 %v4985, 1.442695
        %v5955 = vpow.pop %v5954
        %v5956 = vmul.f32 %v4986, 1.442695
        %v5957 = vpow.pop %v5956
        %v5958 = vmul.f32 %v4987, 1.442695
        %v5959 = vpow.pop %v5958
        %v5960 = vmul.f32 %v4988, 1.442695
        %v5961 = vpow.pop %v5960
        %v5962 = vmul.f32 %v4989, 1.442695
        %v5963 = vpow.pop %v5962
        %v5964 = vmul.f32 %v4990, 1.442695
        %v5965 = vpow.pop %v5964
        %v5966 = vmul.f32 %v4991, 1.442695
        %v5967 = vpow.pop %v5966
        %v5968 = vmul.f32 %v4992, 1.442695
        %v5969 = vpow.pop %v5968
        %v5970 = vmul.f32 %v4993, 1.442695
        %v5971 = vpow.pop %v5970
        %v5972 = vmul.f32 %v4994, 1.442695
        %v5973 = vpow.pop %v5972
        %v5974 = vmul.f32 %v4995, 1.442695
        %v5975 = vpow.pop %v5974
        %v5976 = vmul.f32 %v4996, 1.442695
        %v5977 = vpow.pop %v5976
        %v5978 = vmul.f32 %v4997, 1.442695
        %v5979 = vpow.pop %v5978
        %v5980 = vmul.f32 %v4998, 1.442695
        %v5981 = vpow.pop %v5980
        %v5982 = vmul.f32 %v4999, 1.442695
        %v5983 = vpow.pop %v5982
        %v5984 = vmul.f32 %v5000, 1.442695
        %v5985 = vpow.pop %v5984
        %v5986 = vmul.f32 %v5001, 1.442695
        %v5987 = vpow.pop %v5986
        %v5988 = vmul.f32 %v5002, 1.442695
        %v5989 = vpow.pop %v5988
        %v5990 = vmul.f32 %v5003, 1.442695
        %v5991 = vpow.pop %v5990
        %v5992 = vmul.f32 %v5004, 1.442695
        %v5993 = vpow.pop %v5992
        %v5994 = vmul.f32 %v5005, 1.442695
        %v5995 = vpow.pop %v5994
        %v5996 = vmul.f32 %v5006, 1.442695
        %v5997 = vpow.pop %v5996
        %v5998 = vmul.f32 %v5007, 1.442695
        %v5999 = vpow.pop %v5998
        %v6000 = vmul.f32 %v5008, 1.442695
        %v6001 = vpow.pop %v6000
        %v6002 = vmul.f32 %v5009, 1.442695
        %v6003 = vpow.pop %v6002
        %v6004 = vmul.f32 %v5010, 1.442695
        %v6005 = vpow.pop %v6004
        %v6006 = vmul.f32 %v5011, 1.442695
        %v6007 = vpow.pop %v6006
        %v6008 = vmul.f32 %v5012, 1.442695
        %v6009 = vpow.pop %v6008
        %v6010 = vmul.f32 %v5013, 1.442695
        %v6011 = vpow.pop %v6010
        %v6012 = vmul.f32 %v5014, 1.442695
        %v6013 = vpow.pop %v6012
        %v6014 = vmul.f32 %v5015, 1.442695
        %v6015 = vpow.pop %v6014
        %v6016 = vmul.f32 %v5016, 1.442695
        %v6017 = vpow.pop %v6016
        %v6018 = vmul.f32 %v5017, 1.442695
        %v6019 = vpow.pop %v6018
        %v6020 = vmul.f32 %v5018, 1.442695
        %v6021 = vpow.pop %v6020
        %v6022 = vmul.f32 %v5019, 1.442695
        %v6023 = vpow.pop %v6022
        %v6024 = vmul.f32 %v5020, 1.442695
        %v6025 = vpow.pop %v6024
        %v6026 = vmul.f32 %v5021, 1.442695
        %v6027 = vpow.pop %v6026
        %v6028 = vmul.f32 %v5022, 1.442695
        %v6029 = vpow.pop %v6028
        %v6030 = vmul.f32 %v5023, 1.442695
        %v6031 = vpow.pop %v6030
        %v6032 = vmul.f32 %v5024, 1.442695
        %v6033 = vpow.pop %v6032
        %v6034 = vmul.f32 %v5025, 1.442695
        %v6035 = vpow.pop %v6034
        %v6036 = vmul.f32 %v5026, 1.442695
        %v6037 = vpow.pop %v6036
        %v6038 = vmul.f32 %v5027, 1.442695
        %v6039 = vpow.pop %v6038
        %v6040 = vmul.f32 %v5028, 1.442695
        %v6041 = vpow.pop %v6040
        %v6042 = vmul.f32 %v5029, 1.442695
        %v6043 = vpow.pop %v6042
        %v6044 = vmul.f32 %v5030, 1.442695
        %v6045 = vpow.pop %v6044
        %v6046 = vmul.f32 %v5031, 1.442695
        %v6047 = vpow.pop %v6046
        %v6048 = vmul.f32 %v5032, 1.442695
        %v6049 = vpow.pop %v6048
        %v6050 = vmul.f32 %v5033, 1.442695
        %v6051 = vpow.pop %v6050
        %v6052 = vmul.f32 %v5034, 1.442695
        %v6053 = vpow.pop %v6052
        %v6054 = vmul.f32 %v5035, 1.442695
        %v6055 = vpow.pop %v6054
        %v6056 = vmul.f32 %v5036, 1.442695
        %v6057 = vpow.pop %v6056
        %v6058 = vmul.f32 %v5037, 1.442695
        %v6059 = vpow.pop %v6058
        %v6060 = vmul.f32 %v5038, 1.442695
        %v6061 = vpow.pop %v6060
        %v6062 = vmul.f32 %v5039, 1.442695
        %v6063 = vpow.pop %v6062
        %v6064 = vpack.c.bf16 %v5043, %v5041
        %v6065 = vpack.c.bf16 %v5047, %v5045
        %v6066 = vpack.c.bf16 %v5051, %v5049
        %v6067 = vpack.c.bf16 %v5055, %v5053
        %v6068 = vpack.c.bf16 %v5059, %v5057
        %v6069 = vpack.c.bf16 %v5063, %v5061
        %v6070 = vpack.c.bf16 %v5067, %v5065
        %v6071 = vpack.c.bf16 %v5071, %v5069
        %v6072 = vpack.c.bf16 %v5075, %v5073
        %v6073 = vpack.c.bf16 %v5079, %v5077
        %v6074 = vpack.c.bf16 %v5083, %v5081
        %v6075 = vpack.c.bf16 %v5087, %v5085
        %v6076 = vpack.c.bf16 %v5091, %v5089
        %v6077 = vpack.c.bf16 %v5095, %v5093
        %v6078 = vpack.c.bf16 %v5099, %v5097
        %v6079 = vpack.c.bf16 %v5103, %v5101
        %v6080 = vpack.c.bf16 %v5107, %v5105
        %v6081 = vpack.c.bf16 %v5111, %v5109
        %v6082 = vpack.c.bf16 %v5115, %v5113
        %v6083 = vpack.c.bf16 %v5119, %v5117
        %v6084 = vpack.c.bf16 %v5123, %v5121
        %v6085 = vpack.c.bf16 %v5127, %v5125
        %v6086 = vpack.c.bf16 %v5131, %v5129
        %v6087 = vpack.c.bf16 %v5135, %v5133
        %v6088 = vpack.c.bf16 %v5139, %v5137
        %v6089 = vpack.c.bf16 %v5143, %v5141
        %v6090 = vpack.c.bf16 %v5147, %v5145
        %v6091 = vpack.c.bf16 %v5151, %v5149
        %v6092 = vpack.c.bf16 %v5155, %v5153
        %v6093 = vpack.c.bf16 %v5159, %v5157
        %v6094 = vpack.c.bf16 %v5163, %v5161
        %v6095 = vpack.c.bf16 %v5167, %v5165
        %v6096 = vpack.c.bf16 %v5171, %v5169
        %v6097 = vpack.c.bf16 %v5175, %v5173
        %v6098 = vpack.c.bf16 %v5179, %v5177
        %v6099 = vpack.c.bf16 %v5183, %v5181
        %v6100 = vpack.c.bf16 %v5187, %v5185
        %v6101 = vpack.c.bf16 %v5191, %v5189
        %v6102 = vpack.c.bf16 %v5195, %v5193
        %v6103 = vpack.c.bf16 %v5199, %v5197
        %v6104 = vpack.c.bf16 %v5203, %v5201
        %v6105 = vpack.c.bf16 %v5207, %v5205
        %v6106 = vpack.c.bf16 %v5211, %v5209
        %v6107 = vpack.c.bf16 %v5215, %v5213
        %v6108 = vpack.c.bf16 %v5219, %v5217
        %v6109 = vpack.c.bf16 %v5223, %v5221
        %v6110 = vpack.c.bf16 %v5227, %v5225
        %v6111 = vpack.c.bf16 %v5231, %v5229
        %v6112 = vpack.c.bf16 %v5235, %v5233
        %v6113 = vpack.c.bf16 %v5239, %v5237
        %v6114 = vpack.c.bf16 %v5243, %v5241
        %v6115 = vpack.c.bf16 %v5247, %v5245
        %v6116 = vpack.c.bf16 %v5251, %v5249
        %v6117 = vpack.c.bf16 %v5255, %v5253
        %v6118 = vpack.c.bf16 %v5259, %v5257
        %v6119 = vpack.c.bf16 %v5263, %v5261
        %v6120 = vpack.c.bf16 %v5267, %v5265
        %v6121 = vpack.c.bf16 %v5271, %v5269
        %v6122 = vpack.c.bf16 %v5275, %v5273
        %v6123 = vpack.c.bf16 %v5279, %v5277
        %v6124 = vpack.c.bf16 %v5283, %v5281
        %v6125 = vpack.c.bf16 %v5287, %v5285
        %v6126 = vpack.c.bf16 %v5291, %v5289
        %v6127 = vpack.c.bf16 %v5295, %v5293
        %v6128 = vpack.c.bf16 %v5299, %v5297
        %v6129 = vpack.c.bf16 %v5303, %v5301
        %v6130 = vpack.c.bf16 %v5307, %v5305
        %v6131 = vpack.c.bf16 %v5311, %v5309
        %v6132 = vpack.c.bf16 %v5315, %v5313
        %v6133 = vpack.c.bf16 %v5319, %v5317
        %v6134 = vpack.c.bf16 %v5323, %v5321
        %v6135 = vpack.c.bf16 %v5327, %v5325
        %v6136 = vpack.c.bf16 %v5331, %v5329
        %v6137 = vpack.c.bf16 %v5335, %v5333
        %v6138 = vpack.c.bf16 %v5339, %v5337
        %v6139 = vpack.c.bf16 %v5343, %v5341
        %v6140 = vpack.c.bf16 %v5347, %v5345
        %v6141 = vpack.c.bf16 %v5351, %v5349
        %v6142 = vpack.c.bf16 %v5355, %v5353
        %v6143 = vpack.c.bf16 %v5359, %v5357
        %v6144 = vpack.c.bf16 %v5363, %v5361
        %v6145 = vpack.c.bf16 %v5367, %v5365
        %v6146 = vpack.c.bf16 %v5371, %v5369
        %v6147 = vpack.c.bf16 %v5375, %v5373
        %v6148 = vpack.c.bf16 %v5379, %v5377
        %v6149 = vpack.c.bf16 %v5383, %v5381
        %v6150 = vpack.c.bf16 %v5387, %v5385
        %v6151 = vpack.c.bf16 %v5391, %v5389
        %v6152 = vpack.c.bf16 %v5395, %v5393
        %v6153 = vpack.c.bf16 %v5399, %v5397
        %v6154 = vpack.c.bf16 %v5403, %v5401
        %v6155 = vpack.c.bf16 %v5407, %v5405
        %v6156 = vpack.c.bf16 %v5411, %v5409
        %v6157 = vpack.c.bf16 %v5415, %v5413
        %v6158 = vpack.c.bf16 %v5419, %v5417
        %v6159 = vpack.c.bf16 %v5423, %v5421
        %v6160 = vpack.c.bf16 %v5427, %v5425
        %v6161 = vpack.c.bf16 %v5431, %v5429
        %v6162 = vpack.c.bf16 %v5435, %v5433
        %v6163 = vpack.c.bf16 %v5439, %v5437
        %v6164 = vpack.c.bf16 %v5443, %v5441
        %v6165 = vpack.c.bf16 %v5447, %v5445
        %v6166 = vpack.c.bf16 %v5451, %v5449
        %v6167 = vpack.c.bf16 %v5455, %v5453
        %v6168 = vpack.c.bf16 %v5459, %v5457
        %v6169 = vpack.c.bf16 %v5463, %v5461
        %v6170 = vpack.c.bf16 %v5467, %v5465
        %v6171 = vpack.c.bf16 %v5471, %v5469
        %v6172 = vpack.c.bf16 %v5475, %v5473
        %v6173 = vpack.c.bf16 %v5479, %v5477
        %v6174 = vpack.c.bf16 %v5483, %v5481
        %v6175 = vpack.c.bf16 %v5487, %v5485
        %v6176 = vpack.c.bf16 %v5491, %v5489
        %v6177 = vpack.c.bf16 %v5495, %v5493
        %v6178 = vpack.c.bf16 %v5499, %v5497
        %v6179 = vpack.c.bf16 %v5503, %v5501
        %v6180 = vpack.c.bf16 %v5507, %v5505
        %v6181 = vpack.c.bf16 %v5511, %v5509
        %v6182 = vpack.c.bf16 %v5515, %v5513
        %v6183 = vpack.c.bf16 %v5519, %v5517
        %v6184 = vpack.c.bf16 %v5523, %v5521
        %v6185 = vpack.c.bf16 %v5527, %v5525
        %v6186 = vpack.c.bf16 %v5531, %v5529
        %v6187 = vpack.c.bf16 %v5535, %v5533
        %v6188 = vpack.c.bf16 %v5539, %v5537
        %v6189 = vpack.c.bf16 %v5543, %v5541
        %v6190 = vpack.c.bf16 %v5547, %v5545
        %v6191 = vpack.c.bf16 %v5551, %v5549
        %v6192 = vpack.c.bf16 %v5555, %v5553
        %v6193 = vpack.c.bf16 %v5559, %v5557
        %v6194 = vpack.c.bf16 %v5563, %v5561
        %v6195 = vpack.c.bf16 %v5567, %v5565
        %v6196 = vpack.c.bf16 %v5571, %v5569
        %v6197 = vpack.c.bf16 %v5575, %v5573
        %v6198 = vpack.c.bf16 %v5579, %v5577
        %v6199 = vpack.c.bf16 %v5583, %v5581
        %v6200 = vpack.c.bf16 %v5587, %v5585
        %v6201 = vpack.c.bf16 %v5591, %v5589
        %v6202 = vpack.c.bf16 %v5595, %v5593
        %v6203 = vpack.c.bf16 %v5599, %v5597
        %v6204 = vpack.c.bf16 %v5603, %v5601
        %v6205 = vpack.c.bf16 %v5607, %v5605
        %v6206 = vpack.c.bf16 %v5611, %v5609
        %v6207 = vpack.c.bf16 %v5615, %v5613
        %v6208 = vpack.c.bf16 %v5619, %v5617
        %v6209 = vpack.c.bf16 %v5623, %v5621
        %v6210 = vpack.c.bf16 %v5627, %v5625
        %v6211 = vpack.c.bf16 %v5631, %v5629
        %v6212 = vpack.c.bf16 %v5635, %v5633
        %v6213 = vpack.c.bf16 %v5639, %v5637
        %v6214 = vpack.c.bf16 %v5643, %v5641
        %v6215 = vpack.c.bf16 %v5647, %v5645
        %v6216 = vpack.c.bf16 %v5651, %v5649
        %v6217 = vpack.c.bf16 %v5655, %v5653
        %v6218 = vpack.c.bf16 %v5659, %v5657
        %v6219 = vpack.c.bf16 %v5663, %v5661
        %v6220 = vpack.c.bf16 %v5667, %v5665
        %v6221 = vpack.c.bf16 %v5671, %v5669
        %v6222 = vpack.c.bf16 %v5675, %v5673
        %v6223 = vpack.c.bf16 %v5679, %v5677
        %v6224 = vpack.c.bf16 %v5683, %v5681
        %v6225 = vpack.c.bf16 %v5687, %v5685
        %v6226 = vpack.c.bf16 %v5691, %v5689
        %v6227 = vpack.c.bf16 %v5695, %v5693
        %v6228 = vpack.c.bf16 %v5699, %v5697
        %v6229 = vpack.c.bf16 %v5703, %v5701
        %v6230 = vpack.c.bf16 %v5707, %v5705
        %v6231 = vpack.c.bf16 %v5711, %v5709
        %v6232 = vpack.c.bf16 %v5715, %v5713
        %v6233 = vpack.c.bf16 %v5719, %v5717
        %v6234 = vpack.c.bf16 %v5723, %v5721
        %v6235 = vpack.c.bf16 %v5727, %v5725
        %v6236 = vpack.c.bf16 %v5731, %v5729
        %v6237 = vpack.c.bf16 %v5735, %v5733
        %v6238 = vpack.c.bf16 %v5739, %v5737
        %v6239 = vpack.c.bf16 %v5743, %v5741
        %v6240 = vpack.c.bf16 %v5747, %v5745
        %v6241 = vpack.c.bf16 %v5751, %v5749
        %v6242 = vpack.c.bf16 %v5755, %v5753
        %v6243 = vpack.c.bf16 %v5759, %v5757
        %v6244 = vpack.c.bf16 %v5763, %v5761
        %v6245 = vpack.c.bf16 %v5767, %v5765
        %v6246 = vpack.c.bf16 %v5771, %v5769
        %v6247 = vpack.c.bf16 %v5775, %v5773
        %v6248 = vpack.c.bf16 %v5779, %v5777
        %v6249 = vpack.c.bf16 %v5783, %v5781
        %v6250 = vpack.c.bf16 %v5787, %v5785
        %v6251 = vpack.c.bf16 %v5791, %v5789
        %v6252 = vpack.c.bf16 %v5795, %v5793
        %v6253 = vpack.c.bf16 %v5799, %v5797
        %v6254 = vpack.c.bf16 %v5803, %v5801
        %v6255 = vpack.c.bf16 %v5807, %v5805
        %v6256 = vpack.c.bf16 %v5811, %v5809
        %v6257 = vpack.c.bf16 %v5815, %v5813
        %v6258 = vpack.c.bf16 %v5819, %v5817
        %v6259 = vpack.c.bf16 %v5823, %v5821
        %v6260 = vpack.c.bf16 %v5827, %v5825
        %v6261 = vpack.c.bf16 %v5831, %v5829
        %v6262 = vpack.c.bf16 %v5835, %v5833
        %v6263 = vpack.c.bf16 %v5839, %v5837
        %v6264 = vpack.c.bf16 %v5843, %v5841
        %v6265 = vpack.c.bf16 %v5847, %v5845
        %v6266 = vpack.c.bf16 %v5851, %v5849
        %v6267 = vpack.c.bf16 %v5855, %v5853
        %v6268 = vpack.c.bf16 %v5859, %v5857
        %v6269 = vpack.c.bf16 %v5863, %v5861
        %v6270 = vpack.c.bf16 %v5867, %v5865
        %v6271 = vpack.c.bf16 %v5871, %v5869
        %v6272 = vpack.c.bf16 %v5875, %v5873
        %v6273 = vpack.c.bf16 %v5879, %v5877
        %v6274 = vpack.c.bf16 %v5883, %v5881
        %v6275 = vpack.c.bf16 %v5887, %v5885
        %v6276 = vpack.c.bf16 %v5891, %v5889
        %v6277 = vpack.c.bf16 %v5895, %v5893
        %v6278 = vpack.c.bf16 %v5899, %v5897
        %v6279 = vpack.c.bf16 %v5903, %v5901
        %v6280 = vpack.c.bf16 %v5907, %v5905
        %v6281 = vpack.c.bf16 %v5911, %v5909
        %v6282 = vpack.c.bf16 %v5915, %v5913
        %v6283 = vpack.c.bf16 %v5919, %v5917
        %v6284 = vpack.c.bf16 %v5923, %v5921
        %v6285 = vpack.c.bf16 %v5927, %v5925
        %v6286 = vpack.c.bf16 %v5931, %v5929
        %v6287 = vpack.c.bf16 %v5935, %v5933
        %v6288 = vpack.c.bf16 %v5939, %v5937
        %v6289 = vpack.c.bf16 %v5943, %v5941
        %v6290 = vpack.c.bf16 %v5947, %v5945
        %v6291 = vpack.c.bf16 %v5951, %v5949
        %v6292 = vpack.c.bf16 %v5955, %v5953
        %v6293 = vpack.c.bf16 %v5959, %v5957
        %v6294 = vpack.c.bf16 %v5963, %v5961
        %v6295 = vpack.c.bf16 %v5967, %v5965
        %v6296 = vpack.c.bf16 %v5971, %v5969
        %v6297 = vpack.c.bf16 %v5975, %v5973
        %v6298 = vpack.c.bf16 %v5979, %v5977
        %v6299 = vpack.c.bf16 %v5983, %v5981
        %v6300 = vpack.c.bf16 %v5987, %v5985
        %v6301 = vpack.c.bf16 %v5991, %v5989
        %v6302 = vpack.c.bf16 %v5995, %v5993
        %v6303 = vpack.c.bf16 %v5999, %v5997
        %v6304 = vpack.c.bf16 %v6003, %v6001
        %v6305 = vpack.c.bf16 %v6007, %v6005
        %v6306 = vpack.c.bf16 %v6011, %v6009
        %v6307 = vpack.c.bf16 %v6015, %v6013
        %v6308 = vpack.c.bf16 %v6019, %v6017
        %v6309 = vpack.c.bf16 %v6023, %v6021
        %v6310 = vpack.c.bf16 %v6027, %v6025
        %v6311 = vpack.c.bf16 %v6031, %v6029
        %v6312 = vpack.c.bf16 %v6035, %v6033
        %v6313 = vpack.c.bf16 %v6039, %v6037
        %v6314 = vpack.c.bf16 %v6043, %v6041
        %v6315 = vpack.c.bf16 %v6047, %v6045
        %v6316 = vpack.c.bf16 %v6051, %v6049
        %v6317 = vpack.c.bf16 %v6055, %v6053
        %v6318 = vpack.c.bf16 %v6059, %v6057
        %v6319 = vpack.c.bf16 %v6063, %v6061
        %v6320 = vunpack.c.l.bf16 %v6064
        %v6321 = vunpack.c.h.bf16 %v6064
        %v6322 = vunpack.c.l.bf16 %v6065
        %v6323 = vunpack.c.h.bf16 %v6065
        %v6324 = vunpack.c.l.bf16 %v6066
        %v6325 = vunpack.c.h.bf16 %v6066
        %v6326 = vunpack.c.l.bf16 %v6067
        %v6327 = vunpack.c.h.bf16 %v6067
        %v6328 = vunpack.c.l.bf16 %v6068
        %v6329 = vunpack.c.h.bf16 %v6068
        %v6330 = vunpack.c.l.bf16 %v6069
        %v6331 = vunpack.c.h.bf16 %v6069
        %v6332 = vunpack.c.l.bf16 %v6070
        %v6333 = vunpack.c.h.bf16 %v6070
        %v6334 = vunpack.c.l.bf16 %v6071
        %v6335 = vunpack.c.h.bf16 %v6071
        %v6336 = vunpack.c.l.bf16 %v6072
        %v6337 = vunpack.c.h.bf16 %v6072
        %v6338 = vunpack.c.l.bf16 %v6073
        %v6339 = vunpack.c.h.bf16 %v6073
        %v6340 = vunpack.c.l.bf16 %v6074
        %v6341 = vunpack.c.h.bf16 %v6074
        %v6342 = vunpack.c.l.bf16 %v6075
        %v6343 = vunpack.c.h.bf16 %v6075
        %v6344 = vunpack.c.l.bf16 %v6076
        %v6345 = vunpack.c.h.bf16 %v6076
        %v6346 = vunpack.c.l.bf16 %v6077
        %v6347 = vunpack.c.h.bf16 %v6077
        %v6348 = vunpack.c.l.bf16 %v6078
        %v6349 = vunpack.c.h.bf16 %v6078
        %v6350 = vunpack.c.l.bf16 %v6079
        %v6351 = vunpack.c.h.bf16 %v6079
        %v6352 = vunpack.c.l.bf16 %v6080
        %v6353 = vunpack.c.h.bf16 %v6080
        %v6354 = vunpack.c.l.bf16 %v6081
        %v6355 = vunpack.c.h.bf16 %v6081
        %v6356 = vunpack.c.l.bf16 %v6082
        %v6357 = vunpack.c.h.bf16 %v6082
        %v6358 = vunpack.c.l.bf16 %v6083
        %v6359 = vunpack.c.h.bf16 %v6083
        %v6360 = vunpack.c.l.bf16 %v6084
        %v6361 = vunpack.c.h.bf16 %v6084
        %v6362 = vunpack.c.l.bf16 %v6085
        %v6363 = vunpack.c.h.bf16 %v6085
        %v6364 = vunpack.c.l.bf16 %v6086
        %v6365 = vunpack.c.h.bf16 %v6086
        %v6366 = vunpack.c.l.bf16 %v6087
        %v6367 = vunpack.c.h.bf16 %v6087
        %v6368 = vunpack.c.l.bf16 %v6088
        %v6369 = vunpack.c.h.bf16 %v6088
        %v6370 = vunpack.c.l.bf16 %v6089
        %v6371 = vunpack.c.h.bf16 %v6089
        %v6372 = vunpack.c.l.bf16 %v6090
        %v6373 = vunpack.c.h.bf16 %v6090
        %v6374 = vunpack.c.l.bf16 %v6091
        %v6375 = vunpack.c.h.bf16 %v6091
        %v6376 = vunpack.c.l.bf16 %v6092
        %v6377 = vunpack.c.h.bf16 %v6092
        %v6378 = vunpack.c.l.bf16 %v6093
        %v6379 = vunpack.c.h.bf16 %v6093
        %v6380 = vunpack.c.l.bf16 %v6094
        %v6381 = vunpack.c.h.bf16 %v6094
        %v6382 = vunpack.c.l.bf16 %v6095
        %v6383 = vunpack.c.h.bf16 %v6095
        %v6384 = vunpack.c.l.bf16 %v6096
        %v6385 = vunpack.c.h.bf16 %v6096
        %v6386 = vunpack.c.l.bf16 %v6097
        %v6387 = vunpack.c.h.bf16 %v6097
        %v6388 = vunpack.c.l.bf16 %v6098
        %v6389 = vunpack.c.h.bf16 %v6098
        %v6390 = vunpack.c.l.bf16 %v6099
        %v6391 = vunpack.c.h.bf16 %v6099
        %v6392 = vunpack.c.l.bf16 %v6100
        %v6393 = vunpack.c.h.bf16 %v6100
        %v6394 = vunpack.c.l.bf16 %v6101
        %v6395 = vunpack.c.h.bf16 %v6101
        %v6396 = vunpack.c.l.bf16 %v6102
        %v6397 = vunpack.c.h.bf16 %v6102
        %v6398 = vunpack.c.l.bf16 %v6103
        %v6399 = vunpack.c.h.bf16 %v6103
        %v6400 = vunpack.c.l.bf16 %v6104
        %v6401 = vunpack.c.h.bf16 %v6104
        %v6402 = vunpack.c.l.bf16 %v6105
        %v6403 = vunpack.c.h.bf16 %v6105
        %v6404 = vunpack.c.l.bf16 %v6106
        %v6405 = vunpack.c.h.bf16 %v6106
        %v6406 = vunpack.c.l.bf16 %v6107
        %v6407 = vunpack.c.h.bf16 %v6107
        %v6408 = vunpack.c.l.bf16 %v6108
        %v6409 = vunpack.c.h.bf16 %v6108
        %v6410 = vunpack.c.l.bf16 %v6109
        %v6411 = vunpack.c.h.bf16 %v6109
        %v6412 = vunpack.c.l.bf16 %v6110
        %v6413 = vunpack.c.h.bf16 %v6110
        %v6414 = vunpack.c.l.bf16 %v6111
        %v6415 = vunpack.c.h.bf16 %v6111
        %v6416 = vunpack.c.l.bf16 %v6112
        %v6417 = vunpack.c.h.bf16 %v6112
        %v6418 = vunpack.c.l.bf16 %v6113
        %v6419 = vunpack.c.h.bf16 %v6113
        %v6420 = vunpack.c.l.bf16 %v6114
        %v6421 = vunpack.c.h.bf16 %v6114
        %v6422 = vunpack.c.l.bf16 %v6115
        %v6423 = vunpack.c.h.bf16 %v6115
        %v6424 = vunpack.c.l.bf16 %v6116
        %v6425 = vunpack.c.h.bf16 %v6116
        %v6426 = vunpack.c.l.bf16 %v6117
        %v6427 = vunpack.c.h.bf16 %v6117
        %v6428 = vunpack.c.l.bf16 %v6118
        %v6429 = vunpack.c.h.bf16 %v6118
        %v6430 = vunpack.c.l.bf16 %v6119
        %v6431 = vunpack.c.h.bf16 %v6119
        %v6432 = vunpack.c.l.bf16 %v6120
        %v6433 = vunpack.c.h.bf16 %v6120
        %v6434 = vunpack.c.l.bf16 %v6121
        %v6435 = vunpack.c.h.bf16 %v6121
        %v6436 = vunpack.c.l.bf16 %v6122
        %v6437 = vunpack.c.h.bf16 %v6122
        %v6438 = vunpack.c.l.bf16 %v6123
        %v6439 = vunpack.c.h.bf16 %v6123
        %v6440 = vunpack.c.l.bf16 %v6124
        %v6441 = vunpack.c.h.bf16 %v6124
        %v6442 = vunpack.c.l.bf16 %v6125
        %v6443 = vunpack.c.h.bf16 %v6125
        %v6444 = vunpack.c.l.bf16 %v6126
        %v6445 = vunpack.c.h.bf16 %v6126
        %v6446 = vunpack.c.l.bf16 %v6127
        %v6447 = vunpack.c.h.bf16 %v6127
        %v6448 = vunpack.c.l.bf16 %v6128
        %v6449 = vunpack.c.h.bf16 %v6128
        %v6450 = vunpack.c.l.bf16 %v6129
        %v6451 = vunpack.c.h.bf16 %v6129
        %v6452 = vunpack.c.l.bf16 %v6130
        %v6453 = vunpack.c.h.bf16 %v6130
        %v6454 = vunpack.c.l.bf16 %v6131
        %v6455 = vunpack.c.h.bf16 %v6131
        %v6456 = vunpack.c.l.bf16 %v6132
        %v6457 = vunpack.c.h.bf16 %v6132
        %v6458 = vunpack.c.l.bf16 %v6133
        %v6459 = vunpack.c.h.bf16 %v6133
        %v6460 = vunpack.c.l.bf16 %v6134
        %v6461 = vunpack.c.h.bf16 %v6134
        %v6462 = vunpack.c.l.bf16 %v6135
        %v6463 = vunpack.c.h.bf16 %v6135
        %v6464 = vunpack.c.l.bf16 %v6136
        %v6465 = vunpack.c.h.bf16 %v6136
        %v6466 = vunpack.c.l.bf16 %v6137
        %v6467 = vunpack.c.h.bf16 %v6137
        %v6468 = vunpack.c.l.bf16 %v6138
        %v6469 = vunpack.c.h.bf16 %v6138
        %v6470 = vunpack.c.l.bf16 %v6139
        %v6471 = vunpack.c.h.bf16 %v6139
        %v6472 = vunpack.c.l.bf16 %v6140
        %v6473 = vunpack.c.h.bf16 %v6140
        %v6474 = vunpack.c.l.bf16 %v6141
        %v6475 = vunpack.c.h.bf16 %v6141
        %v6476 = vunpack.c.l.bf16 %v6142
        %v6477 = vunpack.c.h.bf16 %v6142
        %v6478 = vunpack.c.l.bf16 %v6143
        %v6479 = vunpack.c.h.bf16 %v6143
        %v6480 = vunpack.c.l.bf16 %v6144
        %v6481 = vunpack.c.h.bf16 %v6144
        %v6482 = vunpack.c.l.bf16 %v6145
        %v6483 = vunpack.c.h.bf16 %v6145
        %v6484 = vunpack.c.l.bf16 %v6146
        %v6485 = vunpack.c.h.bf16 %v6146
        %v6486 = vunpack.c.l.bf16 %v6147
        %v6487 = vunpack.c.h.bf16 %v6147
        %v6488 = vunpack.c.l.bf16 %v6148
        %v6489 = vunpack.c.h.bf16 %v6148
        %v6490 = vunpack.c.l.bf16 %v6149
        %v6491 = vunpack.c.h.bf16 %v6149
        %v6492 = vunpack.c.l.bf16 %v6150
        %v6493 = vunpack.c.h.bf16 %v6150
        %v6494 = vunpack.c.l.bf16 %v6151
        %v6495 = vunpack.c.h.bf16 %v6151
        %v6496 = vunpack.c.l.bf16 %v6152
        %v6497 = vunpack.c.h.bf16 %v6152
        %v6498 = vunpack.c.l.bf16 %v6153
        %v6499 = vunpack.c.h.bf16 %v6153
        %v6500 = vunpack.c.l.bf16 %v6154
        %v6501 = vunpack.c.h.bf16 %v6154
        %v6502 = vunpack.c.l.bf16 %v6155
        %v6503 = vunpack.c.h.bf16 %v6155
        %v6504 = vunpack.c.l.bf16 %v6156
        %v6505 = vunpack.c.h.bf16 %v6156
        %v6506 = vunpack.c.l.bf16 %v6157
        %v6507 = vunpack.c.h.bf16 %v6157
        %v6508 = vunpack.c.l.bf16 %v6158
        %v6509 = vunpack.c.h.bf16 %v6158
        %v6510 = vunpack.c.l.bf16 %v6159
        %v6511 = vunpack.c.h.bf16 %v6159
        %v6512 = vunpack.c.l.bf16 %v6160
        %v6513 = vunpack.c.h.bf16 %v6160
        %v6514 = vunpack.c.l.bf16 %v6161
        %v6515 = vunpack.c.h.bf16 %v6161
        %v6516 = vunpack.c.l.bf16 %v6162
        %v6517 = vunpack.c.h.bf16 %v6162
        %v6518 = vunpack.c.l.bf16 %v6163
        %v6519 = vunpack.c.h.bf16 %v6163
        %v6520 = vunpack.c.l.bf16 %v6164
        %v6521 = vunpack.c.h.bf16 %v6164
        %v6522 = vunpack.c.l.bf16 %v6165
        %v6523 = vunpack.c.h.bf16 %v6165
        %v6524 = vunpack.c.l.bf16 %v6166
        %v6525 = vunpack.c.h.bf16 %v6166
        %v6526 = vunpack.c.l.bf16 %v6167
        %v6527 = vunpack.c.h.bf16 %v6167
        %v6528 = vunpack.c.l.bf16 %v6168
        %v6529 = vunpack.c.h.bf16 %v6168
        %v6530 = vunpack.c.l.bf16 %v6169
        %v6531 = vunpack.c.h.bf16 %v6169
        %v6532 = vunpack.c.l.bf16 %v6170
        %v6533 = vunpack.c.h.bf16 %v6170
        %v6534 = vunpack.c.l.bf16 %v6171
        %v6535 = vunpack.c.h.bf16 %v6171
        %v6536 = vunpack.c.l.bf16 %v6172
        %v6537 = vunpack.c.h.bf16 %v6172
        %v6538 = vunpack.c.l.bf16 %v6173
        %v6539 = vunpack.c.h.bf16 %v6173
        %v6540 = vunpack.c.l.bf16 %v6174
        %v6541 = vunpack.c.h.bf16 %v6174
        %v6542 = vunpack.c.l.bf16 %v6175
        %v6543 = vunpack.c.h.bf16 %v6175
        %v6544 = vunpack.c.l.bf16 %v6176
        %v6545 = vunpack.c.h.bf16 %v6176
        %v6546 = vunpack.c.l.bf16 %v6177
        %v6547 = vunpack.c.h.bf16 %v6177
        %v6548 = vunpack.c.l.bf16 %v6178
        %v6549 = vunpack.c.h.bf16 %v6178
        %v6550 = vunpack.c.l.bf16 %v6179
        %v6551 = vunpack.c.h.bf16 %v6179
        %v6552 = vunpack.c.l.bf16 %v6180
        %v6553 = vunpack.c.h.bf16 %v6180
        %v6554 = vunpack.c.l.bf16 %v6181
        %v6555 = vunpack.c.h.bf16 %v6181
        %v6556 = vunpack.c.l.bf16 %v6182
        %v6557 = vunpack.c.h.bf16 %v6182
        %v6558 = vunpack.c.l.bf16 %v6183
        %v6559 = vunpack.c.h.bf16 %v6183
        %v6560 = vunpack.c.l.bf16 %v6184
        %v6561 = vunpack.c.h.bf16 %v6184
        %v6562 = vunpack.c.l.bf16 %v6185
        %v6563 = vunpack.c.h.bf16 %v6185
        %v6564 = vunpack.c.l.bf16 %v6186
        %v6565 = vunpack.c.h.bf16 %v6186
        %v6566 = vunpack.c.l.bf16 %v6187
        %v6567 = vunpack.c.h.bf16 %v6187
        %v6568 = vunpack.c.l.bf16 %v6188
        %v6569 = vunpack.c.h.bf16 %v6188
        %v6570 = vunpack.c.l.bf16 %v6189
        %v6571 = vunpack.c.h.bf16 %v6189
        %v6572 = vunpack.c.l.bf16 %v6190
        %v6573 = vunpack.c.h.bf16 %v6190
        %v6574 = vunpack.c.l.bf16 %v6191
        %v6575 = vunpack.c.h.bf16 %v6191
        %v6576 = vunpack.c.l.bf16 %v6192
        %v6577 = vunpack.c.h.bf16 %v6192
        %v6578 = vunpack.c.l.bf16 %v6193
        %v6579 = vunpack.c.h.bf16 %v6193
        %v6580 = vunpack.c.l.bf16 %v6194
        %v6581 = vunpack.c.h.bf16 %v6194
        %v6582 = vunpack.c.l.bf16 %v6195
        %v6583 = vunpack.c.h.bf16 %v6195
        %v6584 = vunpack.c.l.bf16 %v6196
        %v6585 = vunpack.c.h.bf16 %v6196
        %v6586 = vunpack.c.l.bf16 %v6197
        %v6587 = vunpack.c.h.bf16 %v6197
        %v6588 = vunpack.c.l.bf16 %v6198
        %v6589 = vunpack.c.h.bf16 %v6198
        %v6590 = vunpack.c.l.bf16 %v6199
        %v6591 = vunpack.c.h.bf16 %v6199
        %v6592 = vunpack.c.l.bf16 %v6200
        %v6593 = vunpack.c.h.bf16 %v6200
        %v6594 = vunpack.c.l.bf16 %v6201
        %v6595 = vunpack.c.h.bf16 %v6201
        %v6596 = vunpack.c.l.bf16 %v6202
        %v6597 = vunpack.c.h.bf16 %v6202
        %v6598 = vunpack.c.l.bf16 %v6203
        %v6599 = vunpack.c.h.bf16 %v6203
        %v6600 = vunpack.c.l.bf16 %v6204
        %v6601 = vunpack.c.h.bf16 %v6204
        %v6602 = vunpack.c.l.bf16 %v6205
        %v6603 = vunpack.c.h.bf16 %v6205
        %v6604 = vunpack.c.l.bf16 %v6206
        %v6605 = vunpack.c.h.bf16 %v6206
        %v6606 = vunpack.c.l.bf16 %v6207
        %v6607 = vunpack.c.h.bf16 %v6207
        %v6608 = vunpack.c.l.bf16 %v6208
        %v6609 = vunpack.c.h.bf16 %v6208
        %v6610 = vunpack.c.l.bf16 %v6209
        %v6611 = vunpack.c.h.bf16 %v6209
        %v6612 = vunpack.c.l.bf16 %v6210
        %v6613 = vunpack.c.h.bf16 %v6210
        %v6614 = vunpack.c.l.bf16 %v6211
        %v6615 = vunpack.c.h.bf16 %v6211
        %v6616 = vunpack.c.l.bf16 %v6212
        %v6617 = vunpack.c.h.bf16 %v6212
        %v6618 = vunpack.c.l.bf16 %v6213
        %v6619 = vunpack.c.h.bf16 %v6213
        %v6620 = vunpack.c.l.bf16 %v6214
        %v6621 = vunpack.c.h.bf16 %v6214
        %v6622 = vunpack.c.l.bf16 %v6215
        %v6623 = vunpack.c.h.bf16 %v6215
        %v6624 = vunpack.c.l.bf16 %v6216
        %v6625 = vunpack.c.h.bf16 %v6216
        %v6626 = vunpack.c.l.bf16 %v6217
        %v6627 = vunpack.c.h.bf16 %v6217
        %v6628 = vunpack.c.l.bf16 %v6218
        %v6629 = vunpack.c.h.bf16 %v6218
        %v6630 = vunpack.c.l.bf16 %v6219
        %v6631 = vunpack.c.h.bf16 %v6219
        %v6632 = vunpack.c.l.bf16 %v6220
        %v6633 = vunpack.c.h.bf16 %v6220
        %v6634 = vunpack.c.l.bf16 %v6221
        %v6635 = vunpack.c.h.bf16 %v6221
        %v6636 = vunpack.c.l.bf16 %v6222
        %v6637 = vunpack.c.h.bf16 %v6222
        %v6638 = vunpack.c.l.bf16 %v6223
        %v6639 = vunpack.c.h.bf16 %v6223
        %v6640 = vunpack.c.l.bf16 %v6224
        %v6641 = vunpack.c.h.bf16 %v6224
        %v6642 = vunpack.c.l.bf16 %v6225
        %v6643 = vunpack.c.h.bf16 %v6225
        %v6644 = vunpack.c.l.bf16 %v6226
        %v6645 = vunpack.c.h.bf16 %v6226
        %v6646 = vunpack.c.l.bf16 %v6227
        %v6647 = vunpack.c.h.bf16 %v6227
        %v6648 = vunpack.c.l.bf16 %v6228
        %v6649 = vunpack.c.h.bf16 %v6228
        %v6650 = vunpack.c.l.bf16 %v6229
        %v6651 = vunpack.c.h.bf16 %v6229
        %v6652 = vunpack.c.l.bf16 %v6230
        %v6653 = vunpack.c.h.bf16 %v6230
        %v6654 = vunpack.c.l.bf16 %v6231
        %v6655 = vunpack.c.h.bf16 %v6231
        %v6656 = vunpack.c.l.bf16 %v6232
        %v6657 = vunpack.c.h.bf16 %v6232
        %v6658 = vunpack.c.l.bf16 %v6233
        %v6659 = vunpack.c.h.bf16 %v6233
        %v6660 = vunpack.c.l.bf16 %v6234
        %v6661 = vunpack.c.h.bf16 %v6234
        %v6662 = vunpack.c.l.bf16 %v6235
        %v6663 = vunpack.c.h.bf16 %v6235
        %v6664 = vunpack.c.l.bf16 %v6236
        %v6665 = vunpack.c.h.bf16 %v6236
        %v6666 = vunpack.c.l.bf16 %v6237
        %v6667 = vunpack.c.h.bf16 %v6237
        %v6668 = vunpack.c.l.bf16 %v6238
        %v6669 = vunpack.c.h.bf16 %v6238
        %v6670 = vunpack.c.l.bf16 %v6239
        %v6671 = vunpack.c.h.bf16 %v6239
        %v6672 = vunpack.c.l.bf16 %v6240
        %v6673 = vunpack.c.h.bf16 %v6240
        %v6674 = vunpack.c.l.bf16 %v6241
        %v6675 = vunpack.c.h.bf16 %v6241
        %v6676 = vunpack.c.l.bf16 %v6242
        %v6677 = vunpack.c.h.bf16 %v6242
        %v6678 = vunpack.c.l.bf16 %v6243
        %v6679 = vunpack.c.h.bf16 %v6243
        %v6680 = vunpack.c.l.bf16 %v6244
        %v6681 = vunpack.c.h.bf16 %v6244
        %v6682 = vunpack.c.l.bf16 %v6245
        %v6683 = vunpack.c.h.bf16 %v6245
        %v6684 = vunpack.c.l.bf16 %v6246
        %v6685 = vunpack.c.h.bf16 %v6246
        %v6686 = vunpack.c.l.bf16 %v6247
        %v6687 = vunpack.c.h.bf16 %v6247
        %v6688 = vunpack.c.l.bf16 %v6248
        %v6689 = vunpack.c.h.bf16 %v6248
        %v6690 = vunpack.c.l.bf16 %v6249
        %v6691 = vunpack.c.h.bf16 %v6249
        %v6692 = vunpack.c.l.bf16 %v6250
        %v6693 = vunpack.c.h.bf16 %v6250
        %v6694 = vunpack.c.l.bf16 %v6251
        %v6695 = vunpack.c.h.bf16 %v6251
        %v6696 = vunpack.c.l.bf16 %v6252
        %v6697 = vunpack.c.h.bf16 %v6252
        %v6698 = vunpack.c.l.bf16 %v6253
        %v6699 = vunpack.c.h.bf16 %v6253
        %v6700 = vunpack.c.l.bf16 %v6254
        %v6701 = vunpack.c.h.bf16 %v6254
        %v6702 = vunpack.c.l.bf16 %v6255
        %v6703 = vunpack.c.h.bf16 %v6255
        %v6704 = vunpack.c.l.bf16 %v6256
        %v6705 = vunpack.c.h.bf16 %v6256
        %v6706 = vunpack.c.l.bf16 %v6257
        %v6707 = vunpack.c.h.bf16 %v6257
        %v6708 = vunpack.c.l.bf16 %v6258
        %v6709 = vunpack.c.h.bf16 %v6258
        %v6710 = vunpack.c.l.bf16 %v6259
        %v6711 = vunpack.c.h.bf16 %v6259
        %v6712 = vunpack.c.l.bf16 %v6260
        %v6713 = vunpack.c.h.bf16 %v6260
        %v6714 = vunpack.c.l.bf16 %v6261
        %v6715 = vunpack.c.h.bf16 %v6261
        %v6716 = vunpack.c.l.bf16 %v6262
        %v6717 = vunpack.c.h.bf16 %v6262
        %v6718 = vunpack.c.l.bf16 %v6263
        %v6719 = vunpack.c.h.bf16 %v6263
        %v6720 = vunpack.c.l.bf16 %v6264
        %v6721 = vunpack.c.h.bf16 %v6264
        %v6722 = vunpack.c.l.bf16 %v6265
        %v6723 = vunpack.c.h.bf16 %v6265
        %v6724 = vunpack.c.l.bf16 %v6266
        %v6725 = vunpack.c.h.bf16 %v6266
        %v6726 = vunpack.c.l.bf16 %v6267
        %v6727 = vunpack.c.h.bf16 %v6267
        %v6728 = vunpack.c.l.bf16 %v6268
        %v6729 = vunpack.c.h.bf16 %v6268
        %v6730 = vunpack.c.l.bf16 %v6269
        %v6731 = vunpack.c.h.bf16 %v6269
        %v6732 = vunpack.c.l.bf16 %v6270
        %v6733 = vunpack.c.h.bf16 %v6270
        %v6734 = vunpack.c.l.bf16 %v6271
        %v6735 = vunpack.c.h.bf16 %v6271
        %v6736 = vunpack.c.l.bf16 %v6272
        %v6737 = vunpack.c.h.bf16 %v6272
        %v6738 = vunpack.c.l.bf16 %v6273
        %v6739 = vunpack.c.h.bf16 %v6273
        %v6740 = vunpack.c.l.bf16 %v6274
        %v6741 = vunpack.c.h.bf16 %v6274
        %v6742 = vunpack.c.l.bf16 %v6275
        %v6743 = vunpack.c.h.bf16 %v6275
        %v6744 = vunpack.c.l.bf16 %v6276
        %v6745 = vunpack.c.h.bf16 %v6276
        %v6746 = vunpack.c.l.bf16 %v6277
        %v6747 = vunpack.c.h.bf16 %v6277
        %v6748 = vunpack.c.l.bf16 %v6278
        %v6749 = vunpack.c.h.bf16 %v6278
        %v6750 = vunpack.c.l.bf16 %v6279
        %v6751 = vunpack.c.h.bf16 %v6279
        %v6752 = vunpack.c.l.bf16 %v6280
        %v6753 = vunpack.c.h.bf16 %v6280
        %v6754 = vunpack.c.l.bf16 %v6281
        %v6755 = vunpack.c.h.bf16 %v6281
        %v6756 = vunpack.c.l.bf16 %v6282
        %v6757 = vunpack.c.h.bf16 %v6282
        %v6758 = vunpack.c.l.bf16 %v6283
        %v6759 = vunpack.c.h.bf16 %v6283
        %v6760 = vunpack.c.l.bf16 %v6284
        %v6761 = vunpack.c.h.bf16 %v6284
        %v6762 = vunpack.c.l.bf16 %v6285
        %v6763 = vunpack.c.h.bf16 %v6285
        %v6764 = vunpack.c.l.bf16 %v6286
        %v6765 = vunpack.c.h.bf16 %v6286
        %v6766 = vunpack.c.l.bf16 %v6287
        %v6767 = vunpack.c.h.bf16 %v6287
        %v6768 = vunpack.c.l.bf16 %v6288
        %v6769 = vunpack.c.h.bf16 %v6288
        %v6770 = vunpack.c.l.bf16 %v6289
        %v6771 = vunpack.c.h.bf16 %v6289
        %v6772 = vunpack.c.l.bf16 %v6290
        %v6773 = vunpack.c.h.bf16 %v6290
        %v6774 = vunpack.c.l.bf16 %v6291
        %v6775 = vunpack.c.h.bf16 %v6291
        %v6776 = vunpack.c.l.bf16 %v6292
        %v6777 = vunpack.c.h.bf16 %v6292
        %v6778 = vunpack.c.l.bf16 %v6293
        %v6779 = vunpack.c.h.bf16 %v6293
        %v6780 = vunpack.c.l.bf16 %v6294
        %v6781 = vunpack.c.h.bf16 %v6294
        %v6782 = vunpack.c.l.bf16 %v6295
        %v6783 = vunpack.c.h.bf16 %v6295
        %v6784 = vunpack.c.l.bf16 %v6296
        %v6785 = vunpack.c.h.bf16 %v6296
        %v6786 = vunpack.c.l.bf16 %v6297
        %v6787 = vunpack.c.h.bf16 %v6297
        %v6788 = vunpack.c.l.bf16 %v6298
        %v6789 = vunpack.c.h.bf16 %v6298
        %v6790 = vunpack.c.l.bf16 %v6299
        %v6791 = vunpack.c.h.bf16 %v6299
        %v6792 = vunpack.c.l.bf16 %v6300
        %v6793 = vunpack.c.h.bf16 %v6300
        %v6794 = vunpack.c.l.bf16 %v6301
        %v6795 = vunpack.c.h.bf16 %v6301
        %v6796 = vunpack.c.l.bf16 %v6302
        %v6797 = vunpack.c.h.bf16 %v6302
        %v6798 = vunpack.c.l.bf16 %v6303
        %v6799 = vunpack.c.h.bf16 %v6303
        %v6800 = vunpack.c.l.bf16 %v6304
        %v6801 = vunpack.c.h.bf16 %v6304
        %v6802 = vunpack.c.l.bf16 %v6305
        %v6803 = vunpack.c.h.bf16 %v6305
        %v6804 = vunpack.c.l.bf16 %v6306
        %v6805 = vunpack.c.h.bf16 %v6306
        %v6806 = vunpack.c.l.bf16 %v6307
        %v6807 = vunpack.c.h.bf16 %v6307
        %v6808 = vunpack.c.l.bf16 %v6308
        %v6809 = vunpack.c.h.bf16 %v6308
        %v6810 = vunpack.c.l.bf16 %v6309
        %v6811 = vunpack.c.h.bf16 %v6309
        %v6812 = vunpack.c.l.bf16 %v6310
        %v6813 = vunpack.c.h.bf16 %v6310
        %v6814 = vunpack.c.l.bf16 %v6311
        %v6815 = vunpack.c.h.bf16 %v6311
        %v6816 = vunpack.c.l.bf16 %v6312
        %v6817 = vunpack.c.h.bf16 %v6312
        %v6818 = vunpack.c.l.bf16 %v6313
        %v6819 = vunpack.c.h.bf16 %v6313
        %v6820 = vunpack.c.l.bf16 %v6314
        %v6821 = vunpack.c.h.bf16 %v6314
        %v6822 = vunpack.c.l.bf16 %v6315
        %v6823 = vunpack.c.h.bf16 %v6315
        %v6824 = vunpack.c.l.bf16 %v6316
        %v6825 = vunpack.c.h.bf16 %v6316
        %v6826 = vunpack.c.l.bf16 %v6317
        %v6827 = vunpack.c.h.bf16 %v6317
        %v6828 = vunpack.c.l.bf16 %v6318
        %v6829 = vunpack.c.h.bf16 %v6318
        %v6830 = vunpack.c.l.bf16 %v6319
        %v6831 = vunpack.c.h.bf16 %v6319
        %v6832 = vadd.f32 %v6320, %v6321
        %6833 = vadd.xlane.f32.xlu0 %v6832
        %v6834 = vpop.xlane.xlu0 %6833
        %v6835 = vadd.f32 %v6322, %v6323
        %6836 = vadd.xlane.f32.xlu0 %v6835
        %v6837 = vpop.xlane.xlu0 %6836
        %v6838 = vadd.f32 %v6324, %v6325
        %6839 = vadd.xlane.f32.xlu0 %v6838
        %v6840 = vpop.xlane.xlu0 %6839
        %v6841 = vadd.f32 %v6326, %v6327
        %6842 = vadd.xlane.f32.xlu0 %v6841
        %v6843 = vpop.xlane.xlu0 %6842
        %v6844 = vadd.f32 %v6328, %v6329
        %6845 = vadd.xlane.f32.xlu0 %v6844
        %v6846 = vpop.xlane.xlu0 %6845
        %v6847 = vadd.f32 %v6330, %v6331
        %6848 = vadd.xlane.f32.xlu0 %v6847
        %v6849 = vpop.xlane.xlu0 %6848
        %v6850 = vadd.f32 %v6332, %v6333
        %6851 = vadd.xlane.f32.xlu0 %v6850
        %v6852 = vpop.xlane.xlu0 %6851
        %v6853 = vadd.f32 %v6334, %v6335
        %6854 = vadd.xlane.f32.xlu0 %v6853
        %v6855 = vpop.xlane.xlu0 %6854
        %v6856 = vadd.f32 %v6336, %v6337
        %6857 = vadd.xlane.f32.xlu0 %v6856
        %v6858 = vpop.xlane.xlu0 %6857
        %v6859 = vadd.f32 %v6338, %v6339
        %6860 = vadd.xlane.f32.xlu0 %v6859
        %v6861 = vpop.xlane.xlu0 %6860
        %v6862 = vadd.f32 %v6340, %v6341
        %6863 = vadd.xlane.f32.xlu0 %v6862
        %v6864 = vpop.xlane.xlu0 %6863
        %v6865 = vadd.f32 %v6342, %v6343
        %6866 = vadd.xlane.f32.xlu0 %v6865
        %v6867 = vpop.xlane.xlu0 %6866
        %v6868 = vadd.f32 %v6344, %v6345
        %6869 = vadd.xlane.f32.xlu0 %v6868
        %v6870 = vpop.xlane.xlu0 %6869
        %v6871 = vadd.f32 %v6346, %v6347
        %6872 = vadd.xlane.f32.xlu0 %v6871
        %v6873 = vpop.xlane.xlu0 %6872
        %v6874 = vadd.f32 %v6348, %v6349
        %6875 = vadd.xlane.f32.xlu0 %v6874
        %v6876 = vpop.xlane.xlu0 %6875
        %v6877 = vadd.f32 %v6350, %v6351
        %6878 = vadd.xlane.f32.xlu0 %v6877
        %v6879 = vpop.xlane.xlu0 %6878
        %v6880 = vadd.f32 %v6352, %v6353
        %6881 = vadd.xlane.f32.xlu0 %v6880
        %v6882 = vpop.xlane.xlu0 %6881
        %v6883 = vadd.f32 %v6354, %v6355
        %6884 = vadd.xlane.f32.xlu0 %v6883
        %v6885 = vpop.xlane.xlu0 %6884
        %v6886 = vadd.f32 %v6356, %v6357
        %6887 = vadd.xlane.f32.xlu0 %v6886
        %v6888 = vpop.xlane.xlu0 %6887
        %v6889 = vadd.f32 %v6358, %v6359
        %6890 = vadd.xlane.f32.xlu0 %v6889
        %v6891 = vpop.xlane.xlu0 %6890
        %v6892 = vadd.f32 %v6360, %v6361
        %6893 = vadd.xlane.f32.xlu0 %v6892
        %v6894 = vpop.xlane.xlu0 %6893
        %v6895 = vadd.f32 %v6362, %v6363
        %6896 = vadd.xlane.f32.xlu0 %v6895
        %v6897 = vpop.xlane.xlu0 %6896
        %v6898 = vadd.f32 %v6364, %v6365
        %6899 = vadd.xlane.f32.xlu0 %v6898
        %v6900 = vpop.xlane.xlu0 %6899
        %v6901 = vadd.f32 %v6366, %v6367
        %6902 = vadd.xlane.f32.xlu0 %v6901
        %v6903 = vpop.xlane.xlu0 %6902
        %v6904 = vadd.f32 %v6368, %v6369
        %6905 = vadd.xlane.f32.xlu0 %v6904
        %v6906 = vpop.xlane.xlu0 %6905
        %v6907 = vadd.f32 %v6370, %v6371
        %6908 = vadd.xlane.f32.xlu0 %v6907
        %v6909 = vpop.xlane.xlu0 %6908
        %v6910 = vadd.f32 %v6372, %v6373
        %6911 = vadd.xlane.f32.xlu0 %v6910
        %v6912 = vpop.xlane.xlu0 %6911
        %v6913 = vadd.f32 %v6374, %v6375
        %6914 = vadd.xlane.f32.xlu0 %v6913
        %v6915 = vpop.xlane.xlu0 %6914
        %v6916 = vadd.f32 %v6376, %v6377
        %6917 = vadd.xlane.f32.xlu0 %v6916
        %v6918 = vpop.xlane.xlu0 %6917
        %v6919 = vadd.f32 %v6378, %v6379
        %6920 = vadd.xlane.f32.xlu0 %v6919
        %v6921 = vpop.xlane.xlu0 %6920
        %v6922 = vadd.f32 %v6380, %v6381
        %6923 = vadd.xlane.f32.xlu0 %v6922
        %v6924 = vpop.xlane.xlu0 %6923
        %v6925 = vadd.f32 %v6382, %v6383
        %6926 = vadd.xlane.f32.xlu0 %v6925
        %v6927 = vpop.xlane.xlu0 %6926
        %v6928 = vadd.f32 %v6384, %v6385
        %6929 = vadd.xlane.f32.xlu0 %v6928
        %v6930 = vpop.xlane.xlu0 %6929
        %v6931 = vadd.f32 %v6386, %v6387
        %6932 = vadd.xlane.f32.xlu0 %v6931
        %v6933 = vpop.xlane.xlu0 %6932
        %v6934 = vadd.f32 %v6388, %v6389
        %6935 = vadd.xlane.f32.xlu0 %v6934
        %v6936 = vpop.xlane.xlu0 %6935
        %v6937 = vadd.f32 %v6390, %v6391
        %6938 = vadd.xlane.f32.xlu0 %v6937
        %v6939 = vpop.xlane.xlu0 %6938
        %v6940 = vadd.f32 %v6392, %v6393
        %6941 = vadd.xlane.f32.xlu0 %v6940
        %v6942 = vpop.xlane.xlu0 %6941
        %v6943 = vadd.f32 %v6394, %v6395
        %6944 = vadd.xlane.f32.xlu0 %v6943
        %v6945 = vpop.xlane.xlu0 %6944
        %v6946 = vadd.f32 %v6396, %v6397
        %6947 = vadd.xlane.f32.xlu0 %v6946
        %v6948 = vpop.xlane.xlu0 %6947
        %v6949 = vadd.f32 %v6398, %v6399
        %6950 = vadd.xlane.f32.xlu0 %v6949
        %v6951 = vpop.xlane.xlu0 %6950
        %v6952 = vadd.f32 %v6400, %v6401
        %6953 = vadd.xlane.f32.xlu0 %v6952
        %v6954 = vpop.xlane.xlu0 %6953
        %v6955 = vadd.f32 %v6402, %v6403
        %6956 = vadd.xlane.f32.xlu0 %v6955
        %v6957 = vpop.xlane.xlu0 %6956
        %v6958 = vadd.f32 %v6404, %v6405
        %6959 = vadd.xlane.f32.xlu0 %v6958
        %v6960 = vpop.xlane.xlu0 %6959
        %v6961 = vadd.f32 %v6406, %v6407
        %6962 = vadd.xlane.f32.xlu0 %v6961
        %v6963 = vpop.xlane.xlu0 %6962
        %v6964 = vadd.f32 %v6408, %v6409
        %6965 = vadd.xlane.f32.xlu0 %v6964
        %v6966 = vpop.xlane.xlu0 %6965
        %v6967 = vadd.f32 %v6410, %v6411
        %6968 = vadd.xlane.f32.xlu0 %v6967
        %v6969 = vpop.xlane.xlu0 %6968
        %v6970 = vadd.f32 %v6412, %v6413
        %6971 = vadd.xlane.f32.xlu0 %v6970
        %v6972 = vpop.xlane.xlu0 %6971
        %v6973 = vadd.f32 %v6414, %v6415
        %6974 = vadd.xlane.f32.xlu0 %v6973
        %v6975 = vpop.xlane.xlu0 %6974
        %v6976 = vadd.f32 %v6416, %v6417
        %6977 = vadd.xlane.f32.xlu0 %v6976
        %v6978 = vpop.xlane.xlu0 %6977
        %v6979 = vadd.f32 %v6418, %v6419
        %6980 = vadd.xlane.f32.xlu0 %v6979
        %v6981 = vpop.xlane.xlu0 %6980
        %v6982 = vadd.f32 %v6420, %v6421
        %6983 = vadd.xlane.f32.xlu0 %v6982
        %v6984 = vpop.xlane.xlu0 %6983
        %v6985 = vadd.f32 %v6422, %v6423
        %6986 = vadd.xlane.f32.xlu0 %v6985
        %v6987 = vpop.xlane.xlu0 %6986
        %v6988 = vadd.f32 %v6424, %v6425
        %6989 = vadd.xlane.f32.xlu0 %v6988
        %v6990 = vpop.xlane.xlu0 %6989
        %v6991 = vadd.f32 %v6426, %v6427
        %6992 = vadd.xlane.f32.xlu0 %v6991
        %v6993 = vpop.xlane.xlu0 %6992
        %v6994 = vadd.f32 %v6428, %v6429
        %6995 = vadd.xlane.f32.xlu0 %v6994
        %v6996 = vpop.xlane.xlu0 %6995
        %v6997 = vadd.f32 %v6430, %v6431
        %6998 = vadd.xlane.f32.xlu0 %v6997
        %v6999 = vpop.xlane.xlu0 %6998
        %v7000 = vadd.f32 %v6432, %v6433
        %7001 = vadd.xlane.f32.xlu0 %v7000
        %v7002 = vpop.xlane.xlu0 %7001
        %v7003 = vadd.f32 %v6434, %v6435
        %7004 = vadd.xlane.f32.xlu0 %v7003
        %v7005 = vpop.xlane.xlu0 %7004
        %v7006 = vadd.f32 %v6436, %v6437
        %7007 = vadd.xlane.f32.xlu0 %v7006
        %v7008 = vpop.xlane.xlu0 %7007
        %v7009 = vadd.f32 %v6438, %v6439
        %7010 = vadd.xlane.f32.xlu0 %v7009
        %v7011 = vpop.xlane.xlu0 %7010
        %v7012 = vadd.f32 %v6440, %v6441
        %7013 = vadd.xlane.f32.xlu0 %v7012
        %v7014 = vpop.xlane.xlu0 %7013
        %v7015 = vadd.f32 %v6442, %v6443
        %7016 = vadd.xlane.f32.xlu0 %v7015
        %v7017 = vpop.xlane.xlu0 %7016
        %v7018 = vadd.f32 %v6444, %v6445
        %7019 = vadd.xlane.f32.xlu0 %v7018
        %v7020 = vpop.xlane.xlu0 %7019
        %v7021 = vadd.f32 %v6446, %v6447
        %7022 = vadd.xlane.f32.xlu0 %v7021
        %v7023 = vpop.xlane.xlu0 %7022
        %v7024 = vadd.f32 %v6448, %v6449
        %7025 = vadd.xlane.f32.xlu0 %v7024
        %v7026 = vpop.xlane.xlu0 %7025
        %v7027 = vadd.f32 %v6450, %v6451
        %7028 = vadd.xlane.f32.xlu0 %v7027
        %v7029 = vpop.xlane.xlu0 %7028
        %v7030 = vadd.f32 %v6452, %v6453
        %7031 = vadd.xlane.f32.xlu0 %v7030
        %v7032 = vpop.xlane.xlu0 %7031
        %v7033 = vadd.f32 %v6454, %v6455
        %7034 = vadd.xlane.f32.xlu0 %v7033
        %v7035 = vpop.xlane.xlu0 %7034
        %v7036 = vadd.f32 %v6456, %v6457
        %7037 = vadd.xlane.f32.xlu0 %v7036
        %v7038 = vpop.xlane.xlu0 %7037
        %v7039 = vadd.f32 %v6458, %v6459
        %7040 = vadd.xlane.f32.xlu0 %v7039
        %v7041 = vpop.xlane.xlu0 %7040
        %v7042 = vadd.f32 %v6460, %v6461
        %7043 = vadd.xlane.f32.xlu0 %v7042
        %v7044 = vpop.xlane.xlu0 %7043
        %v7045 = vadd.f32 %v6462, %v6463
        %7046 = vadd.xlane.f32.xlu0 %v7045
        %v7047 = vpop.xlane.xlu0 %7046
        %v7048 = vadd.f32 %v6464, %v6465
        %7049 = vadd.xlane.f32.xlu0 %v7048
        %v7050 = vpop.xlane.xlu0 %7049
        %v7051 = vadd.f32 %v6466, %v6467
        %7052 = vadd.xlane.f32.xlu0 %v7051
        %v7053 = vpop.xlane.xlu0 %7052
        %v7054 = vadd.f32 %v6468, %v6469
        %7055 = vadd.xlane.f32.xlu0 %v7054
        %v7056 = vpop.xlane.xlu0 %7055
        %v7057 = vadd.f32 %v6470, %v6471
        %7058 = vadd.xlane.f32.xlu0 %v7057
        %v7059 = vpop.xlane.xlu0 %7058
        %v7060 = vadd.f32 %v6472, %v6473
        %7061 = vadd.xlane.f32.xlu0 %v7060
        %v7062 = vpop.xlane.xlu0 %7061
        %v7063 = vadd.f32 %v6474, %v6475
        %7064 = vadd.xlane.f32.xlu0 %v7063
        %v7065 = vpop.xlane.xlu0 %7064
        %v7066 = vadd.f32 %v6476, %v6477
        %7067 = vadd.xlane.f32.xlu0 %v7066
        %v7068 = vpop.xlane.xlu0 %7067
        %v7069 = vadd.f32 %v6478, %v6479
        %7070 = vadd.xlane.f32.xlu0 %v7069
        %v7071 = vpop.xlane.xlu0 %7070
        %v7072 = vadd.f32 %v6480, %v6481
        %7073 = vadd.xlane.f32.xlu0 %v7072
        %v7074 = vpop.xlane.xlu0 %7073
        %v7075 = vadd.f32 %v6482, %v6483
        %7076 = vadd.xlane.f32.xlu0 %v7075
        %v7077 = vpop.xlane.xlu0 %7076
        %v7078 = vadd.f32 %v6484, %v6485
        %7079 = vadd.xlane.f32.xlu0 %v7078
        %v7080 = vpop.xlane.xlu0 %7079
        %v7081 = vadd.f32 %v6486, %v6487
        %7082 = vadd.xlane.f32.xlu0 %v7081
        %v7083 = vpop.xlane.xlu0 %7082
        %v7084 = vadd.f32 %v6488, %v6489
        %7085 = vadd.xlane.f32.xlu0 %v7084
        %v7086 = vpop.xlane.xlu0 %7085
        %v7087 = vadd.f32 %v6490, %v6491
        %7088 = vadd.xlane.f32.xlu0 %v7087
        %v7089 = vpop.xlane.xlu0 %7088
        %v7090 = vadd.f32 %v6492, %v6493
        %7091 = vadd.xlane.f32.xlu0 %v7090
        %v7092 = vpop.xlane.xlu0 %7091
        %v7093 = vadd.f32 %v6494, %v6495
        %7094 = vadd.xlane.f32.xlu0 %v7093
        %v7095 = vpop.xlane.xlu0 %7094
        %v7096 = vadd.f32 %v6496, %v6497
        %7097 = vadd.xlane.f32.xlu0 %v7096
        %v7098 = vpop.xlane.xlu0 %7097
        %v7099 = vadd.f32 %v6498, %v6499
        %7100 = vadd.xlane.f32.xlu0 %v7099
        %v7101 = vpop.xlane.xlu0 %7100
        %v7102 = vadd.f32 %v6500, %v6501
        %7103 = vadd.xlane.f32.xlu0 %v7102
        %v7104 = vpop.xlane.xlu0 %7103
        %v7105 = vadd.f32 %v6502, %v6503
        %7106 = vadd.xlane.f32.xlu0 %v7105
        %v7107 = vpop.xlane.xlu0 %7106
        %v7108 = vadd.f32 %v6504, %v6505
        %7109 = vadd.xlane.f32.xlu0 %v7108
        %v7110 = vpop.xlane.xlu0 %7109
        %v7111 = vadd.f32 %v6506, %v6507
        %7112 = vadd.xlane.f32.xlu0 %v7111
        %v7113 = vpop.xlane.xlu0 %7112
        %v7114 = vadd.f32 %v6508, %v6509
        %7115 = vadd.xlane.f32.xlu0 %v7114
        %v7116 = vpop.xlane.xlu0 %7115
        %v7117 = vadd.f32 %v6510, %v6511
        %7118 = vadd.xlane.f32.xlu0 %v7117
        %v7119 = vpop.xlane.xlu0 %7118
        %v7120 = vadd.f32 %v6512, %v6513
        %7121 = vadd.xlane.f32.xlu0 %v7120
        %v7122 = vpop.xlane.xlu0 %7121
        %v7123 = vadd.f32 %v6514, %v6515
        %7124 = vadd.xlane.f32.xlu0 %v7123
        %v7125 = vpop.xlane.xlu0 %7124
        %v7126 = vadd.f32 %v6516, %v6517
        %7127 = vadd.xlane.f32.xlu0 %v7126
        %v7128 = vpop.xlane.xlu0 %7127
        %v7129 = vadd.f32 %v6518, %v6519
        %7130 = vadd.xlane.f32.xlu0 %v7129
        %v7131 = vpop.xlane.xlu0 %7130
        %v7132 = vadd.f32 %v6520, %v6521
        %7133 = vadd.xlane.f32.xlu0 %v7132
        %v7134 = vpop.xlane.xlu0 %7133
        %v7135 = vadd.f32 %v6522, %v6523
        %7136 = vadd.xlane.f32.xlu0 %v7135
        %v7137 = vpop.xlane.xlu0 %7136
        %v7138 = vadd.f32 %v6524, %v6525
        %7139 = vadd.xlane.f32.xlu0 %v7138
        %v7140 = vpop.xlane.xlu0 %7139
        %v7141 = vadd.f32 %v6526, %v6527
        %7142 = vadd.xlane.f32.xlu0 %v7141
        %v7143 = vpop.xlane.xlu0 %7142
        %v7144 = vadd.f32 %v6528, %v6529
        %7145 = vadd.xlane.f32.xlu0 %v7144
        %v7146 = vpop.xlane.xlu0 %7145
        %v7147 = vadd.f32 %v6530, %v6531
        %7148 = vadd.xlane.f32.xlu0 %v7147
        %v7149 = vpop.xlane.xlu0 %7148
        %v7150 = vadd.f32 %v6532, %v6533
        %7151 = vadd.xlane.f32.xlu0 %v7150
        %v7152 = vpop.xlane.xlu0 %7151
        %v7153 = vadd.f32 %v6534, %v6535
        %7154 = vadd.xlane.f32.xlu0 %v7153
        %v7155 = vpop.xlane.xlu0 %7154
        %v7156 = vadd.f32 %v6536, %v6537
        %7157 = vadd.xlane.f32.xlu0 %v7156
        %v7158 = vpop.xlane.xlu0 %7157
        %v7159 = vadd.f32 %v6538, %v6539
        %7160 = vadd.xlane.f32.xlu0 %v7159
        %v7161 = vpop.xlane.xlu0 %7160
        %v7162 = vadd.f32 %v6540, %v6541
        %7163 = vadd.xlane.f32.xlu0 %v7162
        %v7164 = vpop.xlane.xlu0 %7163
        %v7165 = vadd.f32 %v6542, %v6543
        %7166 = vadd.xlane.f32.xlu0 %v7165
        %v7167 = vpop.xlane.xlu0 %7166
        %v7168 = vadd.f32 %v6544, %v6545
        %7169 = vadd.xlane.f32.xlu0 %v7168
        %v7170 = vpop.xlane.xlu0 %7169
        %v7171 = vadd.f32 %v6546, %v6547
        %7172 = vadd.xlane.f32.xlu0 %v7171
        %v7173 = vpop.xlane.xlu0 %7172
        %v7174 = vadd.f32 %v6548, %v6549
        %7175 = vadd.xlane.f32.xlu0 %v7174
        %v7176 = vpop.xlane.xlu0 %7175
        %v7177 = vadd.f32 %v6550, %v6551
        %7178 = vadd.xlane.f32.xlu0 %v7177
        %v7179 = vpop.xlane.xlu0 %7178
        %v7180 = vadd.f32 %v6552, %v6553
        %7181 = vadd.xlane.f32.xlu0 %v7180
        %v7182 = vpop.xlane.xlu0 %7181
        %v7183 = vadd.f32 %v6554, %v6555
        %7184 = vadd.xlane.f32.xlu0 %v7183
        %v7185 = vpop.xlane.xlu0 %7184
        %v7186 = vadd.f32 %v6556, %v6557
        %7187 = vadd.xlane.f32.xlu0 %v7186
        %v7188 = vpop.xlane.xlu0 %7187
        %v7189 = vadd.f32 %v6558, %v6559
        %7190 = vadd.xlane.f32.xlu0 %v7189
        %v7191 = vpop.xlane.xlu0 %7190
        %v7192 = vadd.f32 %v6560, %v6561
        %7193 = vadd.xlane.f32.xlu0 %v7192
        %v7194 = vpop.xlane.xlu0 %7193
        %v7195 = vadd.f32 %v6562, %v6563
        %7196 = vadd.xlane.f32.xlu0 %v7195
        %v7197 = vpop.xlane.xlu0 %7196
        %v7198 = vadd.f32 %v6564, %v6565
        %7199 = vadd.xlane.f32.xlu0 %v7198
        %v7200 = vpop.xlane.xlu0 %7199
        %v7201 = vadd.f32 %v6566, %v6567
        %7202 = vadd.xlane.f32.xlu0 %v7201
        %v7203 = vpop.xlane.xlu0 %7202
        %v7204 = vadd.f32 %v6568, %v6569
        %7205 = vadd.xlane.f32.xlu0 %v7204
        %v7206 = vpop.xlane.xlu0 %7205
        %v7207 = vadd.f32 %v6570, %v6571
        %7208 = vadd.xlane.f32.xlu0 %v7207
        %v7209 = vpop.xlane.xlu0 %7208
        %v7210 = vadd.f32 %v6572, %v6573
        %7211 = vadd.xlane.f32.xlu0 %v7210
        %v7212 = vpop.xlane.xlu0 %7211
        %v7213 = vadd.f32 %v6574, %v6575
        %7214 = vadd.xlane.f32.xlu0 %v7213
        %v7215 = vpop.xlane.xlu0 %7214
        %v7216 = vadd.f32 %v6576, %v6577
        %7217 = vadd.xlane.f32.xlu0 %v7216
        %v7218 = vpop.xlane.xlu0 %7217
        %v7219 = vadd.f32 %v6578, %v6579
        %7220 = vadd.xlane.f32.xlu0 %v7219
        %v7221 = vpop.xlane.xlu0 %7220
        %v7222 = vadd.f32 %v6580, %v6581
        %7223 = vadd.xlane.f32.xlu0 %v7222
        %v7224 = vpop.xlane.xlu0 %7223
        %v7225 = vadd.f32 %v6582, %v6583
        %7226 = vadd.xlane.f32.xlu0 %v7225
        %v7227 = vpop.xlane.xlu0 %7226
        %v7228 = vadd.f32 %v6584, %v6585
        %7229 = vadd.xlane.f32.xlu0 %v7228
        %v7230 = vpop.xlane.xlu0 %7229
        %v7231 = vadd.f32 %v6586, %v6587
        %7232 = vadd.xlane.f32.xlu0 %v7231
        %v7233 = vpop.xlane.xlu0 %7232
        %v7234 = vadd.f32 %v6588, %v6589
        %7235 = vadd.xlane.f32.xlu0 %v7234
        %v7236 = vpop.xlane.xlu0 %7235
        %v7237 = vadd.f32 %v6590, %v6591
        %7238 = vadd.xlane.f32.xlu0 %v7237
        %v7239 = vpop.xlane.xlu0 %7238
        %v7240 = vadd.f32 %v6592, %v6593
        %7241 = vadd.xlane.f32.xlu0 %v7240
        %v7242 = vpop.xlane.xlu0 %7241
        %v7243 = vadd.f32 %v6594, %v6595
        %7244 = vadd.xlane.f32.xlu0 %v7243
        %v7245 = vpop.xlane.xlu0 %7244
        %v7246 = vadd.f32 %v6596, %v6597
        %7247 = vadd.xlane.f32.xlu0 %v7246
        %v7248 = vpop.xlane.xlu0 %7247
        %v7249 = vadd.f32 %v6598, %v6599
        %7250 = vadd.xlane.f32.xlu0 %v7249
        %v7251 = vpop.xlane.xlu0 %7250
        %v7252 = vadd.f32 %v6600, %v6601
        %7253 = vadd.xlane.f32.xlu0 %v7252
        %v7254 = vpop.xlane.xlu0 %7253
        %v7255 = vadd.f32 %v6602, %v6603
        %7256 = vadd.xlane.f32.xlu0 %v7255
        %v7257 = vpop.xlane.xlu0 %7256
        %v7258 = vadd.f32 %v6604, %v6605
        %7259 = vadd.xlane.f32.xlu0 %v7258
        %v7260 = vpop.xlane.xlu0 %7259
        %v7261 = vadd.f32 %v6606, %v6607
        %7262 = vadd.xlane.f32.xlu0 %v7261
        %v7263 = vpop.xlane.xlu0 %7262
        %v7264 = vadd.f32 %v6608, %v6609
        %7265 = vadd.xlane.f32.xlu0 %v7264
        %v7266 = vpop.xlane.xlu0 %7265
        %v7267 = vadd.f32 %v6610, %v6611
        %7268 = vadd.xlane.f32.xlu0 %v7267
        %v7269 = vpop.xlane.xlu0 %7268
        %v7270 = vadd.f32 %v6612, %v6613
        %7271 = vadd.xlane.f32.xlu0 %v7270
        %v7272 = vpop.xlane.xlu0 %7271
        %v7273 = vadd.f32 %v6614, %v6615
        %7274 = vadd.xlane.f32.xlu0 %v7273
        %v7275 = vpop.xlane.xlu0 %7274
        %v7276 = vadd.f32 %v6616, %v6617
        %7277 = vadd.xlane.f32.xlu0 %v7276
        %v7278 = vpop.xlane.xlu0 %7277
        %v7279 = vadd.f32 %v6618, %v6619
        %7280 = vadd.xlane.f32.xlu0 %v7279
        %v7281 = vpop.xlane.xlu0 %7280
        %v7282 = vadd.f32 %v6620, %v6621
        %7283 = vadd.xlane.f32.xlu0 %v7282
        %v7284 = vpop.xlane.xlu0 %7283
        %v7285 = vadd.f32 %v6622, %v6623
        %7286 = vadd.xlane.f32.xlu0 %v7285
        %v7287 = vpop.xlane.xlu0 %7286
        %v7288 = vadd.f32 %v6624, %v6625
        %7289 = vadd.xlane.f32.xlu0 %v7288
        %v7290 = vpop.xlane.xlu0 %7289
        %v7291 = vadd.f32 %v6626, %v6627
        %7292 = vadd.xlane.f32.xlu0 %v7291
        %v7293 = vpop.xlane.xlu0 %7292
        %v7294 = vadd.f32 %v6628, %v6629
        %7295 = vadd.xlane.f32.xlu0 %v7294
        %v7296 = vpop.xlane.xlu0 %7295
        %v7297 = vadd.f32 %v6630, %v6631
        %7298 = vadd.xlane.f32.xlu0 %v7297
        %v7299 = vpop.xlane.xlu0 %7298
        %v7300 = vadd.f32 %v6632, %v6633
        %7301 = vadd.xlane.f32.xlu0 %v7300
        %v7302 = vpop.xlane.xlu0 %7301
        %v7303 = vadd.f32 %v6634, %v6635
        %7304 = vadd.xlane.f32.xlu0 %v7303
        %v7305 = vpop.xlane.xlu0 %7304
        %v7306 = vadd.f32 %v6636, %v6637
        %7307 = vadd.xlane.f32.xlu0 %v7306
        %v7308 = vpop.xlane.xlu0 %7307
        %v7309 = vadd.f32 %v6638, %v6639
        %7310 = vadd.xlane.f32.xlu0 %v7309
        %v7311 = vpop.xlane.xlu0 %7310
        %v7312 = vadd.f32 %v6640, %v6641
        %7313 = vadd.xlane.f32.xlu0 %v7312
        %v7314 = vpop.xlane.xlu0 %7313
        %v7315 = vadd.f32 %v6642, %v6643
        %7316 = vadd.xlane.f32.xlu0 %v7315
        %v7317 = vpop.xlane.xlu0 %7316
        %v7318 = vadd.f32 %v6644, %v6645
        %7319 = vadd.xlane.f32.xlu0 %v7318
        %v7320 = vpop.xlane.xlu0 %7319
        %v7321 = vadd.f32 %v6646, %v6647
        %7322 = vadd.xlane.f32.xlu0 %v7321
        %v7323 = vpop.xlane.xlu0 %7322
        %v7324 = vadd.f32 %v6648, %v6649
        %7325 = vadd.xlane.f32.xlu0 %v7324
        %v7326 = vpop.xlane.xlu0 %7325
        %v7327 = vadd.f32 %v6650, %v6651
        %7328 = vadd.xlane.f32.xlu0 %v7327
        %v7329 = vpop.xlane.xlu0 %7328
        %v7330 = vadd.f32 %v6652, %v6653
        %7331 = vadd.xlane.f32.xlu0 %v7330
        %v7332 = vpop.xlane.xlu0 %7331
        %v7333 = vadd.f32 %v6654, %v6655
        %7334 = vadd.xlane.f32.xlu0 %v7333
        %v7335 = vpop.xlane.xlu0 %7334
        %v7336 = vadd.f32 %v6656, %v6657
        %7337 = vadd.xlane.f32.xlu0 %v7336
        %v7338 = vpop.xlane.xlu0 %7337
        %v7339 = vadd.f32 %v6658, %v6659
        %7340 = vadd.xlane.f32.xlu0 %v7339
        %v7341 = vpop.xlane.xlu0 %7340
        %v7342 = vadd.f32 %v6660, %v6661
        %7343 = vadd.xlane.f32.xlu0 %v7342
        %v7344 = vpop.xlane.xlu0 %7343
        %v7345 = vadd.f32 %v6662, %v6663
        %7346 = vadd.xlane.f32.xlu0 %v7345
        %v7347 = vpop.xlane.xlu0 %7346
        %v7348 = vadd.f32 %v6664, %v6665
        %7349 = vadd.xlane.f32.xlu0 %v7348
        %v7350 = vpop.xlane.xlu0 %7349
        %v7351 = vadd.f32 %v6666, %v6667
        %7352 = vadd.xlane.f32.xlu0 %v7351
        %v7353 = vpop.xlane.xlu0 %7352
        %v7354 = vadd.f32 %v6668, %v6669
        %7355 = vadd.xlane.f32.xlu0 %v7354
        %v7356 = vpop.xlane.xlu0 %7355
        %v7357 = vadd.f32 %v6670, %v6671
        %7358 = vadd.xlane.f32.xlu0 %v7357
        %v7359 = vpop.xlane.xlu0 %7358
        %v7360 = vadd.f32 %v6672, %v6673
        %7361 = vadd.xlane.f32.xlu0 %v7360
        %v7362 = vpop.xlane.xlu0 %7361
        %v7363 = vadd.f32 %v6674, %v6675
        %7364 = vadd.xlane.f32.xlu0 %v7363
        %v7365 = vpop.xlane.xlu0 %7364
        %v7366 = vadd.f32 %v6676, %v6677
        %7367 = vadd.xlane.f32.xlu0 %v7366
        %v7368 = vpop.xlane.xlu0 %7367
        %v7369 = vadd.f32 %v6678, %v6679
        %7370 = vadd.xlane.f32.xlu0 %v7369
        %v7371 = vpop.xlane.xlu0 %7370
        %v7372 = vadd.f32 %v6680, %v6681
        %7373 = vadd.xlane.f32.xlu0 %v7372
        %v7374 = vpop.xlane.xlu0 %7373
        %v7375 = vadd.f32 %v6682, %v6683
        %7376 = vadd.xlane.f32.xlu0 %v7375
        %v7377 = vpop.xlane.xlu0 %7376
        %v7378 = vadd.f32 %v6684, %v6685
        %7379 = vadd.xlane.f32.xlu0 %v7378
        %v7380 = vpop.xlane.xlu0 %7379
        %v7381 = vadd.f32 %v6686, %v6687
        %7382 = vadd.xlane.f32.xlu0 %v7381
        %v7383 = vpop.xlane.xlu0 %7382
        %v7384 = vadd.f32 %v6688, %v6689
        %7385 = vadd.xlane.f32.xlu0 %v7384
        %v7386 = vpop.xlane.xlu0 %7385
        %v7387 = vadd.f32 %v6690, %v6691
        %7388 = vadd.xlane.f32.xlu0 %v7387
        %v7389 = vpop.xlane.xlu0 %7388
        %v7390 = vadd.f32 %v6692, %v6693
        %7391 = vadd.xlane.f32.xlu0 %v7390
        %v7392 = vpop.xlane.xlu0 %7391
        %v7393 = vadd.f32 %v6694, %v6695
        %7394 = vadd.xlane.f32.xlu0 %v7393
        %v7395 = vpop.xlane.xlu0 %7394
        %v7396 = vadd.f32 %v6696, %v6697
        %7397 = vadd.xlane.f32.xlu0 %v7396
        %v7398 = vpop.xlane.xlu0 %7397
        %v7399 = vadd.f32 %v6698, %v6699
        %7400 = vadd.xlane.f32.xlu0 %v7399
        %v7401 = vpop.xlane.xlu0 %7400
        %v7402 = vadd.f32 %v6700, %v6701
        %7403 = vadd.xlane.f32.xlu0 %v7402
        %v7404 = vpop.xlane.xlu0 %7403
        %v7405 = vadd.f32 %v6702, %v6703
        %7406 = vadd.xlane.f32.xlu0 %v7405
        %v7407 = vpop.xlane.xlu0 %7406
        %v7408 = vadd.f32 %v6704, %v6705
        %7409 = vadd.xlane.f32.xlu0 %v7408
        %v7410 = vpop.xlane.xlu0 %7409
        %v7411 = vadd.f32 %v6706, %v6707
        %7412 = vadd.xlane.f32.xlu0 %v7411
        %v7413 = vpop.xlane.xlu0 %7412
        %v7414 = vadd.f32 %v6708, %v6709
        %7415 = vadd.xlane.f32.xlu0 %v7414
        %v7416 = vpop.xlane.xlu0 %7415
        %v7417 = vadd.f32 %v6710, %v6711
        %7418 = vadd.xlane.f32.xlu0 %v7417
        %v7419 = vpop.xlane.xlu0 %7418
        %v7420 = vadd.f32 %v6712, %v6713
        %7421 = vadd.xlane.f32.xlu0 %v7420
        %v7422 = vpop.xlane.xlu0 %7421
        %v7423 = vadd.f32 %v6714, %v6715
        %7424 = vadd.xlane.f32.xlu0 %v7423
        %v7425 = vpop.xlane.xlu0 %7424
        %v7426 = vadd.f32 %v6716, %v6717
        %7427 = vadd.xlane.f32.xlu0 %v7426
        %v7428 = vpop.xlane.xlu0 %7427
        %v7429 = vadd.f32 %v6718, %v6719
        %7430 = vadd.xlane.f32.xlu0 %v7429
        %v7431 = vpop.xlane.xlu0 %7430
        %v7432 = vadd.f32 %v6720, %v6721
        %7433 = vadd.xlane.f32.xlu0 %v7432
        %v7434 = vpop.xlane.xlu0 %7433
        %v7435 = vadd.f32 %v6722, %v6723
        %7436 = vadd.xlane.f32.xlu0 %v7435
        %v7437 = vpop.xlane.xlu0 %7436
        %v7438 = vadd.f32 %v6724, %v6725
        %7439 = vadd.xlane.f32.xlu0 %v7438
        %v7440 = vpop.xlane.xlu0 %7439
        %v7441 = vadd.f32 %v6726, %v6727
        %7442 = vadd.xlane.f32.xlu0 %v7441
        %v7443 = vpop.xlane.xlu0 %7442
        %v7444 = vadd.f32 %v6728, %v6729
        %7445 = vadd.xlane.f32.xlu0 %v7444
        %v7446 = vpop.xlane.xlu0 %7445
        %v7447 = vadd.f32 %v6730, %v6731
        %7448 = vadd.xlane.f32.xlu0 %v7447
        %v7449 = vpop.xlane.xlu0 %7448
        %v7450 = vadd.f32 %v6732, %v6733
        %7451 = vadd.xlane.f32.xlu0 %v7450
        %v7452 = vpop.xlane.xlu0 %7451
        %v7453 = vadd.f32 %v6734, %v6735
        %7454 = vadd.xlane.f32.xlu0 %v7453
        %v7455 = vpop.xlane.xlu0 %7454
        %v7456 = vadd.f32 %v6736, %v6737
        %7457 = vadd.xlane.f32.xlu0 %v7456
        %v7458 = vpop.xlane.xlu0 %7457
        %v7459 = vadd.f32 %v6738, %v6739
        %7460 = vadd.xlane.f32.xlu0 %v7459
        %v7461 = vpop.xlane.xlu0 %7460
        %v7462 = vadd.f32 %v6740, %v6741
        %7463 = vadd.xlane.f32.xlu0 %v7462
        %v7464 = vpop.xlane.xlu0 %7463
        %v7465 = vadd.f32 %v6742, %v6743
        %7466 = vadd.xlane.f32.xlu0 %v7465
        %v7467 = vpop.xlane.xlu0 %7466
        %v7468 = vadd.f32 %v6744, %v6745
        %7469 = vadd.xlane.f32.xlu0 %v7468
        %v7470 = vpop.xlane.xlu0 %7469
        %v7471 = vadd.f32 %v6746, %v6747
        %7472 = vadd.xlane.f32.xlu0 %v7471
        %v7473 = vpop.xlane.xlu0 %7472
        %v7474 = vadd.f32 %v6748, %v6749
        %7475 = vadd.xlane.f32.xlu0 %v7474
        %v7476 = vpop.xlane.xlu0 %7475
        %v7477 = vadd.f32 %v6750, %v6751
        %7478 = vadd.xlane.f32.xlu0 %v7477
        %v7479 = vpop.xlane.xlu0 %7478
        %v7480 = vadd.f32 %v6752, %v6753
        %7481 = vadd.xlane.f32.xlu0 %v7480
        %v7482 = vpop.xlane.xlu0 %7481
        %v7483 = vadd.f32 %v6754, %v6755
        %7484 = vadd.xlane.f32.xlu0 %v7483
        %v7485 = vpop.xlane.xlu0 %7484
        %v7486 = vadd.f32 %v6756, %v6757
        %7487 = vadd.xlane.f32.xlu0 %v7486
        %v7488 = vpop.xlane.xlu0 %7487
        %v7489 = vadd.f32 %v6758, %v6759
        %7490 = vadd.xlane.f32.xlu0 %v7489
        %v7491 = vpop.xlane.xlu0 %7490
        %v7492 = vadd.f32 %v6760, %v6761
        %7493 = vadd.xlane.f32.xlu0 %v7492
        %v7494 = vpop.xlane.xlu0 %7493
        %v7495 = vadd.f32 %v6762, %v6763
        %7496 = vadd.xlane.f32.xlu0 %v7495
        %v7497 = vpop.xlane.xlu0 %7496
        %v7498 = vadd.f32 %v6764, %v6765
        %7499 = vadd.xlane.f32.xlu0 %v7498
        %v7500 = vpop.xlane.xlu0 %7499
        %v7501 = vadd.f32 %v6766, %v6767
        %7502 = vadd.xlane.f32.xlu0 %v7501
        %v7503 = vpop.xlane.xlu0 %7502
        %v7504 = vadd.f32 %v6768, %v6769
        %7505 = vadd.xlane.f32.xlu0 %v7504
        %v7506 = vpop.xlane.xlu0 %7505
        %v7507 = vadd.f32 %v6770, %v6771
        %7508 = vadd.xlane.f32.xlu0 %v7507
        %v7509 = vpop.xlane.xlu0 %7508
        %v7510 = vadd.f32 %v6772, %v6773
        %7511 = vadd.xlane.f32.xlu0 %v7510
        %v7512 = vpop.xlane.xlu0 %7511
        %v7513 = vadd.f32 %v6774, %v6775
        %7514 = vadd.xlane.f32.xlu0 %v7513
        %v7515 = vpop.xlane.xlu0 %7514
        %v7516 = vadd.f32 %v6776, %v6777
        %7517 = vadd.xlane.f32.xlu0 %v7516
        %v7518 = vpop.xlane.xlu0 %7517
        %v7519 = vadd.f32 %v6778, %v6779
        %7520 = vadd.xlane.f32.xlu0 %v7519
        %v7521 = vpop.xlane.xlu0 %7520
        %v7522 = vadd.f32 %v6780, %v6781
        %7523 = vadd.xlane.f32.xlu0 %v7522
        %v7524 = vpop.xlane.xlu0 %7523
        %v7525 = vadd.f32 %v6782, %v6783
        %7526 = vadd.xlane.f32.xlu0 %v7525
        %v7527 = vpop.xlane.xlu0 %7526
        %v7528 = vadd.f32 %v6784, %v6785
        %7529 = vadd.xlane.f32.xlu0 %v7528
        %v7530 = vpop.xlane.xlu0 %7529
        %v7531 = vadd.f32 %v6786, %v6787
        %7532 = vadd.xlane.f32.xlu0 %v7531
        %v7533 = vpop.xlane.xlu0 %7532
        %v7534 = vadd.f32 %v6788, %v6789
        %7535 = vadd.xlane.f32.xlu0 %v7534
        %v7536 = vpop.xlane.xlu0 %7535
        %v7537 = vadd.f32 %v6790, %v6791
        %7538 = vadd.xlane.f32.xlu0 %v7537
        %v7539 = vpop.xlane.xlu0 %7538
        %v7540 = vadd.f32 %v6792, %v6793
        %7541 = vadd.xlane.f32.xlu0 %v7540
        %v7542 = vpop.xlane.xlu0 %7541
        %v7543 = vadd.f32 %v6794, %v6795
        %7544 = vadd.xlane.f32.xlu0 %v7543
        %v7545 = vpop.xlane.xlu0 %7544
        %v7546 = vadd.f32 %v6796, %v6797
        %7547 = vadd.xlane.f32.xlu0 %v7546
        %v7548 = vpop.xlane.xlu0 %7547
        %v7549 = vadd.f32 %v6798, %v6799
        %7550 = vadd.xlane.f32.xlu0 %v7549
        %v7551 = vpop.xlane.xlu0 %7550
        %v7552 = vadd.f32 %v6800, %v6801
        %7553 = vadd.xlane.f32.xlu0 %v7552
        %v7554 = vpop.xlane.xlu0 %7553
        %v7555 = vadd.f32 %v6802, %v6803
        %7556 = vadd.xlane.f32.xlu0 %v7555
        %v7557 = vpop.xlane.xlu0 %7556
        %v7558 = vadd.f32 %v6804, %v6805
        %7559 = vadd.xlane.f32.xlu0 %v7558
        %v7560 = vpop.xlane.xlu0 %7559
        %v7561 = vadd.f32 %v6806, %v6807
        %7562 = vadd.xlane.f32.xlu0 %v7561
        %v7563 = vpop.xlane.xlu0 %7562
        %v7564 = vadd.f32 %v6808, %v6809
        %7565 = vadd.xlane.f32.xlu0 %v7564
        %v7566 = vpop.xlane.xlu0 %7565
        %v7567 = vadd.f32 %v6810, %v6811
        %7568 = vadd.xlane.f32.xlu0 %v7567
        %v7569 = vpop.xlane.xlu0 %7568
        %v7570 = vadd.f32 %v6812, %v6813
        %7571 = vadd.xlane.f32.xlu0 %v7570
        %v7572 = vpop.xlane.xlu0 %7571
        %v7573 = vadd.f32 %v6814, %v6815
        %7574 = vadd.xlane.f32.xlu0 %v7573
        %v7575 = vpop.xlane.xlu0 %7574
        %v7576 = vadd.f32 %v6816, %v6817
        %7577 = vadd.xlane.f32.xlu0 %v7576
        %v7578 = vpop.xlane.xlu0 %7577
        %v7579 = vadd.f32 %v6818, %v6819
        %7580 = vadd.xlane.f32.xlu0 %v7579
        %v7581 = vpop.xlane.xlu0 %7580
        %v7582 = vadd.f32 %v6820, %v6821
        %7583 = vadd.xlane.f32.xlu0 %v7582
        %v7584 = vpop.xlane.xlu0 %7583
        %v7585 = vadd.f32 %v6822, %v6823
        %7586 = vadd.xlane.f32.xlu0 %v7585
        %v7587 = vpop.xlane.xlu0 %7586
        %v7588 = vadd.f32 %v6824, %v6825
        %7589 = vadd.xlane.f32.xlu0 %v7588
        %v7590 = vpop.xlane.xlu0 %7589
        %v7591 = vadd.f32 %v6826, %v6827
        %7592 = vadd.xlane.f32.xlu0 %v7591
        %v7593 = vpop.xlane.xlu0 %7592
        %v7594 = vadd.f32 %v6828, %v6829
        %7595 = vadd.xlane.f32.xlu0 %v7594
        %v7596 = vpop.xlane.xlu0 %7595
        %v7597 = vadd.f32 %v6830, %v6831
        %7598 = vadd.xlane.f32.xlu0 %v7597
        %v7599 = vpop.xlane.xlu0 %7598
        %v7600 = vld [vmem:[#allocation3] sm:$0xff]
        %v7601 = vld [vmem:[#allocation3 + $0x8] sm:$0xff]
        %v7602 = vld [vmem:[#allocation3 + $0x10] sm:$0xff]
        %v7603 = vld [vmem:[#allocation3 + $0x18] sm:$0xff]
        %v7604 = vld [vmem:[#allocation3 + $0x20] sm:$0xff]
        %v7605 = vld [vmem:[#allocation3 + $0x28] sm:$0xff]
        %v7606 = vld [vmem:[#allocation3 + $0x30] sm:$0xff]
        %v7607 = vld [vmem:[#allocation3 + $0x38] sm:$0xff]
        %v7609 = vunpack.c.l.b16 %v7600
        %v7610 = vunpack.c.h.b16 %v7600
        %v7611 = vpack.c.b16 %v7609, %v7609
        %v7612 = vpack.c.b16 %v7610, %v7610
        %v7647 = vunpack.c.l.b16 %v6064
        %v7648 = vunpack.c.h.b16 %v6064
        %v7649 = vunpack.c.l.b16 %v6065
        %v7650 = vunpack.c.h.b16 %v6065
        %v7651 = vunpack.c.l.b16 %v6066
        %v7652 = vunpack.c.h.b16 %v6066
        %v7653 = vunpack.c.l.b16 %v6067
        %v7654 = vunpack.c.h.b16 %v6067
        %v7655 = vunpack.c.l.b16 %v6068
        %v7656 = vunpack.c.h.b16 %v6068
        %v7657 = vunpack.c.l.b16 %v6069
        %v7658 = vunpack.c.h.b16 %v6069
        %v7659 = vunpack.c.l.b16 %v6070
        %v7660 = vunpack.c.h.b16 %v6070
        %v7661 = vunpack.c.l.b16 %v6071
        %v7662 = vunpack.c.h.b16 %v6071
        %v7663 = vunpack.c.l.b16 %v6072
        %v7664 = vunpack.c.h.b16 %v6072
        %v7665 = vunpack.c.l.b16 %v6073
        %v7666 = vunpack.c.h.b16 %v6073
        %v7667 = vunpack.c.l.b16 %v6074
        %v7668 = vunpack.c.h.b16 %v6074
        %v7669 = vunpack.c.l.b16 %v6075
        %v7670 = vunpack.c.h.b16 %v6075
        %v7671 = vunpack.c.l.b16 %v6076
        %v7672 = vunpack.c.h.b16 %v6076
        %v7673 = vunpack.c.l.b16 %v6077
        %v7674 = vunpack.c.h.b16 %v6077
        %v7675 = vunpack.c.l.b16 %v6078
        %v7676 = vunpack.c.h.b16 %v6078
        %v7677 = vunpack.c.l.b16 %v6079
        %v7678 = vunpack.c.h.b16 %v6079
        %v7679 = vunpack.c.l.b16 %v6080
        %v7680 = vunpack.c.h.b16 %v6080
        %v7681 = vunpack.c.l.b16 %v6081
        %v7682 = vunpack.c.h.b16 %v6081
        %v7683 = vunpack.c.l.b16 %v6082
        %v7684 = vunpack.c.h.b16 %v6082
        %v7685 = vunpack.c.l.b16 %v6083
        %v7686 = vunpack.c.h.b16 %v6083
        %v7687 = vunpack.c.l.b16 %v6084
        %v7688 = vunpack.c.h.b16 %v6084
        %v7689 = vunpack.c.l.b16 %v6085
        %v7690 = vunpack.c.h.b16 %v6085
        %v7691 = vunpack.c.l.b16 %v6086
        %v7692 = vunpack.c.h.b16 %v6086
        %v7693 = vunpack.c.l.b16 %v6087
        %v7694 = vunpack.c.h.b16 %v6087
        %v7695 = vunpack.c.l.b16 %v6088
        %v7696 = vunpack.c.h.b16 %v6088
        %v7697 = vunpack.c.l.b16 %v6089
        %v7698 = vunpack.c.h.b16 %v6089
        %v7699 = vunpack.c.l.b16 %v6090
        %v7700 = vunpack.c.h.b16 %v6090
        %v7701 = vunpack.c.l.b16 %v6091
        %v7702 = vunpack.c.h.b16 %v6091
        %v7703 = vunpack.c.l.b16 %v6092
        %v7704 = vunpack.c.h.b16 %v6092
        %v7705 = vunpack.c.l.b16 %v6093
        %v7706 = vunpack.c.h.b16 %v6093
        %v7707 = vunpack.c.l.b16 %v6094
        %v7708 = vunpack.c.h.b16 %v6094
        %v7709 = vunpack.c.l.b16 %v6095
        %v7710 = vunpack.c.h.b16 %v6095
        %v7711 = vpack.c.b16 %v7649, %v7647
        %v7712 = vpack.c.b16 %v7650, %v7648
        %v7713 = vpack.c.b16 %v7653, %v7651
        %v7714 = vpack.c.b16 %v7654, %v7652
        %v7715 = vpack.c.b16 %v7657, %v7655
        %v7716 = vpack.c.b16 %v7658, %v7656
        %v7717 = vpack.c.b16 %v7661, %v7659
        %v7718 = vpack.c.b16 %v7662, %v7660
        %v7719 = vpack.c.b16 %v7665, %v7663
        %v7720 = vpack.c.b16 %v7666, %v7664
        %v7721 = vpack.c.b16 %v7669, %v7667
        %v7722 = vpack.c.b16 %v7670, %v7668
        %v7723 = vpack.c.b16 %v7673, %v7671
        %v7724 = vpack.c.b16 %v7674, %v7672
        %v7725 = vpack.c.b16 %v7677, %v7675
        %v7726 = vpack.c.b16 %v7678, %v7676
        %v7727 = vpack.c.b16 %v7681, %v7679
        %v7728 = vpack.c.b16 %v7682, %v7680
        %v7729 = vpack.c.b16 %v7685, %v7683
        %v7730 = vpack.c.b16 %v7686, %v7684
        %v7731 = vpack.c.b16 %v7689, %v7687
        %v7732 = vpack.c.b16 %v7690, %v7688
        %v7733 = vpack.c.b16 %v7693, %v7691
        %v7734 = vpack.c.b16 %v7694, %v7692
        %v7735 = vpack.c.b16 %v7697, %v7695
        %v7736 = vpack.c.b16 %v7698, %v7696
        %v7737 = vpack.c.b16 %v7701, %v7699
        %v7738 = vpack.c.b16 %v7702, %v7700
        %v7739 = vpack.c.b16 %v7705, %v7703
        %v7740 = vpack.c.b16 %v7706, %v7704
        %v7741 = vpack.c.b16 %v7709, %v7707
        %v7742 = vpack.c.b16 %v7710, %v7708
        %7775 = vmatpush.bf16.xpose.msra.mxu0 %v7725
        %7776 = vmatpush.bf16.xpose.msra.mxu0 %v7723
        %7777 = vmatpush.bf16.xpose.msra.mxu0 %v7721
        %7778 = vmatpush.bf16.xpose.msra.mxu0 %v7719
        %7779 = vmatpush.bf16.xpose.msra.mxu0 %v7717
        %7780 = vmatpush.bf16.xpose.msra.mxu0 %v7715
        %7781 = vmatpush.bf16.xpose.msra.mxu0 %v7713
        %7782 = vmatpush.bf16.xpose.msra.mxu0 %v7711
        %7783 = vmatmul.bf16.gmra.mxu0 %v7611
        %v7784 = vpop.f32.mrf.mxu0
        %v7785 = vadd.f32 0.0, %v7784
        %v7786 = vpop.f32.mrf.mxu0
        %7787 = vdwg.mxu0
        %7788 = vmatpush.bf16.xpose.msra.mxu0 %v7726
        %7789 = vmatpush.bf16.xpose.msra.mxu0 %v7724
        %7790 = vmatpush.bf16.xpose.msra.mxu0 %v7722
        %7791 = vmatpush.bf16.xpose.msra.mxu0 %v7720
        %7792 = vmatpush.bf16.xpose.msra.mxu0 %v7718
        %7793 = vmatpush.bf16.xpose.msra.mxu0 %v7716
        %7794 = vmatpush.bf16.xpose.msra.mxu0 %v7714
        %7795 = vmatpush.bf16.xpose.msra.mxu0 %v7712
        %7796 = vmatmul.bf16.gmra.mxu0 %v7612
        %v7797 = vpop.f32.mrf.mxu0
        %v7798 = vadd.f32 %v7785, %v7797
        %v7799 = vpop.f32.mrf.mxu0
        %7800 = vdwg.mxu0
        %7801 = vmatpush.bf16.xpose.msra.mxu0 %v7741
        %7802 = vmatpush.bf16.xpose.msra.mxu0 %v7739
        %7803 = vmatpush.bf16.xpose.msra.mxu0 %v7737
        %7804 = vmatpush.bf16.xpose.msra.mxu0 %v7735
        %7805 = vmatpush.bf16.xpose.msra.mxu0 %v7733
        %7806 = vmatpush.bf16.xpose.msra.mxu0 %v7731
        %7807 = vmatpush.bf16.xpose.msra.mxu0 %v7729
        %7808 = vmatpush.bf16.xpose.msra.mxu0 %v7727
        %7809 = vmatmul.bf16.gmra.mxu0 %v7611
        %v7810 = vpop.f32.mrf.mxu0
        %v7811 = vadd.f32 0.0, %v7810
        %v7812 = vpop.f32.mrf.mxu0
        %7813 = vdwg.mxu0
        %7814 = vmatpush.bf16.xpose.msra.mxu0 %v7742
        %7815 = vmatpush.bf16.xpose.msra.mxu0 %v7740
        %7816 = vmatpush.bf16.xpose.msra.mxu0 %v7738
        %7817 = vmatpush.bf16.xpose.msra.mxu0 %v7736
        %7818 = vmatpush.bf16.xpose.msra.mxu0 %v7734
        %7819 = vmatpush.bf16.xpose.msra.mxu0 %v7732
        %7820 = vmatpush.bf16.xpose.msra.mxu0 %v7730
        %7821 = vmatpush.bf16.xpose.msra.mxu0 %v7728
        %7822 = vmatmul.bf16.gmra.mxu0 %v7612
        %v7823 = vpop.f32.mrf.mxu0
        %v7824 = vadd.f32 %v7811, %v7823
        %v7825 = vpop.f32.mrf.mxu0
        %7826 = vdwg.mxu0
        %v7828 = vunpack.c.l.b16 %v7601
        %v7829 = vunpack.c.h.b16 %v7601
        %v7830 = vpack.c.b16 %v7828, %v7828
        %v7831 = vpack.c.b16 %v7829, %v7829
        %v7866 = vunpack.c.l.b16 %v6096
        %v7867 = vunpack.c.h.b16 %v6096
        %v7868 = vunpack.c.l.b16 %v6097
        %v7869 = vunpack.c.h.b16 %v6097
        %v7870 = vunpack.c.l.b16 %v6098
        %v7871 = vunpack.c.h.b16 %v6098
        %v7872 = vunpack.c.l.b16 %v6099
        %v7873 = vunpack.c.h.b16 %v6099
        %v7874 = vunpack.c.l.b16 %v6100
        %v7875 = vunpack.c.h.b16 %v6100
        %v7876 = vunpack.c.l.b16 %v6101
        %v7877 = vunpack.c.h.b16 %v6101
        %v7878 = vunpack.c.l.b16 %v6102
        %v7879 = vunpack.c.h.b16 %v6102
        %v7880 = vunpack.c.l.b16 %v6103
        %v7881 = vunpack.c.h.b16 %v6103
        %v7882 = vunpack.c.l.b16 %v6104
        %v7883 = vunpack.c.h.b16 %v6104
        %v7884 = vunpack.c.l.b16 %v6105
        %v7885 = vunpack.c.h.b16 %v6105
        %v7886 = vunpack.c.l.b16 %v6106
        %v7887 = vunpack.c.h.b16 %v6106
        %v7888 = vunpack.c.l.b16 %v6107
        %v7889 = vunpack.c.h.b16 %v6107
        %v7890 = vunpack.c.l.b16 %v6108
        %v7891 = vunpack.c.h.b16 %v6108
        %v7892 = vunpack.c.l.b16 %v6109
        %v7893 = vunpack.c.h.b16 %v6109
        %v7894 = vunpack.c.l.b16 %v6110
        %v7895 = vunpack.c.h.b16 %v6110
        %v7896 = vunpack.c.l.b16 %v6111
        %v7897 = vunpack.c.h.b16 %v6111
        %v7898 = vunpack.c.l.b16 %v6112
        %v7899 = vunpack.c.h.b16 %v6112
        %v7900 = vunpack.c.l.b16 %v6113
        %v7901 = vunpack.c.h.b16 %v6113
        %v7902 = vunpack.c.l.b16 %v6114
        %v7903 = vunpack.c.h.b16 %v6114
        %v7904 = vunpack.c.l.b16 %v6115
        %v7905 = vunpack.c.h.b16 %v6115
        %v7906 = vunpack.c.l.b16 %v6116
        %v7907 = vunpack.c.h.b16 %v6116
        %v7908 = vunpack.c.l.b16 %v6117
        %v7909 = vunpack.c.h.b16 %v6117
        %v7910 = vunpack.c.l.b16 %v6118
        %v7911 = vunpack.c.h.b16 %v6118
        %v7912 = vunpack.c.l.b16 %v6119
        %v7913 = vunpack.c.h.b16 %v6119
        %v7914 = vunpack.c.l.b16 %v6120
        %v7915 = vunpack.c.h.b16 %v6120
        %v7916 = vunpack.c.l.b16 %v6121
        %v7917 = vunpack.c.h.b16 %v6121
        %v7918 = vunpack.c.l.b16 %v6122
        %v7919 = vunpack.c.h.b16 %v6122
        %v7920 = vunpack.c.l.b16 %v6123
        %v7921 = vunpack.c.h.b16 %v6123
        %v7922 = vunpack.c.l.b16 %v6124
        %v7923 = vunpack.c.h.b16 %v6124
        %v7924 = vunpack.c.l.b16 %v6125
        %v7925 = vunpack.c.h.b16 %v6125
        %v7926 = vunpack.c.l.b16 %v6126
        %v7927 = vunpack.c.h.b16 %v6126
        %v7928 = vunpack.c.l.b16 %v6127
        %v7929 = vunpack.c.h.b16 %v6127
        %v7930 = vpack.c.b16 %v7868, %v7866
        %v7931 = vpack.c.b16 %v7869, %v7867
        %v7932 = vpack.c.b16 %v7872, %v7870
        %v7933 = vpack.c.b16 %v7873, %v7871
        %v7934 = vpack.c.b16 %v7876, %v7874
        %v7935 = vpack.c.b16 %v7877, %v7875
        %v7936 = vpack.c.b16 %v7880, %v7878
        %v7937 = vpack.c.b16 %v7881, %v7879
        %v7938 = vpack.c.b16 %v7884, %v7882
        %v7939 = vpack.c.b16 %v7885, %v7883
        %v7940 = vpack.c.b16 %v7888, %v7886
        %v7941 = vpack.c.b16 %v7889, %v7887
        %v7942 = vpack.c.b16 %v7892, %v7890
        %v7943 = vpack.c.b16 %v7893, %v7891
        %v7944 = vpack.c.b16 %v7896, %v7894
        %v7945 = vpack.c.b16 %v7897, %v7895
        %v7946 = vpack.c.b16 %v7900, %v7898
        %v7947 = vpack.c.b16 %v7901, %v7899
        %v7948 = vpack.c.b16 %v7904, %v7902
        %v7949 = vpack.c.b16 %v7905, %v7903
        %v7950 = vpack.c.b16 %v7908, %v7906
        %v7951 = vpack.c.b16 %v7909, %v7907
        %v7952 = vpack.c.b16 %v7912, %v7910
        %v7953 = vpack.c.b16 %v7913, %v7911
        %v7954 = vpack.c.b16 %v7916, %v7914
        %v7955 = vpack.c.b16 %v7917, %v7915
        %v7956 = vpack.c.b16 %v7920, %v7918
        %v7957 = vpack.c.b16 %v7921, %v7919
        %v7958 = vpack.c.b16 %v7924, %v7922
        %v7959 = vpack.c.b16 %v7925, %v7923
        %v7960 = vpack.c.b16 %v7928, %v7926
        %v7961 = vpack.c.b16 %v7929, %v7927
        %7994 = vmatpush.bf16.xpose.msra.mxu0 %v7944
        %7995 = vmatpush.bf16.xpose.msra.mxu0 %v7942
        %7996 = vmatpush.bf16.xpose.msra.mxu0 %v7940
        %7997 = vmatpush.bf16.xpose.msra.mxu0 %v7938
        %7998 = vmatpush.bf16.xpose.msra.mxu0 %v7936
        %7999 = vmatpush.bf16.xpose.msra.mxu0 %v7934
        %8000 = vmatpush.bf16.xpose.msra.mxu0 %v7932
        %8001 = vmatpush.bf16.xpose.msra.mxu0 %v7930
        %8002 = vmatmul.bf16.gmra.mxu0 %v7830
        %v8003 = vpop.f32.mrf.mxu0
        %v8004 = vadd.f32 0.0, %v8003
        %v8005 = vpop.f32.mrf.mxu0
        %8006 = vdwg.mxu0
        %8007 = vmatpush.bf16.xpose.msra.mxu0 %v7945
        %8008 = vmatpush.bf16.xpose.msra.mxu0 %v7943
        %8009 = vmatpush.bf16.xpose.msra.mxu0 %v7941
        %8010 = vmatpush.bf16.xpose.msra.mxu0 %v7939
        %8011 = vmatpush.bf16.xpose.msra.mxu0 %v7937
        %8012 = vmatpush.bf16.xpose.msra.mxu0 %v7935
        %8013 = vmatpush.bf16.xpose.msra.mxu0 %v7933
        %8014 = vmatpush.bf16.xpose.msra.mxu0 %v7931
        %8015 = vmatmul.bf16.gmra.mxu0 %v7831
        %v8016 = vpop.f32.mrf.mxu0
        %v8017 = vadd.f32 %v8004, %v8016
        %v8018 = vpop.f32.mrf.mxu0
        %8019 = vdwg.mxu0
        %8020 = vmatpush.bf16.xpose.msra.mxu0 %v7960
        %8021 = vmatpush.bf16.xpose.msra.mxu0 %v7958
        %8022 = vmatpush.bf16.xpose.msra.mxu0 %v7956
        %8023 = vmatpush.bf16.xpose.msra.mxu0 %v7954
        %8024 = vmatpush.bf16.xpose.msra.mxu0 %v7952
        %8025 = vmatpush.bf16.xpose.msra.mxu0 %v7950
        %8026 = vmatpush.bf16.xpose.msra.mxu0 %v7948
        %8027 = vmatpush.bf16.xpose.msra.mxu0 %v7946
        %8028 = vmatmul.bf16.gmra.mxu0 %v7830
        %v8029 = vpop.f32.mrf.mxu0
        %v8030 = vadd.f32 0.0, %v8029
        %v8031 = vpop.f32.mrf.mxu0
        %8032 = vdwg.mxu0
        %8033 = vmatpush.bf16.xpose.msra.mxu0 %v7961
        %8034 = vmatpush.bf16.xpose.msra.mxu0 %v7959
        %8035 = vmatpush.bf16.xpose.msra.mxu0 %v7957
        %8036 = vmatpush.bf16.xpose.msra.mxu0 %v7955
        %8037 = vmatpush.bf16.xpose.msra.mxu0 %v7953
        %8038 = vmatpush.bf16.xpose.msra.mxu0 %v7951
        %8039 = vmatpush.bf16.xpose.msra.mxu0 %v7949
        %8040 = vmatpush.bf16.xpose.msra.mxu0 %v7947
        %8041 = vmatmul.bf16.gmra.mxu0 %v7831
        %v8042 = vpop.f32.mrf.mxu0
        %v8043 = vadd.f32 %v8030, %v8042
        %v8044 = vpop.f32.mrf.mxu0
        %8045 = vdwg.mxu0
        %v8047 = vunpack.c.l.b16 %v7602
        %v8048 = vunpack.c.h.b16 %v7602
        %v8049 = vpack.c.b16 %v8047, %v8047
        %v8050 = vpack.c.b16 %v8048, %v8048
        %v8085 = vunpack.c.l.b16 %v6128
        %v8086 = vunpack.c.h.b16 %v6128
        %v8087 = vunpack.c.l.b16 %v6129
        %v8088 = vunpack.c.h.b16 %v6129
        %v8089 = vunpack.c.l.b16 %v6130
        %v8090 = vunpack.c.h.b16 %v6130
        %v8091 = vunpack.c.l.b16 %v6131
        %v8092 = vunpack.c.h.b16 %v6131
        %v8093 = vunpack.c.l.b16 %v6132
        %v8094 = vunpack.c.h.b16 %v6132
        %v8095 = vunpack.c.l.b16 %v6133
        %v8096 = vunpack.c.h.b16 %v6133
        %v8097 = vunpack.c.l.b16 %v6134
        %v8098 = vunpack.c.h.b16 %v6134
        %v8099 = vunpack.c.l.b16 %v6135
        %v8100 = vunpack.c.h.b16 %v6135
        %v8101 = vunpack.c.l.b16 %v6136
        %v8102 = vunpack.c.h.b16 %v6136
        %v8103 = vunpack.c.l.b16 %v6137
        %v8104 = vunpack.c.h.b16 %v6137
        %v8105 = vunpack.c.l.b16 %v6138
        %v8106 = vunpack.c.h.b16 %v6138
        %v8107 = vunpack.c.l.b16 %v6139
        %v8108 = vunpack.c.h.b16 %v6139
        %v8109 = vunpack.c.l.b16 %v6140
        %v8110 = vunpack.c.h.b16 %v6140
        %v8111 = vunpack.c.l.b16 %v6141
        %v8112 = vunpack.c.h.b16 %v6141
        %v8113 = vunpack.c.l.b16 %v6142
        %v8114 = vunpack.c.h.b16 %v6142
        %v8115 = vunpack.c.l.b16 %v6143
        %v8116 = vunpack.c.h.b16 %v6143
        %v8117 = vunpack.c.l.b16 %v6144
        %v8118 = vunpack.c.h.b16 %v6144
        %v8119 = vunpack.c.l.b16 %v6145
        %v8120 = vunpack.c.h.b16 %v6145
        %v8121 = vunpack.c.l.b16 %v6146
        %v8122 = vunpack.c.h.b16 %v6146
        %v8123 = vunpack.c.l.b16 %v6147
        %v8124 = vunpack.c.h.b16 %v6147
        %v8125 = vunpack.c.l.b16 %v6148
        %v8126 = vunpack.c.h.b16 %v6148
        %v8127 = vunpack.c.l.b16 %v6149
        %v8128 = vunpack.c.h.b16 %v6149
        %v8129 = vunpack.c.l.b16 %v6150
        %v8130 = vunpack.c.h.b16 %v6150
        %v8131 = vunpack.c.l.b16 %v6151
        %v8132 = vunpack.c.h.b16 %v6151
        %v8133 = vunpack.c.l.b16 %v6152
        %v8134 = vunpack.c.h.b16 %v6152
        %v8135 = vunpack.c.l.b16 %v6153
        %v8136 = vunpack.c.h.b16 %v6153
        %v8137 = vunpack.c.l.b16 %v6154
        %v8138 = vunpack.c.h.b16 %v6154
        %v8139 = vunpack.c.l.b16 %v6155
        %v8140 = vunpack.c.h.b16 %v6155
        %v8141 = vunpack.c.l.b16 %v6156
        %v8142 = vunpack.c.h.b16 %v6156
        %v8143 = vunpack.c.l.b16 %v6157
        %v8144 = vunpack.c.h.b16 %v6157
        %v8145 = vunpack.c.l.b16 %v6158
        %v8146 = vunpack.c.h.b16 %v6158
        %v8147 = vunpack.c.l.b16 %v6159
        %v8148 = vunpack.c.h.b16 %v6159
        %v8149 = vpack.c.b16 %v8087, %v8085
        %v8150 = vpack.c.b16 %v8088, %v8086
        %v8151 = vpack.c.b16 %v8091, %v8089
        %v8152 = vpack.c.b16 %v8092, %v8090
        %v8153 = vpack.c.b16 %v8095, %v8093
        %v8154 = vpack.c.b16 %v8096, %v8094
        %v8155 = vpack.c.b16 %v8099, %v8097
        %v8156 = vpack.c.b16 %v8100, %v8098
        %v8157 = vpack.c.b16 %v8103, %v8101
        %v8158 = vpack.c.b16 %v8104, %v8102
        %v8159 = vpack.c.b16 %v8107, %v8105
        %v8160 = vpack.c.b16 %v8108, %v8106
        %v8161 = vpack.c.b16 %v8111, %v8109
        %v8162 = vpack.c.b16 %v8112, %v8110
        %v8163 = vpack.c.b16 %v8115, %v8113
        %v8164 = vpack.c.b16 %v8116, %v8114
        %v8165 = vpack.c.b16 %v8119, %v8117
        %v8166 = vpack.c.b16 %v8120, %v8118
        %v8167 = vpack.c.b16 %v8123, %v8121
        %v8168 = vpack.c.b16 %v8124, %v8122
        %v8169 = vpack.c.b16 %v8127, %v8125
        %v8170 = vpack.c.b16 %v8128, %v8126
        %v8171 = vpack.c.b16 %v8131, %v8129
        %v8172 = vpack.c.b16 %v8132, %v8130
        %v8173 = vpack.c.b16 %v8135, %v8133
        %v8174 = vpack.c.b16 %v8136, %v8134
        %v8175 = vpack.c.b16 %v8139, %v8137
        %v8176 = vpack.c.b16 %v8140, %v8138
        %v8177 = vpack.c.b16 %v8143, %v8141
        %v8178 = vpack.c.b16 %v8144, %v8142
        %v8179 = vpack.c.b16 %v8147, %v8145
        %v8180 = vpack.c.b16 %v8148, %v8146
        %8213 = vmatpush.bf16.xpose.msra.mxu0 %v8163
        %8214 = vmatpush.bf16.xpose.msra.mxu0 %v8161
        %8215 = vmatpush.bf16.xpose.msra.mxu0 %v8159
        %8216 = vmatpush.bf16.xpose.msra.mxu0 %v8157
        %8217 = vmatpush.bf16.xpose.msra.mxu0 %v8155
        %8218 = vmatpush.bf16.xpose.msra.mxu0 %v8153
        %8219 = vmatpush.bf16.xpose.msra.mxu0 %v8151
        %8220 = vmatpush.bf16.xpose.msra.mxu0 %v8149
        %8221 = vmatmul.bf16.gmra.mxu0 %v8049
        %v8222 = vpop.f32.mrf.mxu0
        %v8223 = vadd.f32 0.0, %v8222
        %v8224 = vpop.f32.mrf.mxu0
        %8225 = vdwg.mxu0
        %8226 = vmatpush.bf16.xpose.msra.mxu0 %v8164
        %8227 = vmatpush.bf16.xpose.msra.mxu0 %v8162
        %8228 = vmatpush.bf16.xpose.msra.mxu0 %v8160
        %8229 = vmatpush.bf16.xpose.msra.mxu0 %v8158
        %8230 = vmatpush.bf16.xpose.msra.mxu0 %v8156
        %8231 = vmatpush.bf16.xpose.msra.mxu0 %v8154
        %8232 = vmatpush.bf16.xpose.msra.mxu0 %v8152
        %8233 = vmatpush.bf16.xpose.msra.mxu0 %v8150
        %8234 = vmatmul.bf16.gmra.mxu0 %v8050
        %v8235 = vpop.f32.mrf.mxu0
        %v8236 = vadd.f32 %v8223, %v8235
        %v8237 = vpop.f32.mrf.mxu0
        %8238 = vdwg.mxu0
        %8239 = vmatpush.bf16.xpose.msra.mxu0 %v8179
        %8240 = vmatpush.bf16.xpose.msra.mxu0 %v8177
        %8241 = vmatpush.bf16.xpose.msra.mxu0 %v8175
        %8242 = vmatpush.bf16.xpose.msra.mxu0 %v8173
        %8243 = vmatpush.bf16.xpose.msra.mxu0 %v8171
        %8244 = vmatpush.bf16.xpose.msra.mxu0 %v8169
        %8245 = vmatpush.bf16.xpose.msra.mxu0 %v8167
        %8246 = vmatpush.bf16.xpose.msra.mxu0 %v8165
        %8247 = vmatmul.bf16.gmra.mxu0 %v8049
        %v8248 = vpop.f32.mrf.mxu0
        %v8249 = vadd.f32 0.0, %v8248
        %v8250 = vpop.f32.mrf.mxu0
        %8251 = vdwg.mxu0
        %8252 = vmatpush.bf16.xpose.msra.mxu0 %v8180
        %8253 = vmatpush.bf16.xpose.msra.mxu0 %v8178
        %8254 = vmatpush.bf16.xpose.msra.mxu0 %v8176
        %8255 = vmatpush.bf16.xpose.msra.mxu0 %v8174
        %8256 = vmatpush.bf16.xpose.msra.mxu0 %v8172
        %8257 = vmatpush.bf16.xpose.msra.mxu0 %v8170
        %8258 = vmatpush.bf16.xpose.msra.mxu0 %v8168
        %8259 = vmatpush.bf16.xpose.msra.mxu0 %v8166
        %8260 = vmatmul.bf16.gmra.mxu0 %v8050
        %v8261 = vpop.f32.mrf.mxu0
        %v8262 = vadd.f32 %v8249, %v8261
        %v8263 = vpop.f32.mrf.mxu0
        %8264 = vdwg.mxu0
        %v8266 = vunpack.c.l.b16 %v7603
        %v8267 = vunpack.c.h.b16 %v7603
        %v8268 = vpack.c.b16 %v8266, %v8266
        %v8269 = vpack.c.b16 %v8267, %v8267
        %v8304 = vunpack.c.l.b16 %v6160
        %v8305 = vunpack.c.h.b16 %v6160
        %v8306 = vunpack.c.l.b16 %v6161
        %v8307 = vunpack.c.h.b16 %v6161
        %v8308 = vunpack.c.l.b16 %v6162
        %v8309 = vunpack.c.h.b16 %v6162
        %v8310 = vunpack.c.l.b16 %v6163
        %v8311 = vunpack.c.h.b16 %v6163
        %v8312 = vunpack.c.l.b16 %v6164
        %v8313 = vunpack.c.h.b16 %v6164
        %v8314 = vunpack.c.l.b16 %v6165
        %v8315 = vunpack.c.h.b16 %v6165
        %v8316 = vunpack.c.l.b16 %v6166
        %v8317 = vunpack.c.h.b16 %v6166
        %v8318 = vunpack.c.l.b16 %v6167
        %v8319 = vunpack.c.h.b16 %v6167
        %v8320 = vunpack.c.l.b16 %v6168
        %v8321 = vunpack.c.h.b16 %v6168
        %v8322 = vunpack.c.l.b16 %v6169
        %v8323 = vunpack.c.h.b16 %v6169
        %v8324 = vunpack.c.l.b16 %v6170
        %v8325 = vunpack.c.h.b16 %v6170
        %v8326 = vunpack.c.l.b16 %v6171
        %v8327 = vunpack.c.h.b16 %v6171
        %v8328 = vunpack.c.l.b16 %v6172
        %v8329 = vunpack.c.h.b16 %v6172
        %v8330 = vunpack.c.l.b16 %v6173
        %v8331 = vunpack.c.h.b16 %v6173
        %v8332 = vunpack.c.l.b16 %v6174
        %v8333 = vunpack.c.h.b16 %v6174
        %v8334 = vunpack.c.l.b16 %v6175
        %v8335 = vunpack.c.h.b16 %v6175
        %v8336 = vunpack.c.l.b16 %v6176
        %v8337 = vunpack.c.h.b16 %v6176
        %v8338 = vunpack.c.l.b16 %v6177
        %v8339 = vunpack.c.h.b16 %v6177
        %v8340 = vunpack.c.l.b16 %v6178
        %v8341 = vunpack.c.h.b16 %v6178
        %v8342 = vunpack.c.l.b16 %v6179
        %v8343 = vunpack.c.h.b16 %v6179
        %v8344 = vunpack.c.l.b16 %v6180
        %v8345 = vunpack.c.h.b16 %v6180
        %v8346 = vunpack.c.l.b16 %v6181
        %v8347 = vunpack.c.h.b16 %v6181
        %v8348 = vunpack.c.l.b16 %v6182
        %v8349 = vunpack.c.h.b16 %v6182
        %v8350 = vunpack.c.l.b16 %v6183
        %v8351 = vunpack.c.h.b16 %v6183
        %v8352 = vunpack.c.l.b16 %v6184
        %v8353 = vunpack.c.h.b16 %v6184
        %v8354 = vunpack.c.l.b16 %v6185
        %v8355 = vunpack.c.h.b16 %v6185
        %v8356 = vunpack.c.l.b16 %v6186
        %v8357 = vunpack.c.h.b16 %v6186
        %v8358 = vunpack.c.l.b16 %v6187
        %v8359 = vunpack.c.h.b16 %v6187
        %v8360 = vunpack.c.l.b16 %v6188
        %v8361 = vunpack.c.h.b16 %v6188
        %v8362 = vunpack.c.l.b16 %v6189
        %v8363 = vunpack.c.h.b16 %v6189
        %v8364 = vunpack.c.l.b16 %v6190
        %v8365 = vunpack.c.h.b16 %v6190
        %v8366 = vunpack.c.l.b16 %v6191
        %v8367 = vunpack.c.h.b16 %v6191
        %v8368 = vpack.c.b16 %v8306, %v8304
        %v8369 = vpack.c.b16 %v8307, %v8305
        %v8370 = vpack.c.b16 %v8310, %v8308
        %v8371 = vpack.c.b16 %v8311, %v8309
        %v8372 = vpack.c.b16 %v8314, %v8312
        %v8373 = vpack.c.b16 %v8315, %v8313
        %v8374 = vpack.c.b16 %v8318, %v8316
        %v8375 = vpack.c.b16 %v8319, %v8317
        %v8376 = vpack.c.b16 %v8322, %v8320
        %v8377 = vpack.c.b16 %v8323, %v8321
        %v8378 = vpack.c.b16 %v8326, %v8324
        %v8379 = vpack.c.b16 %v8327, %v8325
        %v8380 = vpack.c.b16 %v8330, %v8328
        %v8381 = vpack.c.b16 %v8331, %v8329
        %v8382 = vpack.c.b16 %v8334, %v8332
        %v8383 = vpack.c.b16 %v8335, %v8333
        %v8384 = vpack.c.b16 %v8338, %v8336
        %v8385 = vpack.c.b16 %v8339, %v8337
        %v8386 = vpack.c.b16 %v8342, %v8340
        %v8387 = vpack.c.b16 %v8343, %v8341
        %v8388 = vpack.c.b16 %v8346, %v8344
        %v8389 = vpack.c.b16 %v8347, %v8345
        %v8390 = vpack.c.b16 %v8350, %v8348
        %v8391 = vpack.c.b16 %v8351, %v8349
        %v8392 = vpack.c.b16 %v8354, %v8352
        %v8393 = vpack.c.b16 %v8355, %v8353
        %v8394 = vpack.c.b16 %v8358, %v8356
        %v8395 = vpack.c.b16 %v8359, %v8357
        %v8396 = vpack.c.b16 %v8362, %v8360
        %v8397 = vpack.c.b16 %v8363, %v8361
        %v8398 = vpack.c.b16 %v8366, %v8364
        %v8399 = vpack.c.b16 %v8367, %v8365
        %8432 = vmatpush.bf16.xpose.msra.mxu0 %v8382
        %8433 = vmatpush.bf16.xpose.msra.mxu0 %v8380
        %8434 = vmatpush.bf16.xpose.msra.mxu0 %v8378
        %8435 = vmatpush.bf16.xpose.msra.mxu0 %v8376
        %8436 = vmatpush.bf16.xpose.msra.mxu0 %v8374
        %8437 = vmatpush.bf16.xpose.msra.mxu0 %v8372
        %8438 = vmatpush.bf16.xpose.msra.mxu0 %v8370
        %8439 = vmatpush.bf16.xpose.msra.mxu0 %v8368
        %8440 = vmatmul.bf16.gmra.mxu0 %v8268
        %v8441 = vpop.f32.mrf.mxu0
        %v8442 = vadd.f32 0.0, %v8441
        %v8443 = vpop.f32.mrf.mxu0
        %8444 = vdwg.mxu0
        %8445 = vmatpush.bf16.xpose.msra.mxu0 %v8383
        %8446 = vmatpush.bf16.xpose.msra.mxu0 %v8381
        %8447 = vmatpush.bf16.xpose.msra.mxu0 %v8379
        %8448 = vmatpush.bf16.xpose.msra.mxu0 %v8377
        %8449 = vmatpush.bf16.xpose.msra.mxu0 %v8375
        %8450 = vmatpush.bf16.xpose.msra.mxu0 %v8373
        %8451 = vmatpush.bf16.xpose.msra.mxu0 %v8371
        %8452 = vmatpush.bf16.xpose.msra.mxu0 %v8369
        %8453 = vmatmul.bf16.gmra.mxu0 %v8269
        %v8454 = vpop.f32.mrf.mxu0
        %v8455 = vadd.f32 %v8442, %v8454
        %v8456 = vpop.f32.mrf.mxu0
        %8457 = vdwg.mxu0
        %8458 = vmatpush.bf16.xpose.msra.mxu0 %v8398
        %8459 = vmatpush.bf16.xpose.msra.mxu0 %v8396
        %8460 = vmatpush.bf16.xpose.msra.mxu0 %v8394
        %8461 = vmatpush.bf16.xpose.msra.mxu0 %v8392
        %8462 = vmatpush.bf16.xpose.msra.mxu0 %v8390
        %8463 = vmatpush.bf16.xpose.msra.mxu0 %v8388
        %8464 = vmatpush.bf16.xpose.msra.mxu0 %v8386
        %8465 = vmatpush.bf16.xpose.msra.mxu0 %v8384
        %8466 = vmatmul.bf16.gmra.mxu0 %v8268
        %v8467 = vpop.f32.mrf.mxu0
        %v8468 = vadd.f32 0.0, %v8467
        %v8469 = vpop.f32.mrf.mxu0
        %8470 = vdwg.mxu0
        %8471 = vmatpush.bf16.xpose.msra.mxu0 %v8399
        %8472 = vmatpush.bf16.xpose.msra.mxu0 %v8397
        %8473 = vmatpush.bf16.xpose.msra.mxu0 %v8395
        %8474 = vmatpush.bf16.xpose.msra.mxu0 %v8393
        %8475 = vmatpush.bf16.xpose.msra.mxu0 %v8391
        %8476 = vmatpush.bf16.xpose.msra.mxu0 %v8389
        %8477 = vmatpush.bf16.xpose.msra.mxu0 %v8387
        %8478 = vmatpush.bf16.xpose.msra.mxu0 %v8385
        %8479 = vmatmul.bf16.gmra.mxu0 %v8269
        %v8480 = vpop.f32.mrf.mxu0
        %v8481 = vadd.f32 %v8468, %v8480
        %v8482 = vpop.f32.mrf.mxu0
        %8483 = vdwg.mxu0
        %v8485 = vunpack.c.l.b16 %v7604
        %v8486 = vunpack.c.h.b16 %v7604
        %v8487 = vpack.c.b16 %v8485, %v8485
        %v8488 = vpack.c.b16 %v8486, %v8486
        %v8523 = vunpack.c.l.b16 %v6192
        %v8524 = vunpack.c.h.b16 %v6192
        %v8525 = vunpack.c.l.b16 %v6193
        %v8526 = vunpack.c.h.b16 %v6193
        %v8527 = vunpack.c.l.b16 %v6194
        %v8528 = vunpack.c.h.b16 %v6194
        %v8529 = vunpack.c.l.b16 %v6195
        %v8530 = vunpack.c.h.b16 %v6195
        %v8531 = vunpack.c.l.b16 %v6196
        %v8532 = vunpack.c.h.b16 %v6196
        %v8533 = vunpack.c.l.b16 %v6197
        %v8534 = vunpack.c.h.b16 %v6197
        %v8535 = vunpack.c.l.b16 %v6198
        %v8536 = vunpack.c.h.b16 %v6198
        %v8537 = vunpack.c.l.b16 %v6199
        %v8538 = vunpack.c.h.b16 %v6199
        %v8539 = vunpack.c.l.b16 %v6200
        %v8540 = vunpack.c.h.b16 %v6200
        %v8541 = vunpack.c.l.b16 %v6201
        %v8542 = vunpack.c.h.b16 %v6201
        %v8543 = vunpack.c.l.b16 %v6202
        %v8544 = vunpack.c.h.b16 %v6202
        %v8545 = vunpack.c.l.b16 %v6203
        %v8546 = vunpack.c.h.b16 %v6203
        %v8547 = vunpack.c.l.b16 %v6204
        %v8548 = vunpack.c.h.b16 %v6204
        %v8549 = vunpack.c.l.b16 %v6205
        %v8550 = vunpack.c.h.b16 %v6205
        %v8551 = vunpack.c.l.b16 %v6206
        %v8552 = vunpack.c.h.b16 %v6206
        %v8553 = vunpack.c.l.b16 %v6207
        %v8554 = vunpack.c.h.b16 %v6207
        %v8555 = vunpack.c.l.b16 %v6208
        %v8556 = vunpack.c.h.b16 %v6208
        %v8557 = vunpack.c.l.b16 %v6209
        %v8558 = vunpack.c.h.b16 %v6209
        %v8559 = vunpack.c.l.b16 %v6210
        %v8560 = vunpack.c.h.b16 %v6210
        %v8561 = vunpack.c.l.b16 %v6211
        %v8562 = vunpack.c.h.b16 %v6211
        %v8563 = vunpack.c.l.b16 %v6212
        %v8564 = vunpack.c.h.b16 %v6212
        %v8565 = vunpack.c.l.b16 %v6213
        %v8566 = vunpack.c.h.b16 %v6213
        %v8567 = vunpack.c.l.b16 %v6214
        %v8568 = vunpack.c.h.b16 %v6214
        %v8569 = vunpack.c.l.b16 %v6215
        %v8570 = vunpack.c.h.b16 %v6215
        %v8571 = vunpack.c.l.b16 %v6216
        %v8572 = vunpack.c.h.b16 %v6216
        %v8573 = vunpack.c.l.b16 %v6217
        %v8574 = vunpack.c.h.b16 %v6217
        %v8575 = vunpack.c.l.b16 %v6218
        %v8576 = vunpack.c.h.b16 %v6218
        %v8577 = vunpack.c.l.b16 %v6219
        %v8578 = vunpack.c.h.b16 %v6219
        %v8579 = vunpack.c.l.b16 %v6220
        %v8580 = vunpack.c.h.b16 %v6220
        %v8581 = vunpack.c.l.b16 %v6221
        %v8582 = vunpack.c.h.b16 %v6221
        %v8583 = vunpack.c.l.b16 %v6222
        %v8584 = vunpack.c.h.b16 %v6222
        %v8585 = vunpack.c.l.b16 %v6223
        %v8586 = vunpack.c.h.b16 %v6223
        %v8587 = vpack.c.b16 %v8525, %v8523
        %v8588 = vpack.c.b16 %v8526, %v8524
        %v8589 = vpack.c.b16 %v8529, %v8527
        %v8590 = vpack.c.b16 %v8530, %v8528
        %v8591 = vpack.c.b16 %v8533, %v8531
        %v8592 = vpack.c.b16 %v8534, %v8532
        %v8593 = vpack.c.b16 %v8537, %v8535
        %v8594 = vpack.c.b16 %v8538, %v8536
        %v8595 = vpack.c.b16 %v8541, %v8539
        %v8596 = vpack.c.b16 %v8542, %v8540
        %v8597 = vpack.c.b16 %v8545, %v8543
        %v8598 = vpack.c.b16 %v8546, %v8544
        %v8599 = vpack.c.b16 %v8549, %v8547
        %v8600 = vpack.c.b16 %v8550, %v8548
        %v8601 = vpack.c.b16 %v8553, %v8551
        %v8602 = vpack.c.b16 %v8554, %v8552
        %v8603 = vpack.c.b16 %v8557, %v8555
        %v8604 = vpack.c.b16 %v8558, %v8556
        %v8605 = vpack.c.b16 %v8561, %v8559
        %v8606 = vpack.c.b16 %v8562, %v8560
        %v8607 = vpack.c.b16 %v8565, %v8563
        %v8608 = vpack.c.b16 %v8566, %v8564
        %v8609 = vpack.c.b16 %v8569, %v8567
        %v8610 = vpack.c.b16 %v8570, %v8568
        %v8611 = vpack.c.b16 %v8573, %v8571
        %v8612 = vpack.c.b16 %v8574, %v8572
        %v8613 = vpack.c.b16 %v8577, %v8575
        %v8614 = vpack.c.b16 %v8578, %v8576
        %v8615 = vpack.c.b16 %v8581, %v8579
        %v8616 = vpack.c.b16 %v8582, %v8580
        %v8617 = vpack.c.b16 %v8585, %v8583
        %v8618 = vpack.c.b16 %v8586, %v8584
        %8651 = vmatpush.bf16.xpose.msra.mxu0 %v8601
        %8652 = vmatpush.bf16.xpose.msra.mxu0 %v8599
        %8653 = vmatpush.bf16.xpose.msra.mxu0 %v8597
        %8654 = vmatpush.bf16.xpose.msra.mxu0 %v8595
        %8655 = vmatpush.bf16.xpose.msra.mxu0 %v8593
        %8656 = vmatpush.bf16.xpose.msra.mxu0 %v8591
        %8657 = vmatpush.bf16.xpose.msra.mxu0 %v8589
        %8658 = vmatpush.bf16.xpose.msra.mxu0 %v8587
        %8659 = vmatmul.bf16.gmra.mxu0 %v8487
        %v8660 = vpop.f32.mrf.mxu0
        %v8661 = vadd.f32 0.0, %v8660
        %v8662 = vpop.f32.mrf.mxu0
        %8663 = vdwg.mxu0
        %8664 = vmatpush.bf16.xpose.msra.mxu0 %v8602
        %8665 = vmatpush.bf16.xpose.msra.mxu0 %v8600
        %8666 = vmatpush.bf16.xpose.msra.mxu0 %v8598
        %8667 = vmatpush.bf16.xpose.msra.mxu0 %v8596
        %8668 = vmatpush.bf16.xpose.msra.mxu0 %v8594
        %8669 = vmatpush.bf16.xpose.msra.mxu0 %v8592
        %8670 = vmatpush.bf16.xpose.msra.mxu0 %v8590
        %8671 = vmatpush.bf16.xpose.msra.mxu0 %v8588
        %8672 = vmatmul.bf16.gmra.mxu0 %v8488
        %v8673 = vpop.f32.mrf.mxu0
        %v8674 = vadd.f32 %v8661, %v8673
        %v8675 = vpop.f32.mrf.mxu0
        %8676 = vdwg.mxu0
        %8677 = vmatpush.bf16.xpose.msra.mxu0 %v8617
        %8678 = vmatpush.bf16.xpose.msra.mxu0 %v8615
        %8679 = vmatpush.bf16.xpose.msra.mxu0 %v8613
        %8680 = vmatpush.bf16.xpose.msra.mxu0 %v8611
        %8681 = vmatpush.bf16.xpose.msra.mxu0 %v8609
        %8682 = vmatpush.bf16.xpose.msra.mxu0 %v8607
        %8683 = vmatpush.bf16.xpose.msra.mxu0 %v8605
        %8684 = vmatpush.bf16.xpose.msra.mxu0 %v8603
        %8685 = vmatmul.bf16.gmra.mxu0 %v8487
        %v8686 = vpop.f32.mrf.mxu0
        %v8687 = vadd.f32 0.0, %v8686
        %v8688 = vpop.f32.mrf.mxu0
        %8689 = vdwg.mxu0
        %8690 = vmatpush.bf16.xpose.msra.mxu0 %v8618
        %8691 = vmatpush.bf16.xpose.msra.mxu0 %v8616
        %8692 = vmatpush.bf16.xpose.msra.mxu0 %v8614
        %8693 = vmatpush.bf16.xpose.msra.mxu0 %v8612
        %8694 = vmatpush.bf16.xpose.msra.mxu0 %v8610
        %8695 = vmatpush.bf16.xpose.msra.mxu0 %v8608
        %8696 = vmatpush.bf16.xpose.msra.mxu0 %v8606
        %8697 = vmatpush.bf16.xpose.msra.mxu0 %v8604
        %8698 = vmatmul.bf16.gmra.mxu0 %v8488
        %v8699 = vpop.f32.mrf.mxu0
        %v8700 = vadd.f32 %v8687, %v8699
        %v8701 = vpop.f32.mrf.mxu0
        %8702 = vdwg.mxu0
        %v8704 = vunpack.c.l.b16 %v7605
        %v8705 = vunpack.c.h.b16 %v7605
        %v8706 = vpack.c.b16 %v8704, %v8704
        %v8707 = vpack.c.b16 %v8705, %v8705
        %v8742 = vunpack.c.l.b16 %v6224
        %v8743 = vunpack.c.h.b16 %v6224
        %v8744 = vunpack.c.l.b16 %v6225
        %v8745 = vunpack.c.h.b16 %v6225
        %v8746 = vunpack.c.l.b16 %v6226
        %v8747 = vunpack.c.h.b16 %v6226
        %v8748 = vunpack.c.l.b16 %v6227
        %v8749 = vunpack.c.h.b16 %v6227
        %v8750 = vunpack.c.l.b16 %v6228
        %v8751 = vunpack.c.h.b16 %v6228
        %v8752 = vunpack.c.l.b16 %v6229
        %v8753 = vunpack.c.h.b16 %v6229
        %v8754 = vunpack.c.l.b16 %v6230
        %v8755 = vunpack.c.h.b16 %v6230
        %v8756 = vunpack.c.l.b16 %v6231
        %v8757 = vunpack.c.h.b16 %v6231
        %v8758 = vunpack.c.l.b16 %v6232
        %v8759 = vunpack.c.h.b16 %v6232
        %v8760 = vunpack.c.l.b16 %v6233
        %v8761 = vunpack.c.h.b16 %v6233
        %v8762 = vunpack.c.l.b16 %v6234
        %v8763 = vunpack.c.h.b16 %v6234
        %v8764 = vunpack.c.l.b16 %v6235
        %v8765 = vunpack.c.h.b16 %v6235
        %v8766 = vunpack.c.l.b16 %v6236
        %v8767 = vunpack.c.h.b16 %v6236
        %v8768 = vunpack.c.l.b16 %v6237
        %v8769 = vunpack.c.h.b16 %v6237
        %v8770 = vunpack.c.l.b16 %v6238
        %v8771 = vunpack.c.h.b16 %v6238
        %v8772 = vunpack.c.l.b16 %v6239
        %v8773 = vunpack.c.h.b16 %v6239
        %v8774 = vunpack.c.l.b16 %v6240
        %v8775 = vunpack.c.h.b16 %v6240
        %v8776 = vunpack.c.l.b16 %v6241
        %v8777 = vunpack.c.h.b16 %v6241
        %v8778 = vunpack.c.l.b16 %v6242
        %v8779 = vunpack.c.h.b16 %v6242
        %v8780 = vunpack.c.l.b16 %v6243
        %v8781 = vunpack.c.h.b16 %v6243
        %v8782 = vunpack.c.l.b16 %v6244
        %v8783 = vunpack.c.h.b16 %v6244
        %v8784 = vunpack.c.l.b16 %v6245
        %v8785 = vunpack.c.h.b16 %v6245
        %v8786 = vunpack.c.l.b16 %v6246
        %v8787 = vunpack.c.h.b16 %v6246
        %v8788 = vunpack.c.l.b16 %v6247
        %v8789 = vunpack.c.h.b16 %v6247
        %v8790 = vunpack.c.l.b16 %v6248
        %v8791 = vunpack.c.h.b16 %v6248
        %v8792 = vunpack.c.l.b16 %v6249
        %v8793 = vunpack.c.h.b16 %v6249
        %v8794 = vunpack.c.l.b16 %v6250
        %v8795 = vunpack.c.h.b16 %v6250
        %v8796 = vunpack.c.l.b16 %v6251
        %v8797 = vunpack.c.h.b16 %v6251
        %v8798 = vunpack.c.l.b16 %v6252
        %v8799 = vunpack.c.h.b16 %v6252
        %v8800 = vunpack.c.l.b16 %v6253
        %v8801 = vunpack.c.h.b16 %v6253
        %v8802 = vunpack.c.l.b16 %v6254
        %v8803 = vunpack.c.h.b16 %v6254
        %v8804 = vunpack.c.l.b16 %v6255
        %v8805 = vunpack.c.h.b16 %v6255
        %v8806 = vpack.c.b16 %v8744, %v8742
        %v8807 = vpack.c.b16 %v8745, %v8743
        %v8808 = vpack.c.b16 %v8748, %v8746
        %v8809 = vpack.c.b16 %v8749, %v8747
        %v8810 = vpack.c.b16 %v8752, %v8750
        %v8811 = vpack.c.b16 %v8753, %v8751
        %v8812 = vpack.c.b16 %v8756, %v8754
        %v8813 = vpack.c.b16 %v8757, %v8755
        %v8814 = vpack.c.b16 %v8760, %v8758
        %v8815 = vpack.c.b16 %v8761, %v8759
        %v8816 = vpack.c.b16 %v8764, %v8762
        %v8817 = vpack.c.b16 %v8765, %v8763
        %v8818 = vpack.c.b16 %v8768, %v8766
        %v8819 = vpack.c.b16 %v8769, %v8767
        %v8820 = vpack.c.b16 %v8772, %v8770
        %v8821 = vpack.c.b16 %v8773, %v8771
        %v8822 = vpack.c.b16 %v8776, %v8774
        %v8823 = vpack.c.b16 %v8777, %v8775
        %v8824 = vpack.c.b16 %v8780, %v8778
        %v8825 = vpack.c.b16 %v8781, %v8779
        %v8826 = vpack.c.b16 %v8784, %v8782
        %v8827 = vpack.c.b16 %v8785, %v8783
        %v8828 = vpack.c.b16 %v8788, %v8786
        %v8829 = vpack.c.b16 %v8789, %v8787
        %v8830 = vpack.c.b16 %v8792, %v8790
        %v8831 = vpack.c.b16 %v8793, %v8791
        %v8832 = vpack.c.b16 %v8796, %v8794
        %v8833 = vpack.c.b16 %v8797, %v8795
        %v8834 = vpack.c.b16 %v8800, %v8798
        %v8835 = vpack.c.b16 %v8801, %v8799
        %v8836 = vpack.c.b16 %v8804, %v8802
        %v8837 = vpack.c.b16 %v8805, %v8803
        %8870 = vmatpush.bf16.xpose.msra.mxu0 %v8820
        %8871 = vmatpush.bf16.xpose.msra.mxu0 %v8818
        %8872 = vmatpush.bf16.xpose.msra.mxu0 %v8816
        %8873 = vmatpush.bf16.xpose.msra.mxu0 %v8814
        %8874 = vmatpush.bf16.xpose.msra.mxu0 %v8812
        %8875 = vmatpush.bf16.xpose.msra.mxu0 %v8810
        %8876 = vmatpush.bf16.xpose.msra.mxu0 %v8808
        %8877 = vmatpush.bf16.xpose.msra.mxu0 %v8806
        %8878 = vmatmul.bf16.gmra.mxu0 %v8706
        %v8879 = vpop.f32.mrf.mxu0
        %v8880 = vadd.f32 0.0, %v8879
        %v8881 = vpop.f32.mrf.mxu0
        %8882 = vdwg.mxu0
        %8883 = vmatpush.bf16.xpose.msra.mxu0 %v8821
        %8884 = vmatpush.bf16.xpose.msra.mxu0 %v8819
        %8885 = vmatpush.bf16.xpose.msra.mxu0 %v8817
        %8886 = vmatpush.bf16.xpose.msra.mxu0 %v8815
        %8887 = vmatpush.bf16.xpose.msra.mxu0 %v8813
        %8888 = vmatpush.bf16.xpose.msra.mxu0 %v8811
        %8889 = vmatpush.bf16.xpose.msra.mxu0 %v8809
        %8890 = vmatpush.bf16.xpose.msra.mxu0 %v8807
        %8891 = vmatmul.bf16.gmra.mxu0 %v8707
        %v8892 = vpop.f32.mrf.mxu0
        %v8893 = vadd.f32 %v8880, %v8892
        %v8894 = vpop.f32.mrf.mxu0
        %8895 = vdwg.mxu0
        %8896 = vmatpush.bf16.xpose.msra.mxu0 %v8836
        %8897 = vmatpush.bf16.xpose.msra.mxu0 %v8834
        %8898 = vmatpush.bf16.xpose.msra.mxu0 %v8832
        %8899 = vmatpush.bf16.xpose.msra.mxu0 %v8830
        %8900 = vmatpush.bf16.xpose.msra.mxu0 %v8828
        %8901 = vmatpush.bf16.xpose.msra.mxu0 %v8826
        %8902 = vmatpush.bf16.xpose.msra.mxu0 %v8824
        %8903 = vmatpush.bf16.xpose.msra.mxu0 %v8822
        %8904 = vmatmul.bf16.gmra.mxu0 %v8706
        %v8905 = vpop.f32.mrf.mxu0
        %v8906 = vadd.f32 0.0, %v8905
        %v8907 = vpop.f32.mrf.mxu0
        %8908 = vdwg.mxu0
        %8909 = vmatpush.bf16.xpose.msra.mxu0 %v8837
        %8910 = vmatpush.bf16.xpose.msra.mxu0 %v8835
        %8911 = vmatpush.bf16.xpose.msra.mxu0 %v8833
        %8912 = vmatpush.bf16.xpose.msra.mxu0 %v8831
        %8913 = vmatpush.bf16.xpose.msra.mxu0 %v8829
        %8914 = vmatpush.bf16.xpose.msra.mxu0 %v8827
        %8915 = vmatpush.bf16.xpose.msra.mxu0 %v8825
        %8916 = vmatpush.bf16.xpose.msra.mxu0 %v8823
        %8917 = vmatmul.bf16.gmra.mxu0 %v8707
        %v8918 = vpop.f32.mrf.mxu0
        %v8919 = vadd.f32 %v8906, %v8918
        %v8920 = vpop.f32.mrf.mxu0
        %8921 = vdwg.mxu0
        %v8923 = vunpack.c.l.b16 %v7606
        %v8924 = vunpack.c.h.b16 %v7606
        %v8925 = vpack.c.b16 %v8923, %v8923
        %v8926 = vpack.c.b16 %v8924, %v8924
        %v8961 = vunpack.c.l.b16 %v6256
        %v8962 = vunpack.c.h.b16 %v6256
        %v8963 = vunpack.c.l.b16 %v6257
        %v8964 = vunpack.c.h.b16 %v6257
        %v8965 = vunpack.c.l.b16 %v6258
        %v8966 = vunpack.c.h.b16 %v6258
        %v8967 = vunpack.c.l.b16 %v6259
        %v8968 = vunpack.c.h.b16 %v6259
        %v8969 = vunpack.c.l.b16 %v6260
        %v8970 = vunpack.c.h.b16 %v6260
        %v8971 = vunpack.c.l.b16 %v6261
        %v8972 = vunpack.c.h.b16 %v6261
        %v8973 = vunpack.c.l.b16 %v6262
        %v8974 = vunpack.c.h.b16 %v6262
        %v8975 = vunpack.c.l.b16 %v6263
        %v8976 = vunpack.c.h.b16 %v6263
        %v8977 = vunpack.c.l.b16 %v6264
        %v8978 = vunpack.c.h.b16 %v6264
        %v8979 = vunpack.c.l.b16 %v6265
        %v8980 = vunpack.c.h.b16 %v6265
        %v8981 = vunpack.c.l.b16 %v6266
        %v8982 = vunpack.c.h.b16 %v6266
        %v8983 = vunpack.c.l.b16 %v6267
        %v8984 = vunpack.c.h.b16 %v6267
        %v8985 = vunpack.c.l.b16 %v6268
        %v8986 = vunpack.c.h.b16 %v6268
        %v8987 = vunpack.c.l.b16 %v6269
        %v8988 = vunpack.c.h.b16 %v6269
        %v8989 = vunpack.c.l.b16 %v6270
        %v8990 = vunpack.c.h.b16 %v6270
        %v8991 = vunpack.c.l.b16 %v6271
        %v8992 = vunpack.c.h.b16 %v6271
        %v8993 = vunpack.c.l.b16 %v6272
        %v8994 = vunpack.c.h.b16 %v6272
        %v8995 = vunpack.c.l.b16 %v6273
        %v8996 = vunpack.c.h.b16 %v6273
        %v8997 = vunpack.c.l.b16 %v6274
        %v8998 = vunpack.c.h.b16 %v6274
        %v8999 = vunpack.c.l.b16 %v6275
        %v9000 = vunpack.c.h.b16 %v6275
        %v9001 = vunpack.c.l.b16 %v6276
        %v9002 = vunpack.c.h.b16 %v6276
        %v9003 = vunpack.c.l.b16 %v6277
        %v9004 = vunpack.c.h.b16 %v6277
        %v9005 = vunpack.c.l.b16 %v6278
        %v9006 = vunpack.c.h.b16 %v6278
        %v9007 = vunpack.c.l.b16 %v6279
        %v9008 = vunpack.c.h.b16 %v6279
        %v9009 = vunpack.c.l.b16 %v6280
        %v9010 = vunpack.c.h.b16 %v6280
        %v9011 = vunpack.c.l.b16 %v6281
        %v9012 = vunpack.c.h.b16 %v6281
        %v9013 = vunpack.c.l.b16 %v6282
        %v9014 = vunpack.c.h.b16 %v6282
        %v9015 = vunpack.c.l.b16 %v6283
        %v9016 = vunpack.c.h.b16 %v6283
        %v9017 = vunpack.c.l.b16 %v6284
        %v9018 = vunpack.c.h.b16 %v6284
        %v9019 = vunpack.c.l.b16 %v6285
        %v9020 = vunpack.c.h.b16 %v6285
        %v9021 = vunpack.c.l.b16 %v6286
        %v9022 = vunpack.c.h.b16 %v6286
        %v9023 = vunpack.c.l.b16 %v6287
        %v9024 = vunpack.c.h.b16 %v6287
        %v9025 = vpack.c.b16 %v8963, %v8961
        %v9026 = vpack.c.b16 %v8964, %v8962
        %v9027 = vpack.c.b16 %v8967, %v8965
        %v9028 = vpack.c.b16 %v8968, %v8966
        %v9029 = vpack.c.b16 %v8971, %v8969
        %v9030 = vpack.c.b16 %v8972, %v8970
        %v9031 = vpack.c.b16 %v8975, %v8973
        %v9032 = vpack.c.b16 %v8976, %v8974
        %v9033 = vpack.c.b16 %v8979, %v8977
        %v9034 = vpack.c.b16 %v8980, %v8978
        %v9035 = vpack.c.b16 %v8983, %v8981
        %v9036 = vpack.c.b16 %v8984, %v8982
        %v9037 = vpack.c.b16 %v8987, %v8985
        %v9038 = vpack.c.b16 %v8988, %v8986
        %v9039 = vpack.c.b16 %v8991, %v8989
        %v9040 = vpack.c.b16 %v8992, %v8990
        %v9041 = vpack.c.b16 %v8995, %v8993
        %v9042 = vpack.c.b16 %v8996, %v8994
        %v9043 = vpack.c.b16 %v8999, %v8997
        %v9044 = vpack.c.b16 %v9000, %v8998
        %v9045 = vpack.c.b16 %v9003, %v9001
        %v9046 = vpack.c.b16 %v9004, %v9002
        %v9047 = vpack.c.b16 %v9007, %v9005
        %v9048 = vpack.c.b16 %v9008, %v9006
        %v9049 = vpack.c.b16 %v9011, %v9009
        %v9050 = vpack.c.b16 %v9012, %v9010
        %v9051 = vpack.c.b16 %v9015, %v9013
        %v9052 = vpack.c.b16 %v9016, %v9014
        %v9053 = vpack.c.b16 %v9019, %v9017
        %v9054 = vpack.c.b16 %v9020, %v9018
        %v9055 = vpack.c.b16 %v9023, %v9021
        %v9056 = vpack.c.b16 %v9024, %v9022
        %9089 = vmatpush.bf16.xpose.msra.mxu0 %v9039
        %9090 = vmatpush.bf16.xpose.msra.mxu0 %v9037
        %9091 = vmatpush.bf16.xpose.msra.mxu0 %v9035
        %9092 = vmatpush.bf16.xpose.msra.mxu0 %v9033
        %9093 = vmatpush.bf16.xpose.msra.mxu0 %v9031
        %9094 = vmatpush.bf16.xpose.msra.mxu0 %v9029
        %9095 = vmatpush.bf16.xpose.msra.mxu0 %v9027
        %9096 = vmatpush.bf16.xpose.msra.mxu0 %v9025
        %9097 = vmatmul.bf16.gmra.mxu0 %v8925
        %v9098 = vpop.f32.mrf.mxu0
        %v9099 = vadd.f32 0.0, %v9098
        %v9100 = vpop.f32.mrf.mxu0
        %9101 = vdwg.mxu0
        %9102 = vmatpush.bf16.xpose.msra.mxu0 %v9040
        %9103 = vmatpush.bf16.xpose.msra.mxu0 %v9038
        %9104 = vmatpush.bf16.xpose.msra.mxu0 %v9036
        %9105 = vmatpush.bf16.xpose.msra.mxu0 %v9034
        %9106 = vmatpush.bf16.xpose.msra.mxu0 %v9032
        %9107 = vmatpush.bf16.xpose.msra.mxu0 %v9030
        %9108 = vmatpush.bf16.xpose.msra.mxu0 %v9028
        %9109 = vmatpush.bf16.xpose.msra.mxu0 %v9026
        %9110 = vmatmul.bf16.gmra.mxu0 %v8926
        %v9111 = vpop.f32.mrf.mxu0
        %v9112 = vadd.f32 %v9099, %v9111
        %v9113 = vpop.f32.mrf.mxu0
        %9114 = vdwg.mxu0
        %9115 = vmatpush.bf16.xpose.msra.mxu0 %v9055
        %9116 = vmatpush.bf16.xpose.msra.mxu0 %v9053
        %9117 = vmatpush.bf16.xpose.msra.mxu0 %v9051
        %9118 = vmatpush.bf16.xpose.msra.mxu0 %v9049
        %9119 = vmatpush.bf16.xpose.msra.mxu0 %v9047
        %9120 = vmatpush.bf16.xpose.msra.mxu0 %v9045
        %9121 = vmatpush.bf16.xpose.msra.mxu0 %v9043
        %9122 = vmatpush.bf16.xpose.msra.mxu0 %v9041
        %9123 = vmatmul.bf16.gmra.mxu0 %v8925
        %v9124 = vpop.f32.mrf.mxu0
        %v9125 = vadd.f32 0.0, %v9124
        %v9126 = vpop.f32.mrf.mxu0
        %9127 = vdwg.mxu0
        %9128 = vmatpush.bf16.xpose.msra.mxu0 %v9056
        %9129 = vmatpush.bf16.xpose.msra.mxu0 %v9054
        %9130 = vmatpush.bf16.xpose.msra.mxu0 %v9052
        %9131 = vmatpush.bf16.xpose.msra.mxu0 %v9050
        %9132 = vmatpush.bf16.xpose.msra.mxu0 %v9048
        %9133 = vmatpush.bf16.xpose.msra.mxu0 %v9046
        %9134 = vmatpush.bf16.xpose.msra.mxu0 %v9044
        %9135 = vmatpush.bf16.xpose.msra.mxu0 %v9042
        %9136 = vmatmul.bf16.gmra.mxu0 %v8926
        %v9137 = vpop.f32.mrf.mxu0
        %v9138 = vadd.f32 %v9125, %v9137
        %v9139 = vpop.f32.mrf.mxu0
        %9140 = vdwg.mxu0
        %v9142 = vunpack.c.l.b16 %v7607
        %v9143 = vunpack.c.h.b16 %v7607
        %v9144 = vpack.c.b16 %v9142, %v9142
        %v9145 = vpack.c.b16 %v9143, %v9143
        %v9180 = vunpack.c.l.b16 %v6288
        %v9181 = vunpack.c.h.b16 %v6288
        %v9182 = vunpack.c.l.b16 %v6289
        %v9183 = vunpack.c.h.b16 %v6289
        %v9184 = vunpack.c.l.b16 %v6290
        %v9185 = vunpack.c.h.b16 %v6290
        %v9186 = vunpack.c.l.b16 %v6291
        %v9187 = vunpack.c.h.b16 %v6291
        %v9188 = vunpack.c.l.b16 %v6292
        %v9189 = vunpack.c.h.b16 %v6292
        %v9190 = vunpack.c.l.b16 %v6293
        %v9191 = vunpack.c.h.b16 %v6293
        %v9192 = vunpack.c.l.b16 %v6294
        %v9193 = vunpack.c.h.b16 %v6294
        %v9194 = vunpack.c.l.b16 %v6295
        %v9195 = vunpack.c.h.b16 %v6295
        %v9196 = vunpack.c.l.b16 %v6296
        %v9197 = vunpack.c.h.b16 %v6296
        %v9198 = vunpack.c.l.b16 %v6297
        %v9199 = vunpack.c.h.b16 %v6297
        %v9200 = vunpack.c.l.b16 %v6298
        %v9201 = vunpack.c.h.b16 %v6298
        %v9202 = vunpack.c.l.b16 %v6299
        %v9203 = vunpack.c.h.b16 %v6299
        %v9204 = vunpack.c.l.b16 %v6300
        %v9205 = vunpack.c.h.b16 %v6300
        %v9206 = vunpack.c.l.b16 %v6301
        %v9207 = vunpack.c.h.b16 %v6301
        %v9208 = vunpack.c.l.b16 %v6302
        %v9209 = vunpack.c.h.b16 %v6302
        %v9210 = vunpack.c.l.b16 %v6303
        %v9211 = vunpack.c.h.b16 %v6303
        %v9212 = vunpack.c.l.b16 %v6304
        %v9213 = vunpack.c.h.b16 %v6304
        %v9214 = vunpack.c.l.b16 %v6305
        %v9215 = vunpack.c.h.b16 %v6305
        %v9216 = vunpack.c.l.b16 %v6306
        %v9217 = vunpack.c.h.b16 %v6306
        %v9218 = vunpack.c.l.b16 %v6307
        %v9219 = vunpack.c.h.b16 %v6307
        %v9220 = vunpack.c.l.b16 %v6308
        %v9221 = vunpack.c.h.b16 %v6308
        %v9222 = vunpack.c.l.b16 %v6309
        %v9223 = vunpack.c.h.b16 %v6309
        %v9224 = vunpack.c.l.b16 %v6310
        %v9225 = vunpack.c.h.b16 %v6310
        %v9226 = vunpack.c.l.b16 %v6311
        %v9227 = vunpack.c.h.b16 %v6311
        %v9228 = vunpack.c.l.b16 %v6312
        %v9229 = vunpack.c.h.b16 %v6312
        %v9230 = vunpack.c.l.b16 %v6313
        %v9231 = vunpack.c.h.b16 %v6313
        %v9232 = vunpack.c.l.b16 %v6314
        %v9233 = vunpack.c.h.b16 %v6314
        %v9234 = vunpack.c.l.b16 %v6315
        %v9235 = vunpack.c.h.b16 %v6315
        %v9236 = vunpack.c.l.b16 %v6316
        %v9237 = vunpack.c.h.b16 %v6316
        %v9238 = vunpack.c.l.b16 %v6317
        %v9239 = vunpack.c.h.b16 %v6317
        %v9240 = vunpack.c.l.b16 %v6318
        %v9241 = vunpack.c.h.b16 %v6318
        %v9242 = vunpack.c.l.b16 %v6319
        %v9243 = vunpack.c.h.b16 %v6319
        %v9244 = vpack.c.b16 %v9182, %v9180
        %v9245 = vpack.c.b16 %v9183, %v9181
        %v9246 = vpack.c.b16 %v9186, %v9184
        %v9247 = vpack.c.b16 %v9187, %v9185
        %v9248 = vpack.c.b16 %v9190, %v9188
        %v9249 = vpack.c.b16 %v9191, %v9189
        %v9250 = vpack.c.b16 %v9194, %v9192
        %v9251 = vpack.c.b16 %v9195, %v9193
        %v9252 = vpack.c.b16 %v9198, %v9196
        %v9253 = vpack.c.b16 %v9199, %v9197
        %v9254 = vpack.c.b16 %v9202, %v9200
        %v9255 = vpack.c.b16 %v9203, %v9201
        %v9256 = vpack.c.b16 %v9206, %v9204
        %v9257 = vpack.c.b16 %v9207, %v9205
        %v9258 = vpack.c.b16 %v9210, %v9208
        %v9259 = vpack.c.b16 %v9211, %v9209
        %v9260 = vpack.c.b16 %v9214, %v9212
        %v9261 = vpack.c.b16 %v9215, %v9213
        %v9262 = vpack.c.b16 %v9218, %v9216
        %v9263 = vpack.c.b16 %v9219, %v9217
        %v9264 = vpack.c.b16 %v9222, %v9220
        %v9265 = vpack.c.b16 %v9223, %v9221
        %v9266 = vpack.c.b16 %v9226, %v9224
        %v9267 = vpack.c.b16 %v9227, %v9225
        %v9268 = vpack.c.b16 %v9230, %v9228
        %v9269 = vpack.c.b16 %v9231, %v9229
        %v9270 = vpack.c.b16 %v9234, %v9232
        %v9271 = vpack.c.b16 %v9235, %v9233
        %v9272 = vpack.c.b16 %v9238, %v9236
        %v9273 = vpack.c.b16 %v9239, %v9237
        %v9274 = vpack.c.b16 %v9242, %v9240
        %v9275 = vpack.c.b16 %v9243, %v9241
        %9308 = vmatpush.bf16.xpose.msra.mxu0 %v9258
        %9309 = vmatpush.bf16.xpose.msra.mxu0 %v9256
        %9310 = vmatpush.bf16.xpose.msra.mxu0 %v9254
        %9311 = vmatpush.bf16.xpose.msra.mxu0 %v9252
        %9312 = vmatpush.bf16.xpose.msra.mxu0 %v9250
        %9313 = vmatpush.bf16.xpose.msra.mxu0 %v9248
        %9314 = vmatpush.bf16.xpose.msra.mxu0 %v9246
        %9315 = vmatpush.bf16.xpose.msra.mxu0 %v9244
        %9316 = vmatmul.bf16.gmra.mxu0 %v9144
        %v9317 = vpop.f32.mrf.mxu0
        %v9318 = vadd.f32 0.0, %v9317
        %v9319 = vpop.f32.mrf.mxu0
        %9320 = vdwg.mxu0
        %9321 = vmatpush.bf16.xpose.msra.mxu0 %v9259
        %9322 = vmatpush.bf16.xpose.msra.mxu0 %v9257
        %9323 = vmatpush.bf16.xpose.msra.mxu0 %v9255
        %9324 = vmatpush.bf16.xpose.msra.mxu0 %v9253
        %9325 = vmatpush.bf16.xpose.msra.mxu0 %v9251
        %9326 = vmatpush.bf16.xpose.msra.mxu0 %v9249
        %9327 = vmatpush.bf16.xpose.msra.mxu0 %v9247
        %9328 = vmatpush.bf16.xpose.msra.mxu0 %v9245
        %9329 = vmatmul.bf16.gmra.mxu0 %v9145
        %v9330 = vpop.f32.mrf.mxu0
        %v9331 = vadd.f32 %v9318, %v9330
        %v9332 = vpop.f32.mrf.mxu0
        %9333 = vdwg.mxu0
        %9334 = vmatpush.bf16.xpose.msra.mxu0 %v9274
        %9335 = vmatpush.bf16.xpose.msra.mxu0 %v9272
        %9336 = vmatpush.bf16.xpose.msra.mxu0 %v9270
        %9337 = vmatpush.bf16.xpose.msra.mxu0 %v9268
        %9338 = vmatpush.bf16.xpose.msra.mxu0 %v9266
        %9339 = vmatpush.bf16.xpose.msra.mxu0 %v9264
        %9340 = vmatpush.bf16.xpose.msra.mxu0 %v9262
        %9341 = vmatpush.bf16.xpose.msra.mxu0 %v9260
        %9342 = vmatmul.bf16.gmra.mxu0 %v9144
        %v9343 = vpop.f32.mrf.mxu0
        %v9344 = vadd.f32 0.0, %v9343
        %v9345 = vpop.f32.mrf.mxu0
        %9346 = vdwg.mxu0
        %9347 = vmatpush.bf16.xpose.msra.mxu0 %v9275
        %9348 = vmatpush.bf16.xpose.msra.mxu0 %v9273
        %9349 = vmatpush.bf16.xpose.msra.mxu0 %v9271
        %9350 = vmatpush.bf16.xpose.msra.mxu0 %v9269
        %9351 = vmatpush.bf16.xpose.msra.mxu0 %v9267
        %9352 = vmatpush.bf16.xpose.msra.mxu0 %v9265
        %9353 = vmatpush.bf16.xpose.msra.mxu0 %v9263
        %9354 = vmatpush.bf16.xpose.msra.mxu0 %v9261
        %9355 = vmatmul.bf16.gmra.mxu0 %v9145
        %v9356 = vpop.f32.mrf.mxu0
        %v9357 = vadd.f32 %v9344, %v9356
        %v9358 = vpop.f32.mrf.mxu0
        %9359 = vdwg.mxu0
        %v9360 = vrcp.pop %v6834
        %v9361 = vrcp.pop %v6837
        %v9362 = vrcp.pop %v6840
        %v9363 = vrcp.pop %v6843
        %v9364 = vrcp.pop %v6846
        %v9365 = vrcp.pop %v6849
        %v9366 = vrcp.pop %v6852
        %v9367 = vrcp.pop %v6855
        %v9368 = vrcp.pop %v6858
        %v9369 = vrcp.pop %v6861
        %v9370 = vrcp.pop %v6864
        %v9371 = vrcp.pop %v6867
        %v9372 = vrcp.pop %v6870
        %v9373 = vrcp.pop %v6873
        %v9374 = vrcp.pop %v6876
        %v9375 = vrcp.pop %v6879
        %v9376 = vrcp.pop %v6882
        %v9377 = vrcp.pop %v6885
        %v9378 = vrcp.pop %v6888
        %v9379 = vrcp.pop %v6891
        %v9380 = vrcp.pop %v6894
        %v9381 = vrcp.pop %v6897
        %v9382 = vrcp.pop %v6900
        %v9383 = vrcp.pop %v6903
        %v9384 = vrcp.pop %v6906
        %v9385 = vrcp.pop %v6909
        %v9386 = vrcp.pop %v6912
        %v9387 = vrcp.pop %v6915
        %v9388 = vrcp.pop %v6918
        %v9389 = vrcp.pop %v6921
        %v9390 = vrcp.pop %v6924
        %v9391 = vrcp.pop %v6927
        %v9392 = vrcp.pop %v6930
        %v9393 = vrcp.pop %v6933
        %v9394 = vrcp.pop %v6936
        %v9395 = vrcp.pop %v6939
        %v9396 = vrcp.pop %v6942
        %v9397 = vrcp.pop %v6945
        %v9398 = vrcp.pop %v6948
        %v9399 = vrcp.pop %v6951
        %v9400 = vrcp.pop %v6954
        %v9401 = vrcp.pop %v6957
        %v9402 = vrcp.pop %v6960
        %v9403 = vrcp.pop %v6963
        %v9404 = vrcp.pop %v6966
        %v9405 = vrcp.pop %v6969
        %v9406 = vrcp.pop %v6972
        %v9407 = vrcp.pop %v6975
        %v9408 = vrcp.pop %v6978
        %v9409 = vrcp.pop %v6981
        %v9410 = vrcp.pop %v6984
        %v9411 = vrcp.pop %v6987
        %v9412 = vrcp.pop %v6990
        %v9413 = vrcp.pop %v6993
        %v9414 = vrcp.pop %v6996
        %v9415 = vrcp.pop %v6999
        %v9416 = vrcp.pop %v7002
        %v9417 = vrcp.pop %v7005
        %v9418 = vrcp.pop %v7008
        %v9419 = vrcp.pop %v7011
        %v9420 = vrcp.pop %v7014
        %v9421 = vrcp.pop %v7017
        %v9422 = vrcp.pop %v7020
        %v9423 = vrcp.pop %v7023
        %v9424 = vrcp.pop %v7026
        %v9425 = vrcp.pop %v7029
        %v9426 = vrcp.pop %v7032
        %v9427 = vrcp.pop %v7035
        %v9428 = vrcp.pop %v7038
        %v9429 = vrcp.pop %v7041
        %v9430 = vrcp.pop %v7044
        %v9431 = vrcp.pop %v7047
        %v9432 = vrcp.pop %v7050
        %v9433 = vrcp.pop %v7053
        %v9434 = vrcp.pop %v7056
        %v9435 = vrcp.pop %v7059
        %v9436 = vrcp.pop %v7062
        %v9437 = vrcp.pop %v7065
        %v9438 = vrcp.pop %v7068
        %v9439 = vrcp.pop %v7071
        %v9440 = vrcp.pop %v7074
        %v9441 = vrcp.pop %v7077
        %v9442 = vrcp.pop %v7080
        %v9443 = vrcp.pop %v7083
        %v9444 = vrcp.pop %v7086
        %v9445 = vrcp.pop %v7089
        %v9446 = vrcp.pop %v7092
        %v9447 = vrcp.pop %v7095
        %v9448 = vrcp.pop %v7098
        %v9449 = vrcp.pop %v7101
        %v9450 = vrcp.pop %v7104
        %v9451 = vrcp.pop %v7107
        %v9452 = vrcp.pop %v7110
        %v9453 = vrcp.pop %v7113
        %v9454 = vrcp.pop %v7116
        %v9455 = vrcp.pop %v7119
        %v9456 = vrcp.pop %v7122
        %v9457 = vrcp.pop %v7125
        %v9458 = vrcp.pop %v7128
        %v9459 = vrcp.pop %v7131
        %v9460 = vrcp.pop %v7134
        %v9461 = vrcp.pop %v7137
        %v9462 = vrcp.pop %v7140
        %v9463 = vrcp.pop %v7143
        %v9464 = vrcp.pop %v7146
        %v9465 = vrcp.pop %v7149
        %v9466 = vrcp.pop %v7152
        %v9467 = vrcp.pop %v7155
        %v9468 = vrcp.pop %v7158
        %v9469 = vrcp.pop %v7161
        %v9470 = vrcp.pop %v7164
        %v9471 = vrcp.pop %v7167
        %v9472 = vrcp.pop %v7170
        %v9473 = vrcp.pop %v7173
        %v9474 = vrcp.pop %v7176
        %v9475 = vrcp.pop %v7179
        %v9476 = vrcp.pop %v7182
        %v9477 = vrcp.pop %v7185
        %v9478 = vrcp.pop %v7188
        %v9479 = vrcp.pop %v7191
        %v9480 = vrcp.pop %v7194
        %v9481 = vrcp.pop %v7197
        %v9482 = vrcp.pop %v7200
        %v9483 = vrcp.pop %v7203
        %v9484 = vrcp.pop %v7206
        %v9485 = vrcp.pop %v7209
        %v9486 = vrcp.pop %v7212
        %v9487 = vrcp.pop %v7215
        %v9488 = vrcp.pop %v7218
        %v9489 = vrcp.pop %v7221
        %v9490 = vrcp.pop %v7224
        %v9491 = vrcp.pop %v7227
        %v9492 = vrcp.pop %v7230
        %v9493 = vrcp.pop %v7233
        %v9494 = vrcp.pop %v7236
        %v9495 = vrcp.pop %v7239
        %v9496 = vrcp.pop %v7242
        %v9497 = vrcp.pop %v7245
        %v9498 = vrcp.pop %v7248
        %v9499 = vrcp.pop %v7251
        %v9500 = vrcp.pop %v7254
        %v9501 = vrcp.pop %v7257
        %v9502 = vrcp.pop %v7260
        %v9503 = vrcp.pop %v7263
        %v9504 = vrcp.pop %v7266
        %v9505 = vrcp.pop %v7269
        %v9506 = vrcp.pop %v7272
        %v9507 = vrcp.pop %v7275
        %v9508 = vrcp.pop %v7278
        %v9509 = vrcp.pop %v7281
        %v9510 = vrcp.pop %v7284
        %v9511 = vrcp.pop %v7287
        %v9512 = vrcp.pop %v7290
        %v9513 = vrcp.pop %v7293
        %v9514 = vrcp.pop %v7296
        %v9515 = vrcp.pop %v7299
        %v9516 = vrcp.pop %v7302
        %v9517 = vrcp.pop %v7305
        %v9518 = vrcp.pop %v7308
        %v9519 = vrcp.pop %v7311
        %v9520 = vrcp.pop %v7314
        %v9521 = vrcp.pop %v7317
        %v9522 = vrcp.pop %v7320
        %v9523 = vrcp.pop %v7323
        %v9524 = vrcp.pop %v7326
        %v9525 = vrcp.pop %v7329
        %v9526 = vrcp.pop %v7332
        %v9527 = vrcp.pop %v7335
        %v9528 = vrcp.pop %v7338
        %v9529 = vrcp.pop %v7341
        %v9530 = vrcp.pop %v7344
        %v9531 = vrcp.pop %v7347
        %v9532 = vrcp.pop %v7350
        %v9533 = vrcp.pop %v7353
        %v9534 = vrcp.pop %v7356
        %v9535 = vrcp.pop %v7359
        %v9536 = vrcp.pop %v7362
        %v9537 = vrcp.pop %v7365
        %v9538 = vrcp.pop %v7368
        %v9539 = vrcp.pop %v7371
        %v9540 = vrcp.pop %v7374
        %v9541 = vrcp.pop %v7377
        %v9542 = vrcp.pop %v7380
        %v9543 = vrcp.pop %v7383
        %v9544 = vrcp.pop %v7386
        %v9545 = vrcp.pop %v7389
        %v9546 = vrcp.pop %v7392
        %v9547 = vrcp.pop %v7395
        %v9548 = vrcp.pop %v7398
        %v9549 = vrcp.pop %v7401
        %v9550 = vrcp.pop %v7404
        %v9551 = vrcp.pop %v7407
        %v9552 = vrcp.pop %v7410
        %v9553 = vrcp.pop %v7413
        %v9554 = vrcp.pop %v7416
        %v9555 = vrcp.pop %v7419
        %v9556 = vrcp.pop %v7422
        %v9557 = vrcp.pop %v7425
        %v9558 = vrcp.pop %v7428
        %v9559 = vrcp.pop %v7431
        %v9560 = vrcp.pop %v7434
        %v9561 = vrcp.pop %v7437
        %v9562 = vrcp.pop %v7440
        %v9563 = vrcp.pop %v7443
        %v9564 = vrcp.pop %v7446
        %v9565 = vrcp.pop %v7449
        %v9566 = vrcp.pop %v7452
        %v9567 = vrcp.pop %v7455
        %v9568 = vrcp.pop %v7458
        %v9569 = vrcp.pop %v7461
        %v9570 = vrcp.pop %v7464
        %v9571 = vrcp.pop %v7467
        %v9572 = vrcp.pop %v7470
        %v9573 = vrcp.pop %v7473
        %v9574 = vrcp.pop %v7476
        %v9575 = vrcp.pop %v7479
        %v9576 = vrcp.pop %v7482
        %v9577 = vrcp.pop %v7485
        %v9578 = vrcp.pop %v7488
        %v9579 = vrcp.pop %v7491
        %v9580 = vrcp.pop %v7494
        %v9581 = vrcp.pop %v7497
        %v9582 = vrcp.pop %v7500
        %v9583 = vrcp.pop %v7503
        %v9584 = vrcp.pop %v7506
        %v9585 = vrcp.pop %v7509
        %v9586 = vrcp.pop %v7512
        %v9587 = vrcp.pop %v7515
        %v9588 = vrcp.pop %v7518
        %v9589 = vrcp.pop %v7521
        %v9590 = vrcp.pop %v7524
        %v9591 = vrcp.pop %v7527
        %v9592 = vrcp.pop %v7530
        %v9593 = vrcp.pop %v7533
        %v9594 = vrcp.pop %v7536
        %v9595 = vrcp.pop %v7539
        %v9596 = vrcp.pop %v7542
        %v9597 = vrcp.pop %v7545
        %v9598 = vrcp.pop %v7548
        %v9599 = vrcp.pop %v7551
        %v9600 = vrcp.pop %v7554
        %v9601 = vrcp.pop %v7557
        %v9602 = vrcp.pop %v7560
        %v9603 = vrcp.pop %v7563
        %v9604 = vrcp.pop %v7566
        %v9605 = vrcp.pop %v7569
        %v9606 = vrcp.pop %v7572
        %v9607 = vrcp.pop %v7575
        %v9608 = vrcp.pop %v7578
        %v9609 = vrcp.pop %v7581
        %v9610 = vrcp.pop %v7584
        %v9611 = vrcp.pop %v7587
        %v9612 = vrcp.pop %v7590
        %v9613 = vrcp.pop %v7593
        %v9614 = vrcp.pop %v7596
        %v9615 = vrcp.pop %v7599
        %v9872 = vlaneseq
        %v9873 = vand.u32 %v9872, 127
        %v9874 = vperm.slane %v9360, %v9873
        %v9875 = vadd.s32 %v9873, 4294967288
        %v9876 = vperm.slane %v9361, %v9875
        %vm9877 = vcmask 130112
        %v9878 = vsel %vm9877, %v9876, %v9874
        %v9879 = vadd.s32 %v9873, 4294967280
        %v9880 = vperm.slane %v9362, %v9879
        %vm9881 = vcmask 195712
        %v9882 = vsel %vm9881, %v9880, %v9878
        %v9883 = vadd.s32 %v9873, 4294967272
        %v9884 = vperm.slane %v9363, %v9883
        %vm9885 = vcmask 261312
        %v9886 = vsel %vm9885, %v9884, %v9882
        %v9887 = vadd.s32 %v9873, 4294967264
        %v9888 = vperm.slane %v9364, %v9887
        %vm9889 = vcmask 326912
        %v9890 = vsel %vm9889, %v9888, %v9886
        %v9891 = vadd.s32 %v9873, 4294967256
        %v9892 = vperm.slane %v9365, %v9891
        %vm9893 = vcmask 392512
        %v9894 = vsel %vm9893, %v9892, %v9890
        %v9895 = vadd.s32 %v9873, 4294967248
        %v9896 = vperm.slane %v9366, %v9895
        %vm9897 = vcmask 458112
        %v9898 = vsel %vm9897, %v9896, %v9894
        %v9899 = vadd.s32 %v9873, 4294967240
        %v9900 = vperm.slane %v9367, %v9899
        %vm9901 = vcmask 523712
        %v9902 = vsel %vm9901, %v9900, %v9898
        %v9903 = vadd.s32 %v9873, 4294967232
        %v9904 = vperm.slane %v9368, %v9903
        %vm9905 = vcmask 589312
        %v9906 = vsel %vm9905, %v9904, %v9902
        %v9907 = vadd.s32 %v9873, 4294967224
        %v9908 = vperm.slane %v9369, %v9907
        %vm9909 = vcmask 654912
        %v9910 = vsel %vm9909, %v9908, %v9906
        %v9911 = vadd.s32 %v9873, 4294967216
        %v9912 = vperm.slane %v9370, %v9911
        %vm9913 = vcmask 720512
        %v9914 = vsel %vm9913, %v9912, %v9910
        %v9915 = vadd.s32 %v9873, 4294967208
        %v9916 = vperm.slane %v9371, %v9915
        %vm9917 = vcmask 786112
        %v9918 = vsel %vm9917, %v9916, %v9914
        %v9919 = vadd.s32 %v9873, 4294967200
        %v9920 = vperm.slane %v9372, %v9919
        %vm9921 = vcmask 851712
        %v9922 = vsel %vm9921, %v9920, %v9918
        %v9923 = vadd.s32 %v9873, 4294967192
        %v9924 = vperm.slane %v9373, %v9923
        %vm9925 = vcmask 917312
        %v9926 = vsel %vm9925, %v9924, %v9922
        %v9927 = vadd.s32 %v9873, 4294967184
        %v9928 = vperm.slane %v9374, %v9927
        %vm9929 = vcmask 982912
        %v9930 = vsel %vm9929, %v9928, %v9926
        %v9931 = vadd.s32 %v9873, 4294967176
        %v9932 = vperm.slane %v9375, %v9931
        %vm9933 = vcmask 1048512
        %v9934 = vsel %vm9933, %v9932, %v9930
        %v9935 = vperm.slane %v9376, %v9873
        %v9936 = vperm.slane %v9377, %v9875
        %v9937 = vsel %vm9877, %v9936, %v9935
        %v9938 = vperm.slane %v9378, %v9879
        %v9939 = vsel %vm9881, %v9938, %v9937
        %v9940 = vperm.slane %v9379, %v9883
        %v9941 = vsel %vm9885, %v9940, %v9939
        %v9942 = vperm.slane %v9380, %v9887
        %v9943 = vsel %vm9889, %v9942, %v9941
        %v9944 = vperm.slane %v9381, %v9891
        %v9945 = vsel %vm9893, %v9944, %v9943
        %v9946 = vperm.slane %v9382, %v9895
        %v9947 = vsel %vm9897, %v9946, %v9945
        %v9948 = vperm.slane %v9383, %v9899
        %v9949 = vsel %vm9901, %v9948, %v9947
        %v9950 = vperm.slane %v9384, %v9903
        %v9951 = vsel %vm9905, %v9950, %v9949
        %v9952 = vperm.slane %v9385, %v9907
        %v9953 = vsel %vm9909, %v9952, %v9951
        %v9954 = vperm.slane %v9386, %v9911
        %v9955 = vsel %vm9913, %v9954, %v9953
        %v9956 = vperm.slane %v9387, %v9915
        %v9957 = vsel %vm9917, %v9956, %v9955
        %v9958 = vperm.slane %v9388, %v9919
        %v9959 = vsel %vm9921, %v9958, %v9957
        %v9960 = vperm.slane %v9389, %v9923
        %v9961 = vsel %vm9925, %v9960, %v9959
        %v9962 = vperm.slane %v9390, %v9927
        %v9963 = vsel %vm9929, %v9962, %v9961
        %v9964 = vperm.slane %v9391, %v9931
        %v9965 = vsel %vm9933, %v9964, %v9963
        %v9966 = vperm.slane %v9392, %v9873
        %v9967 = vperm.slane %v9393, %v9875
        %v9968 = vsel %vm9877, %v9967, %v9966
        %v9969 = vperm.slane %v9394, %v9879
        %v9970 = vsel %vm9881, %v9969, %v9968
        %v9971 = vperm.slane %v9395, %v9883
        %v9972 = vsel %vm9885, %v9971, %v9970
        %v9973 = vperm.slane %v9396, %v9887
        %v9974 = vsel %vm9889, %v9973, %v9972
        %v9975 = vperm.slane %v9397, %v9891
        %v9976 = vsel %vm9893, %v9975, %v9974
        %v9977 = vperm.slane %v9398, %v9895
        %v9978 = vsel %vm9897, %v9977, %v9976
        %v9979 = vperm.slane %v9399, %v9899
        %v9980 = vsel %vm9901, %v9979, %v9978
        %v9981 = vperm.slane %v9400, %v9903
        %v9982 = vsel %vm9905, %v9981, %v9980
        %v9983 = vperm.slane %v9401, %v9907
        %v9984 = vsel %vm9909, %v9983, %v9982
        %v9985 = vperm.slane %v9402, %v9911
        %v9986 = vsel %vm9913, %v9985, %v9984
        %v9987 = vperm.slane %v9403, %v9915
        %v9988 = vsel %vm9917, %v9987, %v9986
        %v9989 = vperm.slane %v9404, %v9919
        %v9990 = vsel %vm9921, %v9989, %v9988
        %v9991 = vperm.slane %v9405, %v9923
        %v9992 = vsel %vm9925, %v9991, %v9990
        %v9993 = vperm.slane %v9406, %v9927
        %v9994 = vsel %vm9929, %v9993, %v9992
        %v9995 = vperm.slane %v9407, %v9931
        %v9996 = vsel %vm9933, %v9995, %v9994
        %v9997 = vperm.slane %v9408, %v9873
        %v9998 = vperm.slane %v9409, %v9875
        %v9999 = vsel %vm9877, %v9998, %v9997
        %v10000 = vperm.slane %v9410, %v9879
        %v10001 = vsel %vm9881, %v10000, %v9999
        %v10002 = vperm.slane %v9411, %v9883
        %v10003 = vsel %vm9885, %v10002, %v10001
        %v10004 = vperm.slane %v9412, %v9887
        %v10005 = vsel %vm9889, %v10004, %v10003
        %v10006 = vperm.slane %v9413, %v9891
        %v10007 = vsel %vm9893, %v10006, %v10005
        %v10008 = vperm.slane %v9414, %v9895
        %v10009 = vsel %vm9897, %v10008, %v10007
        %v10010 = vperm.slane %v9415, %v9899
        %v10011 = vsel %vm9901, %v10010, %v10009
        %v10012 = vperm.slane %v9416, %v9903
        %v10013 = vsel %vm9905, %v10012, %v10011
        %v10014 = vperm.slane %v9417, %v9907
        %v10015 = vsel %vm9909, %v10014, %v10013
        %v10016 = vperm.slane %v9418, %v9911
        %v10017 = vsel %vm9913, %v10016, %v10015
        %v10018 = vperm.slane %v9419, %v9915
        %v10019 = vsel %vm9917, %v10018, %v10017
        %v10020 = vperm.slane %v9420, %v9919
        %v10021 = vsel %vm9921, %v10020, %v10019
        %v10022 = vperm.slane %v9421, %v9923
        %v10023 = vsel %vm9925, %v10022, %v10021
        %v10024 = vperm.slane %v9422, %v9927
        %v10025 = vsel %vm9929, %v10024, %v10023
        %v10026 = vperm.slane %v9423, %v9931
        %v10027 = vsel %vm9933, %v10026, %v10025
        %v10028 = vperm.slane %v9424, %v9873
        %v10029 = vperm.slane %v9425, %v9875
        %v10030 = vsel %vm9877, %v10029, %v10028
        %v10031 = vperm.slane %v9426, %v9879
        %v10032 = vsel %vm9881, %v10031, %v10030
        %v10033 = vperm.slane %v9427, %v9883
        %v10034 = vsel %vm9885, %v10033, %v10032
        %v10035 = vperm.slane %v9428, %v9887
        %v10036 = vsel %vm9889, %v10035, %v10034
        %v10037 = vperm.slane %v9429, %v9891
        %v10038 = vsel %vm9893, %v10037, %v10036
        %v10039 = vperm.slane %v9430, %v9895
        %v10040 = vsel %vm9897, %v10039, %v10038
        %v10041 = vperm.slane %v9431, %v9899
        %v10042 = vsel %vm9901, %v10041, %v10040
        %v10043 = vperm.slane %v9432, %v9903
        %v10044 = vsel %vm9905, %v10043, %v10042
        %v10045 = vperm.slane %v9433, %v9907
        %v10046 = vsel %vm9909, %v10045, %v10044
        %v10047 = vperm.slane %v9434, %v9911
        %v10048 = vsel %vm9913, %v10047, %v10046
        %v10049 = vperm.slane %v9435, %v9915
        %v10050 = vsel %vm9917, %v10049, %v10048
        %v10051 = vperm.slane %v9436, %v9919
        %v10052 = vsel %vm9921, %v10051, %v10050
        %v10053 = vperm.slane %v9437, %v9923
        %v10054 = vsel %vm9925, %v10053, %v10052
        %v10055 = vperm.slane %v9438, %v9927
        %v10056 = vsel %vm9929, %v10055, %v10054
        %v10057 = vperm.slane %v9439, %v9931
        %v10058 = vsel %vm9933, %v10057, %v10056
        %v10059 = vperm.slane %v9440, %v9873
        %v10060 = vperm.slane %v9441, %v9875
        %v10061 = vsel %vm9877, %v10060, %v10059
        %v10062 = vperm.slane %v9442, %v9879
        %v10063 = vsel %vm9881, %v10062, %v10061
        %v10064 = vperm.slane %v9443, %v9883
        %v10065 = vsel %vm9885, %v10064, %v10063
        %v10066 = vperm.slane %v9444, %v9887
        %v10067 = vsel %vm9889, %v10066, %v10065
        %v10068 = vperm.slane %v9445, %v9891
        %v10069 = vsel %vm9893, %v10068, %v10067
        %v10070 = vperm.slane %v9446, %v9895
        %v10071 = vsel %vm9897, %v10070, %v10069
        %v10072 = vperm.slane %v9447, %v9899
        %v10073 = vsel %vm9901, %v10072, %v10071
        %v10074 = vperm.slane %v9448, %v9903
        %v10075 = vsel %vm9905, %v10074, %v10073
        %v10076 = vperm.slane %v9449, %v9907
        %v10077 = vsel %vm9909, %v10076, %v10075
        %v10078 = vperm.slane %v9450, %v9911
        %v10079 = vsel %vm9913, %v10078, %v10077
        %v10080 = vperm.slane %v9451, %v9915
        %v10081 = vsel %vm9917, %v10080, %v10079
        %v10082 = vperm.slane %v9452, %v9919
        %v10083 = vsel %vm9921, %v10082, %v10081
        %v10084 = vperm.slane %v9453, %v9923
        %v10085 = vsel %vm9925, %v10084, %v10083
        %v10086 = vperm.slane %v9454, %v9927
        %v10087 = vsel %vm9929, %v10086, %v10085
        %v10088 = vperm.slane %v9455, %v9931
        %v10089 = vsel %vm9933, %v10088, %v10087
        %v10090 = vperm.slane %v9456, %v9873
        %v10091 = vperm.slane %v9457, %v9875
        %v10092 = vsel %vm9877, %v10091, %v10090
        %v10093 = vperm.slane %v9458, %v9879
        %v10094 = vsel %vm9881, %v10093, %v10092
        %v10095 = vperm.slane %v9459, %v9883
        %v10096 = vsel %vm9885, %v10095, %v10094
        %v10097 = vperm.slane %v9460, %v9887
        %v10098 = vsel %vm9889, %v10097, %v10096
        %v10099 = vperm.slane %v9461, %v9891
        %v10100 = vsel %vm9893, %v10099, %v10098
        %v10101 = vperm.slane %v9462, %v9895
        %v10102 = vsel %vm9897, %v10101, %v10100
        %v10103 = vperm.slane %v9463, %v9899
        %v10104 = vsel %vm9901, %v10103, %v10102
        %v10105 = vperm.slane %v9464, %v9903
        %v10106 = vsel %vm9905, %v10105, %v10104
        %v10107 = vperm.slane %v9465, %v9907
        %v10108 = vsel %vm9909, %v10107, %v10106
        %v10109 = vperm.slane %v9466, %v9911
        %v10110 = vsel %vm9913, %v10109, %v10108
        %v10111 = vperm.slane %v9467, %v9915
        %v10112 = vsel %vm9917, %v10111, %v10110
        %v10113 = vperm.slane %v9468, %v9919
        %v10114 = vsel %vm9921, %v10113, %v10112
        %v10115 = vperm.slane %v9469, %v9923
        %v10116 = vsel %vm9925, %v10115, %v10114
        %v10117 = vperm.slane %v9470, %v9927
        %v10118 = vsel %vm9929, %v10117, %v10116
        %v10119 = vperm.slane %v9471, %v9931
        %v10120 = vsel %vm9933, %v10119, %v10118
        %v10121 = vperm.slane %v9472, %v9873
        %v10122 = vperm.slane %v9473, %v9875
        %v10123 = vsel %vm9877, %v10122, %v10121
        %v10124 = vperm.slane %v9474, %v9879
        %v10125 = vsel %vm9881, %v10124, %v10123
        %v10126 = vperm.slane %v9475, %v9883
        %v10127 = vsel %vm9885, %v10126, %v10125
        %v10128 = vperm.slane %v9476, %v9887
        %v10129 = vsel %vm9889, %v10128, %v10127
        %v10130 = vperm.slane %v9477, %v9891
        %v10131 = vsel %vm9893, %v10130, %v10129
        %v10132 = vperm.slane %v9478, %v9895
        %v10133 = vsel %vm9897, %v10132, %v10131
        %v10134 = vperm.slane %v9479, %v9899
        %v10135 = vsel %vm9901, %v10134, %v10133
        %v10136 = vperm.slane %v9480, %v9903
        %v10137 = vsel %vm9905, %v10136, %v10135
        %v10138 = vperm.slane %v9481, %v9907
        %v10139 = vsel %vm9909, %v10138, %v10137
        %v10140 = vperm.slane %v9482, %v9911
        %v10141 = vsel %vm9913, %v10140, %v10139
        %v10142 = vperm.slane %v9483, %v9915
        %v10143 = vsel %vm9917, %v10142, %v10141
        %v10144 = vperm.slane %v9484, %v9919
        %v10145 = vsel %vm9921, %v10144, %v10143
        %v10146 = vperm.slane %v9485, %v9923
        %v10147 = vsel %vm9925, %v10146, %v10145
        %v10148 = vperm.slane %v9486, %v9927
        %v10149 = vsel %vm9929, %v10148, %v10147
        %v10150 = vperm.slane %v9487, %v9931
        %v10151 = vsel %vm9933, %v10150, %v10149
        %v10152 = vperm.slane %v9488, %v9873
        %v10153 = vperm.slane %v9489, %v9875
        %v10154 = vsel %vm9877, %v10153, %v10152
        %v10155 = vperm.slane %v9490, %v9879
        %v10156 = vsel %vm9881, %v10155, %v10154
        %v10157 = vperm.slane %v9491, %v9883
        %v10158 = vsel %vm9885, %v10157, %v10156
        %v10159 = vperm.slane %v9492, %v9887
        %v10160 = vsel %vm9889, %v10159, %v10158
        %v10161 = vperm.slane %v9493, %v9891
        %v10162 = vsel %vm9893, %v10161, %v10160
        %v10163 = vperm.slane %v9494, %v9895
        %v10164 = vsel %vm9897, %v10163, %v10162
        %v10165 = vperm.slane %v9495, %v9899
        %v10166 = vsel %vm9901, %v10165, %v10164
        %v10167 = vperm.slane %v9496, %v9903
        %v10168 = vsel %vm9905, %v10167, %v10166
        %v10169 = vperm.slane %v9497, %v9907
        %v10170 = vsel %vm9909, %v10169, %v10168
        %v10171 = vperm.slane %v9498, %v9911
        %v10172 = vsel %vm9913, %v10171, %v10170
        %v10173 = vperm.slane %v9499, %v9915
        %v10174 = vsel %vm9917, %v10173, %v10172
        %v10175 = vperm.slane %v9500, %v9919
        %v10176 = vsel %vm9921, %v10175, %v10174
        %v10177 = vperm.slane %v9501, %v9923
        %v10178 = vsel %vm9925, %v10177, %v10176
        %v10179 = vperm.slane %v9502, %v9927
        %v10180 = vsel %vm9929, %v10179, %v10178
        %v10181 = vperm.slane %v9503, %v9931
        %v10182 = vsel %vm9933, %v10181, %v10180
        %v10183 = vperm.slane %v9504, %v9873
        %v10184 = vperm.slane %v9505, %v9875
        %v10185 = vsel %vm9877, %v10184, %v10183
        %v10186 = vperm.slane %v9506, %v9879
        %v10187 = vsel %vm9881, %v10186, %v10185
        %v10188 = vperm.slane %v9507, %v9883
        %v10189 = vsel %vm9885, %v10188, %v10187
        %v10190 = vperm.slane %v9508, %v9887
        %v10191 = vsel %vm9889, %v10190, %v10189
        %v10192 = vperm.slane %v9509, %v9891
        %v10193 = vsel %vm9893, %v10192, %v10191
        %v10194 = vperm.slane %v9510, %v9895
        %v10195 = vsel %vm9897, %v10194, %v10193
        %v10196 = vperm.slane %v9511, %v9899
        %v10197 = vsel %vm9901, %v10196, %v10195
        %v10198 = vperm.slane %v9512, %v9903
        %v10199 = vsel %vm9905, %v10198, %v10197
        %v10200 = vperm.slane %v9513, %v9907
        %v10201 = vsel %vm9909, %v10200, %v10199
        %v10202 = vperm.slane %v9514, %v9911
        %v10203 = vsel %vm9913, %v10202, %v10201
        %v10204 = vperm.slane %v9515, %v9915
        %v10205 = vsel %vm9917, %v10204, %v10203
        %v10206 = vperm.slane %v9516, %v9919
        %v10207 = vsel %vm9921, %v10206, %v10205
        %v10208 = vperm.slane %v9517, %v9923
        %v10209 = vsel %vm9925, %v10208, %v10207
        %v10210 = vperm.slane %v9518, %v9927
        %v10211 = vsel %vm9929, %v10210, %v10209
        %v10212 = vperm.slane %v9519, %v9931
        %v10213 = vsel %vm9933, %v10212, %v10211
        %v10214 = vperm.slane %v9520, %v9873
        %v10215 = vperm.slane %v9521, %v9875
        %v10216 = vsel %vm9877, %v10215, %v10214
        %v10217 = vperm.slane %v9522, %v9879
        %v10218 = vsel %vm9881, %v10217, %v10216
        %v10219 = vperm.slane %v9523, %v9883
        %v10220 = vsel %vm9885, %v10219, %v10218
        %v10221 = vperm.slane %v9524, %v9887
        %v10222 = vsel %vm9889, %v10221, %v10220
        %v10223 = vperm.slane %v9525, %v9891
        %v10224 = vsel %vm9893, %v10223, %v10222
        %v10225 = vperm.slane %v9526, %v9895
        %v10226 = vsel %vm9897, %v10225, %v10224
        %v10227 = vperm.slane %v9527, %v9899
        %v10228 = vsel %vm9901, %v10227, %v10226
        %v10229 = vperm.slane %v9528, %v9903
        %v10230 = vsel %vm9905, %v10229, %v10228
        %v10231 = vperm.slane %v9529, %v9907
        %v10232 = vsel %vm9909, %v10231, %v10230
        %v10233 = vperm.slane %v9530, %v9911
        %v10234 = vsel %vm9913, %v10233, %v10232
        %v10235 = vperm.slane %v9531, %v9915
        %v10236 = vsel %vm9917, %v10235, %v10234
        %v10237 = vperm.slane %v9532, %v9919
        %v10238 = vsel %vm9921, %v10237, %v10236
        %v10239 = vperm.slane %v9533, %v9923
        %v10240 = vsel %vm9925, %v10239, %v10238
        %v10241 = vperm.slane %v9534, %v9927
        %v10242 = vsel %vm9929, %v10241, %v10240
        %v10243 = vperm.slane %v9535, %v9931
        %v10244 = vsel %vm9933, %v10243, %v10242
        %v10245 = vperm.slane %v9536, %v9873
        %v10246 = vperm.slane %v9537, %v9875
        %v10247 = vsel %vm9877, %v10246, %v10245
        %v10248 = vperm.slane %v9538, %v9879
        %v10249 = vsel %vm9881, %v10248, %v10247
        %v10250 = vperm.slane %v9539, %v9883
        %v10251 = vsel %vm9885, %v10250, %v10249
        %v10252 = vperm.slane %v9540, %v9887
        %v10253 = vsel %vm9889, %v10252, %v10251
        %v10254 = vperm.slane %v9541, %v9891
        %v10255 = vsel %vm9893, %v10254, %v10253
        %v10256 = vperm.slane %v9542, %v9895
        %v10257 = vsel %vm9897, %v10256, %v10255
        %v10258 = vperm.slane %v9543, %v9899
        %v10259 = vsel %vm9901, %v10258, %v10257
        %v10260 = vperm.slane %v9544, %v9903
        %v10261 = vsel %vm9905, %v10260, %v10259
        %v10262 = vperm.slane %v9545, %v9907
        %v10263 = vsel %vm9909, %v10262, %v10261
        %v10264 = vperm.slane %v9546, %v9911
        %v10265 = vsel %vm9913, %v10264, %v10263
        %v10266 = vperm.slane %v9547, %v9915
        %v10267 = vsel %vm9917, %v10266, %v10265
        %v10268 = vperm.slane %v9548, %v9919
        %v10269 = vsel %vm9921, %v10268, %v10267
        %v10270 = vperm.slane %v9549, %v9923
        %v10271 = vsel %vm9925, %v10270, %v10269
        %v10272 = vperm.slane %v9550, %v9927
        %v10273 = vsel %vm9929, %v10272, %v10271
        %v10274 = vperm.slane %v9551, %v9931
        %v10275 = vsel %vm9933, %v10274, %v10273
        %v10276 = vperm.slane %v9552, %v9873
        %v10277 = vperm.slane %v9553, %v9875
        %v10278 = vsel %vm9877, %v10277, %v10276
        %v10279 = vperm.slane %v9554, %v9879
        %v10280 = vsel %vm9881, %v10279, %v10278
        %v10281 = vperm.slane %v9555, %v9883
        %v10282 = vsel %vm9885, %v10281, %v10280
        %v10283 = vperm.slane %v9556, %v9887
        %v10284 = vsel %vm9889, %v10283, %v10282
        %v10285 = vperm.slane %v9557, %v9891
        %v10286 = vsel %vm9893, %v10285, %v10284
        %v10287 = vperm.slane %v9558, %v9895
        %v10288 = vsel %vm9897, %v10287, %v10286
        %v10289 = vperm.slane %v9559, %v9899
        %v10290 = vsel %vm9901, %v10289, %v10288
        %v10291 = vperm.slane %v9560, %v9903
        %v10292 = vsel %vm9905, %v10291, %v10290
        %v10293 = vperm.slane %v9561, %v9907
        %v10294 = vsel %vm9909, %v10293, %v10292
        %v10295 = vperm.slane %v9562, %v9911
        %v10296 = vsel %vm9913, %v10295, %v10294
        %v10297 = vperm.slane %v9563, %v9915
        %v10298 = vsel %vm9917, %v10297, %v10296
        %v10299 = vperm.slane %v9564, %v9919
        %v10300 = vsel %vm9921, %v10299, %v10298
        %v10301 = vperm.slane %v9565, %v9923
        %v10302 = vsel %vm9925, %v10301, %v10300
        %v10303 = vperm.slane %v9566, %v9927
        %v10304 = vsel %vm9929, %v10303, %v10302
        %v10305 = vperm.slane %v9567, %v9931
        %v10306 = vsel %vm9933, %v10305, %v10304
        %v10307 = vperm.slane %v9568, %v9873
        %v10308 = vperm.slane %v9569, %v9875
        %v10309 = vsel %vm9877, %v10308, %v10307
        %v10310 = vperm.slane %v9570, %v9879
        %v10311 = vsel %vm9881, %v10310, %v10309
        %v10312 = vperm.slane %v9571, %v9883
        %v10313 = vsel %vm9885, %v10312, %v10311
        %v10314 = vperm.slane %v9572, %v9887
        %v10315 = vsel %vm9889, %v10314, %v10313
        %v10316 = vperm.slane %v9573, %v9891
        %v10317 = vsel %vm9893, %v10316, %v10315
        %v10318 = vperm.slane %v9574, %v9895
        %v10319 = vsel %vm9897, %v10318, %v10317
        %v10320 = vperm.slane %v9575, %v9899
        %v10321 = vsel %vm9901, %v10320, %v10319
        %v10322 = vperm.slane %v9576, %v9903
        %v10323 = vsel %vm9905, %v10322, %v10321
        %v10324 = vperm.slane %v9577, %v9907
        %v10325 = vsel %vm9909, %v10324, %v10323
        %v10326 = vperm.slane %v9578, %v9911
        %v10327 = vsel %vm9913, %v10326, %v10325
        %v10328 = vperm.slane %v9579, %v9915
        %v10329 = vsel %vm9917, %v10328, %v10327
        %v10330 = vperm.slane %v9580, %v9919
        %v10331 = vsel %vm9921, %v10330, %v10329
        %v10332 = vperm.slane %v9581, %v9923
        %v10333 = vsel %vm9925, %v10332, %v10331
        %v10334 = vperm.slane %v9582, %v9927
        %v10335 = vsel %vm9929, %v10334, %v10333
        %v10336 = vperm.slane %v9583, %v9931
        %v10337 = vsel %vm9933, %v10336, %v10335
        %v10338 = vperm.slane %v9584, %v9873
        %v10339 = vperm.slane %v9585, %v9875
        %v10340 = vsel %vm9877, %v10339, %v10338
        %v10341 = vperm.slane %v9586, %v9879
        %v10342 = vsel %vm9881, %v10341, %v10340
        %v10343 = vperm.slane %v9587, %v9883
        %v10344 = vsel %vm9885, %v10343, %v10342
        %v10345 = vperm.slane %v9588, %v9887
        %v10346 = vsel %vm9889, %v10345, %v10344
        %v10347 = vperm.slane %v9589, %v9891
        %v10348 = vsel %vm9893, %v10347, %v10346
        %v10349 = vperm.slane %v9590, %v9895
        %v10350 = vsel %vm9897, %v10349, %v10348
        %v10351 = vperm.slane %v9591, %v9899
        %v10352 = vsel %vm9901, %v10351, %v10350
        %v10353 = vperm.slane %v9592, %v9903
        %v10354 = vsel %vm9905, %v10353, %v10352
        %v10355 = vperm.slane %v9593, %v9907
        %v10356 = vsel %vm9909, %v10355, %v10354
        %v10357 = vperm.slane %v9594, %v9911
        %v10358 = vsel %vm9913, %v10357, %v10356
        %v10359 = vperm.slane %v9595, %v9915
        %v10360 = vsel %vm9917, %v10359, %v10358
        %v10361 = vperm.slane %v9596, %v9919
        %v10362 = vsel %vm9921, %v10361, %v10360
        %v10363 = vperm.slane %v9597, %v9923
        %v10364 = vsel %vm9925, %v10363, %v10362
        %v10365 = vperm.slane %v9598, %v9927
        %v10366 = vsel %vm9929, %v10365, %v10364
        %v10367 = vperm.slane %v9599, %v9931
        %v10368 = vsel %vm9933, %v10367, %v10366
        %v10369 = vperm.slane %v9600, %v9873
        %v10370 = vperm.slane %v9601, %v9875
        %v10371 = vsel %vm9877, %v10370, %v10369
        %v10372 = vperm.slane %v9602, %v9879
        %v10373 = vsel %vm9881, %v10372, %v10371
        %v10374 = vperm.slane %v9603, %v9883
        %v10375 = vsel %vm9885, %v10374, %v10373
        %v10376 = vperm.slane %v9604, %v9887
        %v10377 = vsel %vm9889, %v10376, %v10375
        %v10378 = vperm.slane %v9605, %v9891
        %v10379 = vsel %vm9893, %v10378, %v10377
        %v10380 = vperm.slane %v9606, %v9895
        %v10381 = vsel %vm9897, %v10380, %v10379
        %v10382 = vperm.slane %v9607, %v9899
        %v10383 = vsel %vm9901, %v10382, %v10381
        %v10384 = vperm.slane %v9608, %v9903
        %v10385 = vsel %vm9905, %v10384, %v10383
        %v10386 = vperm.slane %v9609, %v9907
        %v10387 = vsel %vm9909, %v10386, %v10385
        %v10388 = vperm.slane %v9610, %v9911
        %v10389 = vsel %vm9913, %v10388, %v10387
        %v10390 = vperm.slane %v9611, %v9915
        %v10391 = vsel %vm9917, %v10390, %v10389
        %v10392 = vperm.slane %v9612, %v9919
        %v10393 = vsel %vm9921, %v10392, %v10391
        %v10394 = vperm.slane %v9613, %v9923
        %v10395 = vsel %vm9925, %v10394, %v10393
        %v10396 = vperm.slane %v9614, %v9927
        %v10397 = vsel %vm9929, %v10396, %v10395
        %v10398 = vperm.slane %v9615, %v9931
        %v10399 = vsel %vm9933, %v10398, %v10397
        %vm10400 = vcmask 1042434
        %v10401 = vsel %vm10400, %v9934, %v9934
        %vm10402 = vcmask 1043459
        %v10403 = vsel %vm10402, %v9934, %v10401
        %vm10404 = vcmask 1044484
        %v10405 = vsel %vm10404, %v9934, %v10403
        %vm10406 = vcmask 1045509
        %v10407 = vsel %vm10406, %v9934, %v10405
        %vm10408 = vcmask 1046534
        %v10409 = vsel %vm10408, %v9934, %v10407
        %vm10410 = vcmask 1047559
        %v10411 = vsel %vm10410, %v9934, %v10409
        %v10412 = vsel %vm10400, %v9965, %v9965
        %v10413 = vsel %vm10402, %v9965, %v10412
        %v10414 = vsel %vm10404, %v9965, %v10413
        %v10415 = vsel %vm10406, %v9965, %v10414
        %v10416 = vsel %vm10408, %v9965, %v10415
        %v10417 = vsel %vm10410, %v9965, %v10416
        %v10418 = vsel %vm10400, %v9996, %v9996
        %v10419 = vsel %vm10402, %v9996, %v10418
        %v10420 = vsel %vm10404, %v9996, %v10419
        %v10421 = vsel %vm10406, %v9996, %v10420
        %v10422 = vsel %vm10408, %v9996, %v10421
        %v10423 = vsel %vm10410, %v9996, %v10422
        %v10424 = vsel %vm10400, %v10027, %v10027
        %v10425 = vsel %vm10402, %v10027, %v10424
        %v10426 = vsel %vm10404, %v10027, %v10425
        %v10427 = vsel %vm10406, %v10027, %v10426
        %v10428 = vsel %vm10408, %v10027, %v10427
        %v10429 = vsel %vm10410, %v10027, %v10428
        %v10430 = vsel %vm10400, %v10058, %v10058
        %v10431 = vsel %vm10402, %v10058, %v10430
        %v10432 = vsel %vm10404, %v10058, %v10431
        %v10433 = vsel %vm10406, %v10058, %v10432
        %v10434 = vsel %vm10408, %v10058, %v10433
        %v10435 = vsel %vm10410, %v10058, %v10434
        %v10436 = vsel %vm10400, %v10089, %v10089
        %v10437 = vsel %vm10402, %v10089, %v10436
        %v10438 = vsel %vm10404, %v10089, %v10437
        %v10439 = vsel %vm10406, %v10089, %v10438
        %v10440 = vsel %vm10408, %v10089, %v10439
        %v10441 = vsel %vm10410, %v10089, %v10440
        %v10442 = vsel %vm10400, %v10120, %v10120
        %v10443 = vsel %vm10402, %v10120, %v10442
        %v10444 = vsel %vm10404, %v10120, %v10443
        %v10445 = vsel %vm10406, %v10120, %v10444
        %v10446 = vsel %vm10408, %v10120, %v10445
        %v10447 = vsel %vm10410, %v10120, %v10446
        %v10448 = vsel %vm10400, %v10151, %v10151
        %v10449 = vsel %vm10402, %v10151, %v10448
        %v10450 = vsel %vm10404, %v10151, %v10449
        %v10451 = vsel %vm10406, %v10151, %v10450
        %v10452 = vsel %vm10408, %v10151, %v10451
        %v10453 = vsel %vm10410, %v10151, %v10452
        %v10454 = vsel %vm10400, %v10182, %v10182
        %v10455 = vsel %vm10402, %v10182, %v10454
        %v10456 = vsel %vm10404, %v10182, %v10455
        %v10457 = vsel %vm10406, %v10182, %v10456
        %v10458 = vsel %vm10408, %v10182, %v10457
        %v10459 = vsel %vm10410, %v10182, %v10458
        %v10460 = vsel %vm10400, %v10213, %v10213
        %v10461 = vsel %vm10402, %v10213, %v10460
        %v10462 = vsel %vm10404, %v10213, %v10461
        %v10463 = vsel %vm10406, %v10213, %v10462
        %v10464 = vsel %vm10408, %v10213, %v10463
        %v10465 = vsel %vm10410, %v10213, %v10464
        %v10466 = vsel %vm10400, %v10244, %v10244
        %v10467 = vsel %vm10402, %v10244, %v10466
        %v10468 = vsel %vm10404, %v10244, %v10467
        %v10469 = vsel %vm10406, %v10244, %v10468
        %v10470 = vsel %vm10408, %v10244, %v10469
        %v10471 = vsel %vm10410, %v10244, %v10470
        %v10472 = vsel %vm10400, %v10275, %v10275
        %v10473 = vsel %vm10402, %v10275, %v10472
        %v10474 = vsel %vm10404, %v10275, %v10473
        %v10475 = vsel %vm10406, %v10275, %v10474
        %v10476 = vsel %vm10408, %v10275, %v10475
        %v10477 = vsel %vm10410, %v10275, %v10476
        %v10478 = vsel %vm10400, %v10306, %v10306
        %v10479 = vsel %vm10402, %v10306, %v10478
        %v10480 = vsel %vm10404, %v10306, %v10479
        %v10481 = vsel %vm10406, %v10306, %v10480
        %v10482 = vsel %vm10408, %v10306, %v10481
        %v10483 = vsel %vm10410, %v10306, %v10482
        %v10484 = vsel %vm10400, %v10337, %v10337
        %v10485 = vsel %vm10402, %v10337, %v10484
        %v10486 = vsel %vm10404, %v10337, %v10485
        %v10487 = vsel %vm10406, %v10337, %v10486
        %v10488 = vsel %vm10408, %v10337, %v10487
        %v10489 = vsel %vm10410, %v10337, %v10488
        %v10490 = vsel %vm10400, %v10368, %v10368
        %v10491 = vsel %vm10402, %v10368, %v10490
        %v10492 = vsel %vm10404, %v10368, %v10491
        %v10493 = vsel %vm10406, %v10368, %v10492
        %v10494 = vsel %vm10408, %v10368, %v10493
        %v10495 = vsel %vm10410, %v10368, %v10494
        %v10496 = vsel %vm10400, %v10399, %v10399
        %v10497 = vsel %vm10402, %v10399, %v10496
        %v10498 = vsel %vm10404, %v10399, %v10497
        %v10499 = vsel %vm10406, %v10399, %v10498
        %v10500 = vsel %vm10408, %v10399, %v10499
        %v10501 = vsel %vm10410, %v10399, %v10500
        %v10518 = vmul.f32 %v7798, %v10411
        %v10519 = vmul.f32 %v7824, %v10417
        %v10520 = vmul.f32 %v8017, %v10423
        %v10521 = vmul.f32 %v8043, %v10429
        %v10522 = vmul.f32 %v8236, %v10435
        %v10523 = vmul.f32 %v8262, %v10441
        %v10524 = vmul.f32 %v8455, %v10447
        %v10525 = vmul.f32 %v8481, %v10453
        %v10526 = vmul.f32 %v8674, %v10459
        %v10527 = vmul.f32 %v8700, %v10465
        %v10528 = vmul.f32 %v8893, %v10471
        %v10529 = vmul.f32 %v8919, %v10477
        %v10530 = vmul.f32 %v9112, %v10483
        %v10531 = vmul.f32 %v9138, %v10489
        %v10532 = vmul.f32 %v9331, %v10495
        %v10533 = vmul.f32 %v9357, %v10501
        %v10534 = vld [vmem:[#allocation10] sm:$0xf]
        %v10535 = vld [vmem:[#allocation10 + $0x4] sm:$0xf]
        %v10536 = vld [vmem:[#allocation10 + $0x8] sm:$0xf]
        %v10537 = vld [vmem:[#allocation10 + $0xc] sm:$0xf]
        %v10538 = vld [vmem:[#allocation10 + $0x10] sm:$0xf]
        %v10539 = vld [vmem:[#allocation10 + $0x14] sm:$0xf]
        %v10540 = vld [vmem:[#allocation10 + $0x18] sm:$0xf]
        %v10541 = vld [vmem:[#allocation10 + $0x1c] sm:$0xf]
        %v10542 = vpack.c.bf16 %v10520, %v10518
        %v10543 = vpack.c.bf16 %v10521, %v10519
        %v10544 = vpack.c.bf16 %v10524, %v10522
        %v10545 = vpack.c.bf16 %v10525, %v10523
        %v10546 = vpack.c.bf16 %v10528, %v10526
        %v10547 = vpack.c.bf16 %v10529, %v10527
        %v10548 = vpack.c.bf16 %v10532, %v10530
        %v10549 = vpack.c.bf16 %v10533, %v10531
        %v10550 = vld [vmem:[%s6] sm:$0xff]
        %v10551 = vld [vmem:[%s6 + $0x8] sm:$0xff]
        %v10552 = vld [vmem:[%s6 + $0x10] sm:$0xff]
        %v10553 = vld [vmem:[%s6 + $0x18] sm:$0xff]
        %v10554 = vld [vmem:[%s6 + $0x20] sm:$0xff]
        %v10555 = vld [vmem:[%s6 + $0x28] sm:$0xff]
        %v10556 = vld [vmem:[%s6 + $0x30] sm:$0xff]
        %v10557 = vld [vmem:[%s6 + $0x38] sm:$0xff]
        %10559 = vset.pattern.permute.xlu0 0
        %10560 = vperm.xlu0 %10559, %v10550
        %v10561 = vpop.permute.xlu0 %10560
        %10564 = vset.pattern.permute.xlu0 0
        %10565 = vperm.xlu0 %10564, %v10551
        %v10566 = vpop.permute.xlu0 %10565
        %10569 = vset.pattern.permute.xlu0 0
        %10570 = vperm.xlu0 %10569, %v10552
        %v10571 = vpop.permute.xlu0 %10570
        %10574 = vset.pattern.permute.xlu0 0
        %10575 = vperm.xlu0 %10574, %v10553
        %v10576 = vpop.permute.xlu0 %10575
        %10579 = vset.pattern.permute.xlu0 0
        %10580 = vperm.xlu0 %10579, %v10554
        %v10581 = vpop.permute.xlu0 %10580
        %10584 = vset.pattern.permute.xlu0 0
        %10585 = vperm.xlu0 %10584, %v10555
        %v10586 = vpop.permute.xlu0 %10585
        %10589 = vset.pattern.permute.xlu0 0
        %10590 = vperm.xlu0 %10589, %v10556
        %v10591 = vpop.permute.xlu0 %10590
        %10594 = vset.pattern.permute.xlu0 0
        %10595 = vperm.xlu0 %10594, %v10557
        %v10596 = vpop.permute.xlu0 %10595
        %v10606 = vunpack.c.l.b16 %v10534
        %v10607 = vunpack.c.l.b16 %v10535
        %v10608 = vunpack.c.l.b16 %v10536
        %v10609 = vunpack.c.l.b16 %v10537
        %v10610 = vunpack.c.l.b16 %v10538
        %v10611 = vunpack.c.l.b16 %v10539
        %v10612 = vunpack.c.l.b16 %v10540
        %v10613 = vunpack.c.l.b16 %v10541
        %v10614 = vpack.c.b16 %v10607, %v10606
        %v10615 = vpack.c.b16 %v10609, %v10608
        %v10616 = vpack.c.b16 %v10611, %v10610
        %v10617 = vpack.c.b16 %v10613, %v10612
        %vm10618 = vcmask 523264
        %v10620 = vsel %vm10618, %v10614, 0
        %v10623 = vsel %vm10618, %v10615, 0
        %v10626 = vsel %vm10618, %v10616, 0
        %v10629 = vsel %vm10618, %v10617, 0
        %10631 = vmatpush.bf16.msra.mxu0 0
        %10632 = vmatpush.bf16.msra.mxu0 0
        %10633 = vmatpush.bf16.msra.mxu0 0
        %10634 = vmatpush.bf16.msra.mxu0 0
        %10635 = vmatpush.bf16.msra.mxu0 %v10548
        %10636 = vmatpush.bf16.msra.mxu0 %v10546
        %10637 = vmatpush.bf16.msra.mxu0 %v10544
        %10638 = vmatpush.bf16.msra.mxu0 %v10542
        %10639 = vmatmul.bf16.gmra.mxu0 %v10620
        %v10640 = vpop.f32.mrf.mxu0
        %v10641 = vadd.f32 %v10561, %v10640
        %v10642 = vpop.f32.mrf.mxu0
        %v10643 = vadd.f32 %v10566, %v10642
        %10644 = vmatmul.bf16.gmra.mxu0 %v10623
        %v10645 = vpop.f32.mrf.mxu0
        %v10646 = vadd.f32 %v10571, %v10645
        %v10647 = vpop.f32.mrf.mxu0
        %v10648 = vadd.f32 %v10576, %v10647
        %10649 = vmatmul.bf16.gmra.mxu0 %v10626
        %v10650 = vpop.f32.mrf.mxu0
        %v10651 = vadd.f32 %v10581, %v10650
        %v10652 = vpop.f32.mrf.mxu0
        %v10653 = vadd.f32 %v10586, %v10652
        %10654 = vmatmul.bf16.gmra.mxu0 %v10629
        %v10655 = vpop.f32.mrf.mxu0
        %v10656 = vadd.f32 %v10591, %v10655
        %v10657 = vpop.f32.mrf.mxu0
        %v10658 = vadd.f32 %v10596, %v10657
        %10659 = vdwg.mxu0
        %10660 = vmatpush.bf16.msra.mxu0 0
        %10661 = vmatpush.bf16.msra.mxu0 0
        %10662 = vmatpush.bf16.msra.mxu0 0
        %10663 = vmatpush.bf16.msra.mxu0 0
        %10664 = vmatpush.bf16.msra.mxu0 %v10549
        %10665 = vmatpush.bf16.msra.mxu0 %v10547
        %10666 = vmatpush.bf16.msra.mxu0 %v10545
        %10667 = vmatpush.bf16.msra.mxu0 %v10543
        %10668 = vmatmul.bf16.gmra.mxu0 %v10620
        %v10669 = vpop.f32.mrf.mxu0
        %v10670 = vadd.f32 %v10561, %v10669
        %v10671 = vpop.f32.mrf.mxu0
        %v10672 = vadd.f32 %v10566, %v10671
        %10673 = vmatmul.bf16.gmra.mxu0 %v10623
        %v10674 = vpop.f32.mrf.mxu0
        %v10675 = vadd.f32 %v10571, %v10674
        %v10676 = vpop.f32.mrf.mxu0
        %v10677 = vadd.f32 %v10576, %v10676
        %10678 = vmatmul.bf16.gmra.mxu0 %v10626
        %v10679 = vpop.f32.mrf.mxu0
        %v10680 = vadd.f32 %v10581, %v10679
        %v10681 = vpop.f32.mrf.mxu0
        %v10682 = vadd.f32 %v10586, %v10681
        %10683 = vmatmul.bf16.gmra.mxu0 %v10629
        %v10684 = vpop.f32.mrf.mxu0
        %v10685 = vadd.f32 %v10591, %v10684
        %v10686 = vpop.f32.mrf.mxu0
        %v10687 = vadd.f32 %v10596, %v10686
        %10688 = vdwg.mxu0
        %10689 = vst [vmem:[%s387] sm:$0xff] %v692
        %10690 = vst [vmem:[%s387 + $0x8] sm:$0xff] %v693
        %10691 = vst [vmem:[%s387 + $0x10] sm:$0xff] %v694
        %10692 = vst [vmem:[%s387 + $0x18] sm:$0xff] %v695
        %10693 = vst [vmem:[%s387 + $0x20] sm:$0xff] %v696
        %10694 = vst [vmem:[%s387 + $0x28] sm:$0xff] %v697
        %10695 = vst [vmem:[%s387 + $0x30] sm:$0xff] %v698
        %10696 = vst [vmem:[%s387 + $0x38] sm:$0xff] %v699
        %10697 = vst [vmem:[%s387 + $0x40] sm:$0xff] %v700
        %10698 = vst [vmem:[%s387 + $0x48] sm:$0xff] %v701
        %10699 = vst [vmem:[%s387 + $0x50] sm:$0xff] %v702
        %10700 = vst [vmem:[%s387 + $0x58] sm:$0xff] %v703
        %10701 = vst [vmem:[%s387 + $0x60] sm:$0xff] %v704
        %10702 = vst [vmem:[%s387 + $0x68] sm:$0xff] %v705
        %10703 = vst [vmem:[%s387 + $0x70] sm:$0xff] %v706
        %10704 = vst [vmem:[%s387 + $0x78] sm:$0xff] %v707
        %10705 = vst [vmem:[%s387 + $0x80] sm:$0xff] %v708
        %10706 = vst [vmem:[%s387 + $0x88] sm:$0xff] %v709
        %10707 = vst [vmem:[%s387 + $0x90] sm:$0xff] %v710
        %10708 = vst [vmem:[%s387 + $0x98] sm:$0xff] %v711
        %10709 = vst [vmem:[%s387 + $0xa0] sm:$0xff] %v712
        %10710 = vst [vmem:[%s387 + $0xa8] sm:$0xff] %v713
        %10711 = vst [vmem:[%s387 + $0xb0] sm:$0xff] %v714
        %10712 = vst [vmem:[%s387 + $0xb8] sm:$0xff] %v715
        %10713 = vst [vmem:[%s387 + $0xc0] sm:$0xff] %v716
        %10714 = vst [vmem:[%s387 + $0xc8] sm:$0xff] %v717
        %10715 = vst [vmem:[%s387 + $0xd0] sm:$0xff] %v718
        %10716 = vst [vmem:[%s387 + $0xd8] sm:$0xff] %v719
        %10717 = vst [vmem:[%s387 + $0xe0] sm:$0xff] %v720
        %10718 = vst [vmem:[%s387 + $0xe8] sm:$0xff] %v721
        %10719 = vst [vmem:[%s387 + $0xf0] sm:$0xff] %v722
        %10720 = vst [vmem:[%s387 + $0xf8] sm:$0xff] %v723
        %10721 = vst [vmem:[%s387 + $0x100] sm:$0xff] %v10641
        %10722 = vst [vmem:[%s387 + $0x108] sm:$0xff] %v10670
        %10723 = vst [vmem:[%s387 + $0x110] sm:$0xff] %v10643
        %10724 = vst [vmem:[%s387 + $0x118] sm:$0xff] %v10672
        %10725 = vst [vmem:[%s387 + $0x120] sm:$0xff] %v10646
        %10726 = vst [vmem:[%s387 + $0x128] sm:$0xff] %v10675
        %10727 = vst [vmem:[%s387 + $0x130] sm:$0xff] %v10648
        %10728 = vst [vmem:[%s387 + $0x138] sm:$0xff] %v10677
        %10729 = vst [vmem:[%s387 + $0x140] sm:$0xff] %v10651
        %10730 = vst [vmem:[%s387 + $0x148] sm:$0xff] %v10680
        %10731 = vst [vmem:[%s387 + $0x150] sm:$0xff] %v10653
        %10732 = vst [vmem:[%s387 + $0x158] sm:$0xff] %v10682
        %10733 = vst [vmem:[%s387 + $0x160] sm:$0xff] %v10656
        %10734 = vst [vmem:[%s387 + $0x168] sm:$0xff] %v10685
        %10735 = vst [vmem:[%s387 + $0x170] sm:$0xff] %v10658
        %10736 = vst [vmem:[%s387 + $0x178] sm:$0xff] %v10687
        %s10737 = sand.u32 %s207, 1
        %s10738 = scalar_lea.sflag [#allocation6], %s10737
        %s10739 = sand.u32 %s207, 1
        %s10740 = smul.addr %s10739, 384
        %s10741 = scalar_lea.vmem [#allocation12], %s10740
        // Predicated region
        $region69: #{tpu_custom_call.1} parent=47 // pred_check
          %p10742 = pneg %p217
        $region70: #{tpu_custom_call.1} parent=47 // pred_check_branch
          %10744 = sbr.rel (%p10742) target = $region72
        $region71: #{tpu_custom_call.1} parent=47 // pred_region
          %s10745 = smul.u32 2, %s33
          %10747 = vsyncadd %s10738, 0
          %s10748 = smul.addr %s32, 48
          %s10749 = sadd.s32 %s10745, %s10748
          %s10750 = smul.addr %s10749, 8
          %s10751 = scalar_lea.hbm %s7, %s10750
          %s10752 = sshll.u32 %s10741, 4
          %s10753 = int_to_ptr.vmem [resolvable:$true] %s10752
          %s10754 = sshll.u32 %s10751, 4
          %s10755 = int_to_ptr.hbm [resolvable:$true] %s10754
          %10760 = dma.vmem_to_hbm [thread:$0]  %s10753, 6144, %s10755, %s10738, 256, 256, 16
        $region72: #{tpu_custom_call.1} parent=47 // pred_fallthru
          _
      $region48: #{tpu_custom_call.1} parent=5 // pred_fallthru
        _
      %p10761 = scmp.le.s32.totalorder 2, %s23
      // Predicated region
      $region73: #{tpu_custom_call.1} parent=5 // pred_check
        %p10762 = pneg %p10761
      $region74: #{tpu_custom_call.1} parent=5 // pred_check_branch
        %10764 = sbr.rel (%p10762) target = $region76
      $region75: #{tpu_custom_call.1} parent=5 // pred_region
        %s10765 = ssub.s32 %s23, 2
        // Predicated region
        $region77: #{tpu_custom_call.1} parent=75 // pred_check
          %p10766 = pneg %p223
        $region78: #{tpu_custom_call.1} parent=75 // pred_check_branch
          %10768 = sbr.rel (%p10766) target = $region80
        $region79: #{tpu_custom_call.1} parent=75 // pred_region
          %s10769 = sand.u32 %s208, 1
          %s10770 = scalar_lea.sflag [#allocation6], %s10769
          %s10771 = sand.u32 %s208, 1
          %s10772 = smul.addr %s10771, 384
          %s10773 = scalar_lea.vmem [#allocation12], %s10772
          %10775 = dma.done %s10770, 6144
        $region80: #{tpu_custom_call.1} parent=75 // pred_fallthru
          _
      $region76: #{tpu_custom_call.1} parent=5 // pred_fallthru
        _
    $region6: #{tpu_custom_call.1} parent=1 // loop_footer
      %s27 = sadd.s32 1, %s23
    $region7: #{tpu_custom_call.1} parent=1 // loop_footer_branch
      %22 = sbr.rel target = $region3
    $region8: #{tpu_custom_call.1} parent=1 // loop_exit
      _
    %10776 = vsyncpa [#allocation5], 1
    %s10777 = scalar_lea.sflag [#allocation5], 1
    %10778 = vsyncpa %s10777, 1
    %10779 = vsyncpa [#allocation8], 1
    %s10780 = scalar_lea.sflag [#allocation8], 1
    %10781 = vsyncpa %s10780, 1
    %10782 = vsyncpa [#allocation11], 1
    %10783 = vsyncpa [#allocation6], 1
    %s10784 = scalar_lea.sflag [#allocation6], 1
    %10785 = vsyncpa %s10784, 1

</llo_original>
